<compile_context>
chip_gen: v7x
topology: tpu7x:2x2x1
jax: 0.10.0
libtpu: 0.0.40
codegen_flags: <defaults>
</compile_context>

<pallas_src>
import functools

import jax
import jax.numpy as jnp
from jax import lax
from jax.experimental import pallas as pl
from jax.experimental.pallas import tpu as pltpu


_T_BLK = 8        # timesteps processed per grid step
_B_TILE_ENC = 8   # encoder batch rows per grid step (one f32 sublane tile)


# ----------------------------------------------------------------------------
# helpers
# ----------------------------------------------------------------------------
def _round_up(x, m):
    return ((x + m - 1) // m) * m


def _pad_to(x, shape):
    pads = [(0, t - s) for s, t in zip(x.shape, shape)]
    if all(p == (0, 0) for p in pads):
        return x
    return jnp.pad(x, pads)


def _largest_tile(n, candidates):
    for c in candidates:
        if n % c == 0:
            return c
    return n


def _pick_b_tile(bp):
    """LSTM batch tile: as many MXU rows as possible, but keep >=2 blocks on
    the 'parallel' batch axis when the padded batch allows it (v7x: 2 TCs)."""
    cands = [c for c in (128, 64, 32, 16, 8) if bp % c == 0]
    if not cands:
        return bp
    t = cands[0]
    if bp // t < 2 and len(cands) > 1:
        t = cands[1]
    return t


# ----------------------------------------------------------------------------
# Kernel 1: encoder  (global avg-pool  ->  Linear  ->  ReLU), batch tiled
# ----------------------------------------------------------------------------
# TODO(synk): the pretrained EfficientNet-B3 feature extractor has no clean
# self-contained Pallas equivalent; a global-average-pool stand-in feeds the
# (replaced) classifier Linear.  Dropout(0.5) is eval-mode identity.
# TODO(synk): at EfficientNet scale, tile the HW axis with an accumulator (or
# pool via an MXU matmul against ones) instead of holding (B,C,HW) in VMEM and
# doing a lane-axis XLU reduce; at these toy sizes the single-block reduce is fine.
def encoder_forward(images, w_cls, b_cls):
    B, C, H, W = images.shape
    HW = H * W
    Cp, Ep = w_cls.shape                       # already padded in prepare_params
    Bp = _round_up(B, _B_TILE_ENC)
    HWp = _round_up(HW, 128)
    img3 = _pad_to(images.reshape(B, C, HW), (Bp, Cp, HWp))
    inv_hw = 1.0 / HW                          # true divisor (zero padding is safe)

    def kernel(img_ref, w_ref, b_ref, o_ref):
        pooled = jnp.sum(img_ref[...], axis=-1) * inv_hw          # (B_TILE, Cp) f32
        feat = jnp.dot(pooled.astype(w_ref.dtype), w_ref[...],
                       preferred_element_type=jnp.float32) + b_ref[...]
        o_ref[...] = jnp.maximum(feat, 0.0)                       # ReLU

    return pl.pallas_call(
        kernel,
        out_shape=jax.ShapeDtypeStruct((Bp, Ep), jnp.float32),
        grid_spec=pltpu.PrefetchScalarGridSpec(
            num_scalar_prefetch=0,
            grid=(Bp // _B_TILE_ENC,),
            in_specs=[
                pl.BlockSpec((_B_TILE_ENC, Cp, HWp), lambda b: (b, 0, 0)),
                # grid-invariant weights: single-buffered
                pl.BlockSpec((Cp, Ep), lambda b: (0, 0),
                             pipeline_mode=pl.Buffered(1)),
                pl.BlockSpec((1, Ep), lambda b: (0, 0),
                             pipeline_mode=pl.Buffered(1)),
            ],
            out_specs=pl.BlockSpec((_B_TILE_ENC, Ep), lambda b: (b, 0)),
        ),
        compiler_params=pltpu.CompilerParams(
            dimension_semantics=("parallel",)),
    )(img3, w_cls, b_cls)


# ----------------------------------------------------------------------------
# Kernel 2: multi-layer LSTM, time-blocked, layer-major, h/c in VMEM scratch
# ----------------------------------------------------------------------------
def _make_lstm_kernel(n_layers):
    def kernel(emb_ref, *rest):
        w_refs = rest[: 3 * n_layers]
        out_ref = rest[3 * n_layers]
        h_ref, c_ref, xw_ref = rest[3 * n_layers + 1: 3 * n_layers + 4]

        t_blk, b_tile, _ = emb_ref.shape
        hp = out_ref.shape[-1]

        @pl.when(pl.program_id(1) == 0)        # start of each batch tile's sweep
        def _():
            # torch.nn.LSTM with states=None starts from zeros
            h_ref[...] = jnp.zeros_like(h_ref)
            c_ref[...] = jnp.zeros_like(c_ref)

        # Layer-major over the time block.  Each layer's per-step h is staged
        # through the (t_blk, b_tile, Hp) output block (lane-dense stores), so
        # after the last layer out_ref holds the final hiddens for this block.
        x2 = emb_ref[...].reshape(t_blk * b_tile, emb_ref.shape[-1])   # bf16
        for l in range(n_layers):
            w_ih_ref = w_refs[3 * l]
            w_hh_ref = w_refs[3 * l + 1]
            b_ref = w_refs[3 * l + 2]

            # Batched input projection: one (t_blk*b_tile, in) x (in, 4H) MXU
            # matmul covers every timestep in the block (M >= 64 instead of 8).
            xw_ref[...] = jnp.dot(
                x2, w_ih_ref[...], preferred_element_type=jnp.float32
            ).reshape(t_blk, b_tile, 4 * hp)

            def step(t, carry, w_hh_ref=w_hh_ref, b_ref=b_ref):
                h, c = carry                                       # f32 (b_tile, Hp)
                gates = (xw_ref[t]
                         + jnp.dot(h.astype(w_hh_ref.dtype), w_hh_ref[...],
                                   preferred_element_type=jnp.float32)
                         + b_ref[...])                             # (b_tile, 4*Hp)
                # PyTorch gate order: i, f, g, o ; slices are 128-lane aligned
                i_g = jax.nn.sigmoid(gates[:, 0 * hp:1 * hp])
                f_g = jax.nn.sigmoid(gates[:, 1 * hp:2 * hp])
                g_g = jnp.tanh(gates[:, 2 * hp:3 * hp])
                o_g = jax.nn.sigmoid(gates[:, 3 * hp:4 * hp])
                c_new = f_g * c + i_g * g_g
                h_new = o_g * jnp.tanh(c_new)
                out_ref[t] = h_new.astype(out_ref.dtype)           # lane-dense store
                return h_new, c_new

            # NOTE: if bundle dumps show spill ld/st at large H, drop unroll
            # or _T_BLK; per-step live state is now only h/c + one gate tile.
            hT, cT = lax.fori_loop(0, t_blk, step,
                                   (h_ref[l], c_ref[l]), unroll=True)
            h_ref[l] = hT
            c_ref[l] = cT
            if l + 1 < n_layers:
                x2 = out_ref[...].reshape(t_blk * b_tile, hp)      # bf16 input to l+1
    return kernel


def lstm_forward(emb, lstm_params):
    # emb: (T_pad, B_pad, E_pad)  time-major, already padded, bf16
    Tp, Bp, Ep = emb.shape
    n_layers = len(lstm_params)
    Hp = lstm_params[0][1].shape[0]            # w_hh_t is (Hp, 4*Hp)
    b_tile = _pick_b_tile(Bp)

    in_specs = [pl.BlockSpec((_T_BLK, b_tile, Ep), lambda bi, tb: (tb, bi, 0))]
    flat_weights = []
    for (w_ih_t, w_hh_t, bias) in lstm_params:
        for w in (w_ih_t, w_hh_t, bias):
            flat_weights.append(w)
            # grid-invariant (constant index map) weights: single-buffered bf16
            in_specs.append(pl.BlockSpec(w.shape, lambda bi, tb: (0, 0),
                                         pipeline_mode=pl.Buffered(1)))

    kernel = _make_lstm_kernel(n_layers)
    return pl.pallas_call(
        kernel,
        out_shape=jax.ShapeDtypeStruct((Tp, Bp, Hp), jnp.bfloat16),
        grid_spec=pltpu.PrefetchScalarGridSpec(
            num_scalar_prefetch=0,
            grid=(Bp // b_tile, Tp // _T_BLK),
            in_specs=in_specs,
            out_specs=pl.BlockSpec((_T_BLK, b_tile, Hp),
                                   lambda bi, tb: (tb, bi, 0)),
            scratch_shapes=[
                pltpu.VMEM((n_layers, b_tile, Hp), jnp.float32),        # h state
                pltpu.VMEM((n_layers, b_tile, Hp), jnp.float32),        # c state
                pltpu.VMEM((_T_BLK, b_tile, 4 * Hp), jnp.float32),      # x @ W_ih
            ],
        ),
        compiler_params=pltpu.CompilerParams(
            dimension_semantics=("parallel", "arbitrary"),
            # Explicit budget (mandatory posture for v7x's 64 MiB VMEM);
            # bf16 + Buffered(1) keeps 2-layer H=1024 weights resident.
            vmem_limit_bytes=64 * 1024 * 1024),
    )(emb, *flat_weights)


# ----------------------------------------------------------------------------
# Kernel 3: output Linear (hidden -> vocabulary), tiled over rows x vocab
# ----------------------------------------------------------------------------
def linear_forward(hiddens, w_t, b):
    # hiddens: (T_valid, B_pad, H_pad) bf16 -- time padding already stripped so
    # no FLOPs/bandwidth are spent on discarded rows of the dominant matmul.
    T, Bp, Hp = hiddens.shape
    Vp = w_t.shape[1]
    rows = T * Bp
    x2 = hiddens.reshape(rows, Hp)
    if rows <= 2048:
        rows_p = _round_up(rows, 8)
        tm = rows_p
    else:
        rows_p = _round_up(rows, 256)
        tm = _largest_tile(rows_p, (2048, 1024, 512, 256))
    tv = _largest_tile(Vp, (512, 256, 128))
    x2 = _pad_to(x2, (rows_p, Hp))

    def kernel(x_ref, w_ref, b_ref, o_ref):
        o_ref[...] = (jnp.dot(x_ref[...], w_ref[...],
                              preferred_element_type=jnp.float32) + b_ref[...])

    out2 = pl.pallas_call(
        kernel,
        out_shape=jax.ShapeDtypeStruct((rows_p, Vp), jnp.float32),
        grid_spec=pltpu.PrefetchScalarGridSpec(
            num_scalar_prefetch=0,
            grid=(rows_p // tm, Vp // tv),
            in_specs=[
                pl.BlockSpec((tm, Hp), lambda i, j: (i, 0)),
                pl.BlockSpec((Hp, tv), lambda i, j: (0, j)),
                pl.BlockSpec((1, tv), lambda i, j: (0, j)),
            ],
            out_specs=pl.BlockSpec((tm, tv), lambda i, j: (i, j)),
        ),
        compiler_params=pltpu.CompilerParams(
            dimension_semantics=("parallel", "parallel"),
            vmem_limit_bytes=64 * 1024 * 1024),
    )(x2, w_t, b)
    return out2[:rows].reshape(T, Bp, Vp)


# ----------------------------------------------------------------------------
# Full CNNtoRNN forward
# ----------------------------------------------------------------------------
@functools.partial(jax.jit, static_argnames=("vocab_size",))
def cnn_to_rnn_forward(images, captions, params, *, vocab_size):
    B = images.shape[0]
    Tc = captions.shape[0]
    T = Tc + 1

    # EncoderCNN: features = dropout(relu(linear(pool(images))))   (B_pad, E_pad)
    feat = encoder_forward(images, params["enc_w"], params["enc_b"])
    Bp, Ep = feat.shape

    # Decoder_RNN
    # TODO(synk): the embedding gather could be fused into the LSTM kernel via
    # scalar-prefetched caption ids (pl.Element row gather); plain-JAX glue here.
    emb_cap = jnp.take(params["embedding"], captions, axis=0)      # (Tc, B, Ep)
    emb_cap = _pad_to(emb_cap, (Tc, Bp, Ep))
    emb = jnp.concatenate([feat[None], emb_cap], axis=0)           # (T, Bp, Ep)
    emb = _pad_to(emb, (_round_up(T, _T_BLK), Bp, Ep)).astype(jnp.bfloat16)

    hiddens = lstm_forward(emb, params["lstm"])                    # (Tp, Bp, Hp) bf16
    logits = linear_forward(hiddens[:T], params["out_w"], params["out_b"])
    return logits[:, :B, :vocab_size]                              # (T, B, V)


# ----------------------------------------------------------------------------
# Parameters: PyTorch-layout construction + padding/packing for the kernels
# ----------------------------------------------------------------------------
def init_torch_params(key, *, in_channels, embed_size, hidden_size,
                      vocab_size, n_layers):
    keys = jax.random.split(key, 8 + 4 * n_layers)
    ki = iter(range(len(keys)))

    def nrm(k, shape, scale=0.1):
        return (scale * jax.random.normal(keys[k], shape)).astype(jnp.float32)

    params = {
        # stand-in for efficientnet.classifier[1] = Linear(in_feat, embed)
        "enc_w": nrm(next(ki), (embed_size, in_channels)),
        "enc_b": nrm(next(ki), (embed_size,)),
        "embedding": nrm(next(ki), (vocab_size, embed_size), scale=1.0),
        "out_w": nrm(next(ki), (vocab_size, hidden_size)),
        "out_b": nrm(next(ki), (vocab_size,)),
        "lstm": [],
    }
    for l in range(n_layers):
        in_dim = embed_size if l == 0 else hidden_size
        params["lstm"].append({
            "w_ih": nrm(next(ki), (4 * hidden_size, in_dim)),
            "w_hh": nrm(next(ki), (4 * hidden_size, hidden_size)),
            "b_ih": nrm(next(ki), (4 * hidden_size,)),
            "b_hh": nrm(next(ki), (4 * hidden_size,)),
        })
    return params


def prepare_params(tp):
    """Pad/transpose PyTorch-layout params into kernel-friendly layouts.

    Gate blocks are padded per-gate so each H slice lands on a 128-lane
    boundary; all padding is zeros, so results on the valid slice are exact.
    Matmul weights are stored bf16 (MXU-native on v5e/v6e/v7x); biases and
    the embedding table stay f32.
    """
    E, Cin = tp["enc_w"].shape
    V, H = tp["out_w"].shape
    Ep, Hp, Vp = _round_up(E, 128), _round_up(H, 128), _round_up(V, 128)
    Cp = _round_up(Cin, 8)

    def pad_gate_w(w, in_dim, in_pad):
        w4 = w.reshape(4, H, in_dim)
        w4 = jnp.transpose(w4, (2, 0, 1))              # (in, 4, H)
        w4 = _pad_to(w4, (in_pad, 4, Hp))
        return w4.reshape(in_pad, 4 * Hp).astype(jnp.bfloat16)

    def pad_gate_b(b):
        b4 = _pad_to(b.reshape(4, H), (4, Hp))
        return b4.reshape(1, 4 * Hp)                   # f32

    lstm = []
    for l, layer in enumerate(tp["lstm"]):
        in_dim = E if l == 0 else H
        in_pad = Ep if l == 0 else Hp
        lstm.append((
            pad_gate_w(layer["w_ih"], in_dim, in_pad),
            pad_gate_w(layer["w_hh"], H, Hp),
            pad_gate_b(layer["b_ih"] + layer["b_hh"]),   # pre-combined bias
        ))

    return {
        "enc_w": _pad_to(tp["enc_w"].T, (Cp, Ep)).astype(jnp.bfloat16),
        "enc_b": _pad_to(tp["enc_b"].reshape(1, E), (1, Ep)),
        "embedding": _pad_to(tp["embedding"], (V, Ep)),
        "lstm": lstm,
        "out_w": _pad_to(tp["out_w"].T, (Hp, Vp)).astype(jnp.bfloat16),
        "out_b": _pad_to(tp["out_b"].reshape(1, V), (1, Vp)),
    }


# ----------------------------------------------------------------------------
# Pure-JAX reference (unpadded, f32 HIGHEST) for correctness checking
# ----------------------------------------------------------------------------
def reference_forward(images, captions, tp):
    hi = lax.Precision.HIGHEST
    B, C, H, W = images.shape
    pooled = images.reshape(B, C, H * W).mean(axis=-1)
    feat = jax.nn.relu(jnp.dot(pooled, tp["enc_w"].T, precision=hi)
                       + tp["enc_b"])
    emb = jnp.take(tp["embedding"], captions, axis=0)
    x = jnp.concatenate([feat[None], emb], axis=0)
    for layer in tp["lstm"]:
        w_ih, w_hh = layer["w_ih"], layer["w_hh"]
        b = layer["b_ih"] + layer["b_hh"]
        Hs = w_hh.shape[1]

        def step(carry, xt, w_ih=w_ih, w_hh=w_hh, b=b):
            h, c = carry
            g = (jnp.dot(xt, w_ih.T, precision=hi)
                 + jnp.dot(h, w_hh.T, precision=hi) + b)
            i_g, f_g, g_g, o_g = jnp.split(g, 4, axis=-1)
            c = jax.nn.sigmoid(f_g) * c + jax.nn.sigmoid(i_g) * jnp.tanh(g_g)
            h = jax.nn.sigmoid(o_g) * jnp.tanh(c)
            return (h, c), h

        h0 = jnp.zeros((x.shape[1], Hs), jnp.float32)
        (_, _), x = lax.scan(step, (h0, jnp.zeros_like(h0)), x)
    return jnp.dot(x, tp["out_w"].T, precision=hi) + tp["out_b"]


if __name__ == "__main__":
    # small shapes consistent with the module
    B = 2                  # batch
    C, HI, WI = 4, 16, 16  # image channels / spatial
    EMBED = 32
    HIDDEN = 32
    VOCAB = 64
    N_LAYERS = 2
    SEQ = 8                # caption length

    key = jax.random.PRNGKey(0)
    k_img, k_cap = jax.random.split(key)
    images = jax.random.normal(k_img, (B, C, HI, WI), dtype=jnp.float32)
    captions = jax.random.randint(k_cap, (SEQ, B), 0, VOCAB, dtype=jnp.int32)

    torch_params = init_torch_params(
        jax.random.PRNGKey(42), in_channels=C, embed_size=EMBED,
        hidden_size=HIDDEN, vocab_size=VOCAB, n_layers=N_LAYERS)
    params = prepare_params(torch_params)

    out = cnn_to_rnn_forward(images, captions, params, vocab_size=VOCAB)
    out = jax.block_until_ready(out)

    assert out.shape == (SEQ + 1, B, VOCAB), out.shape
    assert out.dtype == jnp.float32
    assert bool(jnp.all(jnp.isfinite(out)))

    ref = jax.block_until_ready(reference_forward(images, captions, torch_params))
    # Tolerance re-derived for bf16 matmul operands vs. f32 HIGHEST reference:
    # gate pre-activation rounding error <~1e-2 (32-term dots, 2^-9 relative),
    # damped by sigmoid/tanh through the recurrence; final linear contributes
    # <~1e-2 more at |out|~0.3, so 3e-2 bounds the worst case at these sizes.
    assert jnp.allclose(out, ref, rtol=3e-2, atol=3e-2), (
        float(jnp.max(jnp.abs(out - ref))))

    print("KERNEL_OK")
</pallas_src>

<mosaic_0001>
module attributes {stable_mosaic.version = 11 : i64} {
  func.func @kernel(%arg0: i32, %arg1: memref<8x8x256xf32, #tpu.memory_space<vmem>>, %arg2: memref<8x128xbf16, #tpu.memory_space<vmem>>, %arg3: memref<1x128xf32, #tpu.memory_space<vmem>>, %arg4: memref<8x128xf32, #tpu.memory_space<vmem>>) attributes {dimension_semantics = [#tpu.dimension_semantics<parallel>], iteration_bounds = array<i64: 1>, scalar_prefetch = 0 : i64, scratch_operands = 0 : i64, tpu.core_type = #tpu.core_type<tc>, window_params = [{transform_indices = @transform_0, window_bounds = array<i64: 8, 8, 256>}, {pipeline_mode = #tpu.pipeline_mode<synchronous>, transform_indices = @transform_1, window_bounds = array<i64: 8, 128>}, {pipeline_mode = #tpu.pipeline_mode<synchronous>, transform_indices = @transform_2, window_bounds = array<i64: 1, 128>}, {transform_indices = @transform_3, window_bounds = array<i64: 8, 128>}]} {
    %c0 = arith.constant 0 : index
    %c0_0 = arith.constant 0 : index
    %c0_1 = arith.constant 0 : index
    %0 = vector.load %arg1[%c0, %c0_0, %c0_1] : memref<8x8x256xf32, #tpu.memory_space<vmem>>, vector<8x8x256xf32>
    %cst = arith.constant dense<0.000000e+00> : vector<8x8xf32>
    %1 = vector.multi_reduction <add>, %0, %cst [2] : vector<8x8x256xf32> to vector<8x8xf32>
    %cst_2 = arith.constant 3.906250e-03 : f32
    %2 = vector.broadcast %cst_2 : f32 to vector<8x8xf32>
    %3 = arith.mulf %1, %2 : vector<8x8xf32>
    %4 = arith.truncf %3 : vector<8x8xf32> to vector<8x8xbf16>
    %c0_3 = arith.constant 0 : index
    %c0_4 = arith.constant 0 : index
    %5 = vector.load %arg2[%c0_3, %c0_4] : memref<8x128xbf16, #tpu.memory_space<vmem>>, vector<8x128xbf16>
    %cst_5 = arith.constant dense<0.000000e+00> : vector<8x128xf32>
    %6 = tpu.matmul %4, %5, %cst_5 {dimension_numbers = #tpu.dot_dimension_numbers<[1], [0], [0], [1], [0, 0, 1, 1], [], []>} : vector<8x8xbf16>, vector<8x128xbf16>, vector<8x128xf32> -> vector<8x128xf32>
    %c0_6 = arith.constant 0 : index
    %c0_7 = arith.constant 0 : index
    %7 = vector.load %arg3[%c0_6, %c0_7] : memref<1x128xf32, #tpu.memory_space<vmem>>, vector<1x128xf32>
    %8 = vector.broadcast %7 : vector<1x128xf32> to vector<8x128xf32>
    %9 = arith.addf %6, %8 : vector<8x128xf32>
    %cst_8 = arith.constant 0.000000e+00 : f32
    %10 = vector.broadcast %cst_8 : f32 to vector<8x128xf32>
    %11 = arith.maximumf %9, %10 : vector<8x128xf32>
    %c0_9 = arith.constant 0 : index
    %c0_10 = arith.constant 0 : index
    %12 = vector.load %arg4[%c0_9, %c0_10] : memref<8x128xf32, #tpu.memory_space<vmem>>, vector<8x128xf32>
    tpu.vector_store %arg4[%c0_9, %c0_10], %11 {strides = array<i32>} : memref<8x128xf32, #tpu.memory_space<vmem>>, vector<8x128xf32>,
    return
  }
  func.func @transform_0(%arg0: i32) -> (i32, i32, i32) {
    %c0_i32 = arith.constant 0 : i32
    %c0_i32_0 = arith.constant 0 : i32
    %c0_i32_1 = arith.constant 0 : i32
    return %arg0, %c0_i32, %c0_i32_0 : i32, i32, i32
  }
  func.func @transform_1(%arg0: i32) -> (i32, i32) {
    %c0_i32 = arith.constant 0 : i32
    %c0_i32_0 = arith.constant 0 : i32
    %c0_i32_1 = arith.constant 0 : i32
    return %c0_i32, %c0_i32_0 : i32, i32
  }
  func.func @transform_2(%arg0: i32) -> (i32, i32) {
    %c0_i32 = arith.constant 0 : i32
    %c0_i32_0 = arith.constant 0 : i32
    %c0_i32_1 = arith.constant 0 : i32
    return %c0_i32, %c0_i32_0 : i32, i32
  }
  func.func @transform_3(%arg0: i32) -> (i32, i32) {
    %c0_i32 = arith.constant 0 : i32
    %c0_i32_0 = arith.constant 0 : i32
    return %arg0, %c0_i32 : i32, i32
  }
}

module attributes {stable_mosaic.version = 11 : i64} {
  func.func @kernel(%arg0: i32, %arg1: i32, %arg2: memref<72x128xbf16, #tpu.memory_space<vmem>>, %arg3: memref<128x128xbf16, #tpu.memory_space<vmem>>, %arg4: memref<1x128xf32, #tpu.memory_space<vmem>>, %arg5: memref<72x128xf32, #tpu.memory_space<vmem>>) attributes {dimension_semantics = [#tpu.dimension_semantics<parallel>, #tpu.dimension_semantics<parallel>], iteration_bounds = array<i64: 1, 1>, scalar_prefetch = 0 : i64, scratch_operands = 0 : i64, tpu.core_type = #tpu.core_type<tc>, window_params = [{transform_indices = @transform_0, window_bounds = array<i64: 72, 128>}, {transform_indices = @transform_1, window_bounds = array<i64: 128, 128>}, {transform_indices = @transform_2, window_bounds = array<i64: 1, 128>}, {transform_indices = @transform_3, window_bounds = array<i64: 72, 128>}]} {
    %c0 = arith.constant 0 : index
    %c0_0 = arith.constant 0 : index
    %0 = vector.load %arg2[%c0, %c0_0] : memref<72x128xbf16, #tpu.memory_space<vmem>>, vector<72x128xbf16>
    %c0_1 = arith.constant 0 : index
    %c0_2 = arith.constant 0 : index
    %1 = vector.load %arg3[%c0_1, %c0_2] : memref<128x128xbf16, #tpu.memory_space<vmem>>, vector<128x128xbf16>
    %cst = arith.constant dense<0.000000e+00> : vector<72x128xf32>
    %2 = tpu.matmul %0, %1, %cst {dimension_numbers = #tpu.dot_dimension_numbers<[1], [0], [0], [1], [0, 0, 1, 1], [], []>} : vector<72x128xbf16>, vector<128x128xbf16>, vector<72x128xf32> -> vector<72x128xf32>
    %c0_3 = arith.constant 0 : index
    %c0_4 = arith.constant 0 : index
    %3 = vector.load %arg4[%c0_3, %c0_4] : memref<1x128xf32, #tpu.memory_space<vmem>>, vector<1x128xf32>
    %4 = vector.broadcast %3 : vector<1x128xf32> to vector<72x128xf32>
    %5 = arith.addf %2, %4 : vector<72x128xf32>
    %c0_5 = arith.constant 0 : index
    %c0_6 = arith.constant 0 : index
    %6 = vector.load %arg5[%c0_5, %c0_6] : memref<72x128xf32, #tpu.memory_space<vmem>>, vector<72x128xf32>
    tpu.vector_store %arg5[%c0_5, %c0_6], %5 {strides = array<i32>} : memref<72x128xf32, #tpu.memory_space<vmem>>, vector<72x128xf32>,
    return
  }
  func.func @transform_0(%arg0: i32, %arg1: i32) -> (i32, i32) {
    %c0_i32 = arith.constant 0 : i32
    %c0_i32_0 = arith.constant 0 : i32
    return %arg0, %c0_i32 : i32, i32
  }
  func.func @transform_1(%arg0: i32, %arg1: i32) -> (i32, i32) {
    %c0_i32 = arith.constant 0 : i32
    %c0_i32_0 = arith.constant 0 : i32
    return %c0_i32, %arg1 : i32, i32
  }
  func.func @transform_2(%arg0: i32, %arg1: i32) -> (i32, i32) {
    %c0_i32 = arith.constant 0 : i32
    %c0_i32_0 = arith.constant 0 : i32
    return %c0_i32, %arg1 : i32, i32
  }
  func.func @transform_3(%arg0: i32, %arg1: i32) -> (i32, i32) {
    %c0_i32 = arith.constant 0 : i32
    return %arg0, %arg1 : i32, i32
  }
}

module attributes {stable_mosaic.version = 11 : i64} {
  func.func @kernel(%arg0: i32, %arg1: i32, %arg2: memref<8x8x128xbf16, #tpu.memory_space<vmem>>, %arg3: memref<128x512xbf16, #tpu.memory_space<vmem>>, %arg4: memref<128x512xbf16, #tpu.memory_space<vmem>>, %arg5: memref<1x512xf32, #tpu.memory_space<vmem>>, %arg6: memref<128x512xbf16, #tpu.memory_space<vmem>>, %arg7: memref<128x512xbf16, #tpu.memory_space<vmem>>, %arg8: memref<1x512xf32, #tpu.memory_space<vmem>>, %arg9: memref<8x8x128xbf16, #tpu.memory_space<vmem>>, %arg10: memref<2x8x128xf32, #tpu.memory_space<vmem>>, %arg11: memref<2x8x128xf32, #tpu.memory_space<vmem>>, %arg12: memref<8x8x512xf32, #tpu.memory_space<vmem>>) attributes {dimension_semantics = [#tpu.dimension_semantics<parallel>, #tpu.dimension_semantics<arbitrary>], iteration_bounds = array<i64: 1, 2>, scalar_prefetch = 0 : i64, scratch_operands = 3 : i64, tpu.core_type = #tpu.core_type<tc>, window_params = [{transform_indices = @transform_0, window_bounds = array<i64: 8, 8, 128>}, {pipeline_mode = #tpu.pipeline_mode<synchronous>, transform_indices = @transform_1, window_bounds = array<i64: 128, 512>}, {pipeline_mode = #tpu.pipeline_mode<synchronous>, transform_indices = @transform_2, window_bounds = array<i64: 128, 512>}, {pipeline_mode = #tpu.pipeline_mode<synchronous>, transform_indices = @transform_3, window_bounds = array<i64: 1, 512>}, {pipeline_mode = #tpu.pipeline_mode<synchronous>, transform_indices = @transform_4, window_bounds = array<i64: 128, 512>}, {pipeline_mode = #tpu.pipeline_mode<synchronous>, transform_indices = @transform_5, window_bounds = array<i64: 128, 512>}, {pipeline_mode = #tpu.pipeline_mode<synchronous>, transform_indices = @transform_6, window_bounds = array<i64: 1, 512>}, {transform_indices = @transform_7, window_bounds = array<i64: 8, 8, 128>}]} {
    %c0_i32 = arith.constant 0 : i32
    %0 = arith.cmpi eq, %arg1, %c0_i32 : i32
    %1 = arith.extui %0 : i1 to i32
    %c0_i32_0 = arith.constant 0 : i32
    %2 = arith.cmpi ne, %1, %c0_i32_0 : i32
    scf.if %2 {
      %cst_242 = arith.constant 0.000000e+00 : f32
      %675 = vector.broadcast %cst_242 : f32 to vector<2x8x128xf32>
      %c0_243 = arith.constant 0 : index
      %c0_244 = arith.constant 0 : index
      %c0_245 = arith.constant 0 : index
      %676 = vector.load %arg10[%c0_243, %c0_244, %c0_245] : memref<2x8x128xf32, #tpu.memory_space<vmem>>, vector<2x8x128xf32>
      tpu.vector_store %arg10[%c0_243, %c0_244, %c0_245], %675 {strides = array<i32>} : memref<2x8x128xf32, #tpu.memory_space<vmem>>, vector<2x8x128xf32>,
      %cst_246 = arith.constant 0.000000e+00 : f32
      %677 = vector.broadcast %cst_246 : f32 to vector<2x8x128xf32>
      %c0_247 = arith.constant 0 : index
      %c0_248 = arith.constant 0 : index
      %c0_249 = arith.constant 0 : index
      %678 = vector.load %arg11[%c0_247, %c0_248, %c0_249] : memref<2x8x128xf32, #tpu.memory_space<vmem>>, vector<2x8x128xf32>
      tpu.vector_store %arg11[%c0_247, %c0_248, %c0_249], %677 {strides = array<i32>} : memref<2x8x128xf32, #tpu.memory_space<vmem>>, vector<2x8x128xf32>,
    } else {
    }
    %c0 = arith.constant 0 : index
    %c0_1 = arith.constant 0 : index
    %c0_2 = arith.constant 0 : index
    %3 = vector.load %arg2[%c0, %c0_1, %c0_2] : memref<8x8x128xbf16, #tpu.memory_space<vmem>>, vector<8x8x128xbf16>
    %4 = vector.shape_cast %3 : vector<8x8x128xbf16> to vector<64x128xbf16>
    %c0_3 = arith.constant 0 : index
    %c0_4 = arith.constant 0 : index
    %5 = vector.load %arg3[%c0_3, %c0_4] : memref<128x512xbf16, #tpu.memory_space<vmem>>, vector<128x512xbf16>
    %cst = arith.constant dense<0.000000e+00> : vector<64x512xf32>
    %6 = tpu.matmul %4, %5, %cst {dimension_numbers = #tpu.dot_dimension_numbers<[1], [0], [0], [1], [0, 0, 1, 1], [], []>} : vector<64x128xbf16>, vector<128x512xbf16>, vector<64x512xf32> -> vector<64x512xf32>
    %7 = vector.shape_cast %6 : vector<64x512xf32> to vector<8x8x512xf32>
    %c0_5 = arith.constant 0 : index
    %c0_6 = arith.constant 0 : index
    %c0_7 = arith.constant 0 : index
    %8 = vector.load %arg12[%c0_5, %c0_6, %c0_7] : memref<8x8x512xf32, #tpu.memory_space<vmem>>, vector<8x8x512xf32>
    tpu.vector_store %arg12[%c0_5, %c0_6, %c0_7], %7 {strides = array<i32>} : memref<8x8x512xf32, #tpu.memory_space<vmem>>, vector<8x8x512xf32>,
    %c0_8 = arith.constant 0 : index
    %c0_9 = arith.constant 0 : index
    %c0_10 = arith.constant 0 : index
    %9 = vector.load %arg10[%c0_8, %c0_9, %c0_10] : memref<2x8x128xf32, #tpu.memory_space<vmem>>, vector<1x8x128xf32>
    %10 = vector.shape_cast %9 : vector<1x8x128xf32> to vector<8x128xf32>
    %c0_11 = arith.constant 0 : index
    %c0_12 = arith.constant 0 : index
    %c0_13 = arith.constant 0 : index
    %11 = vector.load %arg11[%c0_11, %c0_12, %c0_13] : memref<2x8x128xf32, #tpu.memory_space<vmem>>, vector<1x8x128xf32>
    %12 = vector.shape_cast %11 : vector<1x8x128xf32> to vector<8x128xf32>
    %c0_i32_14 = arith.constant 0 : i32
    %13 = arith.index_cast %c0_i32_14 : i32 to index
    %c0_15 = arith.constant 0 : index
    %c0_16 = arith.constant 0 : index
    %14 = vector.load %arg12[%13, %c0_15, %c0_16] : memref<8x8x512xf32, #tpu.memory_space<vmem>>, vector<1x8x512xf32>
    %15 = vector.shape_cast %14 : vector<1x8x512xf32> to vector<8x512xf32>
    %16 = arith.truncf %10 : vector<8x128xf32> to vector<8x128xbf16>
    %c0_17 = arith.constant 0 : index
    %c0_18 = arith.constant 0 : index
    %17 = vector.load %arg4[%c0_17, %c0_18] : memref<128x512xbf16, #tpu.memory_space<vmem>>, vector<128x512xbf16>
    %cst_19 = arith.constant dense<0.000000e+00> : vector<8x512xf32>
    %18 = tpu.matmul %16, %17, %cst_19 {dimension_numbers = #tpu.dot_dimension_numbers<[1], [0], [0], [1], [0, 0, 1, 1], [], []>} : vector<8x128xbf16>, vector<128x512xbf16>, vector<8x512xf32> -> vector<8x512xf32>
    %19 = arith.addf %15, %18 : vector<8x512xf32>
    %c0_20 = arith.constant 0 : index
    %c0_21 = arith.constant 0 : index
    %20 = vector.load %arg5[%c0_20, %c0_21] : memref<1x512xf32, #tpu.memory_space<vmem>>, vector<1x512xf32>
    %21 = vector.broadcast %20 : vector<1x512xf32> to vector<8x512xf32>
    %22 = arith.addf %19, %21 : vector<8x512xf32>
    %23 = vector.extract_strided_slice %22 {offsets = [0, 0], sizes = [8, 128], strides = [1, 1]} : vector<8x512xf32> to vector<8x128xf32>
    %24 = arith.negf %23 : vector<8x128xf32>
    %25 = math.exp %24 : vector<8x128xf32>
    %cst_22 = arith.constant 1.000000e+00 : f32
    %26 = vector.broadcast %cst_22 : f32 to vector<8x128xf32>
    %27 = arith.addf %26, %25 : vector<8x128xf32>
    %28 = arith.divf %26, %27 : vector<8x128xf32>
    %29 = vector.extract_strided_slice %22 {offsets = [0, 128], sizes = [8, 128], strides = [1, 1]} : vector<8x512xf32> to vector<8x128xf32>
    %30 = arith.negf %29 : vector<8x128xf32>
    %31 = math.exp %30 : vector<8x128xf32>
    %cst_23 = arith.constant 1.000000e+00 : f32
    %32 = vector.broadcast %cst_23 : f32 to vector<8x128xf32>
    %33 = arith.addf %32, %31 : vector<8x128xf32>
    %34 = arith.divf %32, %33 : vector<8x128xf32>
    %35 = vector.extract_strided_slice %22 {offsets = [0, 256], sizes = [8, 128], strides = [1, 1]} : vector<8x512xf32> to vector<8x128xf32>
    %36 = math.tanh %35 : vector<8x128xf32>
    %37 = vector.extract_strided_slice %22 {offsets = [0, 384], sizes = [8, 128], strides = [1, 1]} : vector<8x512xf32> to vector<8x128xf32>
    %38 = arith.negf %37 : vector<8x128xf32>
    %39 = math.exp %38 : vector<8x128xf32>
    %cst_24 = arith.constant 1.000000e+00 : f32
    %40 = vector.broadcast %cst_24 : f32 to vector<8x128xf32>
    %41 = arith.addf %40, %39 : vector<8x128xf32>
    %42 = arith.divf %40, %41 : vector<8x128xf32>
    %43 = arith.mulf %34, %12 : vector<8x128xf32>
    %44 = arith.mulf %28, %36 : vector<8x128xf32>
    %45 = arith.addf %43, %44 : vector<8x128xf32>
    %46 = math.tanh %45 : vector<8x128xf32>
    %47 = arith.mulf %42, %46 : vector<8x128xf32>
    %48 = arith.truncf %47 : vector<8x128xf32> to vector<8x128xbf16>
    %49 = arith.index_cast %c0_i32_14 : i32 to index
    %c0_25 = arith.constant 0 : index
    %c0_26 = arith.constant 0 : index
    %50 = vector.load %arg9[%49, %c0_25, %c0_26] : memref<8x8x128xbf16, #tpu.memory_space<vmem>>, vector<1x8x128xbf16>
    %51 = vector.shape_cast %50 : vector<1x8x128xbf16> to vector<8x128xbf16>
    %52 = vector.shape_cast %48 : vector<8x128xbf16> to vector<1x8x128xbf16>
    tpu.vector_store %arg9[%49, %c0_25, %c0_26], %52 {strides = array<i32>} : memref<8x8x128xbf16, #tpu.memory_space<vmem>>, vector<1x8x128xbf16>,
    %c1_i32 = arith.constant 1 : i32
    %53 = arith.index_cast %c1_i32 : i32 to index
    %c0_27 = arith.constant 0 : index
    %c0_28 = arith.constant 0 : index
    %54 = vector.load %arg12[%53, %c0_27, %c0_28] : memref<8x8x512xf32, #tpu.memory_space<vmem>>, vector<1x8x512xf32>
    %55 = vector.shape_cast %54 : vector<1x8x512xf32> to vector<8x512xf32>
    %56 = arith.truncf %47 : vector<8x128xf32> to vector<8x128xbf16>
    %c0_29 = arith.constant 0 : index
    %c0_30 = arith.constant 0 : index
    %57 = vector.load %arg4[%c0_29, %c0_30] : memref<128x512xbf16, #tpu.memory_space<vmem>>, vector<128x512xbf16>
    %cst_31 = arith.constant dense<0.000000e+00> : vector<8x512xf32>
    %58 = tpu.matmul %56, %57, %cst_31 {dimension_numbers = #tpu.dot_dimension_numbers<[1], [0], [0], [1], [0, 0, 1, 1], [], []>} : vector<8x128xbf16>, vector<128x512xbf16>, vector<8x512xf32> -> vector<8x512xf32>
    %59 = arith.addf %55, %58 : vector<8x512xf32>
    %c0_32 = arith.constant 0 : index
    %c0_33 = arith.constant 0 : index
    %60 = vector.load %arg5[%c0_32, %c0_33] : memref<1x512xf32, #tpu.memory_space<vmem>>, vector<1x512xf32>
    %61 = vector.broadcast %60 : vector<1x512xf32> to vector<8x512xf32>
    %62 = arith.addf %59, %61 : vector<8x512xf32>
    %63 = vector.extract_strided_slice %62 {offsets = [0, 0], sizes = [8, 128], strides = [1, 1]} : vector<8x512xf32> to vector<8x128xf32>
    %64 = arith.negf %63 : vector<8x128xf32>
    %65 = math.exp %64 : vector<8x128xf32>
    %cst_34 = arith.constant 1.000000e+00 : f32
    %66 = vector.broadcast %cst_34 : f32 to vector<8x128xf32>
    %67 = arith.addf %66, %65 : vector<8x128xf32>
    %68 = arith.divf %66, %67 : vector<8x128xf32>
    %69 = vector.extract_strided_slice %62 {offsets = [0, 128], sizes = [8, 128], strides = [1, 1]} : vector<8x512xf32> to vector<8x128xf32>
    %70 = arith.negf %69 : vector<8x128xf32>
    %71 = math.exp %70 : vector<8x128xf32>
    %cst_35 = arith.constant 1.000000e+00 : f32
    %72 = vector.broadcast %cst_35 : f32 to vector<8x128xf32>
    %73 = arith.addf %72, %71 : vector<8x128xf32>
    %74 = arith.divf %72, %73 : vector<8x128xf32>
    %75 = vector.extract_strided_slice %62 {offsets = [0, 256], sizes = [8, 128], strides = [1, 1]} : vector<8x512xf32> to vector<8x128xf32>
    %76 = math.tanh %75 : vector<8x128xf32>
    %77 = vector.extract_strided_slice %62 {offsets = [0, 384], sizes = [8, 128], strides = [1, 1]} : vector<8x512xf32> to vector<8x128xf32>
    %78 = arith.negf %77 : vector<8x128xf32>
    %79 = math.exp %78 : vector<8x128xf32>
    %cst_36 = arith.constant 1.000000e+00 : f32
    %80 = vector.broadcast %cst_36 : f32 to vector<8x128xf32>
    %81 = arith.addf %80, %79 : vector<8x128xf32>
    %82 = arith.divf %80, %81 : vector<8x128xf32>
    %83 = arith.mulf %74, %45 : vector<8x128xf32>
    %84 = arith.mulf %68, %76 : vector<8x128xf32>
    %85 = arith.addf %83, %84 : vector<8x128xf32>
    %86 = math.tanh %85 : vector<8x128xf32>
    %87 = arith.mulf %82, %86 : vector<8x128xf32>
    %88 = arith.truncf %87 : vector<8x128xf32> to vector<8x128xbf16>
    %89 = arith.index_cast %c1_i32 : i32 to index
    %c0_37 = arith.constant 0 : index
    %c0_38 = arith.constant 0 : index
    %90 = vector.load %arg9[%89, %c0_37, %c0_38] : memref<8x8x128xbf16, #tpu.memory_space<vmem>>, vector<1x8x128xbf16>
    %91 = vector.shape_cast %90 : vector<1x8x128xbf16> to vector<8x128xbf16>
    %92 = vector.shape_cast %88 : vector<8x128xbf16> to vector<1x8x128xbf16>
    tpu.vector_store %arg9[%89, %c0_37, %c0_38], %92 {strides = array<i32>} : memref<8x8x128xbf16, #tpu.memory_space<vmem>>, vector<1x8x128xbf16>,
    %c2_i32 = arith.constant 2 : i32
    %93 = arith.index_cast %c2_i32 : i32 to index
    %c0_39 = arith.constant 0 : index
    %c0_40 = arith.constant 0 : index
    %94 = vector.load %arg12[%93, %c0_39, %c0_40] : memref<8x8x512xf32, #tpu.memory_space<vmem>>, vector<1x8x512xf32>
    %95 = vector.shape_cast %94 : vector<1x8x512xf32> to vector<8x512xf32>
    %96 = arith.truncf %87 : vector<8x128xf32> to vector<8x128xbf16>
    %c0_41 = arith.constant 0 : index
    %c0_42 = arith.constant 0 : index
    %97 = vector.load %arg4[%c0_41, %c0_42] : memref<128x512xbf16, #tpu.memory_space<vmem>>, vector<128x512xbf16>
    %cst_43 = arith.constant dense<0.000000e+00> : vector<8x512xf32>
    %98 = tpu.matmul %96, %97, %cst_43 {dimension_numbers = #tpu.dot_dimension_numbers<[1], [0], [0], [1], [0, 0, 1, 1], [], []>} : vector<8x128xbf16>, vector<128x512xbf16>, vector<8x512xf32> -> vector<8x512xf32>
    %99 = arith.addf %95, %98 : vector<8x512xf32>
    %c0_44 = arith.constant 0 : index
    %c0_45 = arith.constant 0 : index
    %100 = vector.load %arg5[%c0_44, %c0_45] : memref<1x512xf32, #tpu.memory_space<vmem>>, vector<1x512xf32>
    %101 = vector.broadcast %100 : vector<1x512xf32> to vector<8x512xf32>
    %102 = arith.addf %99, %101 : vector<8x512xf32>
    %103 = vector.extract_strided_slice %102 {offsets = [0, 0], sizes = [8, 128], strides = [1, 1]} : vector<8x512xf32> to vector<8x128xf32>
    %104 = arith.negf %103 : vector<8x128xf32>
    %105 = math.exp %104 : vector<8x128xf32>
    %cst_46 = arith.constant 1.000000e+00 : f32
    %106 = vector.broadcast %cst_46 : f32 to vector<8x128xf32>
    %107 = arith.addf %106, %105 : vector<8x128xf32>
    %108 = arith.divf %106, %107 : vector<8x128xf32>
    %109 = vector.extract_strided_slice %102 {offsets = [0, 128], sizes = [8, 128], strides = [1, 1]} : vector<8x512xf32> to vector<8x128xf32>
    %110 = arith.negf %109 : vector<8x128xf32>
    %111 = math.exp %110 : vector<8x128xf32>
    %cst_47 = arith.constant 1.000000e+00 : f32
    %112 = vector.broadcast %cst_47 : f32 to vector<8x128xf32>
    %113 = arith.addf %112, %111 : vector<8x128xf32>
    %114 = arith.divf %112, %113 : vector<8x128xf32>
    %115 = vector.extract_strided_slice %102 {offsets = [0, 256], sizes = [8, 128], strides = [1, 1]} : vector<8x512xf32> to vector<8x128xf32>
    %116 = math.tanh %115 : vector<8x128xf32>
    %117 = vector.extract_strided_slice %102 {offsets = [0, 384], sizes = [8, 128], strides = [1, 1]} : vector<8x512xf32> to vector<8x128xf32>
    %118 = arith.negf %117 : vector<8x128xf32>
    %119 = math.exp %118 : vector<8x128xf32>
    %cst_48 = arith.constant 1.000000e+00 : f32
    %120 = vector.broadcast %cst_48 : f32 to vector<8x128xf32>
    %121 = arith.addf %120, %119 : vector<8x128xf32>
    %122 = arith.divf %120, %121 : vector<8x128xf32>
    %123 = arith.mulf %114, %85 : vector<8x128xf32>
    %124 = arith.mulf %108, %116 : vector<8x128xf32>
    %125 = arith.addf %123, %124 : vector<8x128xf32>
    %126 = math.tanh %125 : vector<8x128xf32>
    %127 = arith.mulf %122, %126 : vector<8x128xf32>
    %128 = arith.truncf %127 : vector<8x128xf32> to vector<8x128xbf16>
    %129 = arith.index_cast %c2_i32 : i32 to index
    %c0_49 = arith.constant 0 : index
    %c0_50 = arith.constant 0 : index
    %130 = vector.load %arg9[%129, %c0_49, %c0_50] : memref<8x8x128xbf16, #tpu.memory_space<vmem>>, vector<1x8x128xbf16>
    %131 = vector.shape_cast %130 : vector<1x8x128xbf16> to vector<8x128xbf16>
    %132 = vector.shape_cast %128 : vector<8x128xbf16> to vector<1x8x128xbf16>
    tpu.vector_store %arg9[%129, %c0_49, %c0_50], %132 {strides = array<i32>} : memref<8x8x128xbf16, #tpu.memory_space<vmem>>, vector<1x8x128xbf16>,
    %c3_i32 = arith.constant 3 : i32
    %133 = arith.index_cast %c3_i32 : i32 to index
    %c0_51 = arith.constant 0 : index
    %c0_52 = arith.constant 0 : index
    %134 = vector.load %arg12[%133, %c0_51, %c0_52] : memref<8x8x512xf32, #tpu.memory_space<vmem>>, vector<1x8x512xf32>
    %135 = vector.shape_cast %134 : vector<1x8x512xf32> to vector<8x512xf32>
    %136 = arith.truncf %127 : vector<8x128xf32> to vector<8x128xbf16>
    %c0_53 = arith.constant 0 : index
    %c0_54 = arith.constant 0 : index
    %137 = vector.load %arg4[%c0_53, %c0_54] : memref<128x512xbf16, #tpu.memory_space<vmem>>, vector<128x512xbf16>
    %cst_55 = arith.constant dense<0.000000e+00> : vector<8x512xf32>
    %138 = tpu.matmul %136, %137, %cst_55 {dimension_numbers = #tpu.dot_dimension_numbers<[1], [0], [0], [1], [0, 0, 1, 1], [], []>} : vector<8x128xbf16>, vector<128x512xbf16>, vector<8x512xf32> -> vector<8x512xf32>
    %139 = arith.addf %135, %138 : vector<8x512xf32>
    %c0_56 = arith.constant 0 : index
    %c0_57 = arith.constant 0 : index
    %140 = vector.load %arg5[%c0_56, %c0_57] : memref<1x512xf32, #tpu.memory_space<vmem>>, vector<1x512xf32>
    %141 = vector.broadcast %140 : vector<1x512xf32> to vector<8x512xf32>
    %142 = arith.addf %139, %141 : vector<8x512xf32>
    %143 = vector.extract_strided_slice %142 {offsets = [0, 0], sizes = [8, 128], strides = [1, 1]} : vector<8x512xf32> to vector<8x128xf32>
    %144 = arith.negf %143 : vector<8x128xf32>
    %145 = math.exp %144 : vector<8x128xf32>
    %cst_58 = arith.constant 1.000000e+00 : f32
    %146 = vector.broadcast %cst_58 : f32 to vector<8x128xf32>
    %147 = arith.addf %146, %145 : vector<8x128xf32>
    %148 = arith.divf %146, %147 : vector<8x128xf32>
    %149 = vector.extract_strided_slice %142 {offsets = [0, 128], sizes = [8, 128], strides = [1, 1]} : vector<8x512xf32> to vector<8x128xf32>
    %150 = arith.negf %149 : vector<8x128xf32>
    %151 = math.exp %150 : vector<8x128xf32>
    %cst_59 = arith.constant 1.000000e+00 : f32
    %152 = vector.broadcast %cst_59 : f32 to vector<8x128xf32>
    %153 = arith.addf %152, %151 : vector<8x128xf32>
    %154 = arith.divf %152, %153 : vector<8x128xf32>
    %155 = vector.extract_strided_slice %142 {offsets = [0, 256], sizes = [8, 128], strides = [1, 1]} : vector<8x512xf32> to vector<8x128xf32>
    %156 = math.tanh %155 : vector<8x128xf32>
    %157 = vector.extract_strided_slice %142 {offsets = [0, 384], sizes = [8, 128], strides = [1, 1]} : vector<8x512xf32> to vector<8x128xf32>
    %158 = arith.negf %157 : vector<8x128xf32>
    %159 = math.exp %158 : vector<8x128xf32>
    %cst_60 = arith.constant 1.000000e+00 : f32
    %160 = vector.broadcast %cst_60 : f32 to vector<8x128xf32>
    %161 = arith.addf %160, %159 : vector<8x128xf32>
    %162 = arith.divf %160, %161 : vector<8x128xf32>
    %163 = arith.mulf %154, %125 : vector<8x128xf32>
    %164 = arith.mulf %148, %156 : vector<8x128xf32>
    %165 = arith.addf %163, %164 : vector<8x128xf32>
    %166 = math.tanh %165 : vector<8x128xf32>
    %167 = arith.mulf %162, %166 : vector<8x128xf32>
    %168 = arith.truncf %167 : vector<8x128xf32> to vector<8x128xbf16>
    %169 = arith.index_cast %c3_i32 : i32 to index
    %c0_61 = arith.constant 0 : index
    %c0_62 = arith.constant 0 : index
    %170 = vector.load %arg9[%169, %c0_61, %c0_62] : memref<8x8x128xbf16, #tpu.memory_space<vmem>>, vector<1x8x128xbf16>
    %171 = vector.shape_cast %170 : vector<1x8x128xbf16> to vector<8x128xbf16>
    %172 = vector.shape_cast %168 : vector<8x128xbf16> to vector<1x8x128xbf16>
    tpu.vector_store %arg9[%169, %c0_61, %c0_62], %172 {strides = array<i32>} : memref<8x8x128xbf16, #tpu.memory_space<vmem>>, vector<1x8x128xbf16>,
    %c4_i32 = arith.constant 4 : i32
    %173 = arith.index_cast %c4_i32 : i32 to index
    %c0_63 = arith.constant 0 : index
    %c0_64 = arith.constant 0 : index
    %174 = vector.load %arg12[%173, %c0_63, %c0_64] : memref<8x8x512xf32, #tpu.memory_space<vmem>>, vector<1x8x512xf32>
    %175 = vector.shape_cast %174 : vector<1x8x512xf32> to vector<8x512xf32>
    %176 = arith.truncf %167 : vector<8x128xf32> to vector<8x128xbf16>
    %c0_65 = arith.constant 0 : index
    %c0_66 = arith.constant 0 : index
    %177 = vector.load %arg4[%c0_65, %c0_66] : memref<128x512xbf16, #tpu.memory_space<vmem>>, vector<128x512xbf16>
    %cst_67 = arith.constant dense<0.000000e+00> : vector<8x512xf32>
    %178 = tpu.matmul %176, %177, %cst_67 {dimension_numbers = #tpu.dot_dimension_numbers<[1], [0], [0], [1], [0, 0, 1, 1], [], []>} : vector<8x128xbf16>, vector<128x512xbf16>, vector<8x512xf32> -> vector<8x512xf32>
    %179 = arith.addf %175, %178 : vector<8x512xf32>
    %c0_68 = arith.constant 0 : index
    %c0_69 = arith.constant 0 : index
    %180 = vector.load %arg5[%c0_68, %c0_69] : memref<1x512xf32, #tpu.memory_space<vmem>>, vector<1x512xf32>
    %181 = vector.broadcast %180 : vector<1x512xf32> to vector<8x512xf32>
    %182 = arith.addf %179, %181 : vector<8x512xf32>
    %183 = vector.extract_strided_slice %182 {offsets = [0, 0], sizes = [8, 128], strides = [1, 1]} : vector<8x512xf32> to vector<8x128xf32>
    %184 = arith.negf %183 : vector<8x128xf32>
    %185 = math.exp %184 : vector<8x128xf32>
    %cst_70 = arith.constant 1.000000e+00 : f32
    %186 = vector.broadcast %cst_70 : f32 to vector<8x128xf32>
    %187 = arith.addf %186, %185 : vector<8x128xf32>
    %188 = arith.divf %186, %187 : vector<8x128xf32>
    %189 = vector.extract_strided_slice %182 {offsets = [0, 128], sizes = [8, 128], strides = [1, 1]} : vector<8x512xf32> to vector<8x128xf32>
    %190 = arith.negf %189 : vector<8x128xf32>
    %191 = math.exp %190 : vector<8x128xf32>
    %cst_71 = arith.constant 1.000000e+00 : f32
    %192 = vector.broadcast %cst_71 : f32 to vector<8x128xf32>
    %193 = arith.addf %192, %191 : vector<8x128xf32>
    %194 = arith.divf %192, %193 : vector<8x128xf32>
    %195 = vector.extract_strided_slice %182 {offsets = [0, 256], sizes = [8, 128], strides = [1, 1]} : vector<8x512xf32> to vector<8x128xf32>
    %196 = math.tanh %195 : vector<8x128xf32>
    %197 = vector.extract_strided_slice %182 {offsets = [0, 384], sizes = [8, 128], strides = [1, 1]} : vector<8x512xf32> to vector<8x128xf32>
    %198 = arith.negf %197 : vector<8x128xf32>
    %199 = math.exp %198 : vector<8x128xf32>
    %cst_72 = arith.constant 1.000000e+00 : f32
    %200 = vector.broadcast %cst_72 : f32 to vector<8x128xf32>
    %201 = arith.addf %200, %199 : vector<8x128xf32>
    %202 = arith.divf %200, %201 : vector<8x128xf32>
    %203 = arith.mulf %194, %165 : vector<8x128xf32>
    %204 = arith.mulf %188, %196 : vector<8x128xf32>
    %205 = arith.addf %203, %204 : vector<8x128xf32>
    %206 = math.tanh %205 : vector<8x128xf32>
    %207 = arith.mulf %202, %206 : vector<8x128xf32>
    %208 = arith.truncf %207 : vector<8x128xf32> to vector<8x128xbf16>
    %209 = arith.index_cast %c4_i32 : i32 to index
    %c0_73 = arith.constant 0 : index
    %c0_74 = arith.constant 0 : index
    %210 = vector.load %arg9[%209, %c0_73, %c0_74] : memref<8x8x128xbf16, #tpu.memory_space<vmem>>, vector<1x8x128xbf16>
    %211 = vector.shape_cast %210 : vector<1x8x128xbf16> to vector<8x128xbf16>
    %212 = vector.shape_cast %208 : vector<8x128xbf16> to vector<1x8x128xbf16>
    tpu.vector_store %arg9[%209, %c0_73, %c0_74], %212 {strides = array<i32>} : memref<8x8x128xbf16, #tpu.memory_space<vmem>>, vector<1x8x128xbf16>,
    %c5_i32 = arith.constant 5 : i32
    %213 = arith.index_cast %c5_i32 : i32 to index
    %c0_75 = arith.constant 0 : index
    %c0_76 = arith.constant 0 : index
    %214 = vector.load %arg12[%213, %c0_75, %c0_76] : memref<8x8x512xf32, #tpu.memory_space<vmem>>, vector<1x8x512xf32>
    %215 = vector.shape_cast %214 : vector<1x8x512xf32> to vector<8x512xf32>
    %216 = arith.truncf %207 : vector<8x128xf32> to vector<8x128xbf16>
    %c0_77 = arith.constant 0 : index
    %c0_78 = arith.constant 0 : index
    %217 = vector.load %arg4[%c0_77, %c0_78] : memref<128x512xbf16, #tpu.memory_space<vmem>>, vector<128x512xbf16>
    %cst_79 = arith.constant dense<0.000000e+00> : vector<8x512xf32>
    %218 = tpu.matmul %216, %217, %cst_79 {dimension_numbers = #tpu.dot_dimension_numbers<[1], [0], [0], [1], [0, 0, 1, 1], [], []>} : vector<8x128xbf16>, vector<128x512xbf16>, vector<8x512xf32> -> vector<8x512xf32>
    %219 = arith.addf %215, %218 : vector<8x512xf32>
    %c0_80 = arith.constant 0 : index
    %c0_81 = arith.constant 0 : index
    %220 = vector.load %arg5[%c0_80, %c0_81] : memref<1x512xf32, #tpu.memory_space<vmem>>, vector<1x512xf32>
    %221 = vector.broadcast %220 : vector<1x512xf32> to vector<8x512xf32>
    %222 = arith.addf %219, %221 : vector<8x512xf32>
    %223 = vector.extract_strided_slice %222 {offsets = [0, 0], sizes = [8, 128], strides = [1, 1]} : vector<8x512xf32> to vector<8x128xf32>
    %224 = arith.negf %223 : vector<8x128xf32>
    %225 = math.exp %224 : vector<8x128xf32>
    %cst_82 = arith.constant 1.000000e+00 : f32
    %226 = vector.broadcast %cst_82 : f32 to vector<8x128xf32>
    %227 = arith.addf %226, %225 : vector<8x128xf32>
    %228 = arith.divf %226, %227 : vector<8x128xf32>
    %229 = vector.extract_strided_slice %222 {offsets = [0, 128], sizes = [8, 128], strides = [1, 1]} : vector<8x512xf32> to vector<8x128xf32>
    %230 = arith.negf %229 : vector<8x128xf32>
    %231 = math.exp %230 : vector<8x128xf32>
    %cst_83 = arith.constant 1.000000e+00 : f32
    %232 = vector.broadcast %cst_83 : f32 to vector<8x128xf32>
    %233 = arith.addf %232, %231 : vector<8x128xf32>
    %234 = arith.divf %232, %233 : vector<8x128xf32>
    %235 = vector.extract_strided_slice %222 {offsets = [0, 256], sizes = [8, 128], strides = [1, 1]} : vector<8x512xf32> to vector<8x128xf32>
    %236 = math.tanh %235 : vector<8x128xf32>
    %237 = vector.extract_strided_slice %222 {offsets = [0, 384], sizes = [8, 128], strides = [1, 1]} : vector<8x512xf32> to vector<8x128xf32>
    %238 = arith.negf %237 : vector<8x128xf32>
    %239 = math.exp %238 : vector<8x128xf32>
    %cst_84 = arith.constant 1.000000e+00 : f32
    %240 = vector.broadcast %cst_84 : f32 to vector<8x128xf32>
    %241 = arith.addf %240, %239 : vector<8x128xf32>
    %242 = arith.divf %240, %241 : vector<8x128xf32>
    %243 = arith.mulf %234, %205 : vector<8x128xf32>
    %244 = arith.mulf %228, %236 : vector<8x128xf32>
    %245 = arith.addf %243, %244 : vector<8x128xf32>
    %246 = math.tanh %245 : vector<8x128xf32>
    %247 = arith.mulf %242, %246 : vector<8x128xf32>
    %248 = arith.truncf %247 : vector<8x128xf32> to vector<8x128xbf16>
    %249 = arith.index_cast %c5_i32 : i32 to index
    %c0_85 = arith.constant 0 : index
    %c0_86 = arith.constant 0 : index
    %250 = vector.load %arg9[%249, %c0_85, %c0_86] : memref<8x8x128xbf16, #tpu.memory_space<vmem>>, vector<1x8x128xbf16>
    %251 = vector.shape_cast %250 : vector<1x8x128xbf16> to vector<8x128xbf16>
    %252 = vector.shape_cast %248 : vector<8x128xbf16> to vector<1x8x128xbf16>
    tpu.vector_store %arg9[%249, %c0_85, %c0_86], %252 {strides = array<i32>} : memref<8x8x128xbf16, #tpu.memory_space<vmem>>, vector<1x8x128xbf16>,
    %c6_i32 = arith.constant 6 : i32
    %253 = arith.index_cast %c6_i32 : i32 to index
    %c0_87 = arith.constant 0 : index
    %c0_88 = arith.constant 0 : index
    %254 = vector.load %arg12[%253, %c0_87, %c0_88] : memref<8x8x512xf32, #tpu.memory_space<vmem>>, vector<1x8x512xf32>
    %255 = vector.shape_cast %254 : vector<1x8x512xf32> to vector<8x512xf32>
    %256 = arith.truncf %247 : vector<8x128xf32> to vector<8x128xbf16>
    %c0_89 = arith.constant 0 : index
    %c0_90 = arith.constant 0 : index
    %257 = vector.load %arg4[%c0_89, %c0_90] : memref<128x512xbf16, #tpu.memory_space<vmem>>, vector<128x512xbf16>
    %cst_91 = arith.constant dense<0.000000e+00> : vector<8x512xf32>
    %258 = tpu.matmul %256, %257, %cst_91 {dimension_numbers = #tpu.dot_dimension_numbers<[1], [0], [0], [1], [0, 0, 1, 1], [], []>} : vector<8x128xbf16>, vector<128x512xbf16>, vector<8x512xf32> -> vector<8x512xf32>
    %259 = arith.addf %255, %258 : vector<8x512xf32>
    %c0_92 = arith.constant 0 : index
    %c0_93 = arith.constant 0 : index
    %260 = vector.load %arg5[%c0_92, %c0_93] : memref<1x512xf32, #tpu.memory_space<vmem>>, vector<1x512xf32>
    %261 = vector.broadcast %260 : vector<1x512xf32> to vector<8x512xf32>
    %262 = arith.addf %259, %261 : vector<8x512xf32>
    %263 = vector.extract_strided_slice %262 {offsets = [0, 0], sizes = [8, 128], strides = [1, 1]} : vector<8x512xf32> to vector<8x128xf32>
    %264 = arith.negf %263 : vector<8x128xf32>
    %265 = math.exp %264 : vector<8x128xf32>
    %cst_94 = arith.constant 1.000000e+00 : f32
    %266 = vector.broadcast %cst_94 : f32 to vector<8x128xf32>
    %267 = arith.addf %266, %265 : vector<8x128xf32>
    %268 = arith.divf %266, %267 : vector<8x128xf32>
    %269 = vector.extract_strided_slice %262 {offsets = [0, 128], sizes = [8, 128], strides = [1, 1]} : vector<8x512xf32> to vector<8x128xf32>
    %270 = arith.negf %269 : vector<8x128xf32>
    %271 = math.exp %270 : vector<8x128xf32>
    %cst_95 = arith.constant 1.000000e+00 : f32
    %272 = vector.broadcast %cst_95 : f32 to vector<8x128xf32>
    %273 = arith.addf %272, %271 : vector<8x128xf32>
    %274 = arith.divf %272, %273 : vector<8x128xf32>
    %275 = vector.extract_strided_slice %262 {offsets = [0, 256], sizes = [8, 128], strides = [1, 1]} : vector<8x512xf32> to vector<8x128xf32>
    %276 = math.tanh %275 : vector<8x128xf32>
    %277 = vector.extract_strided_slice %262 {offsets = [0, 384], sizes = [8, 128], strides = [1, 1]} : vector<8x512xf32> to vector<8x128xf32>
    %278 = arith.negf %277 : vector<8x128xf32>
    %279 = math.exp %278 : vector<8x128xf32>
    %cst_96 = arith.constant 1.000000e+00 : f32
    %280 = vector.broadcast %cst_96 : f32 to vector<8x128xf32>
    %281 = arith.addf %280, %279 : vector<8x128xf32>
    %282 = arith.divf %280, %281 : vector<8x128xf32>
    %283 = arith.mulf %274, %245 : vector<8x128xf32>
    %284 = arith.mulf %268, %276 : vector<8x128xf32>
    %285 = arith.addf %283, %284 : vector<8x128xf32>
    %286 = math.tanh %285 : vector<8x128xf32>
    %287 = arith.mulf %282, %286 : vector<8x128xf32>
    %288 = arith.truncf %287 : vector<8x128xf32> to vector<8x128xbf16>
    %289 = arith.index_cast %c6_i32 : i32 to index
    %c0_97 = arith.constant 0 : index
    %c0_98 = arith.constant 0 : index
    %290 = vector.load %arg9[%289, %c0_97, %c0_98] : memref<8x8x128xbf16, #tpu.memory_space<vmem>>, vector<1x8x128xbf16>
    %291 = vector.shape_cast %290 : vector<1x8x128xbf16> to vector<8x128xbf16>
    %292 = vector.shape_cast %288 : vector<8x128xbf16> to vector<1x8x128xbf16>
    tpu.vector_store %arg9[%289, %c0_97, %c0_98], %292 {strides = array<i32>} : memref<8x8x128xbf16, #tpu.memory_space<vmem>>, vector<1x8x128xbf16>,
    %c7_i32 = arith.constant 7 : i32
    %293 = arith.index_cast %c7_i32 : i32 to index
    %c0_99 = arith.constant 0 : index
    %c0_100 = arith.constant 0 : index
    %294 = vector.load %arg12[%293, %c0_99, %c0_100] : memref<8x8x512xf32, #tpu.memory_space<vmem>>, vector<1x8x512xf32>
    %295 = vector.shape_cast %294 : vector<1x8x512xf32> to vector<8x512xf32>
    %296 = arith.truncf %287 : vector<8x128xf32> to vector<8x128xbf16>
    %c0_101 = arith.constant 0 : index
    %c0_102 = arith.constant 0 : index
    %297 = vector.load %arg4[%c0_101, %c0_102] : memref<128x512xbf16, #tpu.memory_space<vmem>>, vector<128x512xbf16>
    %cst_103 = arith.constant dense<0.000000e+00> : vector<8x512xf32>
    %298 = tpu.matmul %296, %297, %cst_103 {dimension_numbers = #tpu.dot_dimension_numbers<[1], [0], [0], [1], [0, 0, 1, 1], [], []>} : vector<8x128xbf16>, vector<128x512xbf16>, vector<8x512xf32> -> vector<8x512xf32>
    %299 = arith.addf %295, %298 : vector<8x512xf32>
    %c0_104 = arith.constant 0 : index
    %c0_105 = arith.constant 0 : index
    %300 = vector.load %arg5[%c0_104, %c0_105] : memref<1x512xf32, #tpu.memory_space<vmem>>, vector<1x512xf32>
    %301 = vector.broadcast %300 : vector<1x512xf32> to vector<8x512xf32>
    %302 = arith.addf %299, %301 : vector<8x512xf32>
    %303 = vector.extract_strided_slice %302 {offsets = [0, 0], sizes = [8, 128], strides = [1, 1]} : vector<8x512xf32> to vector<8x128xf32>
    %304 = arith.negf %303 : vector<8x128xf32>
    %305 = math.exp %304 : vector<8x128xf32>
    %cst_106 = arith.constant 1.000000e+00 : f32
    %306 = vector.broadcast %cst_106 : f32 to vector<8x128xf32>
    %307 = arith.addf %306, %305 : vector<8x128xf32>
    %308 = arith.divf %306, %307 : vector<8x128xf32>
    %309 = vector.extract_strided_slice %302 {offsets = [0, 128], sizes = [8, 128], strides = [1, 1]} : vector<8x512xf32> to vector<8x128xf32>
    %310 = arith.negf %309 : vector<8x128xf32>
    %311 = math.exp %310 : vector<8x128xf32>
    %cst_107 = arith.constant 1.000000e+00 : f32
    %312 = vector.broadcast %cst_107 : f32 to vector<8x128xf32>
    %313 = arith.addf %312, %311 : vector<8x128xf32>
    %314 = arith.divf %312, %313 : vector<8x128xf32>
    %315 = vector.extract_strided_slice %302 {offsets = [0, 256], sizes = [8, 128], strides = [1, 1]} : vector<8x512xf32> to vector<8x128xf32>
    %316 = math.tanh %315 : vector<8x128xf32>
    %317 = vector.extract_strided_slice %302 {offsets = [0, 384], sizes = [8, 128], strides = [1, 1]} : vector<8x512xf32> to vector<8x128xf32>
    %318 = arith.negf %317 : vector<8x128xf32>
    %319 = math.exp %318 : vector<8x128xf32>
    %cst_108 = arith.constant 1.000000e+00 : f32
    %320 = vector.broadcast %cst_108 : f32 to vector<8x128xf32>
    %321 = arith.addf %320, %319 : vector<8x128xf32>
    %322 = arith.divf %320, %321 : vector<8x128xf32>
    %323 = arith.mulf %314, %285 : vector<8x128xf32>
    %324 = arith.mulf %308, %316 : vector<8x128xf32>
    %325 = arith.addf %323, %324 : vector<8x128xf32>
    %326 = math.tanh %325 : vector<8x128xf32>
    %327 = arith.mulf %322, %326 : vector<8x128xf32>
    %328 = arith.truncf %327 : vector<8x128xf32> to vector<8x128xbf16>
    %329 = arith.index_cast %c7_i32 : i32 to index
    %c0_109 = arith.constant 0 : index
    %c0_110 = arith.constant 0 : index
    %330 = vector.load %arg9[%329, %c0_109, %c0_110] : memref<8x8x128xbf16, #tpu.memory_space<vmem>>, vector<1x8x128xbf16>
    %331 = vector.shape_cast %330 : vector<1x8x128xbf16> to vector<8x128xbf16>
    %332 = vector.shape_cast %328 : vector<8x128xbf16> to vector<1x8x128xbf16>
    tpu.vector_store %arg9[%329, %c0_109, %c0_110], %332 {strides = array<i32>} : memref<8x8x128xbf16, #tpu.memory_space<vmem>>, vector<1x8x128xbf16>,
    %c8_i32 = arith.constant 8 : i32
    %c0_111 = arith.constant 0 : index
    %c0_112 = arith.constant 0 : index
    %c0_113 = arith.constant 0 : index
    %333 = vector.load %arg10[%c0_111, %c0_112, %c0_113] : memref<2x8x128xf32, #tpu.memory_space<vmem>>, vector<1x8x128xf32>
    %334 = vector.shape_cast %333 : vector<1x8x128xf32> to vector<8x128xf32>
    %335 = vector.shape_cast %327 : vector<8x128xf32> to vector<1x8x128xf32>
    tpu.vector_store %arg10[%c0_111, %c0_112, %c0_113], %335 {strides = array<i32>} : memref<2x8x128xf32, #tpu.memory_space<vmem>>, vector<1x8x128xf32>,
    %c0_114 = arith.constant 0 : index
    %c0_115 = arith.constant 0 : index
    %c0_116 = arith.constant 0 : index
    %336 = vector.load %arg11[%c0_114, %c0_115, %c0_116] : memref<2x8x128xf32, #tpu.memory_space<vmem>>, vector<1x8x128xf32>
    %337 = vector.shape_cast %336 : vector<1x8x128xf32> to vector<8x128xf32>
    %338 = vector.shape_cast %325 : vector<8x128xf32> to vector<1x8x128xf32>
    tpu.vector_store %arg11[%c0_114, %c0_115, %c0_116], %338 {strides = array<i32>} : memref<2x8x128xf32, #tpu.memory_space<vmem>>, vector<1x8x128xf32>,
    %c0_117 = arith.constant 0 : index
    %c0_118 = arith.constant 0 : index
    %c0_119 = arith.constant 0 : index
    %339 = vector.load %arg9[%c0_117, %c0_118, %c0_119] : memref<8x8x128xbf16, #tpu.memory_space<vmem>>, vector<8x8x128xbf16>
    %340 = vector.shape_cast %339 : vector<8x8x128xbf16> to vector<64x128xbf16>
    %c0_120 = arith.constant 0 : index
    %c0_121 = arith.constant 0 : index
    %341 = vector.load %arg6[%c0_120, %c0_121] : memref<128x512xbf16, #tpu.memory_space<vmem>>, vector<128x512xbf16>
    %cst_122 = arith.constant dense<0.000000e+00> : vector<64x512xf32>
    %342 = tpu.matmul %340, %341, %cst_122 {dimension_numbers = #tpu.dot_dimension_numbers<[1], [0], [0], [1], [0, 0, 1, 1], [], []>} : vector<64x128xbf16>, vector<128x512xbf16>, vector<64x512xf32> -> vector<64x512xf32>
    %343 = vector.shape_cast %342 : vector<64x512xf32> to vector<8x8x512xf32>
    %c0_123 = arith.constant 0 : index
    %c0_124 = arith.constant 0 : index
    %c0_125 = arith.constant 0 : index
    %344 = vector.load %arg12[%c0_123, %c0_124, %c0_125] : memref<8x8x512xf32, #tpu.memory_space<vmem>>, vector<8x8x512xf32>
    tpu.vector_store %arg12[%c0_123, %c0_124, %c0_125], %343 {strides = array<i32>} : memref<8x8x512xf32, #tpu.memory_space<vmem>>, vector<8x8x512xf32>,
    %c1 = arith.constant 1 : index
    %c0_126 = arith.constant 0 : index
    %c0_127 = arith.constant 0 : index
    %345 = vector.load %arg10[%c1, %c0_126, %c0_127] : memref<2x8x128xf32, #tpu.memory_space<vmem>>, vector<1x8x128xf32>
    %346 = vector.shape_cast %345 : vector<1x8x128xf32> to vector<8x128xf32>
    %c1_128 = arith.constant 1 : index
    %c0_129 = arith.constant 0 : index
    %c0_130 = arith.constant 0 : index
    %347 = vector.load %arg11[%c1_128, %c0_129, %c0_130] : memref<2x8x128xf32, #tpu.memory_space<vmem>>, vector<1x8x128xf32>
    %348 = vector.shape_cast %347 : vector<1x8x128xf32> to vector<8x128xf32>
    %c0_i32_131 = arith.constant 0 : i32
    %349 = arith.index_cast %c0_i32_131 : i32 to index
    %c0_132 = arith.constant 0 : index
    %c0_133 = arith.constant 0 : index
    %350 = vector.load %arg12[%349, %c0_132, %c0_133] : memref<8x8x512xf32, #tpu.memory_space<vmem>>, vector<1x8x512xf32>
    %351 = vector.shape_cast %350 : vector<1x8x512xf32> to vector<8x512xf32>
    %352 = arith.truncf %346 : vector<8x128xf32> to vector<8x128xbf16>
    %c0_134 = arith.constant 0 : index
    %c0_135 = arith.constant 0 : index
    %353 = vector.load %arg7[%c0_134, %c0_135] : memref<128x512xbf16, #tpu.memory_space<vmem>>, vector<128x512xbf16>
    %cst_136 = arith.constant dense<0.000000e+00> : vector<8x512xf32>
    %354 = tpu.matmul %352, %353, %cst_136 {dimension_numbers = #tpu.dot_dimension_numbers<[1], [0], [0], [1], [0, 0, 1, 1], [], []>} : vector<8x128xbf16>, vector<128x512xbf16>, vector<8x512xf32> -> vector<8x512xf32>
    %355 = arith.addf %351, %354 : vector<8x512xf32>
    %c0_137 = arith.constant 0 : index
    %c0_138 = arith.constant 0 : index
    %356 = vector.load %arg8[%c0_137, %c0_138] : memref<1x512xf32, #tpu.memory_space<vmem>>, vector<1x512xf32>
    %357 = vector.broadcast %356 : vector<1x512xf32> to vector<8x512xf32>
    %358 = arith.addf %355, %357 : vector<8x512xf32>
    %359 = vector.extract_strided_slice %358 {offsets = [0, 0], sizes = [8, 128], strides = [1, 1]} : vector<8x512xf32> to vector<8x128xf32>
    %360 = arith.negf %359 : vector<8x128xf32>
    %361 = math.exp %360 : vector<8x128xf32>
    %cst_139 = arith.constant 1.000000e+00 : f32
    %362 = vector.broadcast %cst_139 : f32 to vector<8x128xf32>
    %363 = arith.addf %362, %361 : vector<8x128xf32>
    %364 = arith.divf %362, %363 : vector<8x128xf32>
    %365 = vector.extract_strided_slice %358 {offsets = [0, 128], sizes = [8, 128], strides = [1, 1]} : vector<8x512xf32> to vector<8x128xf32>
    %366 = arith.negf %365 : vector<8x128xf32>
    %367 = math.exp %366 : vector<8x128xf32>
    %cst_140 = arith.constant 1.000000e+00 : f32
    %368 = vector.broadcast %cst_140 : f32 to vector<8x128xf32>
    %369 = arith.addf %368, %367 : vector<8x128xf32>
    %370 = arith.divf %368, %369 : vector<8x128xf32>
    %371 = vector.extract_strided_slice %358 {offsets = [0, 256], sizes = [8, 128], strides = [1, 1]} : vector<8x512xf32> to vector<8x128xf32>
    %372 = math.tanh %371 : vector<8x128xf32>
    %373 = vector.extract_strided_slice %358 {offsets = [0, 384], sizes = [8, 128], strides = [1, 1]} : vector<8x512xf32> to vector<8x128xf32>
    %374 = arith.negf %373 : vector<8x128xf32>
    %375 = math.exp %374 : vector<8x128xf32>
    %cst_141 = arith.constant 1.000000e+00 : f32
    %376 = vector.broadcast %cst_141 : f32 to vector<8x128xf32>
    %377 = arith.addf %376, %375 : vector<8x128xf32>
    %378 = arith.divf %376, %377 : vector<8x128xf32>
    %379 = arith.mulf %370, %348 : vector<8x128xf32>
    %380 = arith.mulf %364, %372 : vector<8x128xf32>
    %381 = arith.addf %379, %380 : vector<8x128xf32>
    %382 = math.tanh %381 : vector<8x128xf32>
    %383 = arith.mulf %378, %382 : vector<8x128xf32>
    %384 = arith.truncf %383 : vector<8x128xf32> to vector<8x128xbf16>
    %385 = arith.index_cast %c0_i32_131 : i32 to index
    %c0_142 = arith.constant 0 : index
    %c0_143 = arith.constant 0 : index
    %386 = vector.load %arg9[%385, %c0_142, %c0_143] : memref<8x8x128xbf16, #tpu.memory_space<vmem>>, vector<1x8x128xbf16>
    %387 = vector.shape_cast %386 : vector<1x8x128xbf16> to vector<8x128xbf16>
    %388 = vector.shape_cast %384 : vector<8x128xbf16> to vector<1x8x128xbf16>
    tpu.vector_store %arg9[%385, %c0_142, %c0_143], %388 {strides = array<i32>} : memref<8x8x128xbf16, #tpu.memory_space<vmem>>, vector<1x8x128xbf16>,
    %c1_i32_144 = arith.constant 1 : i32
    %389 = arith.index_cast %c1_i32_144 : i32 to index
    %c0_145 = arith.constant 0 : index
    %c0_146 = arith.constant 0 : index
    %390 = vector.load %arg12[%389, %c0_145, %c0_146] : memref<8x8x512xf32, #tpu.memory_space<vmem>>, vector<1x8x512xf32>
    %391 = vector.shape_cast %390 : vector<1x8x512xf32> to vector<8x512xf32>
    %392 = arith.truncf %383 : vector<8x128xf32> to vector<8x128xbf16>
    %c0_147 = arith.constant 0 : index
    %c0_148 = arith.constant 0 : index
    %393 = vector.load %arg7[%c0_147, %c0_148] : memref<128x512xbf16, #tpu.memory_space<vmem>>, vector<128x512xbf16>
    %cst_149 = arith.constant dense<0.000000e+00> : vector<8x512xf32>
    %394 = tpu.matmul %392, %393, %cst_149 {dimension_numbers = #tpu.dot_dimension_numbers<[1], [0], [0], [1], [0, 0, 1, 1], [], []>} : vector<8x128xbf16>, vector<128x512xbf16>, vector<8x512xf32> -> vector<8x512xf32>
    %395 = arith.addf %391, %394 : vector<8x512xf32>
    %c0_150 = arith.constant 0 : index
    %c0_151 = arith.constant 0 : index
    %396 = vector.load %arg8[%c0_150, %c0_151] : memref<1x512xf32, #tpu.memory_space<vmem>>, vector<1x512xf32>
    %397 = vector.broadcast %396 : vector<1x512xf32> to vector<8x512xf32>
    %398 = arith.addf %395, %397 : vector<8x512xf32>
    %399 = vector.extract_strided_slice %398 {offsets = [0, 0], sizes = [8, 128], strides = [1, 1]} : vector<8x512xf32> to vector<8x128xf32>
    %400 = arith.negf %399 : vector<8x128xf32>
    %401 = math.exp %400 : vector<8x128xf32>
    %cst_152 = arith.constant 1.000000e+00 : f32
    %402 = vector.broadcast %cst_152 : f32 to vector<8x128xf32>
    %403 = arith.addf %402, %401 : vector<8x128xf32>
    %404 = arith.divf %402, %403 : vector<8x128xf32>
    %405 = vector.extract_strided_slice %398 {offsets = [0, 128], sizes = [8, 128], strides = [1, 1]} : vector<8x512xf32> to vector<8x128xf32>
    %406 = arith.negf %405 : vector<8x128xf32>
    %407 = math.exp %406 : vector<8x128xf32>
    %cst_153 = arith.constant 1.000000e+00 : f32
    %408 = vector.broadcast %cst_153 : f32 to vector<8x128xf32>
    %409 = arith.addf %408, %407 : vector<8x128xf32>
    %410 = arith.divf %408, %409 : vector<8x128xf32>
    %411 = vector.extract_strided_slice %398 {offsets = [0, 256], sizes = [8, 128], strides = [1, 1]} : vector<8x512xf32> to vector<8x128xf32>
    %412 = math.tanh %411 : vector<8x128xf32>
    %413 = vector.extract_strided_slice %398 {offsets = [0, 384], sizes = [8, 128], strides = [1, 1]} : vector<8x512xf32> to vector<8x128xf32>
    %414 = arith.negf %413 : vector<8x128xf32>
    %415 = math.exp %414 : vector<8x128xf32>
    %cst_154 = arith.constant 1.000000e+00 : f32
    %416 = vector.broadcast %cst_154 : f32 to vector<8x128xf32>
    %417 = arith.addf %416, %415 : vector<8x128xf32>
    %418 = arith.divf %416, %417 : vector<8x128xf32>
    %419 = arith.mulf %410, %381 : vector<8x128xf32>
    %420 = arith.mulf %404, %412 : vector<8x128xf32>
    %421 = arith.addf %419, %420 : vector<8x128xf32>
    %422 = math.tanh %421 : vector<8x128xf32>
    %423 = arith.mulf %418, %422 : vector<8x128xf32>
    %424 = arith.truncf %423 : vector<8x128xf32> to vector<8x128xbf16>
    %425 = arith.index_cast %c1_i32_144 : i32 to index
    %c0_155 = arith.constant 0 : index
    %c0_156 = arith.constant 0 : index
    %426 = vector.load %arg9[%425, %c0_155, %c0_156] : memref<8x8x128xbf16, #tpu.memory_space<vmem>>, vector<1x8x128xbf16>
    %427 = vector.shape_cast %426 : vector<1x8x128xbf16> to vector<8x128xbf16>
    %428 = vector.shape_cast %424 : vector<8x128xbf16> to vector<1x8x128xbf16>
    tpu.vector_store %arg9[%425, %c0_155, %c0_156], %428 {strides = array<i32>} : memref<8x8x128xbf16, #tpu.memory_space<vmem>>, vector<1x8x128xbf16>,
    %c2_i32_157 = arith.constant 2 : i32
    %429 = arith.index_cast %c2_i32_157 : i32 to index
    %c0_158 = arith.constant 0 : index
    %c0_159 = arith.constant 0 : index
    %430 = vector.load %arg12[%429, %c0_158, %c0_159] : memref<8x8x512xf32, #tpu.memory_space<vmem>>, vector<1x8x512xf32>
    %431 = vector.shape_cast %430 : vector<1x8x512xf32> to vector<8x512xf32>
    %432 = arith.truncf %423 : vector<8x128xf32> to vector<8x128xbf16>
    %c0_160 = arith.constant 0 : index
    %c0_161 = arith.constant 0 : index
    %433 = vector.load %arg7[%c0_160, %c0_161] : memref<128x512xbf16, #tpu.memory_space<vmem>>, vector<128x512xbf16>
    %cst_162 = arith.constant dense<0.000000e+00> : vector<8x512xf32>
    %434 = tpu.matmul %432, %433, %cst_162 {dimension_numbers = #tpu.dot_dimension_numbers<[1], [0], [0], [1], [0, 0, 1, 1], [], []>} : vector<8x128xbf16>, vector<128x512xbf16>, vector<8x512xf32> -> vector<8x512xf32>
    %435 = arith.addf %431, %434 : vector<8x512xf32>
    %c0_163 = arith.constant 0 : index
    %c0_164 = arith.constant 0 : index
    %436 = vector.load %arg8[%c0_163, %c0_164] : memref<1x512xf32, #tpu.memory_space<vmem>>, vector<1x512xf32>
    %437 = vector.broadcast %436 : vector<1x512xf32> to vector<8x512xf32>
    %438 = arith.addf %435, %437 : vector<8x512xf32>
    %439 = vector.extract_strided_slice %438 {offsets = [0, 0], sizes = [8, 128], strides = [1, 1]} : vector<8x512xf32> to vector<8x128xf32>
    %440 = arith.negf %439 : vector<8x128xf32>
    %441 = math.exp %440 : vector<8x128xf32>
    %cst_165 = arith.constant 1.000000e+00 : f32
    %442 = vector.broadcast %cst_165 : f32 to vector<8x128xf32>
    %443 = arith.addf %442, %441 : vector<8x128xf32>
    %444 = arith.divf %442, %443 : vector<8x128xf32>
    %445 = vector.extract_strided_slice %438 {offsets = [0, 128], sizes = [8, 128], strides = [1, 1]} : vector<8x512xf32> to vector<8x128xf32>
    %446 = arith.negf %445 : vector<8x128xf32>
    %447 = math.exp %446 : vector<8x128xf32>
    %cst_166 = arith.constant 1.000000e+00 : f32
    %448 = vector.broadcast %cst_166 : f32 to vector<8x128xf32>
    %449 = arith.addf %448, %447 : vector<8x128xf32>
    %450 = arith.divf %448, %449 : vector<8x128xf32>
    %451 = vector.extract_strided_slice %438 {offsets = [0, 256], sizes = [8, 128], strides = [1, 1]} : vector<8x512xf32> to vector<8x128xf32>
    %452 = math.tanh %451 : vector<8x128xf32>
    %453 = vector.extract_strided_slice %438 {offsets = [0, 384], sizes = [8, 128], strides = [1, 1]} : vector<8x512xf32> to vector<8x128xf32>
    %454 = arith.negf %453 : vector<8x128xf32>
    %455 = math.exp %454 : vector<8x128xf32>
    %cst_167 = arith.constant 1.000000e+00 : f32
    %456 = vector.broadcast %cst_167 : f32 to vector<8x128xf32>
    %457 = arith.addf %456, %455 : vector<8x128xf32>
    %458 = arith.divf %456, %457 : vector<8x128xf32>
    %459 = arith.mulf %450, %421 : vector<8x128xf32>
    %460 = arith.mulf %444, %452 : vector<8x128xf32>
    %461 = arith.addf %459, %460 : vector<8x128xf32>
    %462 = math.tanh %461 : vector<8x128xf32>
    %463 = arith.mulf %458, %462 : vector<8x128xf32>
    %464 = arith.truncf %463 : vector<8x128xf32> to vector<8x128xbf16>
    %465 = arith.index_cast %c2_i32_157 : i32 to index
    %c0_168 = arith.constant 0 : index
    %c0_169 = arith.constant 0 : index
    %466 = vector.load %arg9[%465, %c0_168, %c0_169] : memref<8x8x128xbf16, #tpu.memory_space<vmem>>, vector<1x8x128xbf16>
    %467 = vector.shape_cast %466 : vector<1x8x128xbf16> to vector<8x128xbf16>
    %468 = vector.shape_cast %464 : vector<8x128xbf16> to vector<1x8x128xbf16>
    tpu.vector_store %arg9[%465, %c0_168, %c0_169], %468 {strides = array<i32>} : memref<8x8x128xbf16, #tpu.memory_space<vmem>>, vector<1x8x128xbf16>,
    %c3_i32_170 = arith.constant 3 : i32
    %469 = arith.index_cast %c3_i32_170 : i32 to index
    %c0_171 = arith.constant 0 : index
    %c0_172 = arith.constant 0 : index
    %470 = vector.load %arg12[%469, %c0_171, %c0_172] : memref<8x8x512xf32, #tpu.memory_space<vmem>>, vector<1x8x512xf32>
    %471 = vector.shape_cast %470 : vector<1x8x512xf32> to vector<8x512xf32>
    %472 = arith.truncf %463 : vector<8x128xf32> to vector<8x128xbf16>
    %c0_173 = arith.constant 0 : index
    %c0_174 = arith.constant 0 : index
    %473 = vector.load %arg7[%c0_173, %c0_174] : memref<128x512xbf16, #tpu.memory_space<vmem>>, vector<128x512xbf16>
    %cst_175 = arith.constant dense<0.000000e+00> : vector<8x512xf32>
    %474 = tpu.matmul %472, %473, %cst_175 {dimension_numbers = #tpu.dot_dimension_numbers<[1], [0], [0], [1], [0, 0, 1, 1], [], []>} : vector<8x128xbf16>, vector<128x512xbf16>, vector<8x512xf32> -> vector<8x512xf32>
    %475 = arith.addf %471, %474 : vector<8x512xf32>
    %c0_176 = arith.constant 0 : index
    %c0_177 = arith.constant 0 : index
    %476 = vector.load %arg8[%c0_176, %c0_177] : memref<1x512xf32, #tpu.memory_space<vmem>>, vector<1x512xf32>
    %477 = vector.broadcast %476 : vector<1x512xf32> to vector<8x512xf32>
    %478 = arith.addf %475, %477 : vector<8x512xf32>
    %479 = vector.extract_strided_slice %478 {offsets = [0, 0], sizes = [8, 128], strides = [1, 1]} : vector<8x512xf32> to vector<8x128xf32>
    %480 = arith.negf %479 : vector<8x128xf32>
    %481 = math.exp %480 : vector<8x128xf32>
    %cst_178 = arith.constant 1.000000e+00 : f32
    %482 = vector.broadcast %cst_178 : f32 to vector<8x128xf32>
    %483 = arith.addf %482, %481 : vector<8x128xf32>
    %484 = arith.divf %482, %483 : vector<8x128xf32>
    %485 = vector.extract_strided_slice %478 {offsets = [0, 128], sizes = [8, 128], strides = [1, 1]} : vector<8x512xf32> to vector<8x128xf32>
    %486 = arith.negf %485 : vector<8x128xf32>
    %487 = math.exp %486 : vector<8x128xf32>
    %cst_179 = arith.constant 1.000000e+00 : f32
    %488 = vector.broadcast %cst_179 : f32 to vector<8x128xf32>
    %489 = arith.addf %488, %487 : vector<8x128xf32>
    %490 = arith.divf %488, %489 : vector<8x128xf32>
    %491 = vector.extract_strided_slice %478 {offsets = [0, 256], sizes = [8, 128], strides = [1, 1]} : vector<8x512xf32> to vector<8x128xf32>
    %492 = math.tanh %491 : vector<8x128xf32>
    %493 = vector.extract_strided_slice %478 {offsets = [0, 384], sizes = [8, 128], strides = [1, 1]} : vector<8x512xf32> to vector<8x128xf32>
    %494 = arith.negf %493 : vector<8x128xf32>
    %495 = math.exp %494 : vector<8x128xf32>
    %cst_180 = arith.constant 1.000000e+00 : f32
    %496 = vector.broadcast %cst_180 : f32 to vector<8x128xf32>
    %497 = arith.addf %496, %495 : vector<8x128xf32>
    %498 = arith.divf %496, %497 : vector<8x128xf32>
    %499 = arith.mulf %490, %461 : vector<8x128xf32>
    %500 = arith.mulf %484, %492 : vector<8x128xf32>
    %501 = arith.addf %499, %500 : vector<8x128xf32>
    %502 = math.tanh %501 : vector<8x128xf32>
    %503 = arith.mulf %498, %502 : vector<8x128xf32>
    %504 = arith.truncf %503 : vector<8x128xf32> to vector<8x128xbf16>
    %505 = arith.index_cast %c3_i32_170 : i32 to index
    %c0_181 = arith.constant 0 : index
    %c0_182 = arith.constant 0 : index
    %506 = vector.load %arg9[%505, %c0_181, %c0_182] : memref<8x8x128xbf16, #tpu.memory_space<vmem>>, vector<1x8x128xbf16>
    %507 = vector.shape_cast %506 : vector<1x8x128xbf16> to vector<8x128xbf16>
    %508 = vector.shape_cast %504 : vector<8x128xbf16> to vector<1x8x128xbf16>
    tpu.vector_store %arg9[%505, %c0_181, %c0_182], %508 {strides = array<i32>} : memref<8x8x128xbf16, #tpu.memory_space<vmem>>, vector<1x8x128xbf16>,
    %c4_i32_183 = arith.constant 4 : i32
    %509 = arith.index_cast %c4_i32_183 : i32 to index
    %c0_184 = arith.constant 0 : index
    %c0_185 = arith.constant 0 : index
    %510 = vector.load %arg12[%509, %c0_184, %c0_185] : memref<8x8x512xf32, #tpu.memory_space<vmem>>, vector<1x8x512xf32>
    %511 = vector.shape_cast %510 : vector<1x8x512xf32> to vector<8x512xf32>
    %512 = arith.truncf %503 : vector<8x128xf32> to vector<8x128xbf16>
    %c0_186 = arith.constant 0 : index
    %c0_187 = arith.constant 0 : index
    %513 = vector.load %arg7[%c0_186, %c0_187] : memref<128x512xbf16, #tpu.memory_space<vmem>>, vector<128x512xbf16>
    %cst_188 = arith.constant dense<0.000000e+00> : vector<8x512xf32>
    %514 = tpu.matmul %512, %513, %cst_188 {dimension_numbers = #tpu.dot_dimension_numbers<[1], [0], [0], [1], [0, 0, 1, 1], [], []>} : vector<8x128xbf16>, vector<128x512xbf16>, vector<8x512xf32> -> vector<8x512xf32>
    %515 = arith.addf %511, %514 : vector<8x512xf32>
    %c0_189 = arith.constant 0 : index
    %c0_190 = arith.constant 0 : index
    %516 = vector.load %arg8[%c0_189, %c0_190] : memref<1x512xf32, #tpu.memory_space<vmem>>, vector<1x512xf32>
    %517 = vector.broadcast %516 : vector<1x512xf32> to vector<8x512xf32>
    %518 = arith.addf %515, %517 : vector<8x512xf32>
    %519 = vector.extract_strided_slice %518 {offsets = [0, 0], sizes = [8, 128], strides = [1, 1]} : vector<8x512xf32> to vector<8x128xf32>
    %520 = arith.negf %519 : vector<8x128xf32>
    %521 = math.exp %520 : vector<8x128xf32>
    %cst_191 = arith.constant 1.000000e+00 : f32
    %522 = vector.broadcast %cst_191 : f32 to vector<8x128xf32>
    %523 = arith.addf %522, %521 : vector<8x128xf32>
    %524 = arith.divf %522, %523 : vector<8x128xf32>
    %525 = vector.extract_strided_slice %518 {offsets = [0, 128], sizes = [8, 128], strides = [1, 1]} : vector<8x512xf32> to vector<8x128xf32>
    %526 = arith.negf %525 : vector<8x128xf32>
    %527 = math.exp %526 : vector<8x128xf32>
    %cst_192 = arith.constant 1.000000e+00 : f32
    %528 = vector.broadcast %cst_192 : f32 to vector<8x128xf32>
    %529 = arith.addf %528, %527 : vector<8x128xf32>
    %530 = arith.divf %528, %529 : vector<8x128xf32>
    %531 = vector.extract_strided_slice %518 {offsets = [0, 256], sizes = [8, 128], strides = [1, 1]} : vector<8x512xf32> to vector<8x128xf32>
    %532 = math.tanh %531 : vector<8x128xf32>
    %533 = vector.extract_strided_slice %518 {offsets = [0, 384], sizes = [8, 128], strides = [1, 1]} : vector<8x512xf32> to vector<8x128xf32>
    %534 = arith.negf %533 : vector<8x128xf32>
    %535 = math.exp %534 : vector<8x128xf32>
    %cst_193 = arith.constant 1.000000e+00 : f32
    %536 = vector.broadcast %cst_193 : f32 to vector<8x128xf32>
    %537 = arith.addf %536, %535 : vector<8x128xf32>
    %538 = arith.divf %536, %537 : vector<8x128xf32>
    %539 = arith.mulf %530, %501 : vector<8x128xf32>
    %540 = arith.mulf %524, %532 : vector<8x128xf32>
    %541 = arith.addf %539, %540 : vector<8x128xf32>
    %542 = math.tanh %541 : vector<8x128xf32>
    %543 = arith.mulf %538, %542 : vector<8x128xf32>
    %544 = arith.truncf %543 : vector<8x128xf32> to vector<8x128xbf16>
    %545 = arith.index_cast %c4_i32_183 : i32 to index
    %c0_194 = arith.constant 0 : index
    %c0_195 = arith.constant 0 : index
    %546 = vector.load %arg9[%545, %c0_194, %c0_195] : memref<8x8x128xbf16, #tpu.memory_space<vmem>>, vector<1x8x128xbf16>
    %547 = vector.shape_cast %546 : vector<1x8x128xbf16> to vector<8x128xbf16>
    %548 = vector.shape_cast %544 : vector<8x128xbf16> to vector<1x8x128xbf16>
    tpu.vector_store %arg9[%545, %c0_194, %c0_195], %548 {strides = array<i32>} : memref<8x8x128xbf16, #tpu.memory_space<vmem>>, vector<1x8x128xbf16>,
    %c5_i32_196 = arith.constant 5 : i32
    %549 = arith.index_cast %c5_i32_196 : i32 to index
    %c0_197 = arith.constant 0 : index
    %c0_198 = arith.constant 0 : index
    %550 = vector.load %arg12[%549, %c0_197, %c0_198] : memref<8x8x512xf32, #tpu.memory_space<vmem>>, vector<1x8x512xf32>
    %551 = vector.shape_cast %550 : vector<1x8x512xf32> to vector<8x512xf32>
    %552 = arith.truncf %543 : vector<8x128xf32> to vector<8x128xbf16>
    %c0_199 = arith.constant 0 : index
    %c0_200 = arith.constant 0 : index
    %553 = vector.load %arg7[%c0_199, %c0_200] : memref<128x512xbf16, #tpu.memory_space<vmem>>, vector<128x512xbf16>
    %cst_201 = arith.constant dense<0.000000e+00> : vector<8x512xf32>
    %554 = tpu.matmul %552, %553, %cst_201 {dimension_numbers = #tpu.dot_dimension_numbers<[1], [0], [0], [1], [0, 0, 1, 1], [], []>} : vector<8x128xbf16>, vector<128x512xbf16>, vector<8x512xf32> -> vector<8x512xf32>
    %555 = arith.addf %551, %554 : vector<8x512xf32>
    %c0_202 = arith.constant 0 : index
    %c0_203 = arith.constant 0 : index
    %556 = vector.load %arg8[%c0_202, %c0_203] : memref<1x512xf32, #tpu.memory_space<vmem>>, vector<1x512xf32>
    %557 = vector.broadcast %556 : vector<1x512xf32> to vector<8x512xf32>
    %558 = arith.addf %555, %557 : vector<8x512xf32>
    %559 = vector.extract_strided_slice %558 {offsets = [0, 0], sizes = [8, 128], strides = [1, 1]} : vector<8x512xf32> to vector<8x128xf32>
    %560 = arith.negf %559 : vector<8x128xf32>
    %561 = math.exp %560 : vector<8x128xf32>
    %cst_204 = arith.constant 1.000000e+00 : f32
    %562 = vector.broadcast %cst_204 : f32 to vector<8x128xf32>
    %563 = arith.addf %562, %561 : vector<8x128xf32>
    %564 = arith.divf %562, %563 : vector<8x128xf32>
    %565 = vector.extract_strided_slice %558 {offsets = [0, 128], sizes = [8, 128], strides = [1, 1]} : vector<8x512xf32> to vector<8x128xf32>
    %566 = arith.negf %565 : vector<8x128xf32>
    %567 = math.exp %566 : vector<8x128xf32>
    %cst_205 = arith.constant 1.000000e+00 : f32
    %568 = vector.broadcast %cst_205 : f32 to vector<8x128xf32>
    %569 = arith.addf %568, %567 : vector<8x128xf32>
    %570 = arith.divf %568, %569 : vector<8x128xf32>
    %571 = vector.extract_strided_slice %558 {offsets = [0, 256], sizes = [8, 128], strides = [1, 1]} : vector<8x512xf32> to vector<8x128xf32>
    %572 = math.tanh %571 : vector<8x128xf32>
    %573 = vector.extract_strided_slice %558 {offsets = [0, 384], sizes = [8, 128], strides = [1, 1]} : vector<8x512xf32> to vector<8x128xf32>
    %574 = arith.negf %573 : vector<8x128xf32>
    %575 = math.exp %574 : vector<8x128xf32>
    %cst_206 = arith.constant 1.000000e+00 : f32
    %576 = vector.broadcast %cst_206 : f32 to vector<8x128xf32>
    %577 = arith.addf %576, %575 : vector<8x128xf32>
    %578 = arith.divf %576, %577 : vector<8x128xf32>
    %579 = arith.mulf %570, %541 : vector<8x128xf32>
    %580 = arith.mulf %564, %572 : vector<8x128xf32>
    %581 = arith.addf %579, %580 : vector<8x128xf32>
    %582 = math.tanh %581 : vector<8x128xf32>
    %583 = arith.mulf %578, %582 : vector<8x128xf32>
    %584 = arith.truncf %583 : vector<8x128xf32> to vector<8x128xbf16>
    %585 = arith.index_cast %c5_i32_196 : i32 to index
    %c0_207 = arith.constant 0 : index
    %c0_208 = arith.constant 0 : index
    %586 = vector.load %arg9[%585, %c0_207, %c0_208] : memref<8x8x128xbf16, #tpu.memory_space<vmem>>, vector<1x8x128xbf16>
    %587 = vector.shape_cast %586 : vector<1x8x128xbf16> to vector<8x128xbf16>
    %588 = vector.shape_cast %584 : vector<8x128xbf16> to vector<1x8x128xbf16>
    tpu.vector_store %arg9[%585, %c0_207, %c0_208], %588 {strides = array<i32>} : memref<8x8x128xbf16, #tpu.memory_space<vmem>>, vector<1x8x128xbf16>,
    %c6_i32_209 = arith.constant 6 : i32
    %589 = arith.index_cast %c6_i32_209 : i32 to index
    %c0_210 = arith.constant 0 : index
    %c0_211 = arith.constant 0 : index
    %590 = vector.load %arg12[%589, %c0_210, %c0_211] : memref<8x8x512xf32, #tpu.memory_space<vmem>>, vector<1x8x512xf32>
    %591 = vector.shape_cast %590 : vector<1x8x512xf32> to vector<8x512xf32>
    %592 = arith.truncf %583 : vector<8x128xf32> to vector<8x128xbf16>
    %c0_212 = arith.constant 0 : index
    %c0_213 = arith.constant 0 : index
    %593 = vector.load %arg7[%c0_212, %c0_213] : memref<128x512xbf16, #tpu.memory_space<vmem>>, vector<128x512xbf16>
    %cst_214 = arith.constant dense<0.000000e+00> : vector<8x512xf32>
    %594 = tpu.matmul %592, %593, %cst_214 {dimension_numbers = #tpu.dot_dimension_numbers<[1], [0], [0], [1], [0, 0, 1, 1], [], []>} : vector<8x128xbf16>, vector<128x512xbf16>, vector<8x512xf32> -> vector<8x512xf32>
    %595 = arith.addf %591, %594 : vector<8x512xf32>
    %c0_215 = arith.constant 0 : index
    %c0_216 = arith.constant 0 : index
    %596 = vector.load %arg8[%c0_215, %c0_216] : memref<1x512xf32, #tpu.memory_space<vmem>>, vector<1x512xf32>
    %597 = vector.broadcast %596 : vector<1x512xf32> to vector<8x512xf32>
    %598 = arith.addf %595, %597 : vector<8x512xf32>
    %599 = vector.extract_strided_slice %598 {offsets = [0, 0], sizes = [8, 128], strides = [1, 1]} : vector<8x512xf32> to vector<8x128xf32>
    %600 = arith.negf %599 : vector<8x128xf32>
    %601 = math.exp %600 : vector<8x128xf32>
    %cst_217 = arith.constant 1.000000e+00 : f32
    %602 = vector.broadcast %cst_217 : f32 to vector<8x128xf32>
    %603 = arith.addf %602, %601 : vector<8x128xf32>
    %604 = arith.divf %602, %603 : vector<8x128xf32>
    %605 = vector.extract_strided_slice %598 {offsets = [0, 128], sizes = [8, 128], strides = [1, 1]} : vector<8x512xf32> to vector<8x128xf32>
    %606 = arith.negf %605 : vector<8x128xf32>
    %607 = math.exp %606 : vector<8x128xf32>
    %cst_218 = arith.constant 1.000000e+00 : f32
    %608 = vector.broadcast %cst_218 : f32 to vector<8x128xf32>
    %609 = arith.addf %608, %607 : vector<8x128xf32>
    %610 = arith.divf %608, %609 : vector<8x128xf32>
    %611 = vector.extract_strided_slice %598 {offsets = [0, 256], sizes = [8, 128], strides = [1, 1]} : vector<8x512xf32> to vector<8x128xf32>
    %612 = math.tanh %611 : vector<8x128xf32>
    %613 = vector.extract_strided_slice %598 {offsets = [0, 384], sizes = [8, 128], strides = [1, 1]} : vector<8x512xf32> to vector<8x128xf32>
    %614 = arith.negf %613 : vector<8x128xf32>
    %615 = math.exp %614 : vector<8x128xf32>
    %cst_219 = arith.constant 1.000000e+00 : f32
    %616 = vector.broadcast %cst_219 : f32 to vector<8x128xf32>
    %617 = arith.addf %616, %615 : vector<8x128xf32>
    %618 = arith.divf %616, %617 : vector<8x128xf32>
    %619 = arith.mulf %610, %581 : vector<8x128xf32>
    %620 = arith.mulf %604, %612 : vector<8x128xf32>
    %621 = arith.addf %619, %620 : vector<8x128xf32>
    %622 = math.tanh %621 : vector<8x128xf32>
    %623 = arith.mulf %618, %622 : vector<8x128xf32>
    %624 = arith.truncf %623 : vector<8x128xf32> to vector<8x128xbf16>
    %625 = arith.index_cast %c6_i32_209 : i32 to index
    %c0_220 = arith.constant 0 : index
    %c0_221 = arith.constant 0 : index
    %626 = vector.load %arg9[%625, %c0_220, %c0_221] : memref<8x8x128xbf16, #tpu.memory_space<vmem>>, vector<1x8x128xbf16>
    %627 = vector.shape_cast %626 : vector<1x8x128xbf16> to vector<8x128xbf16>
    %628 = vector.shape_cast %624 : vector<8x128xbf16> to vector<1x8x128xbf16>
    tpu.vector_store %arg9[%625, %c0_220, %c0_221], %628 {strides = array<i32>} : memref<8x8x128xbf16, #tpu.memory_space<vmem>>, vector<1x8x128xbf16>,
    %c7_i32_222 = arith.constant 7 : i32
    %629 = arith.index_cast %c7_i32_222 : i32 to index
    %c0_223 = arith.constant 0 : index
    %c0_224 = arith.constant 0 : index
    %630 = vector.load %arg12[%629, %c0_223, %c0_224] : memref<8x8x512xf32, #tpu.memory_space<vmem>>, vector<1x8x512xf32>
    %631 = vector.shape_cast %630 : vector<1x8x512xf32> to vector<8x512xf32>
    %632 = arith.truncf %623 : vector<8x128xf32> to vector<8x128xbf16>
    %c0_225 = arith.constant 0 : index
    %c0_226 = arith.constant 0 : index
    %633 = vector.load %arg7[%c0_225, %c0_226] : memref<128x512xbf16, #tpu.memory_space<vmem>>, vector<128x512xbf16>
    %cst_227 = arith.constant dense<0.000000e+00> : vector<8x512xf32>
    %634 = tpu.matmul %632, %633, %cst_227 {dimension_numbers = #tpu.dot_dimension_numbers<[1], [0], [0], [1], [0, 0, 1, 1], [], []>} : vector<8x128xbf16>, vector<128x512xbf16>, vector<8x512xf32> -> vector<8x512xf32>
    %635 = arith.addf %631, %634 : vector<8x512xf32>
    %c0_228 = arith.constant 0 : index
    %c0_229 = arith.constant 0 : index
    %636 = vector.load %arg8[%c0_228, %c0_229] : memref<1x512xf32, #tpu.memory_space<vmem>>, vector<1x512xf32>
    %637 = vector.broadcast %636 : vector<1x512xf32> to vector<8x512xf32>
    %638 = arith.addf %635, %637 : vector<8x512xf32>
    %639 = vector.extract_strided_slice %638 {offsets = [0, 0], sizes = [8, 128], strides = [1, 1]} : vector<8x512xf32> to vector<8x128xf32>
    %640 = arith.negf %639 : vector<8x128xf32>
    %641 = math.exp %640 : vector<8x128xf32>
    %cst_230 = arith.constant 1.000000e+00 : f32
    %642 = vector.broadcast %cst_230 : f32 to vector<8x128xf32>
    %643 = arith.addf %642, %641 : vector<8x128xf32>
    %644 = arith.divf %642, %643 : vector<8x128xf32>
    %645 = vector.extract_strided_slice %638 {offsets = [0, 128], sizes = [8, 128], strides = [1, 1]} : vector<8x512xf32> to vector<8x128xf32>
    %646 = arith.negf %645 : vector<8x128xf32>
    %647 = math.exp %646 : vector<8x128xf32>
    %cst_231 = arith.constant 1.000000e+00 : f32
    %648 = vector.broadcast %cst_231 : f32 to vector<8x128xf32>
    %649 = arith.addf %648, %647 : vector<8x128xf32>
    %650 = arith.divf %648, %649 : vector<8x128xf32>
    %651 = vector.extract_strided_slice %638 {offsets = [0, 256], sizes = [8, 128], strides = [1, 1]} : vector<8x512xf32> to vector<8x128xf32>
    %652 = math.tanh %651 : vector<8x128xf32>
    %653 = vector.extract_strided_slice %638 {offsets = [0, 384], sizes = [8, 128], strides = [1, 1]} : vector<8x512xf32> to vector<8x128xf32>
    %654 = arith.negf %653 : vector<8x128xf32>
    %655 = math.exp %654 : vector<8x128xf32>
    %cst_232 = arith.constant 1.000000e+00 : f32
    %656 = vector.broadcast %cst_232 : f32 to vector<8x128xf32>
    %657 = arith.addf %656, %655 : vector<8x128xf32>
    %658 = arith.divf %656, %657 : vector<8x128xf32>
    %659 = arith.mulf %650, %621 : vector<8x128xf32>
    %660 = arith.mulf %644, %652 : vector<8x128xf32>
    %661 = arith.addf %659, %660 : vector<8x128xf32>
    %662 = math.tanh %661 : vector<8x128xf32>
    %663 = arith.mulf %658, %662 : vector<8x128xf32>
    %664 = arith.truncf %663 : vector<8x128xf32> to vector<8x128xbf16>
    %665 = arith.index_cast %c7_i32_222 : i32 to index
    %c0_233 = arith.constant 0 : index
    %c0_234 = arith.constant 0 : index
    %666 = vector.load %arg9[%665, %c0_233, %c0_234] : memref<8x8x128xbf16, #tpu.memory_space<vmem>>, vector<1x8x128xbf16>
    %667 = vector.shape_cast %666 : vector<1x8x128xbf16> to vector<8x128xbf16>
    %668 = vector.shape_cast %664 : vector<8x128xbf16> to vector<1x8x128xbf16>
    tpu.vector_store %arg9[%665, %c0_233, %c0_234], %668 {strides = array<i32>} : memref<8x8x128xbf16, #tpu.memory_space<vmem>>, vector<1x8x128xbf16>,
    %c8_i32_235 = arith.constant 8 : i32
    %c1_236 = arith.constant 1 : index
    %c0_237 = arith.constant 0 : index
    %c0_238 = arith.constant 0 : index
    %669 = vector.load %arg10[%c1_236, %c0_237, %c0_238] : memref<2x8x128xf32, #tpu.memory_space<vmem>>, vector<1x8x128xf32>
    %670 = vector.shape_cast %669 : vector<1x8x128xf32> to vector<8x128xf32>
    %671 = vector.shape_cast %663 : vector<8x128xf32> to vector<1x8x128xf32>
    tpu.vector_store %arg10[%c1_236, %c0_237, %c0_238], %671 {strides = array<i32>} : memref<2x8x128xf32, #tpu.memory_space<vmem>>, vector<1x8x128xf32>,
    %c1_239 = arith.constant 1 : index
    %c0_240 = arith.constant 0 : index
    %c0_241 = arith.constant 0 : index
    %672 = vector.load %arg11[%c1_239, %c0_240, %c0_241] : memref<2x8x128xf32, #tpu.memory_space<vmem>>, vector<1x8x128xf32>
    %673 = vector.shape_cast %672 : vector<1x8x128xf32> to vector<8x128xf32>
    %674 = vector.shape_cast %661 : vector<8x128xf32> to vector<1x8x128xf32>
    tpu.vector_store %arg11[%c1_239, %c0_240, %c0_241], %674 {strides = array<i32>} : memref<2x8x128xf32, #tpu.memory_space<vmem>>, vector<1x8x128xf32>,
    return
  }
  func.func @transform_0(%arg0: i32, %arg1: i32) -> (i32, i32, i32) {
    %c0_i32 = arith.constant 0 : i32
    %c0_i32_0 = arith.constant 0 : i32
    return %arg1, %arg0, %c0_i32 : i32, i32, i32
  }
  func.func @transform_1(%arg0: i32, %arg1: i32) -> (i32, i32) {
    %c0_i32 = arith.constant 0 : i32
    %c0_i32_0 = arith.constant 0 : i32
    %c0_i32_1 = arith.constant 0 : i32
    return %c0_i32, %c0_i32_0 : i32, i32
  }
  func.func @transform_2(%arg0: i32, %arg1: i32) -> (i32, i32) {
    %c0_i32 = arith.constant 0 : i32
    %c0_i32_0 = arith.constant 0 : i32
    %c0_i32_1 = arith.constant 0 : i32
    return %c0_i32, %c0_i32_0 : i32, i32
  }
  func.func @transform_3(%arg0: i32, %arg1: i32) -> (i32, i32) {
    %c0_i32 = arith.constant 0 : i32
    %c0_i32_0 = arith.constant 0 : i32
    %c0_i32_1 = arith.constant 0 : i32
    return %c0_i32, %c0_i32_0 : i32, i32
  }
  func.func @transform_4(%arg0: i32, %arg1: i32) -> (i32, i32) {
    %c0_i32 = arith.constant 0 : i32
    %c0_i32_0 = arith.constant 0 : i32
    %c0_i32_1 = arith.constant 0 : i32
    return %c0_i32, %c0_i32_0 : i32, i32
  }
  func.func @transform_5(%arg0: i32, %arg1: i32) -> (i32, i32) {
    %c0_i32 = arith.constant 0 : i32
    %c0_i32_0 = arith.constant 0 : i32
    %c0_i32_1 = arith.constant 0 : i32
    return %c0_i32, %c0_i32_0 : i32, i32
  }
  func.func @transform_6(%arg0: i32, %arg1: i32) -> (i32, i32) {
    %c0_i32 = arith.constant 0 : i32
    %c0_i32_0 = arith.constant 0 : i32
    %c0_i32_1 = arith.constant 0 : i32
    return %c0_i32, %c0_i32_0 : i32, i32
  }
  func.func @transform_7(%arg0: i32, %arg1: i32) -> (i32, i32, i32) {
    %c0_i32 = arith.constant 0 : i32
    %c0_i32_0 = arith.constant 0 : i32
    return %arg1, %arg0, %c0_i32 : i32, i32, i32
  }
}

</mosaic_0001>

<llo_original>
// kernel: cnn_to_rnn_forward.3
$region0: #{cnn_to_rnn_forward.3}
  #allocation0 [shape = 'u32[]', space=smem, size = 0x4, offset = 0x4, fixed_abs, tag = 'smem constant byte address 0x4 - core index']
  #allocation1 [shape = 'u32[144,128]{1,0:T(1,128)}', space=vmem, size = 0x12000, scoped, tag = 'internal scratch']
  %s0 = inlined_call_operand.vmem [shape: f32[8,8,256], index: 0, kind: input, shape index: {}]
  %s1 = inlined_call_operand.vmem [shape: bf16[8,128], index: 1, kind: input, shape index: {}]
  %s2 = inlined_call_operand.vmem [shape: f32[1,128], index: 2, kind: input, shape index: {}]
  %s3 = inlined_call_operand.vmem [shape: f32[8,128], index: 3, kind: output, shape index: {}]
  %s4 = sld [smem:[#allocation0]]
  $region22: #{cnn_to_rnn_forward.3} parent=0
    _
  %s6 = ssub.s32 1, %s4
  %s7 = scalar_select 0, %s6, %s4
  // Predicated region
  $region2: #{cnn_to_rnn_forward.3} parent=0 // pred_check
    _
  $region3: #{cnn_to_rnn_forward.3} parent=0 // pred_check_branch
    %9 = sbr.rel (0) target = $region5
  $region4: #{cnn_to_rnn_forward.3} parent=0 // pred_region
    _
  $region5: #{cnn_to_rnn_forward.3} parent=0 // pred_fallthru
    _
  // Predicated region
  $region6: #{cnn_to_rnn_forward.3} parent=0 // pred_check
    _
  $region7: #{cnn_to_rnn_forward.3} parent=0 // pred_check_branch
    %11 = sbr.rel (0) target = $region9
  $region8: #{cnn_to_rnn_forward.3} parent=0 // pred_region
    _
  $region9: #{cnn_to_rnn_forward.3} parent=0 // pred_fallthru
    _
  // Predicated region
  $region10: #{cnn_to_rnn_forward.3} parent=0 // pred_check
    _
  $region11: #{cnn_to_rnn_forward.3} parent=0 // pred_check_branch
    %13 = sbr.rel (0) target = $region13
  $region12: #{cnn_to_rnn_forward.3} parent=0 // pred_region
    _
  $region13: #{cnn_to_rnn_forward.3} parent=0 // pred_fallthru
    _
  %v15 = vld [vmem:[%s0] sm:$0xff]
  %v16 = vld [vmem:[%s0 + $0x8] sm:$0xff]
  %v17 = vld [vmem:[%s0 + $0x10] sm:$0xff]
  %v18 = vld [vmem:[%s0 + $0x18] sm:$0xff]
  %v19 = vld [vmem:[%s0 + $0x20] sm:$0xff]
  %v20 = vld [vmem:[%s0 + $0x28] sm:$0xff]
  %v21 = vld [vmem:[%s0 + $0x30] sm:$0xff]
  %v22 = vld [vmem:[%s0 + $0x38] sm:$0xff]
  %v23 = vld [vmem:[%s0 + $0x40] sm:$0xff]
  %v24 = vld [vmem:[%s0 + $0x48] sm:$0xff]
  %v25 = vld [vmem:[%s0 + $0x50] sm:$0xff]
  %v26 = vld [vmem:[%s0 + $0x58] sm:$0xff]
  %v27 = vld [vmem:[%s0 + $0x60] sm:$0xff]
  %v28 = vld [vmem:[%s0 + $0x68] sm:$0xff]
  %v29 = vld [vmem:[%s0 + $0x70] sm:$0xff]
  %v30 = vld [vmem:[%s0 + $0x78] sm:$0xff]
  %v31 = vadd.f32 %v15, %v16
  %32 = vadd.xlane.f32.xlu0 %v31
  %v33 = vpop.xlane.xlu0 %32
  %v34 = vadd.f32 %v17, %v18
  %35 = vadd.xlane.f32.xlu0 %v34
  %v36 = vpop.xlane.xlu0 %35
  %v37 = vadd.f32 %v19, %v20
  %38 = vadd.xlane.f32.xlu0 %v37
  %v39 = vpop.xlane.xlu0 %38
  %v40 = vadd.f32 %v21, %v22
  %41 = vadd.xlane.f32.xlu0 %v40
  %v42 = vpop.xlane.xlu0 %41
  %v43 = vadd.f32 %v23, %v24
  %44 = vadd.xlane.f32.xlu0 %v43
  %v45 = vpop.xlane.xlu0 %44
  %v46 = vadd.f32 %v25, %v26
  %47 = vadd.xlane.f32.xlu0 %v46
  %v48 = vpop.xlane.xlu0 %47
  %v49 = vadd.f32 %v27, %v28
  %50 = vadd.xlane.f32.xlu0 %v49
  %v51 = vpop.xlane.xlu0 %50
  %v52 = vadd.f32 %v29, %v30
  %53 = vadd.xlane.f32.xlu0 %v52
  %v54 = vpop.xlane.xlu0 %53
  %v55 = vmul.f32 %v33, 0.00390625
  %v56 = vmul.f32 %v36, 0.00390625
  %v57 = vmul.f32 %v39, 0.00390625
  %v58 = vmul.f32 %v42, 0.00390625
  %v59 = vmul.f32 %v45, 0.00390625
  %v60 = vmul.f32 %v48, 0.00390625
  %v61 = vmul.f32 %v51, 0.00390625
  %v62 = vmul.f32 %v54, 0.00390625
  %v63 = vpack.c.bf16 %v55, %v55
  %v64 = vpack.c.bf16 %v56, %v56
  %v65 = vpack.c.bf16 %v57, %v57
  %v66 = vpack.c.bf16 %v58, %v58
  %v67 = vpack.c.bf16 %v59, %v59
  %v68 = vpack.c.bf16 %v60, %v60
  %v69 = vpack.c.bf16 %v61, %v61
  %v70 = vpack.c.bf16 %v62, %v62
  %v71 = vld [vmem:[%s1] sm:$0xf]
  %v72 = vld [vmem:[%s2] sm:$0x1]
  %v74 = vlaneseq
  %v75 = vshrl.u32 %v74, 7
  %v76 = vsub.s32 0, %v75
  %v77 = vrot.slane %v72, %v76
  %v87 = vunpack.c.l.b16 %v63
  %v88 = vunpack.c.l.b16 %v64
  %v89 = vunpack.c.l.b16 %v65
  %v90 = vunpack.c.l.b16 %v66
  %v91 = vunpack.c.l.b16 %v67
  %v92 = vunpack.c.l.b16 %v68
  %v93 = vunpack.c.l.b16 %v69
  %v94 = vunpack.c.l.b16 %v70
  %v95 = vlaneseq
  %v96 = vand.u32 %v95, 127
  %v97 = vlaneseq
  %v98 = vshrl.u32 %v97, 7
  %v99 = vsub.s32 %v96, %v98
  %v100 = vrot.slane %v87, %v99
  %v101 = vlaneseq
  %v102 = vshrl.u32 %v101, 7
  %v103 = vsub.s32 %v96, %v102
  %v104 = vrot.slane %v88, %v103
  %v105 = vlaneseq
  %v106 = vshrl.u32 %v105, 7
  %v107 = vsub.s32 %v96, %v106
  %v108 = vrot.slane %v89, %v107
  %v109 = vlaneseq
  %v110 = vshrl.u32 %v109, 7
  %v111 = vsub.s32 %v96, %v110
  %v112 = vrot.slane %v90, %v111
  %v113 = vlaneseq
  %v114 = vshrl.u32 %v113, 7
  %v115 = vsub.s32 %v96, %v114
  %v116 = vrot.slane %v91, %v115
  %v117 = vlaneseq
  %v118 = vshrl.u32 %v117, 7
  %v119 = vsub.s32 %v96, %v118
  %v120 = vrot.slane %v92, %v119
  %v121 = vlaneseq
  %v122 = vshrl.u32 %v121, 7
  %v123 = vsub.s32 %v96, %v122
  %v124 = vrot.slane %v93, %v123
  %v125 = vlaneseq
  %v126 = vshrl.u32 %v125, 7
  %v127 = vsub.s32 %v96, %v126
  %v128 = vrot.slane %v94, %v127
  %vm129 = vcmask 1041409
  %v130 = vsel %vm129, %v104, %v100
  %vm131 = vcmask 1042434
  %v132 = vsel %vm131, %v108, %v130
  %vm133 = vcmask 1043459
  %v134 = vsel %vm133, %v112, %v132
  %vm135 = vcmask 1044484
  %v136 = vsel %vm135, %v116, %v134
  %vm137 = vcmask 1045509
  %v138 = vsel %vm137, %v120, %v136
  %vm139 = vcmask 1046534
  %v140 = vsel %vm139, %v124, %v138
  %vm141 = vcmask 1047559
  %v142 = vsel %vm141, %v128, %v140
  %v143 = vpack.c.b16 %v142, %v142
  %vm144 = vcmask 64512
  %v146 = vsel %vm144, %v143, 0
  %vm148 = vcmask 1043456
  %v150 = vsel %vm148, %v71, 0
  %152 = vmatprep.subr.bf16.mxu0 0
  %153 = vmatpush1.bf16.msra.mxu0 %v150
  %154 = vmatprep.subr.bf16.mxu0 0
  %155 = vmatpush1.bf16.msra.mxu0 0
  %156 = vmatprep.subr.bf16.mxu0 0
  %157 = vmatpush1.bf16.msra.mxu0 0
  %158 = vmatprep.subr.bf16.mxu0 0
  %159 = vmatpush1.bf16.msra.mxu0 0
  %160 = vmatprep.subr.bf16.mxu0 0
  %161 = vmatpush1.bf16.msra.mxu0 0
  %162 = vmatprep.subr.bf16.mxu0 0
  %163 = vmatpush1.bf16.msra.mxu0 0
  %164 = vmatprep.subr.bf16.mxu0 0
  %165 = vmatpush1.bf16.msra.mxu0 0
  %166 = vmatprep.subr.bf16.mxu0 0
  %167 = vmatpush1.bf16.msra.mxu0 0
  %168 = vmatprep.subr.bf16.mxu0 0
  %169 = vmatpush1.bf16.msra.mxu0 0
  %170 = vmatprep.subr.bf16.mxu0 0
  %171 = vmatpush1.bf16.msra.mxu0 0
  %172 = vmatprep.subr.bf16.mxu0 0
  %173 = vmatpush1.bf16.msra.mxu0 0
  %174 = vmatprep.subr.bf16.mxu0 0
  %175 = vmatpush1.bf16.msra.mxu0 0
  %176 = vmatprep.subr.bf16.mxu0 0
  %177 = vmatpush1.bf16.msra.mxu0 0
  %178 = vmatprep.subr.bf16.mxu0 0
  %179 = vmatpush1.bf16.msra.mxu0 0
  %180 = vmatprep.subr.bf16.mxu0 0
  %181 = vmatpush1.bf16.msra.mxu0 0
  %182 = vmatprep.subr.bf16.mxu0 0
  %183 = vmatpush1.bf16.msra.mxu0 0
  %184 = vmatprep.mubr.bf16.mxu0 0
  %185 = vmatmul.mubr.bf16.gmra.mrb[0].mxu0 %v146
  %v186 = vpop.f32.mrb[0].mxu0
  %v187 = vadd.f32 %v77, %v186
  %v188 = vpop.f32.mrb[0].mxu0
  %v189 = vpop.f32.mrb[0].mxu0
  %v190 = vpop.f32.mrb[0].mxu0
  %191 = vdwg.mxu0
  %v192 = vmax.f32 %v187, 0.0
  %193 = vst [vmem:[%s3] sm:$0xff] %v192
  // Predicated region
  $region14: #{cnn_to_rnn_forward.3} parent=0 // pred_check
    _
  $region15: #{cnn_to_rnn_forward.3} parent=0 // pred_check_branch
    %195 = sbr.rel (0) target = $region17
  $region16: #{cnn_to_rnn_forward.3} parent=0 // pred_region
    _
  $region17: #{cnn_to_rnn_forward.3} parent=0 // pred_fallthru
    _
  // Predicated region
  $region18: #{cnn_to_rnn_forward.3} parent=0 // pred_check
    _
  $region19: #{cnn_to_rnn_forward.3} parent=0 // pred_check_branch
    %197 = sbr.rel (0) target = $region21
  $region20: #{cnn_to_rnn_forward.3} parent=0 // pred_region
    _
  $region21: #{cnn_to_rnn_forward.3} parent=0 // pred_fallthru
    _

// kernel: cnn_to_rnn_forward.5
$region0: #{cnn_to_rnn_forward.5}
  #allocation0 [shape = 'u32[]', space=smem, size = 0x4, offset = 0x4, fixed_abs, tag = 'smem constant byte address 0x4 - core index']
  #allocation1 [shape = 'u32[144,128]{1,0:T(1,128)}', space=vmem, size = 0x12000, scoped, tag = 'internal scratch']
  %s0 = inlined_call_operand.hbm [shape: bf16[72,128], index: 0, kind: input, shape index: {}]
  %s1 = inlined_call_operand.hbm [shape: bf16[128,128], index: 1, kind: input, shape index: {}]
  %s2 = inlined_call_operand.hbm [shape: f32[1,128], index: 2, kind: input, shape index: {}]
  %s3 = inlined_call_operand.hbm [shape: f32[72,128], index: 3, kind: output, shape index: {}]
  %s4 = sld [smem:[#allocation0]]
  $region34: #{cnn_to_rnn_forward.5} parent=0
    _
  %s6 = ssub.s32 1, %s4
  %s7 = scalar_select 0, %s6, %s4
  $region1: #{cnn_to_rnn_forward.5} parent=0
    #allocation2 [shape = 'u8[18432]{0}', space=vmem, size = 0x4800, scoped, tag = 'input window, operand 0, single buffered']
    #allocation3 [shape = 's32[1]{0}', space=sflag, size = 0x4, scoped, tag = 'scoped memory for cnn_to_rnn_forward.5']
    #allocation4 [shape = 's32[1]{0}', space=sflag, size = 0x4, scoped, tag = 'scoped memory for cnn_to_rnn_forward.5']
    #allocation5 [shape = 'u8[32768]{0}', space=vmem, size = 0x8000, scoped, tag = 'input window, operand 1, single buffered']
    #allocation6 [shape = 's32[1]{0}', space=sflag, size = 0x4, scoped, tag = 'scoped memory for cnn_to_rnn_forward.5']
    #allocation7 [shape = 'u8[512]{0}', space=vmem, size = 0x400, scoped, tag = 'input window, operand 2, single buffered']
    #allocation8 [shape = 'u8[36864]{0}', space=vmem, size = 0x9000, scoped, tag = 'output window, operand 0, single buffered']
    %8 = vsyncpa [#allocation3], 0
    %9 = vsyncpa [#allocation6], 0
    %10 = vsyncpa [#allocation4], 0
    // Predicated region
    $region2: #{cnn_to_rnn_forward.5} parent=1 // pred_check
      _
    $region3: #{cnn_to_rnn_forward.5} parent=1 // pred_check_branch
      %12 = sbr.rel (0) target = $region5
    $region4: #{cnn_to_rnn_forward.5} parent=1 // pred_region
      %s14 = ssub.s32 576, 576
      %15 = vsyncadd [#allocation3], %s14
      %s16 = sshll.u32 [#allocation2], 4
      %s17 = int_to_ptr.vmem [resolvable:$true] %s16
      %22 = dma.hbm_to_vmem [thread:$0]  %s0, 576, %s17, [#allocation3], 64, 64, 4
    $region5: #{cnn_to_rnn_forward.5} parent=1 // pred_fallthru
      _
    // Predicated region
    $region6: #{cnn_to_rnn_forward.5} parent=1 // pred_check
      _
    $region7: #{cnn_to_rnn_forward.5} parent=1 // pred_check_branch
      %24 = sbr.rel (0) target = $region9
    $region8: #{cnn_to_rnn_forward.5} parent=1 // pred_region
      %s26 = ssub.s32 1024, 1024
      %27 = vsyncadd [#allocation6], %s26
      %s28 = sshll.u32 [#allocation5], 4
      %s29 = int_to_ptr.vmem [resolvable:$true] %s28
      %34 = dma.hbm_to_vmem [thread:$0]  %s1, 1024, %s29, [#allocation6], 64, 64, 4
    $region9: #{cnn_to_rnn_forward.5} parent=1 // pred_fallthru
      _
    // Predicated region
    $region10: #{cnn_to_rnn_forward.5} parent=1 // pred_check
      _
    $region11: #{cnn_to_rnn_forward.5} parent=1 // pred_check_branch
      %36 = sbr.rel (0) target = $region13
    $region12: #{cnn_to_rnn_forward.5} parent=1 // pred_region
      %s38 = ssub.s32 16, 16
      %39 = vsyncadd [#allocation6], %s38
      %s41 = sshll.u32 [#allocation7], 4
      %s42 = int_to_ptr.vmem [resolvable:$true] %s41
      %44 = dma.hbm_to_vmem [thread:$0]  %s2, 16, %s42, [#allocation6]
    $region13: #{cnn_to_rnn_forward.5} parent=1 // pred_fallthru
      _
    // Predicated region
    $region14: #{cnn_to_rnn_forward.5} parent=1 // pred_check
      _
    $region15: #{cnn_to_rnn_forward.5} parent=1 // pred_check_branch
      %46 = sbr.rel (0) target = $region17
    $region16: #{cnn_to_rnn_forward.5} parent=1 // pred_region
      %47 = dma.done [#allocation3], 576
    $region17: #{cnn_to_rnn_forward.5} parent=1 // pred_fallthru
      _
    // Predicated region
    $region18: #{cnn_to_rnn_forward.5} parent=1 // pred_check
      _
    $region19: #{cnn_to_rnn_forward.5} parent=1 // pred_check_branch
      %49 = sbr.rel (0) target = $region21
    $region20: #{cnn_to_rnn_forward.5} parent=1 // pred_region
      %50 = dma.done [#allocation6], 1024
    $region21: #{cnn_to_rnn_forward.5} parent=1 // pred_fallthru
      _
    // Predicated region
    $region22: #{cnn_to_rnn_forward.5} parent=1 // pred_check
      _
    $region23: #{cnn_to_rnn_forward.5} parent=1 // pred_check_branch
      %52 = sbr.rel (0) target = $region25
    $region24: #{cnn_to_rnn_forward.5} parent=1 // pred_region
      %53 = dma.done [#allocation6], 16
    $region25: #{cnn_to_rnn_forward.5} parent=1 // pred_fallthru
      _
    %v55 = vld [vmem:[#allocation2] sm:$0xf]
    %v56 = vld [vmem:[#allocation2 + $0x4] sm:$0xf]
    %v57 = vld [vmem:[#allocation2 + $0x8] sm:$0xf]
    %v58 = vld [vmem:[#allocation2 + $0xc] sm:$0xf]
    %v59 = vld [vmem:[#allocation2 + $0x10] sm:$0xf]
    %v60 = vld [vmem:[#allocation2 + $0x14] sm:$0xf]
    %v61 = vld [vmem:[#allocation2 + $0x18] sm:$0xf]
    %v62 = vld [vmem:[#allocation2 + $0x1c] sm:$0xf]
    %v63 = vld [vmem:[#allocation2 + $0x20] sm:$0xf]
    %v64 = vld [vmem:[#allocation5] sm:$0xf]
    %v65 = vld [vmem:[#allocation5 + $0x4] sm:$0xf]
    %v66 = vld [vmem:[#allocation5 + $0x8] sm:$0xf]
    %v67 = vld [vmem:[#allocation5 + $0xc] sm:$0xf]
    %v68 = vld [vmem:[#allocation5 + $0x10] sm:$0xf]
    %v69 = vld [vmem:[#allocation5 + $0x14] sm:$0xf]
    %v70 = vld [vmem:[#allocation5 + $0x18] sm:$0xf]
    %v71 = vld [vmem:[#allocation5 + $0x1c] sm:$0xf]
    %v72 = vld [vmem:[#allocation5 + $0x20] sm:$0xf]
    %v73 = vld [vmem:[#allocation5 + $0x24] sm:$0xf]
    %v74 = vld [vmem:[#allocation5 + $0x28] sm:$0xf]
    %v75 = vld [vmem:[#allocation5 + $0x2c] sm:$0xf]
    %v76 = vld [vmem:[#allocation5 + $0x30] sm:$0xf]
    %v77 = vld [vmem:[#allocation5 + $0x34] sm:$0xf]
    %v78 = vld [vmem:[#allocation5 + $0x38] sm:$0xf]
    %v79 = vld [vmem:[#allocation5 + $0x3c] sm:$0xf]
    %v80 = vld [vmem:[#allocation7] sm:$0x1]
    %v82 = vlaneseq
    %v83 = vshrl.u32 %v82, 7
    %v84 = vsub.s32 0, %v83
    %v85 = vrot.slane %v80, %v84
    %v96 = vunpack.c.l.b16 %v55
    %v97 = vunpack.c.l.b16 %v56
    %v98 = vunpack.c.l.b16 %v57
    %v99 = vunpack.c.l.b16 %v58
    %v100 = vunpack.c.l.b16 %v59
    %v101 = vunpack.c.l.b16 %v60
    %v102 = vunpack.c.l.b16 %v61
    %v103 = vunpack.c.l.b16 %v62
    %v104 = vunpack.c.l.b16 %v63
    %v105 = vpack.c.b16 %v97, %v96
    %v106 = vpack.c.b16 %v99, %v98
    %v107 = vpack.c.b16 %v101, %v100
    %v108 = vpack.c.b16 %v103, %v102
    %v109 = vpack.c.b16 %v104, %v104
    %v131 = vunpack.c.l.b16 %v64
    %v132 = vunpack.c.l.b16 %v65
    %v133 = vunpack.c.l.b16 %v66
    %v134 = vunpack.c.l.b16 %v67
    %v135 = vunpack.c.l.b16 %v68
    %v136 = vunpack.c.l.b16 %v69
    %v137 = vunpack.c.l.b16 %v70
    %v138 = vunpack.c.l.b16 %v71
    %v139 = vunpack.c.l.b16 %v72
    %v140 = vunpack.c.l.b16 %v73
    %v141 = vunpack.c.l.b16 %v74
    %v142 = vunpack.c.l.b16 %v75
    %v143 = vunpack.c.l.b16 %v76
    %v144 = vunpack.c.l.b16 %v77
    %v145 = vunpack.c.l.b16 %v78
    %v146 = vunpack.c.l.b16 %v79
    %v147 = vpack.c.b16 %v132, %v131
    %v148 = vpack.c.b16 %v134, %v133
    %v149 = vpack.c.b16 %v136, %v135
    %v150 = vpack.c.b16 %v138, %v137
    %v151 = vpack.c.b16 %v140, %v139
    %v152 = vpack.c.b16 %v142, %v141
    %v153 = vpack.c.b16 %v144, %v143
    %v154 = vpack.c.b16 %v146, %v145
    %163 = vmatprep.subr.bf16.mxu0 0
    %164 = vmatpush1.bf16.msra.mxu0 %v147
    %165 = vmatprep.subr.bf16.mxu0 0
    %166 = vmatpush1.bf16.msra.mxu0 %v148
    %167 = vmatprep.subr.bf16.mxu0 0
    %168 = vmatpush1.bf16.msra.mxu0 %v149
    %169 = vmatprep.subr.bf16.mxu0 0
    %170 = vmatpush1.bf16.msra.mxu0 %v150
    %171 = vmatprep.subr.bf16.mxu0 0
    %172 = vmatpush1.bf16.msra.mxu0 %v151
    %173 = vmatprep.subr.bf16.mxu0 0
    %174 = vmatpush1.bf16.msra.mxu0 %v152
    %175 = vmatprep.subr.bf16.mxu0 0
    %176 = vmatpush1.bf16.msra.mxu0 %v153
    %177 = vmatprep.subr.bf16.mxu0 0
    %178 = vmatpush1.bf16.msra.mxu0 %v154
    %179 = vmatprep.subr.bf16.mxu0 0
    %180 = vmatpush1.bf16.msra.mxu0 0
    %181 = vmatprep.subr.bf16.mxu0 0
    %182 = vmatpush1.bf16.msra.mxu0 0
    %183 = vmatprep.subr.bf16.mxu0 0
    %184 = vmatpush1.bf16.msra.mxu0 0
    %185 = vmatprep.subr.bf16.mxu0 0
    %186 = vmatpush1.bf16.msra.mxu0 0
    %187 = vmatprep.subr.bf16.mxu0 0
    %188 = vmatpush1.bf16.msra.mxu0 0
    %189 = vmatprep.subr.bf16.mxu0 0
    %190 = vmatpush1.bf16.msra.mxu0 0
    %191 = vmatprep.subr.bf16.mxu0 0
    %192 = vmatpush1.bf16.msra.mxu0 0
    %193 = vmatprep.subr.bf16.mxu0 0
    %194 = vmatpush1.bf16.msra.mxu0 0
    %195 = vmatprep.mubr.bf16.mxu0 0
    %196 = vmatmul.mubr.bf16.gmra.mrb[0].mxu0 %v105
    %v197 = vpop.f32.mrb[0].mxu0
    %v198 = vadd.f32 %v85, %v197
    %v199 = vpop.f32.mrb[0].mxu0
    %v200 = vpop.f32.mrb[0].mxu0
    %v201 = vadd.f32 %v85, %v200
    %v202 = vpop.f32.mrb[0].mxu0
    %203 = vmatprep.mubr.bf16.mxu0 0
    %204 = vmatmul.mubr.bf16.gmra.mrb[0].mxu0 %v106
    %v205 = vpop.f32.mrb[0].mxu0
    %v206 = vadd.f32 %v85, %v205
    %v207 = vpop.f32.mrb[0].mxu0
    %v208 = vpop.f32.mrb[0].mxu0
    %v209 = vadd.f32 %v85, %v208
    %v210 = vpop.f32.mrb[0].mxu0
    %211 = vmatprep.mubr.bf16.mxu0 0
    %212 = vmatmul.mubr.bf16.gmra.mrb[0].mxu0 %v107
    %v213 = vpop.f32.mrb[0].mxu0
    %v214 = vadd.f32 %v85, %v213
    %v215 = vpop.f32.mrb[0].mxu0
    %v216 = vpop.f32.mrb[0].mxu0
    %v217 = vadd.f32 %v85, %v216
    %v218 = vpop.f32.mrb[0].mxu0
    %219 = vmatprep.mubr.bf16.mxu0 0
    %220 = vmatmul.mubr.bf16.gmra.mrb[0].mxu0 %v108
    %v221 = vpop.f32.mrb[0].mxu0
    %v222 = vadd.f32 %v85, %v221
    %v223 = vpop.f32.mrb[0].mxu0
    %v224 = vpop.f32.mrb[0].mxu0
    %v225 = vadd.f32 %v85, %v224
    %v226 = vpop.f32.mrb[0].mxu0
    %227 = vmatprep.mubr.bf16.mxu0 0
    %228 = vmatmul.mubr.bf16.gmra.mrb[0].mxu0 %v109
    %v229 = vpop.f32.mrb[0].mxu0
    %v230 = vadd.f32 %v85, %v229
    %v231 = vpop.f32.mrb[0].mxu0
    %v232 = vpop.f32.mrb[0].mxu0
    %v233 = vpop.f32.mrb[0].mxu0
    %234 = vdwg.mxu0
    %235 = vst [vmem:[#allocation8] sm:$0xff] %v198
    %236 = vst [vmem:[#allocation8 + $0x8] sm:$0xff] %v201
    %237 = vst [vmem:[#allocation8 + $0x10] sm:$0xff] %v206
    %238 = vst [vmem:[#allocation8 + $0x18] sm:$0xff] %v209
    %239 = vst [vmem:[#allocation8 + $0x20] sm:$0xff] %v214
    %240 = vst [vmem:[#allocation8 + $0x28] sm:$0xff] %v217
    %241 = vst [vmem:[#allocation8 + $0x30] sm:$0xff] %v222
    %242 = vst [vmem:[#allocation8 + $0x38] sm:$0xff] %v225
    %243 = vst [vmem:[#allocation8 + $0x40] sm:$0xff] %v230
    // Predicated region
    $region26: #{cnn_to_rnn_forward.5} parent=1 // pred_check
      _
    $region27: #{cnn_to_rnn_forward.5} parent=1 // pred_check_branch
      %245 = sbr.rel (0) target = $region29
    $region28: #{cnn_to_rnn_forward.5} parent=1 // pred_region
      %s247 = ssub.s32 1152, 1152
      %248 = vsyncadd [#allocation4], %s247
      %s249 = sshll.u32 [#allocation8], 4
      %s250 = int_to_ptr.vmem [resolvable:$true] %s249
      %255 = dma.vmem_to_hbm [thread:$0]  %s250, 1152, %s3, [#allocation4], 128, 128, 8
    $region29: #{cnn_to_rnn_forward.5} parent=1 // pred_fallthru
      _
    // Predicated region
    $region30: #{cnn_to_rnn_forward.5} parent=1 // pred_check
      _
    $region31: #{cnn_to_rnn_forward.5} parent=1 // pred_check_branch
      %257 = sbr.rel (0) target = $region33
    $region32: #{cnn_to_rnn_forward.5} parent=1 // pred_region
      %258 = dma.done [#allocation4], 1152
    $region33: #{cnn_to_rnn_forward.5} parent=1 // pred_fallthru
      _
    %259 = vsyncpa [#allocation3], 1
    %260 = vsyncpa [#allocation6], 1
    %261 = vsyncpa [#allocation4], 1

// kernel: cnn_to_rnn_forward.4
$region0: #{cnn_to_rnn_forward.4}
  #allocation0 [shape = 'u32[]', space=smem, size = 0x4, offset = 0x4, fixed_abs, tag = 'smem constant byte address 0x4 - core index']
  #allocation1 [shape = 'u32[144,128]{1,0:T(1,128)}', space=vmem, size = 0x12000, scoped, tag = 'internal scratch']
  #allocation2 [shape = 'f32[2,8,128]{2,1,0:T(8,128)}', space=vmem, size = 0x2000, scoped, tag = 'scratch operand']
  #allocation3 [shape = 'f32[2,8,128]{2,1,0:T(8,128)}', space=vmem, size = 0x2000, scoped, tag = 'scratch operand']
  #allocation4 [shape = 'f32[8,8,512]{2,1,0:T(8,128)}', space=vmem, size = 0x20000, scoped, tag = 'scratch operand']
  %s0 = inlined_call_operand.hbm [shape: bf16[16,8,128], index: 0, kind: input, shape index: {}]
  %s1 = inlined_call_operand.hbm [shape: bf16[128,512], index: 1, kind: input, shape index: {}]
  %s2 = inlined_call_operand.hbm [shape: bf16[128,512], index: 2, kind: input, shape index: {}]
  %s3 = inlined_call_operand.hbm [shape: f32[1,512], index: 3, kind: input, shape index: {}]
  %s4 = inlined_call_operand.hbm [shape: bf16[128,512], index: 4, kind: input, shape index: {}]
  %s5 = inlined_call_operand.hbm [shape: bf16[128,512], index: 5, kind: input, shape index: {}]
  %s6 = inlined_call_operand.hbm [shape: f32[1,512], index: 6, kind: input, shape index: {}]
  %s7 = inlined_call_operand.hbm [shape: bf16[16,8,128], index: 7, kind: output, shape index: {}]
  %s8 = sld [smem:[#allocation0]]
  $region93: #{cnn_to_rnn_forward.4} parent=0
    _
  %s10 = ssub.s32 1, %s8
  %s11 = scalar_select 0, %s10, %s8
  $region1: #{cnn_to_rnn_forward.4} parent=0
    #allocation5 [shape = 'u8[32768]{0}', space=vmem, size = 0x8000, scoped, tag = 'input window, operand 0']
    #allocation6 [shape = 's32[2]{0}', space=sflag, size = 0x8, scoped, tag = 'scoped memory for cnn_to_rnn_forward.4']
    #allocation7 [shape = 's32[2]{0}', space=sflag, size = 0x8, scoped, tag = 'scoped memory for cnn_to_rnn_forward.4']
    #allocation8 [shape = 'u8[131072]{0}', space=vmem, size = 0x20000, scoped, tag = 'input window, operand 1, single buffered']
    #allocation9 [shape = 's32[1]{0}', space=sflag, size = 0x4, scoped, tag = 'scoped memory for cnn_to_rnn_forward.4']
    #allocation10 [shape = 'u8[131072]{0}', space=vmem, size = 0x20000, scoped, tag = 'input window, operand 2, single buffered']
    #allocation11 [shape = 'u8[2048]{0}', space=vmem, size = 0x800, scoped, tag = 'input window, operand 3, single buffered']
    #allocation12 [shape = 's32[1]{0}', space=sflag, size = 0x4, scoped, tag = 'scoped memory for cnn_to_rnn_forward.4']
    #allocation13 [shape = 'u8[131072]{0}', space=vmem, size = 0x20000, scoped, tag = 'input window, operand 4, single buffered']
    #allocation14 [shape = 'u8[131072]{0}', space=vmem, size = 0x20000, scoped, tag = 'input window, operand 5, single buffered']
    #allocation15 [shape = 's32[1]{0}', space=sflag, size = 0x4, scoped, tag = 'scoped memory for cnn_to_rnn_forward.4']
    #allocation16 [shape = 'u8[2048]{0}', space=vmem, size = 0x800, scoped, tag = 'input window, operand 6, single buffered']
    #allocation17 [shape = 'u8[32768]{0}', space=vmem, size = 0x8000, scoped, tag = 'output window, operand 0']
    %12 = vsyncpa [#allocation6], 0
    %s13 = scalar_lea.sflag [#allocation6], 1
    %14 = vsyncpa %s13, 0
    %15 = vsyncpa [#allocation9], 0
    %16 = vsyncpa [#allocation12], 0
    %17 = vsyncpa [#allocation15], 0
    %18 = vsyncpa [#allocation7], 0
    %s19 = scalar_lea.sflag [#allocation7], 1
    %20 = vsyncpa %s19, 0
    loop: start=0, step=1, limit=4
    $region2: #{cnn_to_rnn_forward.4} parent=1 // loop_pre_header
      _
    $region3: #{cnn_to_rnn_forward.4} parent=1 // loop_header
      %s22 = sphi 0, %s26
      %p23 = scmp.ge.s32.totalorder %s22, 4
      %s29 = sphi 0, %s41
      %s30 = sphi 0, %s37
      %s31 = sphi 0, %s29
      %s32 = sphi 0, %s30
      %s33 = sphi 0, %s31
      %s34 = sphi 0, %s32
      %s46 = sphi 0, %s48
      %s49 = sphi 0, %s46
      %s50 = sphi 0, %s49
      %s66 = sphi 0, %s50
      %s70 = sphi 0, %s70
      %s72 = sphi 0, %s70
      %s73 = sphi 0, %s72
      %s87 = sphi 0, %s73
      %s91 = sphi 0, %s91
      %s93 = sphi 0, %s91
      %s94 = sphi 0, %s93
      %s108 = sphi 0, %s94
      %s112 = sphi 0, %s112
      %s114 = sphi 0, %s112
      %s115 = sphi 0, %s114
      %s129 = sphi 0, %s115
      %s133 = sphi 0, %s133
      %s135 = sphi 0, %s133
      %s136 = sphi 0, %s135
      %s150 = sphi 0, %s136
      %s154 = sphi 0, %s154
      %s156 = sphi 0, %s154
      %s157 = sphi 0, %s156
      %s171 = sphi 0, %s157
      %s175 = sphi 0, %s175
      %s177 = sphi 0, %s175
      %s178 = sphi 0, %s177
      %s192 = sphi 0, %s178
      %s200 = sphi 0, %s202
      %s203 = sphi 0, %s200
      %s204 = sphi 0, %s203
      %s220 = sphi 0, %s204
    $region4: #{cnn_to_rnn_forward.4} parent=1 // loop_header_branch
      %25 = sbr.rel (%p23) target = $region8
    $region5: #{cnn_to_rnn_forward.4} parent=1 // loop_body
      %s27 = ssub.s32 %s22, 1
      %s28 = ssub.s32 %s22, 2
      %s35 = sadd.s32 1, %s30
      %p36 = scmp.ge.s32.totalorder %s35, 2
      %s37 = scalar_select %p36, 0, %s35
      %s38 = sadd.s32 1, %s29
      %s39 = scalar_select %p36, %s38, %s29
      %p40 = scmp.ge.s32.totalorder %s39, 1
      %s41 = scalar_select %p40, 0, %s39
      %s42 = ssub.s32 %s30, %s37
      %s43 = ssub.s32 %s29, %s41
      %s44 = sor.u32 %s42, %s43
      %p45 = scmp.eq.s32.totalorder %s44, 0
      %s47 = sadd.s32 %s46, 1
      %s48 = scalar_select %p45, %s46, %s47
      %p51 = pneg %p45
      %p52 = scmp.eq.s32.totalorder %s22, 1
      %p53 = por %p51, %p52
      %p54 = scmp.ne.s32.totalorder %s46, %s49
      %p55 = scmp.eq.s32.totalorder %s22, 0
      %p56 = por %p54, %p55
      %p57 = scmp.ne.s32.totalorder %s46, %s49
      %p58 = scmp.eq.s32.totalorder %s27, 1
      %p59 = por %p57, %p58
      %p60 = scmp.ne.s32.totalorder %s49, %s50
      %p61 = scmp.eq.s32.totalorder %s27, 0
      %p62 = por %p60, %p61
      %p63 = scmp.ne.s32.totalorder %s49, %s50
      %p64 = scmp.eq.s32.totalorder %s28, 1
      %p65 = por %p63, %p64
      %p67 = scmp.ne.s32.totalorder %s50, %s66
      %p68 = scmp.eq.s32.totalorder %s28, 0
      %p69 = por %p67, %p68
      %s71 = sadd.s32 %s70, 1
      %p74 = scmp.eq.s32.totalorder %s22, 1
      %p75 = scmp.ne.s32.totalorder %s70, %s72
      %p76 = scmp.eq.s32.totalorder %s22, 0
      %p77 = por %p75, %p76
      %p78 = scmp.ne.s32.totalorder %s70, %s72
      %p79 = scmp.eq.s32.totalorder %s27, 1
      %p80 = por %p78, %p79
      %p81 = scmp.ne.s32.totalorder %s72, %s73
      %p82 = scmp.eq.s32.totalorder %s27, 0
      %p83 = por %p81, %p82
      %p84 = scmp.ne.s32.totalorder %s72, %s73
      %p85 = scmp.eq.s32.totalorder %s28, 1
      %p86 = por %p84, %p85
      %p88 = scmp.ne.s32.totalorder %s73, %s87
      %p89 = scmp.eq.s32.totalorder %s28, 0
      %p90 = por %p88, %p89
      %s92 = sadd.s32 %s91, 1
      %p95 = scmp.eq.s32.totalorder %s22, 1
      %p96 = scmp.ne.s32.totalorder %s91, %s93
      %p97 = scmp.eq.s32.totalorder %s22, 0
      %p98 = por %p96, %p97
      %p99 = scmp.ne.s32.totalorder %s91, %s93
      %p100 = scmp.eq.s32.totalorder %s27, 1
      %p101 = por %p99, %p100
      %p102 = scmp.ne.s32.totalorder %s93, %s94
      %p103 = scmp.eq.s32.totalorder %s27, 0
      %p104 = por %p102, %p103
      %p105 = scmp.ne.s32.totalorder %s93, %s94
      %p106 = scmp.eq.s32.totalorder %s28, 1
      %p107 = por %p105, %p106
      %p109 = scmp.ne.s32.totalorder %s94, %s108
      %p110 = scmp.eq.s32.totalorder %s28, 0
      %p111 = por %p109, %p110
      %s113 = sadd.s32 %s112, 1
      %p116 = scmp.eq.s32.totalorder %s22, 1
      %p117 = scmp.ne.s32.totalorder %s112, %s114
      %p118 = scmp.eq.s32.totalorder %s22, 0
      %p119 = por %p117, %p118
      %p120 = scmp.ne.s32.totalorder %s112, %s114
      %p121 = scmp.eq.s32.totalorder %s27, 1
      %p122 = por %p120, %p121
      %p123 = scmp.ne.s32.totalorder %s114, %s115
      %p124 = scmp.eq.s32.totalorder %s27, 0
      %p125 = por %p123, %p124
      %p126 = scmp.ne.s32.totalorder %s114, %s115
      %p127 = scmp.eq.s32.totalorder %s28, 1
      %p128 = por %p126, %p127
      %p130 = scmp.ne.s32.totalorder %s115, %s129
      %p131 = scmp.eq.s32.totalorder %s28, 0
      %p132 = por %p130, %p131
      %s134 = sadd.s32 %s133, 1
      %p137 = scmp.eq.s32.totalorder %s22, 1
      %p138 = scmp.ne.s32.totalorder %s133, %s135
      %p139 = scmp.eq.s32.totalorder %s22, 0
      %p140 = por %p138, %p139
      %p141 = scmp.ne.s32.totalorder %s133, %s135
      %p142 = scmp.eq.s32.totalorder %s27, 1
      %p143 = por %p141, %p142
      %p144 = scmp.ne.s32.totalorder %s135, %s136
      %p145 = scmp.eq.s32.totalorder %s27, 0
      %p146 = por %p144, %p145
      %p147 = scmp.ne.s32.totalorder %s135, %s136
      %p148 = scmp.eq.s32.totalorder %s28, 1
      %p149 = por %p147, %p148
      %p151 = scmp.ne.s32.totalorder %s136, %s150
      %p152 = scmp.eq.s32.totalorder %s28, 0
      %p153 = por %p151, %p152
      %s155 = sadd.s32 %s154, 1
      %p158 = scmp.eq.s32.totalorder %s22, 1
      %p159 = scmp.ne.s32.totalorder %s154, %s156
      %p160 = scmp.eq.s32.totalorder %s22, 0
      %p161 = por %p159, %p160
      %p162 = scmp.ne.s32.totalorder %s154, %s156
      %p163 = scmp.eq.s32.totalorder %s27, 1
      %p164 = por %p162, %p163
      %p165 = scmp.ne.s32.totalorder %s156, %s157
      %p166 = scmp.eq.s32.totalorder %s27, 0
      %p167 = por %p165, %p166
      %p168 = scmp.ne.s32.totalorder %s156, %s157
      %p169 = scmp.eq.s32.totalorder %s28, 1
      %p170 = por %p168, %p169
      %p172 = scmp.ne.s32.totalorder %s157, %s171
      %p173 = scmp.eq.s32.totalorder %s28, 0
      %p174 = por %p172, %p173
      %s176 = sadd.s32 %s175, 1
      %p179 = scmp.eq.s32.totalorder %s22, 1
      %p180 = scmp.ne.s32.totalorder %s175, %s177
      %p181 = scmp.eq.s32.totalorder %s22, 0
      %p182 = por %p180, %p181
      %p183 = scmp.ne.s32.totalorder %s175, %s177
      %p184 = scmp.eq.s32.totalorder %s27, 1
      %p185 = por %p183, %p184
      %p186 = scmp.ne.s32.totalorder %s177, %s178
      %p187 = scmp.eq.s32.totalorder %s27, 0
      %p188 = por %p186, %p187
      %p189 = scmp.ne.s32.totalorder %s177, %s178
      %p190 = scmp.eq.s32.totalorder %s28, 1
      %p191 = por %p189, %p190
      %p193 = scmp.ne.s32.totalorder %s178, %s192
      %p194 = scmp.eq.s32.totalorder %s28, 0
      %p195 = por %p193, %p194
      %s196 = ssub.s32 %s30, %s37
      %s197 = ssub.s32 %s29, %s41
      %s198 = sor.u32 %s196, %s197
      %p199 = scmp.eq.s32.totalorder %s198, 0
      %s201 = sadd.s32 %s200, 1
      %s202 = scalar_select %p199, %s200, %s201
      %p205 = pneg %p199
      %p206 = scmp.eq.s32.totalorder %s22, 1
      %p207 = por %p205, %p206
      %p208 = scmp.ne.s32.totalorder %s200, %s203
      %p209 = scmp.eq.s32.totalorder %s22, 0
      %p210 = por %p208, %p209
      %p211 = scmp.ne.s32.totalorder %s200, %s203
      %p212 = scmp.eq.s32.totalorder %s27, 1
      %p213 = por %p211, %p212
      %p214 = scmp.ne.s32.totalorder %s203, %s204
      %p215 = scmp.eq.s32.totalorder %s27, 0
      %p216 = por %p214, %p215
      %p217 = scmp.ne.s32.totalorder %s203, %s204
      %p218 = scmp.eq.s32.totalorder %s28, 1
      %p219 = por %p217, %p218
      %p221 = scmp.ne.s32.totalorder %s204, %s220
      %p222 = scmp.eq.s32.totalorder %s28, 0
      %p223 = por %p221, %p222
      %p224 = scmp.le.s32.totalorder 1, %s22
      %p225 = scmp.lt.s32.totalorder %s22, 3
      %p226 = pnand %p224, %p225
      %p227 = pneg %p226
      // Predicated region
      $region9: #{cnn_to_rnn_forward.4} parent=5 // pred_check
        _
      $region10: #{cnn_to_rnn_forward.4} parent=5 // pred_check_branch
        %229 = sbr.rel (%p226) target = $region12
      $region11: #{cnn_to_rnn_forward.4} parent=5 // pred_region
        %s230 = ssub.s32 %s22, 1
        // Predicated region
        $region13: #{cnn_to_rnn_forward.4} parent=11 // pred_check
          %p231 = pneg %p83
        $region14: #{cnn_to_rnn_forward.4} parent=11 // pred_check_branch
          %233 = sbr.rel (%p231) target = $region16
        $region15: #{cnn_to_rnn_forward.4} parent=11 // pred_region
          %s235 = ssub.s32 4096, 4096
          %236 = vsyncadd [#allocation9], %s235
          %s237 = sshll.u32 [#allocation8], 4
          %s238 = int_to_ptr.vmem [resolvable:$true] %s237
          %243 = dma.hbm_to_vmem [thread:$0]  %s1, 4096, %s238, [#allocation9], 256, 256, 16
        $region16: #{cnn_to_rnn_forward.4} parent=11 // pred_fallthru
          _
        // Predicated region
        $region17: #{cnn_to_rnn_forward.4} parent=11 // pred_check
          %p244 = pneg %p104
        $region18: #{cnn_to_rnn_forward.4} parent=11 // pred_check_branch
          %246 = sbr.rel (%p244) target = $region20
        $region19: #{cnn_to_rnn_forward.4} parent=11 // pred_region
          %s248 = ssub.s32 4096, 4096
          %249 = vsyncadd [#allocation9], %s248
          %s250 = sshll.u32 [#allocation10], 4
          %s251 = int_to_ptr.vmem [resolvable:$true] %s250
          %256 = dma.hbm_to_vmem [thread:$0]  %s2, 4096, %s251, [#allocation9], 256, 256, 16
        $region20: #{cnn_to_rnn_forward.4} parent=11 // pred_fallthru
          _
        // Predicated region
        $region21: #{cnn_to_rnn_forward.4} parent=11 // pred_check
          %p257 = pneg %p125
        $region22: #{cnn_to_rnn_forward.4} parent=11 // pred_check_branch
          %259 = sbr.rel (%p257) target = $region24
        $region23: #{cnn_to_rnn_forward.4} parent=11 // pred_region
          %s261 = ssub.s32 64, 64
          %262 = vsyncadd [#allocation12], %s261
          %s264 = sshll.u32 [#allocation11], 4
          %s265 = int_to_ptr.vmem [resolvable:$true] %s264
          %267 = dma.hbm_to_vmem [thread:$0]  %s3, 64, %s265, [#allocation12]
        $region24: #{cnn_to_rnn_forward.4} parent=11 // pred_fallthru
          _
        // Predicated region
        $region25: #{cnn_to_rnn_forward.4} parent=11 // pred_check
          %p268 = pneg %p146
        $region26: #{cnn_to_rnn_forward.4} parent=11 // pred_check_branch
          %270 = sbr.rel (%p268) target = $region28
        $region27: #{cnn_to_rnn_forward.4} parent=11 // pred_region
          %s272 = ssub.s32 4096, 4096
          %273 = vsyncadd [#allocation12], %s272
          %s274 = sshll.u32 [#allocation13], 4
          %s275 = int_to_ptr.vmem [resolvable:$true] %s274
          %280 = dma.hbm_to_vmem [thread:$0]  %s4, 4096, %s275, [#allocation12], 256, 256, 16
        $region28: #{cnn_to_rnn_forward.4} parent=11 // pred_fallthru
          _
        // Predicated region
        $region29: #{cnn_to_rnn_forward.4} parent=11 // pred_check
          %p281 = pneg %p167
        $region30: #{cnn_to_rnn_forward.4} parent=11 // pred_check_branch
          %283 = sbr.rel (%p281) target = $region32
        $region31: #{cnn_to_rnn_forward.4} parent=11 // pred_region
          %s285 = ssub.s32 4096, 4096
          %286 = vsyncadd [#allocation15], %s285
          %s287 = sshll.u32 [#allocation14], 4
          %s288 = int_to_ptr.vmem [resolvable:$true] %s287
          %293 = dma.hbm_to_vmem [thread:$0]  %s5, 4096, %s288, [#allocation15], 256, 256, 16
        $region32: #{cnn_to_rnn_forward.4} parent=11 // pred_fallthru
          _
        // Predicated region
        $region33: #{cnn_to_rnn_forward.4} parent=11 // pred_check
          %p294 = pneg %p188
        $region34: #{cnn_to_rnn_forward.4} parent=11 // pred_check_branch
          %296 = sbr.rel (%p294) target = $region36
        $region35: #{cnn_to_rnn_forward.4} parent=11 // pred_region
          %s298 = ssub.s32 64, 64
          %299 = vsyncadd [#allocation15], %s298
          %s301 = sshll.u32 [#allocation16], 4
          %s302 = int_to_ptr.vmem [resolvable:$true] %s301
          %304 = dma.hbm_to_vmem [thread:$0]  %s6, 64, %s302, [#allocation15]
        $region36: #{cnn_to_rnn_forward.4} parent=11 // pred_fallthru
          _
      $region12: #{cnn_to_rnn_forward.4} parent=5 // pred_fallthru
        _
      %p305 = scmp.lt.s32.totalorder %s22, 2
      // Predicated region
      $region37: #{cnn_to_rnn_forward.4} parent=5 // pred_check
        %p306 = pneg %p305
      $region38: #{cnn_to_rnn_forward.4} parent=5 // pred_check_branch
        %308 = sbr.rel (%p306) target = $region40
      $region39: #{cnn_to_rnn_forward.4} parent=5 // pred_region
        // Predicated region
        $region41: #{cnn_to_rnn_forward.4} parent=39 // pred_check
          %p309 = pneg %p56
        $region42: #{cnn_to_rnn_forward.4} parent=39 // pred_check_branch
          %311 = sbr.rel (%p309) target = $region44
        $region43: #{cnn_to_rnn_forward.4} parent=39 // pred_region
          %s312 = sand.u32 %s46, 1
          %s313 = scalar_lea.sflag [#allocation6], %s312
          %s314 = sand.u32 %s46, 1
          %s315 = smul.addr %s314, 32
          %s316 = scalar_lea.vmem [#allocation5], %s315
          %s317 = smul.u32 8, %s30
          %s319 = ssub.s32 512, 512
          %320 = vsyncadd %s313, %s319
          %s321 = sadd.s32 %s29, %s317
          %s322 = smul.addr %s321, 64
          %s323 = scalar_lea.hbm %s0, %s322
          %s324 = sshll.u32 %s316, 4
          %s325 = int_to_ptr.vmem [resolvable:$true] %s324
          %330 = dma.hbm_to_vmem [thread:$0]  %s323, 512, %s325, %s313, 64, 64, 4
        $region44: #{cnn_to_rnn_forward.4} parent=39 // pred_fallthru
          _
      $region40: #{cnn_to_rnn_forward.4} parent=5 // pred_fallthru
        _
      %p331 = scmp.le.s32.totalorder 1, %s22
      %p332 = scmp.lt.s32.totalorder %s22, 3
      %p333 = pnand %p331, %p332
      %p334 = pneg %p333
      // Predicated region
      $region45: #{cnn_to_rnn_forward.4} parent=5 // pred_check
        _
      $region46: #{cnn_to_rnn_forward.4} parent=5 // pred_check_branch
        %336 = sbr.rel (%p333) target = $region48
      $region47: #{cnn_to_rnn_forward.4} parent=5 // pred_region
        %s337 = ssub.s32 %s22, 1
        %s338 = sand.u32 %s49, 1
        %s339 = scalar_lea.sflag [#allocation6], %s338
        %s340 = sand.u32 %s49, 1
        %s341 = smul.addr %s340, 32
        %s342 = scalar_lea.vmem [#allocation5], %s341
        // Predicated region
        $region49: #{cnn_to_rnn_forward.4} parent=47 // pred_check
          %p343 = pneg %p62
        $region50: #{cnn_to_rnn_forward.4} parent=47 // pred_check_branch
          %345 = sbr.rel (%p343) target = $region52
        $region51: #{cnn_to_rnn_forward.4} parent=47 // pred_region
          %346 = dma.done %s339, 512
        $region52: #{cnn_to_rnn_forward.4} parent=47 // pred_fallthru
          _
        // Predicated region
        $region53: #{cnn_to_rnn_forward.4} parent=47 // pred_check
          %p347 = pneg %p83
        $region54: #{cnn_to_rnn_forward.4} parent=47 // pred_check_branch
          %349 = sbr.rel (%p347) target = $region56
        $region55: #{cnn_to_rnn_forward.4} parent=47 // pred_region
          %350 = dma.done [#allocation9], 4096
        $region56: #{cnn_to_rnn_forward.4} parent=47 // pred_fallthru
          _
        // Predicated region
        $region57: #{cnn_to_rnn_forward.4} parent=47 // pred_check
          %p351 = pneg %p104
        $region58: #{cnn_to_rnn_forward.4} parent=47 // pred_check_branch
          %353 = sbr.rel (%p351) target = $region60
        $region59: #{cnn_to_rnn_forward.4} parent=47 // pred_region
          %354 = dma.done [#allocation9], 4096
        $region60: #{cnn_to_rnn_forward.4} parent=47 // pred_fallthru
          _
        // Predicated region
        $region61: #{cnn_to_rnn_forward.4} parent=47 // pred_check
          %p355 = pneg %p125
        $region62: #{cnn_to_rnn_forward.4} parent=47 // pred_check_branch
          %357 = sbr.rel (%p355) target = $region64
        $region63: #{cnn_to_rnn_forward.4} parent=47 // pred_region
          %358 = dma.done [#allocation12], 64
        $region64: #{cnn_to_rnn_forward.4} parent=47 // pred_fallthru
          _
        // Predicated region
        $region65: #{cnn_to_rnn_forward.4} parent=47 // pred_check
          %p359 = pneg %p146
        $region66: #{cnn_to_rnn_forward.4} parent=47 // pred_check_branch
          %361 = sbr.rel (%p359) target = $region68
        $region67: #{cnn_to_rnn_forward.4} parent=47 // pred_region
          %362 = dma.done [#allocation12], 4096
        $region68: #{cnn_to_rnn_forward.4} parent=47 // pred_fallthru
          _
        // Predicated region
        $region69: #{cnn_to_rnn_forward.4} parent=47 // pred_check
          %p363 = pneg %p167
        $region70: #{cnn_to_rnn_forward.4} parent=47 // pred_check_branch
          %365 = sbr.rel (%p363) target = $region72
        $region71: #{cnn_to_rnn_forward.4} parent=47 // pred_region
          %366 = dma.done [#allocation15], 4096
        $region72: #{cnn_to_rnn_forward.4} parent=47 // pred_fallthru
          _
        // Predicated region
        $region73: #{cnn_to_rnn_forward.4} parent=47 // pred_check
          %p367 = pneg %p188
        $region74: #{cnn_to_rnn_forward.4} parent=47 // pred_check_branch
          %369 = sbr.rel (%p367) target = $region76
        $region75: #{cnn_to_rnn_forward.4} parent=47 // pred_region
          %370 = dma.done [#allocation15], 64
        $region76: #{cnn_to_rnn_forward.4} parent=47 // pred_fallthru
          _
        %s371 = sand.u32 %s49, 1
        %s372 = scalar_lea.sflag [#allocation6], %s371
        %s373 = sand.u32 %s49, 1
        %s374 = smul.addr %s373, 32
        %s375 = scalar_lea.vmem [#allocation5], %s374
        %p376 = pneg %p62
        %p377 = pneg %p59
        %p378 = pneg %p83
        %p379 = pneg %p80
        %p380 = pneg %p104
        %p381 = pneg %p101
        %p382 = pneg %p125
        %p383 = pneg %p122
        %p384 = pneg %p146
        %p385 = pneg %p143
        %p386 = pneg %p167
        %p387 = pneg %p164
        %p388 = pneg %p188
        %p389 = pneg %p185
        %p390 = pneg %p216
        %p391 = pneg %p213
        %s392 = sand.u32 %s203, 1
        %s393 = scalar_lea.sflag [#allocation7], %s392
        %s394 = sand.u32 %s203, 1
        %s395 = smul.addr %s394, 32
        %s396 = scalar_lea.vmem [#allocation17], %s395
        %s397 = smul.u32 8, %s32
        %s398 = smul.u32 8, %s32
        %p400 = scmp.eq.s32.totalorder %s32, 0
        // Predicated region
        $region77: #{cnn_to_rnn_forward.4} parent=47 // pred_check
          %p401 = pneg %p400
        $region78: #{cnn_to_rnn_forward.4} parent=47 // pred_check_branch
          %403 = sbr.rel (%p401) target = $region80
        $region79: #{cnn_to_rnn_forward.4} parent=47 // pred_region
          %404 = vst [vmem:[#allocation2] sm:$0xff] 0.0
          %405 = vst [vmem:[#allocation2 + $0x8] sm:$0xff] 0.0
          %406 = vst [vmem:[#allocation3] sm:$0xff] 0.0
          %407 = vst [vmem:[#allocation3 + $0x8] sm:$0xff] 0.0
        $region80: #{cnn_to_rnn_forward.4} parent=47 // pred_fallthru
          _
        %v408 = vld [vmem:[%s342] sm:$0xf]
        %v409 = vld [vmem:[%s342 + $0x4] sm:$0xf]
        %v410 = vld [vmem:[%s342 + $0x8] sm:$0xf]
        %v411 = vld [vmem:[%s342 + $0xc] sm:$0xf]
        %v412 = vld [vmem:[%s342 + $0x10] sm:$0xf]
        %v413 = vld [vmem:[%s342 + $0x14] sm:$0xf]
        %v414 = vld [vmem:[%s342 + $0x18] sm:$0xf]
        %v415 = vld [vmem:[%s342 + $0x1c] sm:$0xf]
        %v416 = vld [vmem:[#allocation8] sm:$0xff]
        %v417 = vld [vmem:[#allocation8 + $0x8] sm:$0xff]
        %v418 = vld [vmem:[#allocation8 + $0x10] sm:$0xff]
        %v419 = vld [vmem:[#allocation8 + $0x18] sm:$0xff]
        %v420 = vld [vmem:[#allocation8 + $0x20] sm:$0xff]
        %v421 = vld [vmem:[#allocation8 + $0x28] sm:$0xff]
        %v422 = vld [vmem:[#allocation8 + $0x30] sm:$0xff]
        %v423 = vld [vmem:[#allocation8 + $0x38] sm:$0xff]
        %v424 = vld [vmem:[#allocation8 + $0x40] sm:$0xff]
        %v425 = vld [vmem:[#allocation8 + $0x48] sm:$0xff]
        %v426 = vld [vmem:[#allocation8 + $0x50] sm:$0xff]
        %v427 = vld [vmem:[#allocation8 + $0x58] sm:$0xff]
        %v428 = vld [vmem:[#allocation8 + $0x60] sm:$0xff]
        %v429 = vld [vmem:[#allocation8 + $0x68] sm:$0xff]
        %v430 = vld [vmem:[#allocation8 + $0x70] sm:$0xff]
        %v431 = vld [vmem:[#allocation8 + $0x78] sm:$0xff]
        %v432 = vld [vmem:[#allocation8 + $0x80] sm:$0xff]
        %v433 = vld [vmem:[#allocation8 + $0x88] sm:$0xff]
        %v434 = vld [vmem:[#allocation8 + $0x90] sm:$0xff]
        %v435 = vld [vmem:[#allocation8 + $0x98] sm:$0xff]
        %v436 = vld [vmem:[#allocation8 + $0xa0] sm:$0xff]
        %v437 = vld [vmem:[#allocation8 + $0xa8] sm:$0xff]
        %v438 = vld [vmem:[#allocation8 + $0xb0] sm:$0xff]
        %v439 = vld [vmem:[#allocation8 + $0xb8] sm:$0xff]
        %v440 = vld [vmem:[#allocation8 + $0xc0] sm:$0xff]
        %v441 = vld [vmem:[#allocation8 + $0xc8] sm:$0xff]
        %v442 = vld [vmem:[#allocation8 + $0xd0] sm:$0xff]
        %v443 = vld [vmem:[#allocation8 + $0xd8] sm:$0xff]
        %v444 = vld [vmem:[#allocation8 + $0xe0] sm:$0xff]
        %v445 = vld [vmem:[#allocation8 + $0xe8] sm:$0xff]
        %v446 = vld [vmem:[#allocation8 + $0xf0] sm:$0xff]
        %v447 = vld [vmem:[#allocation8 + $0xf8] sm:$0xff]
        %v456 = vunpack.c.l.b16 %v408
        %v457 = vunpack.c.l.b16 %v409
        %v458 = vunpack.c.l.b16 %v410
        %v459 = vunpack.c.l.b16 %v411
        %v460 = vunpack.c.l.b16 %v412
        %v461 = vunpack.c.l.b16 %v413
        %v462 = vunpack.c.l.b16 %v414
        %v463 = vunpack.c.l.b16 %v415
        %v464 = vpack.c.b16 %v457, %v456
        %v465 = vpack.c.b16 %v459, %v458
        %v466 = vpack.c.b16 %v461, %v460
        %v467 = vpack.c.b16 %v463, %v462
        %v504 = vunpack.c.l.b16 %v416
        %v505 = vunpack.c.h.b16 %v416
        %v506 = vunpack.c.l.b16 %v417
        %v507 = vunpack.c.h.b16 %v417
        %v508 = vunpack.c.l.b16 %v418
        %v509 = vunpack.c.h.b16 %v418
        %v510 = vunpack.c.l.b16 %v419
        %v511 = vunpack.c.h.b16 %v419
        %v512 = vunpack.c.l.b16 %v420
        %v513 = vunpack.c.h.b16 %v420
        %v514 = vunpack.c.l.b16 %v421
        %v515 = vunpack.c.h.b16 %v421
        %v516 = vunpack.c.l.b16 %v422
        %v517 = vunpack.c.h.b16 %v422
        %v518 = vunpack.c.l.b16 %v423
        %v519 = vunpack.c.h.b16 %v423
        %v520 = vunpack.c.l.b16 %v424
        %v521 = vunpack.c.h.b16 %v424
        %v522 = vunpack.c.l.b16 %v425
        %v523 = vunpack.c.h.b16 %v425
        %v524 = vunpack.c.l.b16 %v426
        %v525 = vunpack.c.h.b16 %v426
        %v526 = vunpack.c.l.b16 %v427
        %v527 = vunpack.c.h.b16 %v427
        %v528 = vunpack.c.l.b16 %v428
        %v529 = vunpack.c.h.b16 %v428
        %v530 = vunpack.c.l.b16 %v429
        %v531 = vunpack.c.h.b16 %v429
        %v532 = vunpack.c.l.b16 %v430
        %v533 = vunpack.c.h.b16 %v430
        %v534 = vunpack.c.l.b16 %v431
        %v535 = vunpack.c.h.b16 %v431
        %v536 = vunpack.c.l.b16 %v432
        %v537 = vunpack.c.h.b16 %v432
        %v538 = vunpack.c.l.b16 %v433
        %v539 = vunpack.c.h.b16 %v433
        %v540 = vunpack.c.l.b16 %v434
        %v541 = vunpack.c.h.b16 %v434
        %v542 = vunpack.c.l.b16 %v435
        %v543 = vunpack.c.h.b16 %v435
        %v544 = vunpack.c.l.b16 %v436
        %v545 = vunpack.c.h.b16 %v436
        %v546 = vunpack.c.l.b16 %v437
        %v547 = vunpack.c.h.b16 %v437
        %v548 = vunpack.c.l.b16 %v438
        %v549 = vunpack.c.h.b16 %v438
        %v550 = vunpack.c.l.b16 %v439
        %v551 = vunpack.c.h.b16 %v439
        %v552 = vunpack.c.l.b16 %v440
        %v553 = vunpack.c.h.b16 %v440
        %v554 = vunpack.c.l.b16 %v441
        %v555 = vunpack.c.h.b16 %v441
        %v556 = vunpack.c.l.b16 %v442
        %v557 = vunpack.c.h.b16 %v442
        %v558 = vunpack.c.l.b16 %v443
        %v559 = vunpack.c.h.b16 %v443
        %v560 = vunpack.c.l.b16 %v444
        %v561 = vunpack.c.h.b16 %v444
        %v562 = vunpack.c.l.b16 %v445
        %v563 = vunpack.c.h.b16 %v445
        %v564 = vunpack.c.l.b16 %v446
        %v565 = vunpack.c.h.b16 %v446
        %v566 = vunpack.c.l.b16 %v447
        %v567 = vunpack.c.h.b16 %v447
        %v568 = vpack.c.b16 %v508, %v504
        %v569 = vpack.c.b16 %v509, %v505
        %v570 = vpack.c.b16 %v510, %v506
        %v571 = vpack.c.b16 %v511, %v507
        %v572 = vpack.c.b16 %v516, %v512
        %v573 = vpack.c.b16 %v517, %v513
        %v574 = vpack.c.b16 %v518, %v514
        %v575 = vpack.c.b16 %v519, %v515
        %v576 = vpack.c.b16 %v524, %v520
        %v577 = vpack.c.b16 %v525, %v521
        %v578 = vpack.c.b16 %v526, %v522
        %v579 = vpack.c.b16 %v527, %v523
        %v580 = vpack.c.b16 %v532, %v528
        %v581 = vpack.c.b16 %v533, %v529
        %v582 = vpack.c.b16 %v534, %v530
        %v583 = vpack.c.b16 %v535, %v531
        %v584 = vpack.c.b16 %v540, %v536
        %v585 = vpack.c.b16 %v541, %v537
        %v586 = vpack.c.b16 %v542, %v538
        %v587 = vpack.c.b16 %v543, %v539
        %v588 = vpack.c.b16 %v548, %v544
        %v589 = vpack.c.b16 %v549, %v545
        %v590 = vpack.c.b16 %v550, %v546
        %v591 = vpack.c.b16 %v551, %v547
        %v592 = vpack.c.b16 %v556, %v552
        %v593 = vpack.c.b16 %v557, %v553
        %v594 = vpack.c.b16 %v558, %v554
        %v595 = vpack.c.b16 %v559, %v555
        %v596 = vpack.c.b16 %v564, %v560
        %v597 = vpack.c.b16 %v565, %v561
        %v598 = vpack.c.b16 %v566, %v562
        %v599 = vpack.c.b16 %v567, %v563
        %632 = vmatprep.subr.bf16.mxu0 %v569
        %633 = vmatpush1.bf16.msra.mxu0 %v568
        %634 = vmatprep.subr.bf16.mxu0 %v573
        %635 = vmatpush1.bf16.msra.mxu0 %v572
        %636 = vmatprep.subr.bf16.mxu0 %v577
        %637 = vmatpush1.bf16.msra.mxu0 %v576
        %638 = vmatprep.subr.bf16.mxu0 %v581
        %639 = vmatpush1.bf16.msra.mxu0 %v580
        %640 = vmatprep.subr.bf16.mxu0 %v585
        %641 = vmatpush1.bf16.msra.mxu0 %v584
        %642 = vmatprep.subr.bf16.mxu0 %v589
        %643 = vmatpush1.bf16.msra.mxu0 %v588
        %644 = vmatprep.subr.bf16.mxu0 %v593
        %645 = vmatpush1.bf16.msra.mxu0 %v592
        %646 = vmatprep.subr.bf16.mxu0 %v597
        %647 = vmatpush1.bf16.msra.mxu0 %v596
        %648 = vmatprep.subr.bf16.mxu0 0
        %649 = vmatpush1.bf16.msra.mxu0 0
        %650 = vmatprep.subr.bf16.mxu0 0
        %651 = vmatpush1.bf16.msra.mxu0 0
        %652 = vmatprep.subr.bf16.mxu0 0
        %653 = vmatpush1.bf16.msra.mxu0 0
        %654 = vmatprep.subr.bf16.mxu0 0
        %655 = vmatpush1.bf16.msra.mxu0 0
        %656 = vmatprep.subr.bf16.mxu0 0
        %657 = vmatpush1.bf16.msra.mxu0 0
        %658 = vmatprep.subr.bf16.mxu0 0
        %659 = vmatpush1.bf16.msra.mxu0 0
        %660 = vmatprep.subr.bf16.mxu0 0
        %661 = vmatpush1.bf16.msra.mxu0 0
        %662 = vmatprep.subr.bf16.mxu0 0
        %663 = vmatpush1.bf16.msra.mxu0 0
        %664 = vmatprep.mubr.bf16.mxu0 0
        %665 = vmatmul.mubr.bf16.gmra.mrb[0].mxu0 %v464
        %v666 = vpop.f32.mrb[0].mxu0
        %v667 = vadd.f32 0.0, %v666
        %v668 = vpop.f32.mrb[0].mxu0
        %v669 = vadd.f32 0.0, %v668
        %v670 = vpop.f32.mrb[0].mxu0
        %v671 = vadd.f32 0.0, %v670
        %v672 = vpop.f32.mrb[0].mxu0
        %v673 = vadd.f32 0.0, %v672
        %674 = vmatprep.mubr.bf16.mxu0 0
        %675 = vmatmul.mubr.bf16.gmra.mrb[0].mxu0 %v465
        %v676 = vpop.f32.mrb[0].mxu0
        %v677 = vadd.f32 0.0, %v676
        %v678 = vpop.f32.mrb[0].mxu0
        %v679 = vadd.f32 0.0, %v678
        %v680 = vpop.f32.mrb[0].mxu0
        %v681 = vadd.f32 0.0, %v680
        %v682 = vpop.f32.mrb[0].mxu0
        %v683 = vadd.f32 0.0, %v682
        %684 = vmatprep.mubr.bf16.mxu0 0
        %685 = vmatmul.mubr.bf16.gmra.mrb[0].mxu0 %v466
        %v686 = vpop.f32.mrb[0].mxu0
        %v687 = vadd.f32 0.0, %v686
        %v688 = vpop.f32.mrb[0].mxu0
        %v689 = vadd.f32 0.0, %v688
        %v690 = vpop.f32.mrb[0].mxu0
        %v691 = vadd.f32 0.0, %v690
        %v692 = vpop.f32.mrb[0].mxu0
        %v693 = vadd.f32 0.0, %v692
        %694 = vmatprep.mubr.bf16.mxu0 0
        %695 = vmatmul.mubr.bf16.gmra.mrb[0].mxu0 %v467
        %v696 = vpop.f32.mrb[0].mxu0
        %v697 = vadd.f32 0.0, %v696
        %v698 = vpop.f32.mrb[0].mxu0
        %v699 = vadd.f32 0.0, %v698
        %v700 = vpop.f32.mrb[0].mxu0
        %v701 = vadd.f32 0.0, %v700
        %v702 = vpop.f32.mrb[0].mxu0
        %v703 = vadd.f32 0.0, %v702
        %704 = vdwg.mxu0
        %705 = vmatprep.subr.bf16.mxu0 %v571
        %706 = vmatpush1.bf16.msra.mxu0 %v570
        %707 = vmatprep.subr.bf16.mxu0 %v575
        %708 = vmatpush1.bf16.msra.mxu0 %v574
        %709 = vmatprep.subr.bf16.mxu0 %v579
        %710 = vmatpush1.bf16.msra.mxu0 %v578
        %711 = vmatprep.subr.bf16.mxu0 %v583
        %712 = vmatpush1.bf16.msra.mxu0 %v582
        %713 = vmatprep.subr.bf16.mxu0 %v587
        %714 = vmatpush1.bf16.msra.mxu0 %v586
        %715 = vmatprep.subr.bf16.mxu0 %v591
        %716 = vmatpush1.bf16.msra.mxu0 %v590
        %717 = vmatprep.subr.bf16.mxu0 %v595
        %718 = vmatpush1.bf16.msra.mxu0 %v594
        %719 = vmatprep.subr.bf16.mxu0 %v599
        %720 = vmatpush1.bf16.msra.mxu0 %v598
        %721 = vmatprep.subr.bf16.mxu0 0
        %722 = vmatpush1.bf16.msra.mxu0 0
        %723 = vmatprep.subr.bf16.mxu0 0
        %724 = vmatpush1.bf16.msra.mxu0 0
        %725 = vmatprep.subr.bf16.mxu0 0
        %726 = vmatpush1.bf16.msra.mxu0 0
        %727 = vmatprep.subr.bf16.mxu0 0
        %728 = vmatpush1.bf16.msra.mxu0 0
        %729 = vmatprep.subr.bf16.mxu0 0
        %730 = vmatpush1.bf16.msra.mxu0 0
        %731 = vmatprep.subr.bf16.mxu0 0
        %732 = vmatpush1.bf16.msra.mxu0 0
        %733 = vmatprep.subr.bf16.mxu0 0
        %734 = vmatpush1.bf16.msra.mxu0 0
        %735 = vmatprep.subr.bf16.mxu0 0
        %736 = vmatpush1.bf16.msra.mxu0 0
        %737 = vmatprep.mubr.bf16.mxu0 0
        %738 = vmatmul.mubr.bf16.gmra.mrb[0].mxu0 %v464
        %v739 = vpop.f32.mrb[0].mxu0
        %v740 = vadd.f32 0.0, %v739
        %v741 = vpop.f32.mrb[0].mxu0
        %v742 = vadd.f32 0.0, %v741
        %v743 = vpop.f32.mrb[0].mxu0
        %v744 = vadd.f32 0.0, %v743
        %v745 = vpop.f32.mrb[0].mxu0
        %v746 = vadd.f32 0.0, %v745
        %747 = vmatprep.mubr.bf16.mxu0 0
        %748 = vmatmul.mubr.bf16.gmra.mrb[0].mxu0 %v465
        %v749 = vpop.f32.mrb[0].mxu0
        %v750 = vadd.f32 0.0, %v749
        %v751 = vpop.f32.mrb[0].mxu0
        %v752 = vadd.f32 0.0, %v751
        %v753 = vpop.f32.mrb[0].mxu0
        %v754 = vadd.f32 0.0, %v753
        %v755 = vpop.f32.mrb[0].mxu0
        %v756 = vadd.f32 0.0, %v755
        %757 = vmatprep.mubr.bf16.mxu0 0
        %758 = vmatmul.mubr.bf16.gmra.mrb[0].mxu0 %v466
        %v759 = vpop.f32.mrb[0].mxu0
        %v760 = vadd.f32 0.0, %v759
        %v761 = vpop.f32.mrb[0].mxu0
        %v762 = vadd.f32 0.0, %v761
        %v763 = vpop.f32.mrb[0].mxu0
        %v764 = vadd.f32 0.0, %v763
        %v765 = vpop.f32.mrb[0].mxu0
        %v766 = vadd.f32 0.0, %v765
        %767 = vmatprep.mubr.bf16.mxu0 0
        %768 = vmatmul.mubr.bf16.gmra.mrb[0].mxu0 %v467
        %v769 = vpop.f32.mrb[0].mxu0
        %v770 = vadd.f32 0.0, %v769
        %v771 = vpop.f32.mrb[0].mxu0
        %v772 = vadd.f32 0.0, %v771
        %v773 = vpop.f32.mrb[0].mxu0
        %v774 = vadd.f32 0.0, %v773
        %v775 = vpop.f32.mrb[0].mxu0
        %v776 = vadd.f32 0.0, %v775
        %777 = vdwg.mxu0
        %778 = vst [vmem:[#allocation4] sm:$0xff] %v667
        %779 = vst [vmem:[#allocation4 + $0x8] sm:$0xff] %v669
        %780 = vst [vmem:[#allocation4 + $0x10] sm:$0xff] %v740
        %781 = vst [vmem:[#allocation4 + $0x18] sm:$0xff] %v742
        %782 = vst [vmem:[#allocation4 + $0x20] sm:$0xff] %v671
        %783 = vst [vmem:[#allocation4 + $0x28] sm:$0xff] %v673
        %784 = vst [vmem:[#allocation4 + $0x30] sm:$0xff] %v744
        %785 = vst [vmem:[#allocation4 + $0x38] sm:$0xff] %v746
        %786 = vst [vmem:[#allocation4 + $0x40] sm:$0xff] %v677
        %787 = vst [vmem:[#allocation4 + $0x48] sm:$0xff] %v679
        %788 = vst [vmem:[#allocation4 + $0x50] sm:$0xff] %v750
        %789 = vst [vmem:[#allocation4 + $0x58] sm:$0xff] %v752
        %790 = vst [vmem:[#allocation4 + $0x60] sm:$0xff] %v681
        %791 = vst [vmem:[#allocation4 + $0x68] sm:$0xff] %v683
        %792 = vst [vmem:[#allocation4 + $0x70] sm:$0xff] %v754
        %793 = vst [vmem:[#allocation4 + $0x78] sm:$0xff] %v756
        %794 = vst [vmem:[#allocation4 + $0x80] sm:$0xff] %v687
        %795 = vst [vmem:[#allocation4 + $0x88] sm:$0xff] %v689
        %796 = vst [vmem:[#allocation4 + $0x90] sm:$0xff] %v760
        %797 = vst [vmem:[#allocation4 + $0x98] sm:$0xff] %v762
        %798 = vst [vmem:[#allocation4 + $0xa0] sm:$0xff] %v691
        %799 = vst [vmem:[#allocation4 + $0xa8] sm:$0xff] %v693
        %800 = vst [vmem:[#allocation4 + $0xb0] sm:$0xff] %v764
        %801 = vst [vmem:[#allocation4 + $0xb8] sm:$0xff] %v766
        %802 = vst [vmem:[#allocation4 + $0xc0] sm:$0xff] %v697
        %803 = vst [vmem:[#allocation4 + $0xc8] sm:$0xff] %v699
        %804 = vst [vmem:[#allocation4 + $0xd0] sm:$0xff] %v770
        %805 = vst [vmem:[#allocation4 + $0xd8] sm:$0xff] %v772
        %806 = vst [vmem:[#allocation4 + $0xe0] sm:$0xff] %v701
        %807 = vst [vmem:[#allocation4 + $0xe8] sm:$0xff] %v703
        %808 = vst [vmem:[#allocation4 + $0xf0] sm:$0xff] %v774
        %809 = vst [vmem:[#allocation4 + $0xf8] sm:$0xff] %v776
        %v810 = vld [vmem:[#allocation2] sm:$0xff]
        %v811 = vld [vmem:[#allocation3] sm:$0xff]
        %v812 = vld [vmem:[#allocation4] sm:$0xff]
        %v813 = vld [vmem:[#allocation4 + $0x8] sm:$0xff]
        %v814 = vld [vmem:[#allocation4 + $0x10] sm:$0xff]
        %v815 = vld [vmem:[#allocation4 + $0x18] sm:$0xff]
        %v816 = vpack.c.bf16 %v810, %v810
        %v817 = vld [vmem:[#allocation10] sm:$0xff]
        %v818 = vld [vmem:[#allocation10 + $0x8] sm:$0xff]
        %v819 = vld [vmem:[#allocation10 + $0x10] sm:$0xff]
        %v820 = vld [vmem:[#allocation10 + $0x18] sm:$0xff]
        %v821 = vld [vmem:[#allocation10 + $0x20] sm:$0xff]
        %v822 = vld [vmem:[#allocation10 + $0x28] sm:$0xff]
        %v823 = vld [vmem:[#allocation10 + $0x30] sm:$0xff]
        %v824 = vld [vmem:[#allocation10 + $0x38] sm:$0xff]
        %v825 = vld [vmem:[#allocation10 + $0x40] sm:$0xff]
        %v826 = vld [vmem:[#allocation10 + $0x48] sm:$0xff]
        %v827 = vld [vmem:[#allocation10 + $0x50] sm:$0xff]
        %v828 = vld [vmem:[#allocation10 + $0x58] sm:$0xff]
        %v829 = vld [vmem:[#allocation10 + $0x60] sm:$0xff]
        %v830 = vld [vmem:[#allocation10 + $0x68] sm:$0xff]
        %v831 = vld [vmem:[#allocation10 + $0x70] sm:$0xff]
        %v832 = vld [vmem:[#allocation10 + $0x78] sm:$0xff]
        %v833 = vld [vmem:[#allocation10 + $0x80] sm:$0xff]
        %v834 = vld [vmem:[#allocation10 + $0x88] sm:$0xff]
        %v835 = vld [vmem:[#allocation10 + $0x90] sm:$0xff]
        %v836 = vld [vmem:[#allocation10 + $0x98] sm:$0xff]
        %v837 = vld [vmem:[#allocation10 + $0xa0] sm:$0xff]
        %v838 = vld [vmem:[#allocation10 + $0xa8] sm:$0xff]
        %v839 = vld [vmem:[#allocation10 + $0xb0] sm:$0xff]
        %v840 = vld [vmem:[#allocation10 + $0xb8] sm:$0xff]
        %v841 = vld [vmem:[#allocation10 + $0xc0] sm:$0xff]
        %v842 = vld [vmem:[#allocation10 + $0xc8] sm:$0xff]
        %v843 = vld [vmem:[#allocation10 + $0xd0] sm:$0xff]
        %v844 = vld [vmem:[#allocation10 + $0xd8] sm:$0xff]
        %v845 = vld [vmem:[#allocation10 + $0xe0] sm:$0xff]
        %v846 = vld [vmem:[#allocation10 + $0xe8] sm:$0xff]
        %v847 = vld [vmem:[#allocation10 + $0xf0] sm:$0xff]
        %v848 = vld [vmem:[#allocation10 + $0xf8] sm:$0xff]
        %v881 = vunpack.c.l.b16 %v817
        %v882 = vunpack.c.h.b16 %v817
        %v883 = vunpack.c.l.b16 %v818
        %v884 = vunpack.c.h.b16 %v818
        %v885 = vunpack.c.l.b16 %v819
        %v886 = vunpack.c.h.b16 %v819
        %v887 = vunpack.c.l.b16 %v820
        %v888 = vunpack.c.h.b16 %v820
        %v889 = vunpack.c.l.b16 %v821
        %v890 = vunpack.c.h.b16 %v821
        %v891 = vunpack.c.l.b16 %v822
        %v892 = vunpack.c.h.b16 %v822
        %v893 = vunpack.c.l.b16 %v823
        %v894 = vunpack.c.h.b16 %v823
        %v895 = vunpack.c.l.b16 %v824
        %v896 = vunpack.c.h.b16 %v824
        %v897 = vunpack.c.l.b16 %v825
        %v898 = vunpack.c.h.b16 %v825
        %v899 = vunpack.c.l.b16 %v826
        %v900 = vunpack.c.h.b16 %v826
        %v901 = vunpack.c.l.b16 %v827
        %v902 = vunpack.c.h.b16 %v827
        %v903 = vunpack.c.l.b16 %v828
        %v904 = vunpack.c.h.b16 %v828
        %v905 = vunpack.c.l.b16 %v829
        %v906 = vunpack.c.h.b16 %v829
        %v907 = vunpack.c.l.b16 %v830
        %v908 = vunpack.c.h.b16 %v830
        %v909 = vunpack.c.l.b16 %v831
        %v910 = vunpack.c.h.b16 %v831
        %v911 = vunpack.c.l.b16 %v832
        %v912 = vunpack.c.h.b16 %v832
        %v913 = vunpack.c.l.b16 %v833
        %v914 = vunpack.c.h.b16 %v833
        %v915 = vunpack.c.l.b16 %v834
        %v916 = vunpack.c.h.b16 %v834
        %v917 = vunpack.c.l.b16 %v835
        %v918 = vunpack.c.h.b16 %v835
        %v919 = vunpack.c.l.b16 %v836
        %v920 = vunpack.c.h.b16 %v836
        %v921 = vunpack.c.l.b16 %v837
        %v922 = vunpack.c.h.b16 %v837
        %v923 = vunpack.c.l.b16 %v838
        %v924 = vunpack.c.h.b16 %v838
        %v925 = vunpack.c.l.b16 %v839
        %v926 = vunpack.c.h.b16 %v839
        %v927 = vunpack.c.l.b16 %v840
        %v928 = vunpack.c.h.b16 %v840
        %v929 = vunpack.c.l.b16 %v841
        %v930 = vunpack.c.h.b16 %v841
        %v931 = vunpack.c.l.b16 %v842
        %v932 = vunpack.c.h.b16 %v842
        %v933 = vunpack.c.l.b16 %v843
        %v934 = vunpack.c.h.b16 %v843
        %v935 = vunpack.c.l.b16 %v844
        %v936 = vunpack.c.h.b16 %v844
        %v937 = vunpack.c.l.b16 %v845
        %v938 = vunpack.c.h.b16 %v845
        %v939 = vunpack.c.l.b16 %v846
        %v940 = vunpack.c.h.b16 %v846
        %v941 = vunpack.c.l.b16 %v847
        %v942 = vunpack.c.h.b16 %v847
        %v943 = vunpack.c.l.b16 %v848
        %v944 = vunpack.c.h.b16 %v848
        %v945 = vpack.c.b16 %v885, %v881
        %v946 = vpack.c.b16 %v886, %v882
        %v947 = vpack.c.b16 %v887, %v883
        %v948 = vpack.c.b16 %v888, %v884
        %v949 = vpack.c.b16 %v893, %v889
        %v950 = vpack.c.b16 %v894, %v890
        %v951 = vpack.c.b16 %v895, %v891
        %v952 = vpack.c.b16 %v896, %v892
        %v953 = vpack.c.b16 %v901, %v897
        %v954 = vpack.c.b16 %v902, %v898
        %v955 = vpack.c.b16 %v903, %v899
        %v956 = vpack.c.b16 %v904, %v900
        %v957 = vpack.c.b16 %v909, %v905
        %v958 = vpack.c.b16 %v910, %v906
        %v959 = vpack.c.b16 %v911, %v907
        %v960 = vpack.c.b16 %v912, %v908
        %v961 = vpack.c.b16 %v917, %v913
        %v962 = vpack.c.b16 %v918, %v914
        %v963 = vpack.c.b16 %v919, %v915
        %v964 = vpack.c.b16 %v920, %v916
        %v965 = vpack.c.b16 %v925, %v921
        %v966 = vpack.c.b16 %v926, %v922
        %v967 = vpack.c.b16 %v927, %v923
        %v968 = vpack.c.b16 %v928, %v924
        %v969 = vpack.c.b16 %v933, %v929
        %v970 = vpack.c.b16 %v934, %v930
        %v971 = vpack.c.b16 %v935, %v931
        %v972 = vpack.c.b16 %v936, %v932
        %v973 = vpack.c.b16 %v941, %v937
        %v974 = vpack.c.b16 %v942, %v938
        %v975 = vpack.c.b16 %v943, %v939
        %v976 = vpack.c.b16 %v944, %v940
        %1009 = vmatprep.subr.bf16.mxu0 %v946
        %1010 = vmatpush1.bf16.msra.mxu0 %v945
        %1011 = vmatprep.subr.bf16.mxu0 %v950
        %1012 = vmatpush1.bf16.msra.mxu0 %v949
        %1013 = vmatprep.subr.bf16.mxu0 %v954
        %1014 = vmatpush1.bf16.msra.mxu0 %v953
        %1015 = vmatprep.subr.bf16.mxu0 %v958
        %1016 = vmatpush1.bf16.msra.mxu0 %v957
        %1017 = vmatprep.subr.bf16.mxu0 %v962
        %1018 = vmatpush1.bf16.msra.mxu0 %v961
        %1019 = vmatprep.subr.bf16.mxu0 %v966
        %1020 = vmatpush1.bf16.msra.mxu0 %v965
        %1021 = vmatprep.subr.bf16.mxu0 %v970
        %1022 = vmatpush1.bf16.msra.mxu0 %v969
        %1023 = vmatprep.subr.bf16.mxu0 %v974
        %1024 = vmatpush1.bf16.msra.mxu0 %v973
        %1025 = vmatprep.subr.bf16.mxu0 0
        %1026 = vmatpush1.bf16.msra.mxu0 0
        %1027 = vmatprep.subr.bf16.mxu0 0
        %1028 = vmatpush1.bf16.msra.mxu0 0
        %1029 = vmatprep.subr.bf16.mxu0 0
        %1030 = vmatpush1.bf16.msra.mxu0 0
        %1031 = vmatprep.subr.bf16.mxu0 0
        %1032 = vmatpush1.bf16.msra.mxu0 0
        %1033 = vmatprep.subr.bf16.mxu0 0
        %1034 = vmatpush1.bf16.msra.mxu0 0
        %1035 = vmatprep.subr.bf16.mxu0 0
        %1036 = vmatpush1.bf16.msra.mxu0 0
        %1037 = vmatprep.subr.bf16.mxu0 0
        %1038 = vmatpush1.bf16.msra.mxu0 0
        %1039 = vmatprep.subr.bf16.mxu0 0
        %1040 = vmatpush1.bf16.msra.mxu0 0
        %1041 = vmatprep.mubr.bf16.mxu0 0
        %1042 = vmatmul.mubr.bf16.gmra.mrb[0].mxu0 %v816
        %v1043 = vpop.f32.mrb[0].mxu0
        %v1044 = vadd.f32 0.0, %v1043
        %v1045 = vpop.f32.mrb[0].mxu0
        %v1046 = vadd.f32 0.0, %v1045
        %v1047 = vpop.f32.mrb[0].mxu0
        %v1048 = vpop.f32.mrb[0].mxu0
        %1049 = vdwg.mxu0
        %1050 = vmatprep.subr.bf16.mxu0 %v948
        %1051 = vmatpush1.bf16.msra.mxu0 %v947
        %1052 = vmatprep.subr.bf16.mxu0 %v952
        %1053 = vmatpush1.bf16.msra.mxu0 %v951
        %1054 = vmatprep.subr.bf16.mxu0 %v956
        %1055 = vmatpush1.bf16.msra.mxu0 %v955
        %1056 = vmatprep.subr.bf16.mxu0 %v960
        %1057 = vmatpush1.bf16.msra.mxu0 %v959
        %1058 = vmatprep.subr.bf16.mxu0 %v964
        %1059 = vmatpush1.bf16.msra.mxu0 %v963
        %1060 = vmatprep.subr.bf16.mxu0 %v968
        %1061 = vmatpush1.bf16.msra.mxu0 %v967
        %1062 = vmatprep.subr.bf16.mxu0 %v972
        %1063 = vmatpush1.bf16.msra.mxu0 %v971
        %1064 = vmatprep.subr.bf16.mxu0 %v976
        %1065 = vmatpush1.bf16.msra.mxu0 %v975
        %1066 = vmatprep.subr.bf16.mxu0 0
        %1067 = vmatpush1.bf16.msra.mxu0 0
        %1068 = vmatprep.subr.bf16.mxu0 0
        %1069 = vmatpush1.bf16.msra.mxu0 0
        %1070 = vmatprep.subr.bf16.mxu0 0
        %1071 = vmatpush1.bf16.msra.mxu0 0
        %1072 = vmatprep.subr.bf16.mxu0 0
        %1073 = vmatpush1.bf16.msra.mxu0 0
        %1074 = vmatprep.subr.bf16.mxu0 0
        %1075 = vmatpush1.bf16.msra.mxu0 0
        %1076 = vmatprep.subr.bf16.mxu0 0
        %1077 = vmatpush1.bf16.msra.mxu0 0
        %1078 = vmatprep.subr.bf16.mxu0 0
        %1079 = vmatpush1.bf16.msra.mxu0 0
        %1080 = vmatprep.subr.bf16.mxu0 0
        %1081 = vmatpush1.bf16.msra.mxu0 0
        %1082 = vmatprep.mubr.bf16.mxu0 0
        %1083 = vmatmul.mubr.bf16.gmra.mrb[0].mxu0 %v816
        %v1084 = vpop.f32.mrb[0].mxu0
        %v1085 = vadd.f32 0.0, %v1084
        %v1086 = vpop.f32.mrb[0].mxu0
        %v1087 = vadd.f32 0.0, %v1086
        %v1088 = vpop.f32.mrb[0].mxu0
        %v1089 = vpop.f32.mrb[0].mxu0
        %1090 = vdwg.mxu0
        %v1091 = vadd.f32 %v812, %v1044
        %v1092 = vadd.f32 %v813, %v1046
        %v1093 = vadd.f32 %v814, %v1085
        %v1094 = vadd.f32 %v815, %v1087
        %v1095 = vld [vmem:[#allocation11] sm:$0xf]
        %v1097 = vlaneseq
        %v1098 = vshrl.u32 %v1097, 7
        %v1099 = vsub.s32 0, %v1098
        %v1100 = vrot.slane %v1095, %v1099
        %v1101 = vlaneseq
        %v1102 = vshrl.u32 %v1101, 7
        %v1103 = vsub.s32 1, %v1102
        %v1104 = vrot.slane %v1095, %v1103
        %v1105 = vlaneseq
        %v1106 = vshrl.u32 %v1105, 7
        %v1107 = vsub.s32 2, %v1106
        %v1108 = vrot.slane %v1095, %v1107
        %v1109 = vlaneseq
        %v1110 = vshrl.u32 %v1109, 7
        %v1111 = vsub.s32 3, %v1110
        %v1112 = vrot.slane %v1095, %v1111
        %v1117 = vadd.f32 %v1091, %v1100
        %v1118 = vadd.f32 %v1092, %v1104
        %v1119 = vadd.f32 %v1093, %v1108
        %v1120 = vadd.f32 %v1094, %v1112
        %v1121 = vxor.u32 %v1117, 2147483648
        %v1122 = vmul.f32 %v1121, 1.442695
        %v1123 = vpow.pop %v1122
        %v1124 = vadd.f32 %v1123, 1.0
        %v1125 = vrcp.pop %v1124
        %v1126 = vmul.f32 1.0, %v1125
        %v1127 = vxor.u32 %v1118, 2147483648
        %v1128 = vmul.f32 %v1127, 1.442695
        %v1129 = vpow.pop %v1128
        %v1130 = vadd.f32 %v1129, 1.0
        %v1131 = vrcp.pop %v1130
        %v1132 = vmul.f32 1.0, %v1131
        %v1133 = vtanh.pop %v1119
        %v1134 = vxor.u32 %v1120, 2147483648
        %v1135 = vmul.f32 %v1134, 1.442695
        %v1136 = vpow.pop %v1135
        %v1137 = vadd.f32 %v1136, 1.0
        %v1138 = vrcp.pop %v1137
        %v1139 = vmul.f32 1.0, %v1138
        %v1140 = vmul.f32 %v1132, %v811
        %v1141 = vmul.f32 %v1126, %v1133
        %v1142 = vadd.f32 %v1140, %v1141
        %v1143 = vtanh.pop %v1142
        %v1144 = vmul.f32 %v1139, %v1143
        %v1145 = vpack.c.bf16 %v1144, %v1144
        %1146 = vst [vmem:[%s396] sm:$0xf] %v1145
        %s1147 = scalar_lea.vmem [#allocation4], 32
        %v1148 = vld [vmem:[%s1147] sm:$0xff]
        %v1149 = vld [vmem:[%s1147 + $0x8] sm:$0xff]
        %v1150 = vld [vmem:[%s1147 + $0x10] sm:$0xff]
        %v1151 = vld [vmem:[%s1147 + $0x18] sm:$0xff]
        %v1152 = vld [vmem:[#allocation10] sm:$0xff]
        %v1153 = vld [vmem:[#allocation10 + $0x8] sm:$0xff]
        %v1154 = vld [vmem:[#allocation10 + $0x10] sm:$0xff]
        %v1155 = vld [vmem:[#allocation10 + $0x18] sm:$0xff]
        %v1156 = vld [vmem:[#allocation10 + $0x20] sm:$0xff]
        %v1157 = vld [vmem:[#allocation10 + $0x28] sm:$0xff]
        %v1158 = vld [vmem:[#allocation10 + $0x30] sm:$0xff]
        %v1159 = vld [vmem:[#allocation10 + $0x38] sm:$0xff]
        %v1160 = vld [vmem:[#allocation10 + $0x40] sm:$0xff]
        %v1161 = vld [vmem:[#allocation10 + $0x48] sm:$0xff]
        %v1162 = vld [vmem:[#allocation10 + $0x50] sm:$0xff]
        %v1163 = vld [vmem:[#allocation10 + $0x58] sm:$0xff]
        %v1164 = vld [vmem:[#allocation10 + $0x60] sm:$0xff]
        %v1165 = vld [vmem:[#allocation10 + $0x68] sm:$0xff]
        %v1166 = vld [vmem:[#allocation10 + $0x70] sm:$0xff]
        %v1167 = vld [vmem:[#allocation10 + $0x78] sm:$0xff]
        %v1168 = vld [vmem:[#allocation10 + $0x80] sm:$0xff]
        %v1169 = vld [vmem:[#allocation10 + $0x88] sm:$0xff]
        %v1170 = vld [vmem:[#allocation10 + $0x90] sm:$0xff]
        %v1171 = vld [vmem:[#allocation10 + $0x98] sm:$0xff]
        %v1172 = vld [vmem:[#allocation10 + $0xa0] sm:$0xff]
        %v1173 = vld [vmem:[#allocation10 + $0xa8] sm:$0xff]
        %v1174 = vld [vmem:[#allocation10 + $0xb0] sm:$0xff]
        %v1175 = vld [vmem:[#allocation10 + $0xb8] sm:$0xff]
        %v1176 = vld [vmem:[#allocation10 + $0xc0] sm:$0xff]
        %v1177 = vld [vmem:[#allocation10 + $0xc8] sm:$0xff]
        %v1178 = vld [vmem:[#allocation10 + $0xd0] sm:$0xff]
        %v1179 = vld [vmem:[#allocation10 + $0xd8] sm:$0xff]
        %v1180 = vld [vmem:[#allocation10 + $0xe0] sm:$0xff]
        %v1181 = vld [vmem:[#allocation10 + $0xe8] sm:$0xff]
        %v1182 = vld [vmem:[#allocation10 + $0xf0] sm:$0xff]
        %v1183 = vld [vmem:[#allocation10 + $0xf8] sm:$0xff]
        %v1216 = vunpack.c.l.b16 %v1152
        %v1217 = vunpack.c.h.b16 %v1152
        %v1218 = vunpack.c.l.b16 %v1153
        %v1219 = vunpack.c.h.b16 %v1153
        %v1220 = vunpack.c.l.b16 %v1154
        %v1221 = vunpack.c.h.b16 %v1154
        %v1222 = vunpack.c.l.b16 %v1155
        %v1223 = vunpack.c.h.b16 %v1155
        %v1224 = vunpack.c.l.b16 %v1156
        %v1225 = vunpack.c.h.b16 %v1156
        %v1226 = vunpack.c.l.b16 %v1157
        %v1227 = vunpack.c.h.b16 %v1157
        %v1228 = vunpack.c.l.b16 %v1158
        %v1229 = vunpack.c.h.b16 %v1158
        %v1230 = vunpack.c.l.b16 %v1159
        %v1231 = vunpack.c.h.b16 %v1159
        %v1232 = vunpack.c.l.b16 %v1160
        %v1233 = vunpack.c.h.b16 %v1160
        %v1234 = vunpack.c.l.b16 %v1161
        %v1235 = vunpack.c.h.b16 %v1161
        %v1236 = vunpack.c.l.b16 %v1162
        %v1237 = vunpack.c.h.b16 %v1162
        %v1238 = vunpack.c.l.b16 %v1163
        %v1239 = vunpack.c.h.b16 %v1163
        %v1240 = vunpack.c.l.b16 %v1164
        %v1241 = vunpack.c.h.b16 %v1164
        %v1242 = vunpack.c.l.b16 %v1165
        %v1243 = vunpack.c.h.b16 %v1165
        %v1244 = vunpack.c.l.b16 %v1166
        %v1245 = vunpack.c.h.b16 %v1166
        %v1246 = vunpack.c.l.b16 %v1167
        %v1247 = vunpack.c.h.b16 %v1167
        %v1248 = vunpack.c.l.b16 %v1168
        %v1249 = vunpack.c.h.b16 %v1168
        %v1250 = vunpack.c.l.b16 %v1169
        %v1251 = vunpack.c.h.b16 %v1169
        %v1252 = vunpack.c.l.b16 %v1170
        %v1253 = vunpack.c.h.b16 %v1170
        %v1254 = vunpack.c.l.b16 %v1171
        %v1255 = vunpack.c.h.b16 %v1171
        %v1256 = vunpack.c.l.b16 %v1172
        %v1257 = vunpack.c.h.b16 %v1172
        %v1258 = vunpack.c.l.b16 %v1173
        %v1259 = vunpack.c.h.b16 %v1173
        %v1260 = vunpack.c.l.b16 %v1174
        %v1261 = vunpack.c.h.b16 %v1174
        %v1262 = vunpack.c.l.b16 %v1175
        %v1263 = vunpack.c.h.b16 %v1175
        %v1264 = vunpack.c.l.b16 %v1176
        %v1265 = vunpack.c.h.b16 %v1176
        %v1266 = vunpack.c.l.b16 %v1177
        %v1267 = vunpack.c.h.b16 %v1177
        %v1268 = vunpack.c.l.b16 %v1178
        %v1269 = vunpack.c.h.b16 %v1178
        %v1270 = vunpack.c.l.b16 %v1179
        %v1271 = vunpack.c.h.b16 %v1179
        %v1272 = vunpack.c.l.b16 %v1180
        %v1273 = vunpack.c.h.b16 %v1180
        %v1274 = vunpack.c.l.b16 %v1181
        %v1275 = vunpack.c.h.b16 %v1181
        %v1276 = vunpack.c.l.b16 %v1182
        %v1277 = vunpack.c.h.b16 %v1182
        %v1278 = vunpack.c.l.b16 %v1183
        %v1279 = vunpack.c.h.b16 %v1183
        %v1280 = vpack.c.b16 %v1220, %v1216
        %v1281 = vpack.c.b16 %v1221, %v1217
        %v1282 = vpack.c.b16 %v1222, %v1218
        %v1283 = vpack.c.b16 %v1223, %v1219
        %v1284 = vpack.c.b16 %v1228, %v1224
        %v1285 = vpack.c.b16 %v1229, %v1225
        %v1286 = vpack.c.b16 %v1230, %v1226
        %v1287 = vpack.c.b16 %v1231, %v1227
        %v1288 = vpack.c.b16 %v1236, %v1232
        %v1289 = vpack.c.b16 %v1237, %v1233
        %v1290 = vpack.c.b16 %v1238, %v1234
        %v1291 = vpack.c.b16 %v1239, %v1235
        %v1292 = vpack.c.b16 %v1244, %v1240
        %v1293 = vpack.c.b16 %v1245, %v1241
        %v1294 = vpack.c.b16 %v1246, %v1242
        %v1295 = vpack.c.b16 %v1247, %v1243
        %v1296 = vpack.c.b16 %v1252, %v1248
        %v1297 = vpack.c.b16 %v1253, %v1249
        %v1298 = vpack.c.b16 %v1254, %v1250
        %v1299 = vpack.c.b16 %v1255, %v1251
        %v1300 = vpack.c.b16 %v1260, %v1256
        %v1301 = vpack.c.b16 %v1261, %v1257
        %v1302 = vpack.c.b16 %v1262, %v1258
        %v1303 = vpack.c.b16 %v1263, %v1259
        %v1304 = vpack.c.b16 %v1268, %v1264
        %v1305 = vpack.c.b16 %v1269, %v1265
        %v1306 = vpack.c.b16 %v1270, %v1266
        %v1307 = vpack.c.b16 %v1271, %v1267
        %v1308 = vpack.c.b16 %v1276, %v1272
        %v1309 = vpack.c.b16 %v1277, %v1273
        %v1310 = vpack.c.b16 %v1278, %v1274
        %v1311 = vpack.c.b16 %v1279, %v1275
        %1344 = vmatprep.subr.bf16.mxu0 %v1281
        %1345 = vmatpush1.bf16.msra.mxu0 %v1280
        %1346 = vmatprep.subr.bf16.mxu0 %v1285
        %1347 = vmatpush1.bf16.msra.mxu0 %v1284
        %1348 = vmatprep.subr.bf16.mxu0 %v1289
        %1349 = vmatpush1.bf16.msra.mxu0 %v1288
        %1350 = vmatprep.subr.bf16.mxu0 %v1293
        %1351 = vmatpush1.bf16.msra.mxu0 %v1292
        %1352 = vmatprep.subr.bf16.mxu0 %v1297
        %1353 = vmatpush1.bf16.msra.mxu0 %v1296
        %1354 = vmatprep.subr.bf16.mxu0 %v1301
        %1355 = vmatpush1.bf16.msra.mxu0 %v1300
        %1356 = vmatprep.subr.bf16.mxu0 %v1305
        %1357 = vmatpush1.bf16.msra.mxu0 %v1304
        %1358 = vmatprep.subr.bf16.mxu0 %v1309
        %1359 = vmatpush1.bf16.msra.mxu0 %v1308
        %1360 = vmatprep.subr.bf16.mxu0 0
        %1361 = vmatpush1.bf16.msra.mxu0 0
        %1362 = vmatprep.subr.bf16.mxu0 0
        %1363 = vmatpush1.bf16.msra.mxu0 0
        %1364 = vmatprep.subr.bf16.mxu0 0
        %1365 = vmatpush1.bf16.msra.mxu0 0
        %1366 = vmatprep.subr.bf16.mxu0 0
        %1367 = vmatpush1.bf16.msra.mxu0 0
        %1368 = vmatprep.subr.bf16.mxu0 0
        %1369 = vmatpush1.bf16.msra.mxu0 0
        %1370 = vmatprep.subr.bf16.mxu0 0
        %1371 = vmatpush1.bf16.msra.mxu0 0
        %1372 = vmatprep.subr.bf16.mxu0 0
        %1373 = vmatpush1.bf16.msra.mxu0 0
        %1374 = vmatprep.subr.bf16.mxu0 0
        %1375 = vmatpush1.bf16.msra.mxu0 0
        %1376 = vmatprep.mubr.bf16.mxu0 0
        %1377 = vmatmul.mubr.bf16.gmra.mrb[0].mxu0 %v1145
        %v1378 = vpop.f32.mrb[0].mxu0
        %v1379 = vadd.f32 0.0, %v1378
        %v1380 = vpop.f32.mrb[0].mxu0
        %v1381 = vadd.f32 0.0, %v1380
        %v1382 = vpop.f32.mrb[0].mxu0
        %v1383 = vpop.f32.mrb[0].mxu0
        %1384 = vdwg.mxu0
        %1385 = vmatprep.subr.bf16.mxu0 %v1283
        %1386 = vmatpush1.bf16.msra.mxu0 %v1282
        %1387 = vmatprep.subr.bf16.mxu0 %v1287
        %1388 = vmatpush1.bf16.msra.mxu0 %v1286
        %1389 = vmatprep.subr.bf16.mxu0 %v1291
        %1390 = vmatpush1.bf16.msra.mxu0 %v1290
        %1391 = vmatprep.subr.bf16.mxu0 %v1295
        %1392 = vmatpush1.bf16.msra.mxu0 %v1294
        %1393 = vmatprep.subr.bf16.mxu0 %v1299
        %1394 = vmatpush1.bf16.msra.mxu0 %v1298
        %1395 = vmatprep.subr.bf16.mxu0 %v1303
        %1396 = vmatpush1.bf16.msra.mxu0 %v1302
        %1397 = vmatprep.subr.bf16.mxu0 %v1307
        %1398 = vmatpush1.bf16.msra.mxu0 %v1306
        %1399 = vmatprep.subr.bf16.mxu0 %v1311
        %1400 = vmatpush1.bf16.msra.mxu0 %v1310
        %1401 = vmatprep.subr.bf16.mxu0 0
        %1402 = vmatpush1.bf16.msra.mxu0 0
        %1403 = vmatprep.subr.bf16.mxu0 0
        %1404 = vmatpush1.bf16.msra.mxu0 0
        %1405 = vmatprep.subr.bf16.mxu0 0
        %1406 = vmatpush1.bf16.msra.mxu0 0
        %1407 = vmatprep.subr.bf16.mxu0 0
        %1408 = vmatpush1.bf16.msra.mxu0 0
        %1409 = vmatprep.subr.bf16.mxu0 0
        %1410 = vmatpush1.bf16.msra.mxu0 0
        %1411 = vmatprep.subr.bf16.mxu0 0
        %1412 = vmatpush1.bf16.msra.mxu0 0
        %1413 = vmatprep.subr.bf16.mxu0 0
        %1414 = vmatpush1.bf16.msra.mxu0 0
        %1415 = vmatprep.subr.bf16.mxu0 0
        %1416 = vmatpush1.bf16.msra.mxu0 0
        %1417 = vmatprep.mubr.bf16.mxu0 0
        %1418 = vmatmul.mubr.bf16.gmra.mrb[0].mxu0 %v1145
        %v1419 = vpop.f32.mrb[0].mxu0
        %v1420 = vadd.f32 0.0, %v1419
        %v1421 = vpop.f32.mrb[0].mxu0
        %v1422 = vadd.f32 0.0, %v1421
        %v1423 = vpop.f32.mrb[0].mxu0
        %v1424 = vpop.f32.mrb[0].mxu0
        %1425 = vdwg.mxu0
        %v1426 = vadd.f32 %v1148, %v1379
        %v1427 = vadd.f32 %v1149, %v1381
        %v1428 = vadd.f32 %v1150, %v1420
        %v1429 = vadd.f32 %v1151, %v1422
        %v1430 = vld [vmem:[#allocation11] sm:$0xf]
        %v1432 = vlaneseq
        %v1433 = vshrl.u32 %v1432, 7
        %v1434 = vsub.s32 0, %v1433
        %v1435 = vrot.slane %v1430, %v1434
        %v1436 = vlaneseq
        %v1437 = vshrl.u32 %v1436, 7
        %v1438 = vsub.s32 1, %v1437
        %v1439 = vrot.slane %v1430, %v1438
        %v1440 = vlaneseq
        %v1441 = vshrl.u32 %v1440, 7
        %v1442 = vsub.s32 2, %v1441
        %v1443 = vrot.slane %v1430, %v1442
        %v1444 = vlaneseq
        %v1445 = vshrl.u32 %v1444, 7
        %v1446 = vsub.s32 3, %v1445
        %v1447 = vrot.slane %v1430, %v1446
        %v1452 = vadd.f32 %v1426, %v1435
        %v1453 = vadd.f32 %v1427, %v1439
        %v1454 = vadd.f32 %v1428, %v1443
        %v1455 = vadd.f32 %v1429, %v1447
        %v1456 = vxor.u32 %v1452, 2147483648
        %v1457 = vmul.f32 %v1456, 1.442695
        %v1458 = vpow.pop %v1457
        %v1459 = vadd.f32 %v1458, 1.0
        %v1460 = vrcp.pop %v1459
        %v1461 = vmul.f32 1.0, %v1460
        %v1462 = vxor.u32 %v1453, 2147483648
        %v1463 = vmul.f32 %v1462, 1.442695
        %v1464 = vpow.pop %v1463
        %v1465 = vadd.f32 %v1464, 1.0
        %v1466 = vrcp.pop %v1465
        %v1467 = vmul.f32 1.0, %v1466
        %v1468 = vtanh.pop %v1454
        %v1469 = vxor.u32 %v1455, 2147483648
        %v1470 = vmul.f32 %v1469, 1.442695
        %v1471 = vpow.pop %v1470
        %v1472 = vadd.f32 %v1471, 1.0
        %v1473 = vrcp.pop %v1472
        %v1474 = vmul.f32 1.0, %v1473
        %v1475 = vmul.f32 %v1467, %v1142
        %v1476 = vmul.f32 %v1461, %v1468
        %v1477 = vadd.f32 %v1475, %v1476
        %v1478 = vtanh.pop %v1477
        %v1479 = vmul.f32 %v1474, %v1478
        %v1480 = vpack.c.bf16 %v1479, %v1479
        %s1481 = scalar_lea.vmem %s396, 4 [#allocation17]
        %1482 = vst [vmem:[%s1481] sm:$0xf] %v1480
        %s1483 = scalar_lea.vmem [#allocation4], 64
        %v1484 = vld [vmem:[%s1483] sm:$0xff]
        %v1485 = vld [vmem:[%s1483 + $0x8] sm:$0xff]
        %v1486 = vld [vmem:[%s1483 + $0x10] sm:$0xff]
        %v1487 = vld [vmem:[%s1483 + $0x18] sm:$0xff]
        %v1488 = vld [vmem:[#allocation10] sm:$0xff]
        %v1489 = vld [vmem:[#allocation10 + $0x8] sm:$0xff]
        %v1490 = vld [vmem:[#allocation10 + $0x10] sm:$0xff]
        %v1491 = vld [vmem:[#allocation10 + $0x18] sm:$0xff]
        %v1492 = vld [vmem:[#allocation10 + $0x20] sm:$0xff]
        %v1493 = vld [vmem:[#allocation10 + $0x28] sm:$0xff]
        %v1494 = vld [vmem:[#allocation10 + $0x30] sm:$0xff]
        %v1495 = vld [vmem:[#allocation10 + $0x38] sm:$0xff]
        %v1496 = vld [vmem:[#allocation10 + $0x40] sm:$0xff]
        %v1497 = vld [vmem:[#allocation10 + $0x48] sm:$0xff]
        %v1498 = vld [vmem:[#allocation10 + $0x50] sm:$0xff]
        %v1499 = vld [vmem:[#allocation10 + $0x58] sm:$0xff]
        %v1500 = vld [vmem:[#allocation10 + $0x60] sm:$0xff]
        %v1501 = vld [vmem:[#allocation10 + $0x68] sm:$0xff]
        %v1502 = vld [vmem:[#allocation10 + $0x70] sm:$0xff]
        %v1503 = vld [vmem:[#allocation10 + $0x78] sm:$0xff]
        %v1504 = vld [vmem:[#allocation10 + $0x80] sm:$0xff]
        %v1505 = vld [vmem:[#allocation10 + $0x88] sm:$0xff]
        %v1506 = vld [vmem:[#allocation10 + $0x90] sm:$0xff]
        %v1507 = vld [vmem:[#allocation10 + $0x98] sm:$0xff]
        %v1508 = vld [vmem:[#allocation10 + $0xa0] sm:$0xff]
        %v1509 = vld [vmem:[#allocation10 + $0xa8] sm:$0xff]
        %v1510 = vld [vmem:[#allocation10 + $0xb0] sm:$0xff]
        %v1511 = vld [vmem:[#allocation10 + $0xb8] sm:$0xff]
        %v1512 = vld [vmem:[#allocation10 + $0xc0] sm:$0xff]
        %v1513 = vld [vmem:[#allocation10 + $0xc8] sm:$0xff]
        %v1514 = vld [vmem:[#allocation10 + $0xd0] sm:$0xff]
        %v1515 = vld [vmem:[#allocation10 + $0xd8] sm:$0xff]
        %v1516 = vld [vmem:[#allocation10 + $0xe0] sm:$0xff]
        %v1517 = vld [vmem:[#allocation10 + $0xe8] sm:$0xff]
        %v1518 = vld [vmem:[#allocation10 + $0xf0] sm:$0xff]
        %v1519 = vld [vmem:[#allocation10 + $0xf8] sm:$0xff]
        %v1552 = vunpack.c.l.b16 %v1488
        %v1553 = vunpack.c.h.b16 %v1488
        %v1554 = vunpack.c.l.b16 %v1489
        %v1555 = vunpack.c.h.b16 %v1489
        %v1556 = vunpack.c.l.b16 %v1490
        %v1557 = vunpack.c.h.b16 %v1490
        %v1558 = vunpack.c.l.b16 %v1491
        %v1559 = vunpack.c.h.b16 %v1491
        %v1560 = vunpack.c.l.b16 %v1492
        %v1561 = vunpack.c.h.b16 %v1492
        %v1562 = vunpack.c.l.b16 %v1493
        %v1563 = vunpack.c.h.b16 %v1493
        %v1564 = vunpack.c.l.b16 %v1494
        %v1565 = vunpack.c.h.b16 %v1494
        %v1566 = vunpack.c.l.b16 %v1495
        %v1567 = vunpack.c.h.b16 %v1495
        %v1568 = vunpack.c.l.b16 %v1496
        %v1569 = vunpack.c.h.b16 %v1496
        %v1570 = vunpack.c.l.b16 %v1497
        %v1571 = vunpack.c.h.b16 %v1497
        %v1572 = vunpack.c.l.b16 %v1498
        %v1573 = vunpack.c.h.b16 %v1498
        %v1574 = vunpack.c.l.b16 %v1499
        %v1575 = vunpack.c.h.b16 %v1499
        %v1576 = vunpack.c.l.b16 %v1500
        %v1577 = vunpack.c.h.b16 %v1500
        %v1578 = vunpack.c.l.b16 %v1501
        %v1579 = vunpack.c.h.b16 %v1501
        %v1580 = vunpack.c.l.b16 %v1502
        %v1581 = vunpack.c.h.b16 %v1502
        %v1582 = vunpack.c.l.b16 %v1503
        %v1583 = vunpack.c.h.b16 %v1503
        %v1584 = vunpack.c.l.b16 %v1504
        %v1585 = vunpack.c.h.b16 %v1504
        %v1586 = vunpack.c.l.b16 %v1505
        %v1587 = vunpack.c.h.b16 %v1505
        %v1588 = vunpack.c.l.b16 %v1506
        %v1589 = vunpack.c.h.b16 %v1506
        %v1590 = vunpack.c.l.b16 %v1507
        %v1591 = vunpack.c.h.b16 %v1507
        %v1592 = vunpack.c.l.b16 %v1508
        %v1593 = vunpack.c.h.b16 %v1508
        %v1594 = vunpack.c.l.b16 %v1509
        %v1595 = vunpack.c.h.b16 %v1509
        %v1596 = vunpack.c.l.b16 %v1510
        %v1597 = vunpack.c.h.b16 %v1510
        %v1598 = vunpack.c.l.b16 %v1511
        %v1599 = vunpack.c.h.b16 %v1511
        %v1600 = vunpack.c.l.b16 %v1512
        %v1601 = vunpack.c.h.b16 %v1512
        %v1602 = vunpack.c.l.b16 %v1513
        %v1603 = vunpack.c.h.b16 %v1513
        %v1604 = vunpack.c.l.b16 %v1514
        %v1605 = vunpack.c.h.b16 %v1514
        %v1606 = vunpack.c.l.b16 %v1515
        %v1607 = vunpack.c.h.b16 %v1515
        %v1608 = vunpack.c.l.b16 %v1516
        %v1609 = vunpack.c.h.b16 %v1516
        %v1610 = vunpack.c.l.b16 %v1517
        %v1611 = vunpack.c.h.b16 %v1517
        %v1612 = vunpack.c.l.b16 %v1518
        %v1613 = vunpack.c.h.b16 %v1518
        %v1614 = vunpack.c.l.b16 %v1519
        %v1615 = vunpack.c.h.b16 %v1519
        %v1616 = vpack.c.b16 %v1556, %v1552
        %v1617 = vpack.c.b16 %v1557, %v1553
        %v1618 = vpack.c.b16 %v1558, %v1554
        %v1619 = vpack.c.b16 %v1559, %v1555
        %v1620 = vpack.c.b16 %v1564, %v1560
        %v1621 = vpack.c.b16 %v1565, %v1561
        %v1622 = vpack.c.b16 %v1566, %v1562
        %v1623 = vpack.c.b16 %v1567, %v1563
        %v1624 = vpack.c.b16 %v1572, %v1568
        %v1625 = vpack.c.b16 %v1573, %v1569
        %v1626 = vpack.c.b16 %v1574, %v1570
        %v1627 = vpack.c.b16 %v1575, %v1571
        %v1628 = vpack.c.b16 %v1580, %v1576
        %v1629 = vpack.c.b16 %v1581, %v1577
        %v1630 = vpack.c.b16 %v1582, %v1578
        %v1631 = vpack.c.b16 %v1583, %v1579
        %v1632 = vpack.c.b16 %v1588, %v1584
        %v1633 = vpack.c.b16 %v1589, %v1585
        %v1634 = vpack.c.b16 %v1590, %v1586
        %v1635 = vpack.c.b16 %v1591, %v1587
        %v1636 = vpack.c.b16 %v1596, %v1592
        %v1637 = vpack.c.b16 %v1597, %v1593
        %v1638 = vpack.c.b16 %v1598, %v1594
        %v1639 = vpack.c.b16 %v1599, %v1595
        %v1640 = vpack.c.b16 %v1604, %v1600
        %v1641 = vpack.c.b16 %v1605, %v1601
        %v1642 = vpack.c.b16 %v1606, %v1602
        %v1643 = vpack.c.b16 %v1607, %v1603
        %v1644 = vpack.c.b16 %v1612, %v1608
        %v1645 = vpack.c.b16 %v1613, %v1609
        %v1646 = vpack.c.b16 %v1614, %v1610
        %v1647 = vpack.c.b16 %v1615, %v1611
        %1680 = vmatprep.subr.bf16.mxu0 %v1617
        %1681 = vmatpush1.bf16.msra.mxu0 %v1616
        %1682 = vmatprep.subr.bf16.mxu0 %v1621
        %1683 = vmatpush1.bf16.msra.mxu0 %v1620
        %1684 = vmatprep.subr.bf16.mxu0 %v1625
        %1685 = vmatpush1.bf16.msra.mxu0 %v1624
        %1686 = vmatprep.subr.bf16.mxu0 %v1629
        %1687 = vmatpush1.bf16.msra.mxu0 %v1628
        %1688 = vmatprep.subr.bf16.mxu0 %v1633
        %1689 = vmatpush1.bf16.msra.mxu0 %v1632
        %1690 = vmatprep.subr.bf16.mxu0 %v1637
        %1691 = vmatpush1.bf16.msra.mxu0 %v1636
        %1692 = vmatprep.subr.bf16.mxu0 %v1641
        %1693 = vmatpush1.bf16.msra.mxu0 %v1640
        %1694 = vmatprep.subr.bf16.mxu0 %v1645
        %1695 = vmatpush1.bf16.msra.mxu0 %v1644
        %1696 = vmatprep.subr.bf16.mxu0 0
        %1697 = vmatpush1.bf16.msra.mxu0 0
        %1698 = vmatprep.subr.bf16.mxu0 0
        %1699 = vmatpush1.bf16.msra.mxu0 0
        %1700 = vmatprep.subr.bf16.mxu0 0
        %1701 = vmatpush1.bf16.msra.mxu0 0
        %1702 = vmatprep.subr.bf16.mxu0 0
        %1703 = vmatpush1.bf16.msra.mxu0 0
        %1704 = vmatprep.subr.bf16.mxu0 0
        %1705 = vmatpush1.bf16.msra.mxu0 0
        %1706 = vmatprep.subr.bf16.mxu0 0
        %1707 = vmatpush1.bf16.msra.mxu0 0
        %1708 = vmatprep.subr.bf16.mxu0 0
        %1709 = vmatpush1.bf16.msra.mxu0 0
        %1710 = vmatprep.subr.bf16.mxu0 0
        %1711 = vmatpush1.bf16.msra.mxu0 0
        %1712 = vmatprep.mubr.bf16.mxu0 0
        %1713 = vmatmul.mubr.bf16.gmra.mrb[0].mxu0 %v1480
        %v1714 = vpop.f32.mrb[0].mxu0
        %v1715 = vadd.f32 0.0, %v1714
        %v1716 = vpop.f32.mrb[0].mxu0
        %v1717 = vadd.f32 0.0, %v1716
        %v1718 = vpop.f32.mrb[0].mxu0
        %v1719 = vpop.f32.mrb[0].mxu0
        %1720 = vdwg.mxu0
        %1721 = vmatprep.subr.bf16.mxu0 %v1619
        %1722 = vmatpush1.bf16.msra.mxu0 %v1618
        %1723 = vmatprep.subr.bf16.mxu0 %v1623
        %1724 = vmatpush1.bf16.msra.mxu0 %v1622
        %1725 = vmatprep.subr.bf16.mxu0 %v1627
        %1726 = vmatpush1.bf16.msra.mxu0 %v1626
        %1727 = vmatprep.subr.bf16.mxu0 %v1631
        %1728 = vmatpush1.bf16.msra.mxu0 %v1630
        %1729 = vmatprep.subr.bf16.mxu0 %v1635
        %1730 = vmatpush1.bf16.msra.mxu0 %v1634
        %1731 = vmatprep.subr.bf16.mxu0 %v1639
        %1732 = vmatpush1.bf16.msra.mxu0 %v1638
        %1733 = vmatprep.subr.bf16.mxu0 %v1643
        %1734 = vmatpush1.bf16.msra.mxu0 %v1642
        %1735 = vmatprep.subr.bf16.mxu0 %v1647
        %1736 = vmatpush1.bf16.msra.mxu0 %v1646
        %1737 = vmatprep.subr.bf16.mxu0 0
        %1738 = vmatpush1.bf16.msra.mxu0 0
        %1739 = vmatprep.subr.bf16.mxu0 0
        %1740 = vmatpush1.bf16.msra.mxu0 0
        %1741 = vmatprep.subr.bf16.mxu0 0
        %1742 = vmatpush1.bf16.msra.mxu0 0
        %1743 = vmatprep.subr.bf16.mxu0 0
        %1744 = vmatpush1.bf16.msra.mxu0 0
        %1745 = vmatprep.subr.bf16.mxu0 0
        %1746 = vmatpush1.bf16.msra.mxu0 0
        %1747 = vmatprep.subr.bf16.mxu0 0
        %1748 = vmatpush1.bf16.msra.mxu0 0
        %1749 = vmatprep.subr.bf16.mxu0 0
        %1750 = vmatpush1.bf16.msra.mxu0 0
        %1751 = vmatprep.subr.bf16.mxu0 0
        %1752 = vmatpush1.bf16.msra.mxu0 0
        %1753 = vmatprep.mubr.bf16.mxu0 0
        %1754 = vmatmul.mubr.bf16.gmra.mrb[0].mxu0 %v1480
        %v1755 = vpop.f32.mrb[0].mxu0
        %v1756 = vadd.f32 0.0, %v1755
        %v1757 = vpop.f32.mrb[0].mxu0
        %v1758 = vadd.f32 0.0, %v1757
        %v1759 = vpop.f32.mrb[0].mxu0
        %v1760 = vpop.f32.mrb[0].mxu0
        %1761 = vdwg.mxu0
        %v1762 = vadd.f32 %v1484, %v1715
        %v1763 = vadd.f32 %v1485, %v1717
        %v1764 = vadd.f32 %v1486, %v1756
        %v1765 = vadd.f32 %v1487, %v1758
        %v1766 = vld [vmem:[#allocation11] sm:$0xf]
        %v1768 = vlaneseq
        %v1769 = vshrl.u32 %v1768, 7
        %v1770 = vsub.s32 0, %v1769
        %v1771 = vrot.slane %v1766, %v1770
        %v1772 = vlaneseq
        %v1773 = vshrl.u32 %v1772, 7
        %v1774 = vsub.s32 1, %v1773
        %v1775 = vrot.slane %v1766, %v1774
        %v1776 = vlaneseq
        %v1777 = vshrl.u32 %v1776, 7
        %v1778 = vsub.s32 2, %v1777
        %v1779 = vrot.slane %v1766, %v1778
        %v1780 = vlaneseq
        %v1781 = vshrl.u32 %v1780, 7
        %v1782 = vsub.s32 3, %v1781
        %v1783 = vrot.slane %v1766, %v1782
        %v1788 = vadd.f32 %v1762, %v1771
        %v1789 = vadd.f32 %v1763, %v1775
        %v1790 = vadd.f32 %v1764, %v1779
        %v1791 = vadd.f32 %v1765, %v1783
        %v1792 = vxor.u32 %v1788, 2147483648
        %v1793 = vmul.f32 %v1792, 1.442695
        %v1794 = vpow.pop %v1793
        %v1795 = vadd.f32 %v1794, 1.0
        %v1796 = vrcp.pop %v1795
        %v1797 = vmul.f32 1.0, %v1796
        %v1798 = vxor.u32 %v1789, 2147483648
        %v1799 = vmul.f32 %v1798, 1.442695
        %v1800 = vpow.pop %v1799
        %v1801 = vadd.f32 %v1800, 1.0
        %v1802 = vrcp.pop %v1801
        %v1803 = vmul.f32 1.0, %v1802
        %v1804 = vtanh.pop %v1790
        %v1805 = vxor.u32 %v1791, 2147483648
        %v1806 = vmul.f32 %v1805, 1.442695
        %v1807 = vpow.pop %v1806
        %v1808 = vadd.f32 %v1807, 1.0
        %v1809 = vrcp.pop %v1808
        %v1810 = vmul.f32 1.0, %v1809
        %v1811 = vmul.f32 %v1803, %v1477
        %v1812 = vmul.f32 %v1797, %v1804
        %v1813 = vadd.f32 %v1811, %v1812
        %v1814 = vtanh.pop %v1813
        %v1815 = vmul.f32 %v1810, %v1814
        %v1816 = vpack.c.bf16 %v1815, %v1815
        %s1817 = scalar_lea.vmem %s396, 8 [#allocation17]
        %1818 = vst [vmem:[%s1817] sm:$0xf] %v1816
        %s1819 = scalar_lea.vmem [#allocation4], 96
        %v1820 = vld [vmem:[%s1819] sm:$0xff]
        %v1821 = vld [vmem:[%s1819 + $0x8] sm:$0xff]
        %v1822 = vld [vmem:[%s1819 + $0x10] sm:$0xff]
        %v1823 = vld [vmem:[%s1819 + $0x18] sm:$0xff]
        %v1824 = vld [vmem:[#allocation10] sm:$0xff]
        %v1825 = vld [vmem:[#allocation10 + $0x8] sm:$0xff]
        %v1826 = vld [vmem:[#allocation10 + $0x10] sm:$0xff]
        %v1827 = vld [vmem:[#allocation10 + $0x18] sm:$0xff]
        %v1828 = vld [vmem:[#allocation10 + $0x20] sm:$0xff]
        %v1829 = vld [vmem:[#allocation10 + $0x28] sm:$0xff]
        %v1830 = vld [vmem:[#allocation10 + $0x30] sm:$0xff]
        %v1831 = vld [vmem:[#allocation10 + $0x38] sm:$0xff]
        %v1832 = vld [vmem:[#allocation10 + $0x40] sm:$0xff]
        %v1833 = vld [vmem:[#allocation10 + $0x48] sm:$0xff]
        %v1834 = vld [vmem:[#allocation10 + $0x50] sm:$0xff]
        %v1835 = vld [vmem:[#allocation10 + $0x58] sm:$0xff]
        %v1836 = vld [vmem:[#allocation10 + $0x60] sm:$0xff]
        %v1837 = vld [vmem:[#allocation10 + $0x68] sm:$0xff]
        %v1838 = vld [vmem:[#allocation10 + $0x70] sm:$0xff]
        %v1839 = vld [vmem:[#allocation10 + $0x78] sm:$0xff]
        %v1840 = vld [vmem:[#allocation10 + $0x80] sm:$0xff]
        %v1841 = vld [vmem:[#allocation10 + $0x88] sm:$0xff]
        %v1842 = vld [vmem:[#allocation10 + $0x90] sm:$0xff]
        %v1843 = vld [vmem:[#allocation10 + $0x98] sm:$0xff]
        %v1844 = vld [vmem:[#allocation10 + $0xa0] sm:$0xff]
        %v1845 = vld [vmem:[#allocation10 + $0xa8] sm:$0xff]
        %v1846 = vld [vmem:[#allocation10 + $0xb0] sm:$0xff]
        %v1847 = vld [vmem:[#allocation10 + $0xb8] sm:$0xff]
        %v1848 = vld [vmem:[#allocation10 + $0xc0] sm:$0xff]
        %v1849 = vld [vmem:[#allocation10 + $0xc8] sm:$0xff]
        %v1850 = vld [vmem:[#allocation10 + $0xd0] sm:$0xff]
        %v1851 = vld [vmem:[#allocation10 + $0xd8] sm:$0xff]
        %v1852 = vld [vmem:[#allocation10 + $0xe0] sm:$0xff]
        %v1853 = vld [vmem:[#allocation10 + $0xe8] sm:$0xff]
        %v1854 = vld [vmem:[#allocation10 + $0xf0] sm:$0xff]
        %v1855 = vld [vmem:[#allocation10 + $0xf8] sm:$0xff]
        %v1888 = vunpack.c.l.b16 %v1824
        %v1889 = vunpack.c.h.b16 %v1824
        %v1890 = vunpack.c.l.b16 %v1825
        %v1891 = vunpack.c.h.b16 %v1825
        %v1892 = vunpack.c.l.b16 %v1826
        %v1893 = vunpack.c.h.b16 %v1826
        %v1894 = vunpack.c.l.b16 %v1827
        %v1895 = vunpack.c.h.b16 %v1827
        %v1896 = vunpack.c.l.b16 %v1828
        %v1897 = vunpack.c.h.b16 %v1828
        %v1898 = vunpack.c.l.b16 %v1829
        %v1899 = vunpack.c.h.b16 %v1829
        %v1900 = vunpack.c.l.b16 %v1830
        %v1901 = vunpack.c.h.b16 %v1830
        %v1902 = vunpack.c.l.b16 %v1831
        %v1903 = vunpack.c.h.b16 %v1831
        %v1904 = vunpack.c.l.b16 %v1832
        %v1905 = vunpack.c.h.b16 %v1832
        %v1906 = vunpack.c.l.b16 %v1833
        %v1907 = vunpack.c.h.b16 %v1833
        %v1908 = vunpack.c.l.b16 %v1834
        %v1909 = vunpack.c.h.b16 %v1834
        %v1910 = vunpack.c.l.b16 %v1835
        %v1911 = vunpack.c.h.b16 %v1835
        %v1912 = vunpack.c.l.b16 %v1836
        %v1913 = vunpack.c.h.b16 %v1836
        %v1914 = vunpack.c.l.b16 %v1837
        %v1915 = vunpack.c.h.b16 %v1837
        %v1916 = vunpack.c.l.b16 %v1838
        %v1917 = vunpack.c.h.b16 %v1838
        %v1918 = vunpack.c.l.b16 %v1839
        %v1919 = vunpack.c.h.b16 %v1839
        %v1920 = vunpack.c.l.b16 %v1840
        %v1921 = vunpack.c.h.b16 %v1840
        %v1922 = vunpack.c.l.b16 %v1841
        %v1923 = vunpack.c.h.b16 %v1841
        %v1924 = vunpack.c.l.b16 %v1842
        %v1925 = vunpack.c.h.b16 %v1842
        %v1926 = vunpack.c.l.b16 %v1843
        %v1927 = vunpack.c.h.b16 %v1843
        %v1928 = vunpack.c.l.b16 %v1844
        %v1929 = vunpack.c.h.b16 %v1844
        %v1930 = vunpack.c.l.b16 %v1845
        %v1931 = vunpack.c.h.b16 %v1845
        %v1932 = vunpack.c.l.b16 %v1846
        %v1933 = vunpack.c.h.b16 %v1846
        %v1934 = vunpack.c.l.b16 %v1847
        %v1935 = vunpack.c.h.b16 %v1847
        %v1936 = vunpack.c.l.b16 %v1848
        %v1937 = vunpack.c.h.b16 %v1848
        %v1938 = vunpack.c.l.b16 %v1849
        %v1939 = vunpack.c.h.b16 %v1849
        %v1940 = vunpack.c.l.b16 %v1850
        %v1941 = vunpack.c.h.b16 %v1850
        %v1942 = vunpack.c.l.b16 %v1851
        %v1943 = vunpack.c.h.b16 %v1851
        %v1944 = vunpack.c.l.b16 %v1852
        %v1945 = vunpack.c.h.b16 %v1852
        %v1946 = vunpack.c.l.b16 %v1853
        %v1947 = vunpack.c.h.b16 %v1853
        %v1948 = vunpack.c.l.b16 %v1854
        %v1949 = vunpack.c.h.b16 %v1854
        %v1950 = vunpack.c.l.b16 %v1855
        %v1951 = vunpack.c.h.b16 %v1855
        %v1952 = vpack.c.b16 %v1892, %v1888
        %v1953 = vpack.c.b16 %v1893, %v1889
        %v1954 = vpack.c.b16 %v1894, %v1890
        %v1955 = vpack.c.b16 %v1895, %v1891
        %v1956 = vpack.c.b16 %v1900, %v1896
        %v1957 = vpack.c.b16 %v1901, %v1897
        %v1958 = vpack.c.b16 %v1902, %v1898
        %v1959 = vpack.c.b16 %v1903, %v1899
        %v1960 = vpack.c.b16 %v1908, %v1904
        %v1961 = vpack.c.b16 %v1909, %v1905
        %v1962 = vpack.c.b16 %v1910, %v1906
        %v1963 = vpack.c.b16 %v1911, %v1907
        %v1964 = vpack.c.b16 %v1916, %v1912
        %v1965 = vpack.c.b16 %v1917, %v1913
        %v1966 = vpack.c.b16 %v1918, %v1914
        %v1967 = vpack.c.b16 %v1919, %v1915
        %v1968 = vpack.c.b16 %v1924, %v1920
        %v1969 = vpack.c.b16 %v1925, %v1921
        %v1970 = vpack.c.b16 %v1926, %v1922
        %v1971 = vpack.c.b16 %v1927, %v1923
        %v1972 = vpack.c.b16 %v1932, %v1928
        %v1973 = vpack.c.b16 %v1933, %v1929
        %v1974 = vpack.c.b16 %v1934, %v1930
        %v1975 = vpack.c.b16 %v1935, %v1931
        %v1976 = vpack.c.b16 %v1940, %v1936
        %v1977 = vpack.c.b16 %v1941, %v1937
        %v1978 = vpack.c.b16 %v1942, %v1938
        %v1979 = vpack.c.b16 %v1943, %v1939
        %v1980 = vpack.c.b16 %v1948, %v1944
        %v1981 = vpack.c.b16 %v1949, %v1945
        %v1982 = vpack.c.b16 %v1950, %v1946
        %v1983 = vpack.c.b16 %v1951, %v1947
        %2016 = vmatprep.subr.bf16.mxu0 %v1953
        %2017 = vmatpush1.bf16.msra.mxu0 %v1952
        %2018 = vmatprep.subr.bf16.mxu0 %v1957
        %2019 = vmatpush1.bf16.msra.mxu0 %v1956
        %2020 = vmatprep.subr.bf16.mxu0 %v1961
        %2021 = vmatpush1.bf16.msra.mxu0 %v1960
        %2022 = vmatprep.subr.bf16.mxu0 %v1965
        %2023 = vmatpush1.bf16.msra.mxu0 %v1964
        %2024 = vmatprep.subr.bf16.mxu0 %v1969
        %2025 = vmatpush1.bf16.msra.mxu0 %v1968
        %2026 = vmatprep.subr.bf16.mxu0 %v1973
        %2027 = vmatpush1.bf16.msra.mxu0 %v1972
        %2028 = vmatprep.subr.bf16.mxu0 %v1977
        %2029 = vmatpush1.bf16.msra.mxu0 %v1976
        %2030 = vmatprep.subr.bf16.mxu0 %v1981
        %2031 = vmatpush1.bf16.msra.mxu0 %v1980
        %2032 = vmatprep.subr.bf16.mxu0 0
        %2033 = vmatpush1.bf16.msra.mxu0 0
        %2034 = vmatprep.subr.bf16.mxu0 0
        %2035 = vmatpush1.bf16.msra.mxu0 0
        %2036 = vmatprep.subr.bf16.mxu0 0
        %2037 = vmatpush1.bf16.msra.mxu0 0
        %2038 = vmatprep.subr.bf16.mxu0 0
        %2039 = vmatpush1.bf16.msra.mxu0 0
        %2040 = vmatprep.subr.bf16.mxu0 0
        %2041 = vmatpush1.bf16.msra.mxu0 0
        %2042 = vmatprep.subr.bf16.mxu0 0
        %2043 = vmatpush1.bf16.msra.mxu0 0
        %2044 = vmatprep.subr.bf16.mxu0 0
        %2045 = vmatpush1.bf16.msra.mxu0 0
        %2046 = vmatprep.subr.bf16.mxu0 0
        %2047 = vmatpush1.bf16.msra.mxu0 0
        %2048 = vmatprep.mubr.bf16.mxu0 0
        %2049 = vmatmul.mubr.bf16.gmra.mrb[0].mxu0 %v1816
        %v2050 = vpop.f32.mrb[0].mxu0
        %v2051 = vadd.f32 0.0, %v2050
        %v2052 = vpop.f32.mrb[0].mxu0
        %v2053 = vadd.f32 0.0, %v2052
        %v2054 = vpop.f32.mrb[0].mxu0
        %v2055 = vpop.f32.mrb[0].mxu0
        %2056 = vdwg.mxu0
        %2057 = vmatprep.subr.bf16.mxu0 %v1955
        %2058 = vmatpush1.bf16.msra.mxu0 %v1954
        %2059 = vmatprep.subr.bf16.mxu0 %v1959
        %2060 = vmatpush1.bf16.msra.mxu0 %v1958
        %2061 = vmatprep.subr.bf16.mxu0 %v1963
        %2062 = vmatpush1.bf16.msra.mxu0 %v1962
        %2063 = vmatprep.subr.bf16.mxu0 %v1967
        %2064 = vmatpush1.bf16.msra.mxu0 %v1966
        %2065 = vmatprep.subr.bf16.mxu0 %v1971
        %2066 = vmatpush1.bf16.msra.mxu0 %v1970
        %2067 = vmatprep.subr.bf16.mxu0 %v1975
        %2068 = vmatpush1.bf16.msra.mxu0 %v1974
        %2069 = vmatprep.subr.bf16.mxu0 %v1979
        %2070 = vmatpush1.bf16.msra.mxu0 %v1978
        %2071 = vmatprep.subr.bf16.mxu0 %v1983
        %2072 = vmatpush1.bf16.msra.mxu0 %v1982
        %2073 = vmatprep.subr.bf16.mxu0 0
        %2074 = vmatpush1.bf16.msra.mxu0 0
        %2075 = vmatprep.subr.bf16.mxu0 0
        %2076 = vmatpush1.bf16.msra.mxu0 0
        %2077 = vmatprep.subr.bf16.mxu0 0
        %2078 = vmatpush1.bf16.msra.mxu0 0
        %2079 = vmatprep.subr.bf16.mxu0 0
        %2080 = vmatpush1.bf16.msra.mxu0 0
        %2081 = vmatprep.subr.bf16.mxu0 0
        %2082 = vmatpush1.bf16.msra.mxu0 0
        %2083 = vmatprep.subr.bf16.mxu0 0
        %2084 = vmatpush1.bf16.msra.mxu0 0
        %2085 = vmatprep.subr.bf16.mxu0 0
        %2086 = vmatpush1.bf16.msra.mxu0 0
        %2087 = vmatprep.subr.bf16.mxu0 0
        %2088 = vmatpush1.bf16.msra.mxu0 0
        %2089 = vmatprep.mubr.bf16.mxu0 0
        %2090 = vmatmul.mubr.bf16.gmra.mrb[0].mxu0 %v1816
        %v2091 = vpop.f32.mrb[0].mxu0
        %v2092 = vadd.f32 0.0, %v2091
        %v2093 = vpop.f32.mrb[0].mxu0
        %v2094 = vadd.f32 0.0, %v2093
        %v2095 = vpop.f32.mrb[0].mxu0
        %v2096 = vpop.f32.mrb[0].mxu0
        %2097 = vdwg.mxu0
        %v2098 = vadd.f32 %v1820, %v2051
        %v2099 = vadd.f32 %v1821, %v2053
        %v2100 = vadd.f32 %v1822, %v2092
        %v2101 = vadd.f32 %v1823, %v2094
        %v2102 = vld [vmem:[#allocation11] sm:$0xf]
        %v2104 = vlaneseq
        %v2105 = vshrl.u32 %v2104, 7
        %v2106 = vsub.s32 0, %v2105
        %v2107 = vrot.slane %v2102, %v2106
        %v2108 = vlaneseq
        %v2109 = vshrl.u32 %v2108, 7
        %v2110 = vsub.s32 1, %v2109
        %v2111 = vrot.slane %v2102, %v2110
        %v2112 = vlaneseq
        %v2113 = vshrl.u32 %v2112, 7
        %v2114 = vsub.s32 2, %v2113
        %v2115 = vrot.slane %v2102, %v2114
        %v2116 = vlaneseq
        %v2117 = vshrl.u32 %v2116, 7
        %v2118 = vsub.s32 3, %v2117
        %v2119 = vrot.slane %v2102, %v2118
        %v2124 = vadd.f32 %v2098, %v2107
        %v2125 = vadd.f32 %v2099, %v2111
        %v2126 = vadd.f32 %v2100, %v2115
        %v2127 = vadd.f32 %v2101, %v2119
        %v2128 = vxor.u32 %v2124, 2147483648
        %v2129 = vmul.f32 %v2128, 1.442695
        %v2130 = vpow.pop %v2129
        %v2131 = vadd.f32 %v2130, 1.0
        %v2132 = vrcp.pop %v2131
        %v2133 = vmul.f32 1.0, %v2132
        %v2134 = vxor.u32 %v2125, 2147483648
        %v2135 = vmul.f32 %v2134, 1.442695
        %v2136 = vpow.pop %v2135
        %v2137 = vadd.f32 %v2136, 1.0
        %v2138 = vrcp.pop %v2137
        %v2139 = vmul.f32 1.0, %v2138
        %v2140 = vtanh.pop %v2126
        %v2141 = vxor.u32 %v2127, 2147483648
        %v2142 = vmul.f32 %v2141, 1.442695
        %v2143 = vpow.pop %v2142
        %v2144 = vadd.f32 %v2143, 1.0
        %v2145 = vrcp.pop %v2144
        %v2146 = vmul.f32 1.0, %v2145
        %v2147 = vmul.f32 %v2139, %v1813
        %v2148 = vmul.f32 %v2133, %v2140
        %v2149 = vadd.f32 %v2147, %v2148
        %v2150 = vtanh.pop %v2149
        %v2151 = vmul.f32 %v2146, %v2150
        %v2152 = vpack.c.bf16 %v2151, %v2151
        %s2153 = scalar_lea.vmem %s396, 12 [#allocation17]
        %2154 = vst [vmem:[%s2153] sm:$0xf] %v2152
        %s2155 = scalar_lea.vmem [#allocation4], 128
        %v2156 = vld [vmem:[%s2155] sm:$0xff]
        %v2157 = vld [vmem:[%s2155 + $0x8] sm:$0xff]
        %v2158 = vld [vmem:[%s2155 + $0x10] sm:$0xff]
        %v2159 = vld [vmem:[%s2155 + $0x18] sm:$0xff]
        %v2160 = vld [vmem:[#allocation10] sm:$0xff]
        %v2161 = vld [vmem:[#allocation10 + $0x8] sm:$0xff]
        %v2162 = vld [vmem:[#allocation10 + $0x10] sm:$0xff]
        %v2163 = vld [vmem:[#allocation10 + $0x18] sm:$0xff]
        %v2164 = vld [vmem:[#allocation10 + $0x20] sm:$0xff]
        %v2165 = vld [vmem:[#allocation10 + $0x28] sm:$0xff]
        %v2166 = vld [vmem:[#allocation10 + $0x30] sm:$0xff]
        %v2167 = vld [vmem:[#allocation10 + $0x38] sm:$0xff]
        %v2168 = vld [vmem:[#allocation10 + $0x40] sm:$0xff]
        %v2169 = vld [vmem:[#allocation10 + $0x48] sm:$0xff]
        %v2170 = vld [vmem:[#allocation10 + $0x50] sm:$0xff]
        %v2171 = vld [vmem:[#allocation10 + $0x58] sm:$0xff]
        %v2172 = vld [vmem:[#allocation10 + $0x60] sm:$0xff]
        %v2173 = vld [vmem:[#allocation10 + $0x68] sm:$0xff]
        %v2174 = vld [vmem:[#allocation10 + $0x70] sm:$0xff]
        %v2175 = vld [vmem:[#allocation10 + $0x78] sm:$0xff]
        %v2176 = vld [vmem:[#allocation10 + $0x80] sm:$0xff]
        %v2177 = vld [vmem:[#allocation10 + $0x88] sm:$0xff]
        %v2178 = vld [vmem:[#allocation10 + $0x90] sm:$0xff]
        %v2179 = vld [vmem:[#allocation10 + $0x98] sm:$0xff]
        %v2180 = vld [vmem:[#allocation10 + $0xa0] sm:$0xff]
        %v2181 = vld [vmem:[#allocation10 + $0xa8] sm:$0xff]
        %v2182 = vld [vmem:[#allocation10 + $0xb0] sm:$0xff]
        %v2183 = vld [vmem:[#allocation10 + $0xb8] sm:$0xff]
        %v2184 = vld [vmem:[#allocation10 + $0xc0] sm:$0xff]
        %v2185 = vld [vmem:[#allocation10 + $0xc8] sm:$0xff]
        %v2186 = vld [vmem:[#allocation10 + $0xd0] sm:$0xff]
        %v2187 = vld [vmem:[#allocation10 + $0xd8] sm:$0xff]
        %v2188 = vld [vmem:[#allocation10 + $0xe0] sm:$0xff]
        %v2189 = vld [vmem:[#allocation10 + $0xe8] sm:$0xff]
        %v2190 = vld [vmem:[#allocation10 + $0xf0] sm:$0xff]
        %v2191 = vld [vmem:[#allocation10 + $0xf8] sm:$0xff]
        %v2224 = vunpack.c.l.b16 %v2160
        %v2225 = vunpack.c.h.b16 %v2160
        %v2226 = vunpack.c.l.b16 %v2161
        %v2227 = vunpack.c.h.b16 %v2161
        %v2228 = vunpack.c.l.b16 %v2162
        %v2229 = vunpack.c.h.b16 %v2162
        %v2230 = vunpack.c.l.b16 %v2163
        %v2231 = vunpack.c.h.b16 %v2163
        %v2232 = vunpack.c.l.b16 %v2164
        %v2233 = vunpack.c.h.b16 %v2164
        %v2234 = vunpack.c.l.b16 %v2165
        %v2235 = vunpack.c.h.b16 %v2165
        %v2236 = vunpack.c.l.b16 %v2166
        %v2237 = vunpack.c.h.b16 %v2166
        %v2238 = vunpack.c.l.b16 %v2167
        %v2239 = vunpack.c.h.b16 %v2167
        %v2240 = vunpack.c.l.b16 %v2168
        %v2241 = vunpack.c.h.b16 %v2168
        %v2242 = vunpack.c.l.b16 %v2169
        %v2243 = vunpack.c.h.b16 %v2169
        %v2244 = vunpack.c.l.b16 %v2170
        %v2245 = vunpack.c.h.b16 %v2170
        %v2246 = vunpack.c.l.b16 %v2171
        %v2247 = vunpack.c.h.b16 %v2171
        %v2248 = vunpack.c.l.b16 %v2172
        %v2249 = vunpack.c.h.b16 %v2172
        %v2250 = vunpack.c.l.b16 %v2173
        %v2251 = vunpack.c.h.b16 %v2173
        %v2252 = vunpack.c.l.b16 %v2174
        %v2253 = vunpack.c.h.b16 %v2174
        %v2254 = vunpack.c.l.b16 %v2175
        %v2255 = vunpack.c.h.b16 %v2175
        %v2256 = vunpack.c.l.b16 %v2176
        %v2257 = vunpack.c.h.b16 %v2176
        %v2258 = vunpack.c.l.b16 %v2177
        %v2259 = vunpack.c.h.b16 %v2177
        %v2260 = vunpack.c.l.b16 %v2178
        %v2261 = vunpack.c.h.b16 %v2178
        %v2262 = vunpack.c.l.b16 %v2179
        %v2263 = vunpack.c.h.b16 %v2179
        %v2264 = vunpack.c.l.b16 %v2180
        %v2265 = vunpack.c.h.b16 %v2180
        %v2266 = vunpack.c.l.b16 %v2181
        %v2267 = vunpack.c.h.b16 %v2181
        %v2268 = vunpack.c.l.b16 %v2182
        %v2269 = vunpack.c.h.b16 %v2182
        %v2270 = vunpack.c.l.b16 %v2183
        %v2271 = vunpack.c.h.b16 %v2183
        %v2272 = vunpack.c.l.b16 %v2184
        %v2273 = vunpack.c.h.b16 %v2184
        %v2274 = vunpack.c.l.b16 %v2185
        %v2275 = vunpack.c.h.b16 %v2185
        %v2276 = vunpack.c.l.b16 %v2186
        %v2277 = vunpack.c.h.b16 %v2186
        %v2278 = vunpack.c.l.b16 %v2187
        %v2279 = vunpack.c.h.b16 %v2187
        %v2280 = vunpack.c.l.b16 %v2188
        %v2281 = vunpack.c.h.b16 %v2188
        %v2282 = vunpack.c.l.b16 %v2189
        %v2283 = vunpack.c.h.b16 %v2189
        %v2284 = vunpack.c.l.b16 %v2190
        %v2285 = vunpack.c.h.b16 %v2190
        %v2286 = vunpack.c.l.b16 %v2191
        %v2287 = vunpack.c.h.b16 %v2191
        %v2288 = vpack.c.b16 %v2228, %v2224
        %v2289 = vpack.c.b16 %v2229, %v2225
        %v2290 = vpack.c.b16 %v2230, %v2226
        %v2291 = vpack.c.b16 %v2231, %v2227
        %v2292 = vpack.c.b16 %v2236, %v2232
        %v2293 = vpack.c.b16 %v2237, %v2233
        %v2294 = vpack.c.b16 %v2238, %v2234
        %v2295 = vpack.c.b16 %v2239, %v2235
        %v2296 = vpack.c.b16 %v2244, %v2240
        %v2297 = vpack.c.b16 %v2245, %v2241
        %v2298 = vpack.c.b16 %v2246, %v2242
        %v2299 = vpack.c.b16 %v2247, %v2243
        %v2300 = vpack.c.b16 %v2252, %v2248
        %v2301 = vpack.c.b16 %v2253, %v2249
        %v2302 = vpack.c.b16 %v2254, %v2250
        %v2303 = vpack.c.b16 %v2255, %v2251
        %v2304 = vpack.c.b16 %v2260, %v2256
        %v2305 = vpack.c.b16 %v2261, %v2257
        %v2306 = vpack.c.b16 %v2262, %v2258
        %v2307 = vpack.c.b16 %v2263, %v2259
        %v2308 = vpack.c.b16 %v2268, %v2264
        %v2309 = vpack.c.b16 %v2269, %v2265
        %v2310 = vpack.c.b16 %v2270, %v2266
        %v2311 = vpack.c.b16 %v2271, %v2267
        %v2312 = vpack.c.b16 %v2276, %v2272
        %v2313 = vpack.c.b16 %v2277, %v2273
        %v2314 = vpack.c.b16 %v2278, %v2274
        %v2315 = vpack.c.b16 %v2279, %v2275
        %v2316 = vpack.c.b16 %v2284, %v2280
        %v2317 = vpack.c.b16 %v2285, %v2281
        %v2318 = vpack.c.b16 %v2286, %v2282
        %v2319 = vpack.c.b16 %v2287, %v2283
        %2352 = vmatprep.subr.bf16.mxu0 %v2289
        %2353 = vmatpush1.bf16.msra.mxu0 %v2288
        %2354 = vmatprep.subr.bf16.mxu0 %v2293
        %2355 = vmatpush1.bf16.msra.mxu0 %v2292
        %2356 = vmatprep.subr.bf16.mxu0 %v2297
        %2357 = vmatpush1.bf16.msra.mxu0 %v2296
        %2358 = vmatprep.subr.bf16.mxu0 %v2301
        %2359 = vmatpush1.bf16.msra.mxu0 %v2300
        %2360 = vmatprep.subr.bf16.mxu0 %v2305
        %2361 = vmatpush1.bf16.msra.mxu0 %v2304
        %2362 = vmatprep.subr.bf16.mxu0 %v2309
        %2363 = vmatpush1.bf16.msra.mxu0 %v2308
        %2364 = vmatprep.subr.bf16.mxu0 %v2313
        %2365 = vmatpush1.bf16.msra.mxu0 %v2312
        %2366 = vmatprep.subr.bf16.mxu0 %v2317
        %2367 = vmatpush1.bf16.msra.mxu0 %v2316
        %2368 = vmatprep.subr.bf16.mxu0 0
        %2369 = vmatpush1.bf16.msra.mxu0 0
        %2370 = vmatprep.subr.bf16.mxu0 0
        %2371 = vmatpush1.bf16.msra.mxu0 0
        %2372 = vmatprep.subr.bf16.mxu0 0
        %2373 = vmatpush1.bf16.msra.mxu0 0
        %2374 = vmatprep.subr.bf16.mxu0 0
        %2375 = vmatpush1.bf16.msra.mxu0 0
        %2376 = vmatprep.subr.bf16.mxu0 0
        %2377 = vmatpush1.bf16.msra.mxu0 0
        %2378 = vmatprep.subr.bf16.mxu0 0
        %2379 = vmatpush1.bf16.msra.mxu0 0
        %2380 = vmatprep.subr.bf16.mxu0 0
        %2381 = vmatpush1.bf16.msra.mxu0 0
        %2382 = vmatprep.subr.bf16.mxu0 0
        %2383 = vmatpush1.bf16.msra.mxu0 0
        %2384 = vmatprep.mubr.bf16.mxu0 0
        %2385 = vmatmul.mubr.bf16.gmra.mrb[0].mxu0 %v2152
        %v2386 = vpop.f32.mrb[0].mxu0
        %v2387 = vadd.f32 0.0, %v2386
        %v2388 = vpop.f32.mrb[0].mxu0
        %v2389 = vadd.f32 0.0, %v2388
        %v2390 = vpop.f32.mrb[0].mxu0
        %v2391 = vpop.f32.mrb[0].mxu0
        %2392 = vdwg.mxu0
        %2393 = vmatprep.subr.bf16.mxu0 %v2291
        %2394 = vmatpush1.bf16.msra.mxu0 %v2290
        %2395 = vmatprep.subr.bf16.mxu0 %v2295
        %2396 = vmatpush1.bf16.msra.mxu0 %v2294
        %2397 = vmatprep.subr.bf16.mxu0 %v2299
        %2398 = vmatpush1.bf16.msra.mxu0 %v2298
        %2399 = vmatprep.subr.bf16.mxu0 %v2303
        %2400 = vmatpush1.bf16.msra.mxu0 %v2302
        %2401 = vmatprep.subr.bf16.mxu0 %v2307
        %2402 = vmatpush1.bf16.msra.mxu0 %v2306
        %2403 = vmatprep.subr.bf16.mxu0 %v2311
        %2404 = vmatpush1.bf16.msra.mxu0 %v2310
        %2405 = vmatprep.subr.bf16.mxu0 %v2315
        %2406 = vmatpush1.bf16.msra.mxu0 %v2314
        %2407 = vmatprep.subr.bf16.mxu0 %v2319
        %2408 = vmatpush1.bf16.msra.mxu0 %v2318
        %2409 = vmatprep.subr.bf16.mxu0 0
        %2410 = vmatpush1.bf16.msra.mxu0 0
        %2411 = vmatprep.subr.bf16.mxu0 0
        %2412 = vmatpush1.bf16.msra.mxu0 0
        %2413 = vmatprep.subr.bf16.mxu0 0
        %2414 = vmatpush1.bf16.msra.mxu0 0
        %2415 = vmatprep.subr.bf16.mxu0 0
        %2416 = vmatpush1.bf16.msra.mxu0 0
        %2417 = vmatprep.subr.bf16.mxu0 0
        %2418 = vmatpush1.bf16.msra.mxu0 0
        %2419 = vmatprep.subr.bf16.mxu0 0
        %2420 = vmatpush1.bf16.msra.mxu0 0
        %2421 = vmatprep.subr.bf16.mxu0 0
        %2422 = vmatpush1.bf16.msra.mxu0 0
        %2423 = vmatprep.subr.bf16.mxu0 0
        %2424 = vmatpush1.bf16.msra.mxu0 0
        %2425 = vmatprep.mubr.bf16.mxu0 0
        %2426 = vmatmul.mubr.bf16.gmra.mrb[0].mxu0 %v2152
        %v2427 = vpop.f32.mrb[0].mxu0
        %v2428 = vadd.f32 0.0, %v2427
        %v2429 = vpop.f32.mrb[0].mxu0
        %v2430 = vadd.f32 0.0, %v2429
        %v2431 = vpop.f32.mrb[0].mxu0
        %v2432 = vpop.f32.mrb[0].mxu0
        %2433 = vdwg.mxu0
        %v2434 = vadd.f32 %v2156, %v2387
        %v2435 = vadd.f32 %v2157, %v2389
        %v2436 = vadd.f32 %v2158, %v2428
        %v2437 = vadd.f32 %v2159, %v2430
        %v2438 = vld [vmem:[#allocation11] sm:$0xf]
        %v2440 = vlaneseq
        %v2441 = vshrl.u32 %v2440, 7
        %v2442 = vsub.s32 0, %v2441
        %v2443 = vrot.slane %v2438, %v2442
        %v2444 = vlaneseq
        %v2445 = vshrl.u32 %v2444, 7
        %v2446 = vsub.s32 1, %v2445
        %v2447 = vrot.slane %v2438, %v2446
        %v2448 = vlaneseq
        %v2449 = vshrl.u32 %v2448, 7
        %v2450 = vsub.s32 2, %v2449
        %v2451 = vrot.slane %v2438, %v2450
        %v2452 = vlaneseq
        %v2453 = vshrl.u32 %v2452, 7
        %v2454 = vsub.s32 3, %v2453
        %v2455 = vrot.slane %v2438, %v2454
        %v2460 = vadd.f32 %v2434, %v2443
        %v2461 = vadd.f32 %v2435, %v2447
        %v2462 = vadd.f32 %v2436, %v2451
        %v2463 = vadd.f32 %v2437, %v2455
        %v2464 = vxor.u32 %v2460, 2147483648
        %v2465 = vmul.f32 %v2464, 1.442695
        %v2466 = vpow.pop %v2465
        %v2467 = vadd.f32 %v2466, 1.0
        %v2468 = vrcp.pop %v2467
        %v2469 = vmul.f32 1.0, %v2468
        %v2470 = vxor.u32 %v2461, 2147483648
        %v2471 = vmul.f32 %v2470, 1.442695
        %v2472 = vpow.pop %v2471
        %v2473 = vadd.f32 %v2472, 1.0
        %v2474 = vrcp.pop %v2473
        %v2475 = vmul.f32 1.0, %v2474
        %v2476 = vtanh.pop %v2462
        %v2477 = vxor.u32 %v2463, 2147483648
        %v2478 = vmul.f32 %v2477, 1.442695
        %v2479 = vpow.pop %v2478
        %v2480 = vadd.f32 %v2479, 1.0
        %v2481 = vrcp.pop %v2480
        %v2482 = vmul.f32 1.0, %v2481
        %v2483 = vmul.f32 %v2475, %v2149
        %v2484 = vmul.f32 %v2469, %v2476
        %v2485 = vadd.f32 %v2483, %v2484
        %v2486 = vtanh.pop %v2485
        %v2487 = vmul.f32 %v2482, %v2486
        %v2488 = vpack.c.bf16 %v2487, %v2487
        %s2489 = scalar_lea.vmem %s396, 16 [#allocation17]
        %2490 = vst [vmem:[%s2489] sm:$0xf] %v2488
        %s2491 = scalar_lea.vmem [#allocation4], 160
        %v2492 = vld [vmem:[%s2491] sm:$0xff]
        %v2493 = vld [vmem:[%s2491 + $0x8] sm:$0xff]
        %v2494 = vld [vmem:[%s2491 + $0x10] sm:$0xff]
        %v2495 = vld [vmem:[%s2491 + $0x18] sm:$0xff]
        %v2496 = vld [vmem:[#allocation10] sm:$0xff]
        %v2497 = vld [vmem:[#allocation10 + $0x8] sm:$0xff]
        %v2498 = vld [vmem:[#allocation10 + $0x10] sm:$0xff]
        %v2499 = vld [vmem:[#allocation10 + $0x18] sm:$0xff]
        %v2500 = vld [vmem:[#allocation10 + $0x20] sm:$0xff]
        %v2501 = vld [vmem:[#allocation10 + $0x28] sm:$0xff]
        %v2502 = vld [vmem:[#allocation10 + $0x30] sm:$0xff]
        %v2503 = vld [vmem:[#allocation10 + $0x38] sm:$0xff]
        %v2504 = vld [vmem:[#allocation10 + $0x40] sm:$0xff]
        %v2505 = vld [vmem:[#allocation10 + $0x48] sm:$0xff]
        %v2506 = vld [vmem:[#allocation10 + $0x50] sm:$0xff]
        %v2507 = vld [vmem:[#allocation10 + $0x58] sm:$0xff]
        %v2508 = vld [vmem:[#allocation10 + $0x60] sm:$0xff]
        %v2509 = vld [vmem:[#allocation10 + $0x68] sm:$0xff]
        %v2510 = vld [vmem:[#allocation10 + $0x70] sm:$0xff]
        %v2511 = vld [vmem:[#allocation10 + $0x78] sm:$0xff]
        %v2512 = vld [vmem:[#allocation10 + $0x80] sm:$0xff]
        %v2513 = vld [vmem:[#allocation10 + $0x88] sm:$0xff]
        %v2514 = vld [vmem:[#allocation10 + $0x90] sm:$0xff]
        %v2515 = vld [vmem:[#allocation10 + $0x98] sm:$0xff]
        %v2516 = vld [vmem:[#allocation10 + $0xa0] sm:$0xff]
        %v2517 = vld [vmem:[#allocation10 + $0xa8] sm:$0xff]
        %v2518 = vld [vmem:[#allocation10 + $0xb0] sm:$0xff]
        %v2519 = vld [vmem:[#allocation10 + $0xb8] sm:$0xff]
        %v2520 = vld [vmem:[#allocation10 + $0xc0] sm:$0xff]
        %v2521 = vld [vmem:[#allocation10 + $0xc8] sm:$0xff]
        %v2522 = vld [vmem:[#allocation10 + $0xd0] sm:$0xff]
        %v2523 = vld [vmem:[#allocation10 + $0xd8] sm:$0xff]
        %v2524 = vld [vmem:[#allocation10 + $0xe0] sm:$0xff]
        %v2525 = vld [vmem:[#allocation10 + $0xe8] sm:$0xff]
        %v2526 = vld [vmem:[#allocation10 + $0xf0] sm:$0xff]
        %v2527 = vld [vmem:[#allocation10 + $0xf8] sm:$0xff]
        %v2560 = vunpack.c.l.b16 %v2496
        %v2561 = vunpack.c.h.b16 %v2496
        %v2562 = vunpack.c.l.b16 %v2497
        %v2563 = vunpack.c.h.b16 %v2497
        %v2564 = vunpack.c.l.b16 %v2498
        %v2565 = vunpack.c.h.b16 %v2498
        %v2566 = vunpack.c.l.b16 %v2499
        %v2567 = vunpack.c.h.b16 %v2499
        %v2568 = vunpack.c.l.b16 %v2500
        %v2569 = vunpack.c.h.b16 %v2500
        %v2570 = vunpack.c.l.b16 %v2501
        %v2571 = vunpack.c.h.b16 %v2501
        %v2572 = vunpack.c.l.b16 %v2502
        %v2573 = vunpack.c.h.b16 %v2502
        %v2574 = vunpack.c.l.b16 %v2503
        %v2575 = vunpack.c.h.b16 %v2503
        %v2576 = vunpack.c.l.b16 %v2504
        %v2577 = vunpack.c.h.b16 %v2504
        %v2578 = vunpack.c.l.b16 %v2505
        %v2579 = vunpack.c.h.b16 %v2505
        %v2580 = vunpack.c.l.b16 %v2506
        %v2581 = vunpack.c.h.b16 %v2506
        %v2582 = vunpack.c.l.b16 %v2507
        %v2583 = vunpack.c.h.b16 %v2507
        %v2584 = vunpack.c.l.b16 %v2508
        %v2585 = vunpack.c.h.b16 %v2508
        %v2586 = vunpack.c.l.b16 %v2509
        %v2587 = vunpack.c.h.b16 %v2509
        %v2588 = vunpack.c.l.b16 %v2510
        %v2589 = vunpack.c.h.b16 %v2510
        %v2590 = vunpack.c.l.b16 %v2511
        %v2591 = vunpack.c.h.b16 %v2511
        %v2592 = vunpack.c.l.b16 %v2512
        %v2593 = vunpack.c.h.b16 %v2512
        %v2594 = vunpack.c.l.b16 %v2513
        %v2595 = vunpack.c.h.b16 %v2513
        %v2596 = vunpack.c.l.b16 %v2514
        %v2597 = vunpack.c.h.b16 %v2514
        %v2598 = vunpack.c.l.b16 %v2515
        %v2599 = vunpack.c.h.b16 %v2515
        %v2600 = vunpack.c.l.b16 %v2516
        %v2601 = vunpack.c.h.b16 %v2516
        %v2602 = vunpack.c.l.b16 %v2517
        %v2603 = vunpack.c.h.b16 %v2517
        %v2604 = vunpack.c.l.b16 %v2518
        %v2605 = vunpack.c.h.b16 %v2518
        %v2606 = vunpack.c.l.b16 %v2519
        %v2607 = vunpack.c.h.b16 %v2519
        %v2608 = vunpack.c.l.b16 %v2520
        %v2609 = vunpack.c.h.b16 %v2520
        %v2610 = vunpack.c.l.b16 %v2521
        %v2611 = vunpack.c.h.b16 %v2521
        %v2612 = vunpack.c.l.b16 %v2522
        %v2613 = vunpack.c.h.b16 %v2522
        %v2614 = vunpack.c.l.b16 %v2523
        %v2615 = vunpack.c.h.b16 %v2523
        %v2616 = vunpack.c.l.b16 %v2524
        %v2617 = vunpack.c.h.b16 %v2524
        %v2618 = vunpack.c.l.b16 %v2525
        %v2619 = vunpack.c.h.b16 %v2525
        %v2620 = vunpack.c.l.b16 %v2526
        %v2621 = vunpack.c.h.b16 %v2526
        %v2622 = vunpack.c.l.b16 %v2527
        %v2623 = vunpack.c.h.b16 %v2527
        %v2624 = vpack.c.b16 %v2564, %v2560
        %v2625 = vpack.c.b16 %v2565, %v2561
        %v2626 = vpack.c.b16 %v2566, %v2562
        %v2627 = vpack.c.b16 %v2567, %v2563
        %v2628 = vpack.c.b16 %v2572, %v2568
        %v2629 = vpack.c.b16 %v2573, %v2569
        %v2630 = vpack.c.b16 %v2574, %v2570
        %v2631 = vpack.c.b16 %v2575, %v2571
        %v2632 = vpack.c.b16 %v2580, %v2576
        %v2633 = vpack.c.b16 %v2581, %v2577
        %v2634 = vpack.c.b16 %v2582, %v2578
        %v2635 = vpack.c.b16 %v2583, %v2579
        %v2636 = vpack.c.b16 %v2588, %v2584
        %v2637 = vpack.c.b16 %v2589, %v2585
        %v2638 = vpack.c.b16 %v2590, %v2586
        %v2639 = vpack.c.b16 %v2591, %v2587
        %v2640 = vpack.c.b16 %v2596, %v2592
        %v2641 = vpack.c.b16 %v2597, %v2593
        %v2642 = vpack.c.b16 %v2598, %v2594
        %v2643 = vpack.c.b16 %v2599, %v2595
        %v2644 = vpack.c.b16 %v2604, %v2600
        %v2645 = vpack.c.b16 %v2605, %v2601
        %v2646 = vpack.c.b16 %v2606, %v2602
        %v2647 = vpack.c.b16 %v2607, %v2603
        %v2648 = vpack.c.b16 %v2612, %v2608
        %v2649 = vpack.c.b16 %v2613, %v2609
        %v2650 = vpack.c.b16 %v2614, %v2610
        %v2651 = vpack.c.b16 %v2615, %v2611
        %v2652 = vpack.c.b16 %v2620, %v2616
        %v2653 = vpack.c.b16 %v2621, %v2617
        %v2654 = vpack.c.b16 %v2622, %v2618
        %v2655 = vpack.c.b16 %v2623, %v2619
        %2688 = vmatprep.subr.bf16.mxu0 %v2625
        %2689 = vmatpush1.bf16.msra.mxu0 %v2624
        %2690 = vmatprep.subr.bf16.mxu0 %v2629
        %2691 = vmatpush1.bf16.msra.mxu0 %v2628
        %2692 = vmatprep.subr.bf16.mxu0 %v2633
        %2693 = vmatpush1.bf16.msra.mxu0 %v2632
        %2694 = vmatprep.subr.bf16.mxu0 %v2637
        %2695 = vmatpush1.bf16.msra.mxu0 %v2636
        %2696 = vmatprep.subr.bf16.mxu0 %v2641
        %2697 = vmatpush1.bf16.msra.mxu0 %v2640
        %2698 = vmatprep.subr.bf16.mxu0 %v2645
        %2699 = vmatpush1.bf16.msra.mxu0 %v2644
        %2700 = vmatprep.subr.bf16.mxu0 %v2649
        %2701 = vmatpush1.bf16.msra.mxu0 %v2648
        %2702 = vmatprep.subr.bf16.mxu0 %v2653
        %2703 = vmatpush1.bf16.msra.mxu0 %v2652
        %2704 = vmatprep.subr.bf16.mxu0 0
        %2705 = vmatpush1.bf16.msra.mxu0 0
        %2706 = vmatprep.subr.bf16.mxu0 0
        %2707 = vmatpush1.bf16.msra.mxu0 0
        %2708 = vmatprep.subr.bf16.mxu0 0
        %2709 = vmatpush1.bf16.msra.mxu0 0
        %2710 = vmatprep.subr.bf16.mxu0 0
        %2711 = vmatpush1.bf16.msra.mxu0 0
        %2712 = vmatprep.subr.bf16.mxu0 0
        %2713 = vmatpush1.bf16.msra.mxu0 0
        %2714 = vmatprep.subr.bf16.mxu0 0
        %2715 = vmatpush1.bf16.msra.mxu0 0
        %2716 = vmatprep.subr.bf16.mxu0 0
        %2717 = vmatpush1.bf16.msra.mxu0 0
        %2718 = vmatprep.subr.bf16.mxu0 0
        %2719 = vmatpush1.bf16.msra.mxu0 0
        %2720 = vmatprep.mubr.bf16.mxu0 0
        %2721 = vmatmul.mubr.bf16.gmra.mrb[0].mxu0 %v2488
        %v2722 = vpop.f32.mrb[0].mxu0
        %v2723 = vadd.f32 0.0, %v2722
        %v2724 = vpop.f32.mrb[0].mxu0
        %v2725 = vadd.f32 0.0, %v2724
        %v2726 = vpop.f32.mrb[0].mxu0
        %v2727 = vpop.f32.mrb[0].mxu0
        %2728 = vdwg.mxu0
        %2729 = vmatprep.subr.bf16.mxu0 %v2627
        %2730 = vmatpush1.bf16.msra.mxu0 %v2626
        %2731 = vmatprep.subr.bf16.mxu0 %v2631
        %2732 = vmatpush1.bf16.msra.mxu0 %v2630
        %2733 = vmatprep.subr.bf16.mxu0 %v2635
        %2734 = vmatpush1.bf16.msra.mxu0 %v2634
        %2735 = vmatprep.subr.bf16.mxu0 %v2639
        %2736 = vmatpush1.bf16.msra.mxu0 %v2638
        %2737 = vmatprep.subr.bf16.mxu0 %v2643
        %2738 = vmatpush1.bf16.msra.mxu0 %v2642
        %2739 = vmatprep.subr.bf16.mxu0 %v2647
        %2740 = vmatpush1.bf16.msra.mxu0 %v2646
        %2741 = vmatprep.subr.bf16.mxu0 %v2651
        %2742 = vmatpush1.bf16.msra.mxu0 %v2650
        %2743 = vmatprep.subr.bf16.mxu0 %v2655
        %2744 = vmatpush1.bf16.msra.mxu0 %v2654
        %2745 = vmatprep.subr.bf16.mxu0 0
        %2746 = vmatpush1.bf16.msra.mxu0 0
        %2747 = vmatprep.subr.bf16.mxu0 0
        %2748 = vmatpush1.bf16.msra.mxu0 0
        %2749 = vmatprep.subr.bf16.mxu0 0
        %2750 = vmatpush1.bf16.msra.mxu0 0
        %2751 = vmatprep.subr.bf16.mxu0 0
        %2752 = vmatpush1.bf16.msra.mxu0 0
        %2753 = vmatprep.subr.bf16.mxu0 0
        %2754 = vmatpush1.bf16.msra.mxu0 0
        %2755 = vmatprep.subr.bf16.mxu0 0
        %2756 = vmatpush1.bf16.msra.mxu0 0
        %2757 = vmatprep.subr.bf16.mxu0 0
        %2758 = vmatpush1.bf16.msra.mxu0 0
        %2759 = vmatprep.subr.bf16.mxu0 0
        %2760 = vmatpush1.bf16.msra.mxu0 0
        %2761 = vmatprep.mubr.bf16.mxu0 0
        %2762 = vmatmul.mubr.bf16.gmra.mrb[0].mxu0 %v2488
        %v2763 = vpop.f32.mrb[0].mxu0
        %v2764 = vadd.f32 0.0, %v2763
        %v2765 = vpop.f32.mrb[0].mxu0
        %v2766 = vadd.f32 0.0, %v2765
        %v2767 = vpop.f32.mrb[0].mxu0
        %v2768 = vpop.f32.mrb[0].mxu0
        %2769 = vdwg.mxu0
        %v2770 = vadd.f32 %v2492, %v2723
        %v2771 = vadd.f32 %v2493, %v2725
        %v2772 = vadd.f32 %v2494, %v2764
        %v2773 = vadd.f32 %v2495, %v2766
        %v2774 = vld [vmem:[#allocation11] sm:$0xf]
        %v2776 = vlaneseq
        %v2777 = vshrl.u32 %v2776, 7
        %v2778 = vsub.s32 0, %v2777
        %v2779 = vrot.slane %v2774, %v2778
        %v2780 = vlaneseq
        %v2781 = vshrl.u32 %v2780, 7
        %v2782 = vsub.s32 1, %v2781
        %v2783 = vrot.slane %v2774, %v2782
        %v2784 = vlaneseq
        %v2785 = vshrl.u32 %v2784, 7
        %v2786 = vsub.s32 2, %v2785
        %v2787 = vrot.slane %v2774, %v2786
        %v2788 = vlaneseq
        %v2789 = vshrl.u32 %v2788, 7
        %v2790 = vsub.s32 3, %v2789
        %v2791 = vrot.slane %v2774, %v2790
        %v2796 = vadd.f32 %v2770, %v2779
        %v2797 = vadd.f32 %v2771, %v2783
        %v2798 = vadd.f32 %v2772, %v2787
        %v2799 = vadd.f32 %v2773, %v2791
        %v2800 = vxor.u32 %v2796, 2147483648
        %v2801 = vmul.f32 %v2800, 1.442695
        %v2802 = vpow.pop %v2801
        %v2803 = vadd.f32 %v2802, 1.0
        %v2804 = vrcp.pop %v2803
        %v2805 = vmul.f32 1.0, %v2804
        %v2806 = vxor.u32 %v2797, 2147483648
        %v2807 = vmul.f32 %v2806, 1.442695
        %v2808 = vpow.pop %v2807
        %v2809 = vadd.f32 %v2808, 1.0
        %v2810 = vrcp.pop %v2809
        %v2811 = vmul.f32 1.0, %v2810
        %v2812 = vtanh.pop %v2798
        %v2813 = vxor.u32 %v2799, 2147483648
        %v2814 = vmul.f32 %v2813, 1.442695
        %v2815 = vpow.pop %v2814
        %v2816 = vadd.f32 %v2815, 1.0
        %v2817 = vrcp.pop %v2816
        %v2818 = vmul.f32 1.0, %v2817
        %v2819 = vmul.f32 %v2811, %v2485
        %v2820 = vmul.f32 %v2805, %v2812
        %v2821 = vadd.f32 %v2819, %v2820
        %v2822 = vtanh.pop %v2821
        %v2823 = vmul.f32 %v2818, %v2822
        %v2824 = vpack.c.bf16 %v2823, %v2823
        %s2825 = scalar_lea.vmem %s396, 20 [#allocation17]
        %2826 = vst [vmem:[%s2825] sm:$0xf] %v2824
        %s2827 = scalar_lea.vmem [#allocation4], 192
        %v2828 = vld [vmem:[%s2827] sm:$0xff]
        %v2829 = vld [vmem:[%s2827 + $0x8] sm:$0xff]
        %v2830 = vld [vmem:[%s2827 + $0x10] sm:$0xff]
        %v2831 = vld [vmem:[%s2827 + $0x18] sm:$0xff]
        %v2832 = vld [vmem:[#allocation10] sm:$0xff]
        %v2833 = vld [vmem:[#allocation10 + $0x8] sm:$0xff]
        %v2834 = vld [vmem:[#allocation10 + $0x10] sm:$0xff]
        %v2835 = vld [vmem:[#allocation10 + $0x18] sm:$0xff]
        %v2836 = vld [vmem:[#allocation10 + $0x20] sm:$0xff]
        %v2837 = vld [vmem:[#allocation10 + $0x28] sm:$0xff]
        %v2838 = vld [vmem:[#allocation10 + $0x30] sm:$0xff]
        %v2839 = vld [vmem:[#allocation10 + $0x38] sm:$0xff]
        %v2840 = vld [vmem:[#allocation10 + $0x40] sm:$0xff]
        %v2841 = vld [vmem:[#allocation10 + $0x48] sm:$0xff]
        %v2842 = vld [vmem:[#allocation10 + $0x50] sm:$0xff]
        %v2843 = vld [vmem:[#allocation10 + $0x58] sm:$0xff]
        %v2844 = vld [vmem:[#allocation10 + $0x60] sm:$0xff]
        %v2845 = vld [vmem:[#allocation10 + $0x68] sm:$0xff]
        %v2846 = vld [vmem:[#allocation10 + $0x70] sm:$0xff]
        %v2847 = vld [vmem:[#allocation10 + $0x78] sm:$0xff]
        %v2848 = vld [vmem:[#allocation10 + $0x80] sm:$0xff]
        %v2849 = vld [vmem:[#allocation10 + $0x88] sm:$0xff]
        %v2850 = vld [vmem:[#allocation10 + $0x90] sm:$0xff]
        %v2851 = vld [vmem:[#allocation10 + $0x98] sm:$0xff]
        %v2852 = vld [vmem:[#allocation10 + $0xa0] sm:$0xff]
        %v2853 = vld [vmem:[#allocation10 + $0xa8] sm:$0xff]
        %v2854 = vld [vmem:[#allocation10 + $0xb0] sm:$0xff]
        %v2855 = vld [vmem:[#allocation10 + $0xb8] sm:$0xff]
        %v2856 = vld [vmem:[#allocation10 + $0xc0] sm:$0xff]
        %v2857 = vld [vmem:[#allocation10 + $0xc8] sm:$0xff]
        %v2858 = vld [vmem:[#allocation10 + $0xd0] sm:$0xff]
        %v2859 = vld [vmem:[#allocation10 + $0xd8] sm:$0xff]
        %v2860 = vld [vmem:[#allocation10 + $0xe0] sm:$0xff]
        %v2861 = vld [vmem:[#allocation10 + $0xe8] sm:$0xff]
        %v2862 = vld [vmem:[#allocation10 + $0xf0] sm:$0xff]
        %v2863 = vld [vmem:[#allocation10 + $0xf8] sm:$0xff]
        %v2896 = vunpack.c.l.b16 %v2832
        %v2897 = vunpack.c.h.b16 %v2832
        %v2898 = vunpack.c.l.b16 %v2833
        %v2899 = vunpack.c.h.b16 %v2833
        %v2900 = vunpack.c.l.b16 %v2834
        %v2901 = vunpack.c.h.b16 %v2834
        %v2902 = vunpack.c.l.b16 %v2835
        %v2903 = vunpack.c.h.b16 %v2835
        %v2904 = vunpack.c.l.b16 %v2836
        %v2905 = vunpack.c.h.b16 %v2836
        %v2906 = vunpack.c.l.b16 %v2837
        %v2907 = vunpack.c.h.b16 %v2837
        %v2908 = vunpack.c.l.b16 %v2838
        %v2909 = vunpack.c.h.b16 %v2838
        %v2910 = vunpack.c.l.b16 %v2839
        %v2911 = vunpack.c.h.b16 %v2839
        %v2912 = vunpack.c.l.b16 %v2840
        %v2913 = vunpack.c.h.b16 %v2840
        %v2914 = vunpack.c.l.b16 %v2841
        %v2915 = vunpack.c.h.b16 %v2841
        %v2916 = vunpack.c.l.b16 %v2842
        %v2917 = vunpack.c.h.b16 %v2842
        %v2918 = vunpack.c.l.b16 %v2843
        %v2919 = vunpack.c.h.b16 %v2843
        %v2920 = vunpack.c.l.b16 %v2844
        %v2921 = vunpack.c.h.b16 %v2844
        %v2922 = vunpack.c.l.b16 %v2845
        %v2923 = vunpack.c.h.b16 %v2845
        %v2924 = vunpack.c.l.b16 %v2846
        %v2925 = vunpack.c.h.b16 %v2846
        %v2926 = vunpack.c.l.b16 %v2847
        %v2927 = vunpack.c.h.b16 %v2847
        %v2928 = vunpack.c.l.b16 %v2848
        %v2929 = vunpack.c.h.b16 %v2848
        %v2930 = vunpack.c.l.b16 %v2849
        %v2931 = vunpack.c.h.b16 %v2849
        %v2932 = vunpack.c.l.b16 %v2850
        %v2933 = vunpack.c.h.b16 %v2850
        %v2934 = vunpack.c.l.b16 %v2851
        %v2935 = vunpack.c.h.b16 %v2851
        %v2936 = vunpack.c.l.b16 %v2852
        %v2937 = vunpack.c.h.b16 %v2852
        %v2938 = vunpack.c.l.b16 %v2853
        %v2939 = vunpack.c.h.b16 %v2853
        %v2940 = vunpack.c.l.b16 %v2854
        %v2941 = vunpack.c.h.b16 %v2854
        %v2942 = vunpack.c.l.b16 %v2855
        %v2943 = vunpack.c.h.b16 %v2855
        %v2944 = vunpack.c.l.b16 %v2856
        %v2945 = vunpack.c.h.b16 %v2856
        %v2946 = vunpack.c.l.b16 %v2857
        %v2947 = vunpack.c.h.b16 %v2857
        %v2948 = vunpack.c.l.b16 %v2858
        %v2949 = vunpack.c.h.b16 %v2858
        %v2950 = vunpack.c.l.b16 %v2859
        %v2951 = vunpack.c.h.b16 %v2859
        %v2952 = vunpack.c.l.b16 %v2860
        %v2953 = vunpack.c.h.b16 %v2860
        %v2954 = vunpack.c.l.b16 %v2861
        %v2955 = vunpack.c.h.b16 %v2861
        %v2956 = vunpack.c.l.b16 %v2862
        %v2957 = vunpack.c.h.b16 %v2862
        %v2958 = vunpack.c.l.b16 %v2863
        %v2959 = vunpack.c.h.b16 %v2863
        %v2960 = vpack.c.b16 %v2900, %v2896
        %v2961 = vpack.c.b16 %v2901, %v2897
        %v2962 = vpack.c.b16 %v2902, %v2898
        %v2963 = vpack.c.b16 %v2903, %v2899
        %v2964 = vpack.c.b16 %v2908, %v2904
        %v2965 = vpack.c.b16 %v2909, %v2905
        %v2966 = vpack.c.b16 %v2910, %v2906
        %v2967 = vpack.c.b16 %v2911, %v2907
        %v2968 = vpack.c.b16 %v2916, %v2912
        %v2969 = vpack.c.b16 %v2917, %v2913
        %v2970 = vpack.c.b16 %v2918, %v2914
        %v2971 = vpack.c.b16 %v2919, %v2915
        %v2972 = vpack.c.b16 %v2924, %v2920
        %v2973 = vpack.c.b16 %v2925, %v2921
        %v2974 = vpack.c.b16 %v2926, %v2922
        %v2975 = vpack.c.b16 %v2927, %v2923
        %v2976 = vpack.c.b16 %v2932, %v2928
        %v2977 = vpack.c.b16 %v2933, %v2929
        %v2978 = vpack.c.b16 %v2934, %v2930
        %v2979 = vpack.c.b16 %v2935, %v2931
        %v2980 = vpack.c.b16 %v2940, %v2936
        %v2981 = vpack.c.b16 %v2941, %v2937
        %v2982 = vpack.c.b16 %v2942, %v2938
        %v2983 = vpack.c.b16 %v2943, %v2939
        %v2984 = vpack.c.b16 %v2948, %v2944
        %v2985 = vpack.c.b16 %v2949, %v2945
        %v2986 = vpack.c.b16 %v2950, %v2946
        %v2987 = vpack.c.b16 %v2951, %v2947
        %v2988 = vpack.c.b16 %v2956, %v2952
        %v2989 = vpack.c.b16 %v2957, %v2953
        %v2990 = vpack.c.b16 %v2958, %v2954
        %v2991 = vpack.c.b16 %v2959, %v2955
        %3024 = vmatprep.subr.bf16.mxu0 %v2961
        %3025 = vmatpush1.bf16.msra.mxu0 %v2960
        %3026 = vmatprep.subr.bf16.mxu0 %v2965
        %3027 = vmatpush1.bf16.msra.mxu0 %v2964
        %3028 = vmatprep.subr.bf16.mxu0 %v2969
        %3029 = vmatpush1.bf16.msra.mxu0 %v2968
        %3030 = vmatprep.subr.bf16.mxu0 %v2973
        %3031 = vmatpush1.bf16.msra.mxu0 %v2972
        %3032 = vmatprep.subr.bf16.mxu0 %v2977
        %3033 = vmatpush1.bf16.msra.mxu0 %v2976
        %3034 = vmatprep.subr.bf16.mxu0 %v2981
        %3035 = vmatpush1.bf16.msra.mxu0 %v2980
        %3036 = vmatprep.subr.bf16.mxu0 %v2985
        %3037 = vmatpush1.bf16.msra.mxu0 %v2984
        %3038 = vmatprep.subr.bf16.mxu0 %v2989
        %3039 = vmatpush1.bf16.msra.mxu0 %v2988
        %3040 = vmatprep.subr.bf16.mxu0 0
        %3041 = vmatpush1.bf16.msra.mxu0 0
        %3042 = vmatprep.subr.bf16.mxu0 0
        %3043 = vmatpush1.bf16.msra.mxu0 0
        %3044 = vmatprep.subr.bf16.mxu0 0
        %3045 = vmatpush1.bf16.msra.mxu0 0
        %3046 = vmatprep.subr.bf16.mxu0 0
        %3047 = vmatpush1.bf16.msra.mxu0 0
        %3048 = vmatprep.subr.bf16.mxu0 0
        %3049 = vmatpush1.bf16.msra.mxu0 0
        %3050 = vmatprep.subr.bf16.mxu0 0
        %3051 = vmatpush1.bf16.msra.mxu0 0
        %3052 = vmatprep.subr.bf16.mxu0 0
        %3053 = vmatpush1.bf16.msra.mxu0 0
        %3054 = vmatprep.subr.bf16.mxu0 0
        %3055 = vmatpush1.bf16.msra.mxu0 0
        %3056 = vmatprep.mubr.bf16.mxu0 0
        %3057 = vmatmul.mubr.bf16.gmra.mrb[0].mxu0 %v2824
        %v3058 = vpop.f32.mrb[0].mxu0
        %v3059 = vadd.f32 0.0, %v3058
        %v3060 = vpop.f32.mrb[0].mxu0
        %v3061 = vadd.f32 0.0, %v3060
        %v3062 = vpop.f32.mrb[0].mxu0
        %v3063 = vpop.f32.mrb[0].mxu0
        %3064 = vdwg.mxu0
        %3065 = vmatprep.subr.bf16.mxu0 %v2963
        %3066 = vmatpush1.bf16.msra.mxu0 %v2962
        %3067 = vmatprep.subr.bf16.mxu0 %v2967
        %3068 = vmatpush1.bf16.msra.mxu0 %v2966
        %3069 = vmatprep.subr.bf16.mxu0 %v2971
        %3070 = vmatpush1.bf16.msra.mxu0 %v2970
        %3071 = vmatprep.subr.bf16.mxu0 %v2975
        %3072 = vmatpush1.bf16.msra.mxu0 %v2974
        %3073 = vmatprep.subr.bf16.mxu0 %v2979
        %3074 = vmatpush1.bf16.msra.mxu0 %v2978
        %3075 = vmatprep.subr.bf16.mxu0 %v2983
        %3076 = vmatpush1.bf16.msra.mxu0 %v2982
        %3077 = vmatprep.subr.bf16.mxu0 %v2987
        %3078 = vmatpush1.bf16.msra.mxu0 %v2986
        %3079 = vmatprep.subr.bf16.mxu0 %v2991
        %3080 = vmatpush1.bf16.msra.mxu0 %v2990
        %3081 = vmatprep.subr.bf16.mxu0 0
        %3082 = vmatpush1.bf16.msra.mxu0 0
        %3083 = vmatprep.subr.bf16.mxu0 0
        %3084 = vmatpush1.bf16.msra.mxu0 0
        %3085 = vmatprep.subr.bf16.mxu0 0
        %3086 = vmatpush1.bf16.msra.mxu0 0
        %3087 = vmatprep.subr.bf16.mxu0 0
        %3088 = vmatpush1.bf16.msra.mxu0 0
        %3089 = vmatprep.subr.bf16.mxu0 0
        %3090 = vmatpush1.bf16.msra.mxu0 0
        %3091 = vmatprep.subr.bf16.mxu0 0
        %3092 = vmatpush1.bf16.msra.mxu0 0
        %3093 = vmatprep.subr.bf16.mxu0 0
        %3094 = vmatpush1.bf16.msra.mxu0 0
        %3095 = vmatprep.subr.bf16.mxu0 0
        %3096 = vmatpush1.bf16.msra.mxu0 0
        %3097 = vmatprep.mubr.bf16.mxu0 0
        %3098 = vmatmul.mubr.bf16.gmra.mrb[0].mxu0 %v2824
        %v3099 = vpop.f32.mrb[0].mxu0
        %v3100 = vadd.f32 0.0, %v3099
        %v3101 = vpop.f32.mrb[0].mxu0
        %v3102 = vadd.f32 0.0, %v3101
        %v3103 = vpop.f32.mrb[0].mxu0
        %v3104 = vpop.f32.mrb[0].mxu0
        %3105 = vdwg.mxu0
        %v3106 = vadd.f32 %v2828, %v3059
        %v3107 = vadd.f32 %v2829, %v3061
        %v3108 = vadd.f32 %v2830, %v3100
        %v3109 = vadd.f32 %v2831, %v3102
        %v3110 = vld [vmem:[#allocation11] sm:$0xf]
        %v3112 = vlaneseq
        %v3113 = vshrl.u32 %v3112, 7
        %v3114 = vsub.s32 0, %v3113
        %v3115 = vrot.slane %v3110, %v3114
        %v3116 = vlaneseq
        %v3117 = vshrl.u32 %v3116, 7
        %v3118 = vsub.s32 1, %v3117
        %v3119 = vrot.slane %v3110, %v3118
        %v3120 = vlaneseq
        %v3121 = vshrl.u32 %v3120, 7
        %v3122 = vsub.s32 2, %v3121
        %v3123 = vrot.slane %v3110, %v3122
        %v3124 = vlaneseq
        %v3125 = vshrl.u32 %v3124, 7
        %v3126 = vsub.s32 3, %v3125
        %v3127 = vrot.slane %v3110, %v3126
        %v3132 = vadd.f32 %v3106, %v3115
        %v3133 = vadd.f32 %v3107, %v3119
        %v3134 = vadd.f32 %v3108, %v3123
        %v3135 = vadd.f32 %v3109, %v3127
        %v3136 = vxor.u32 %v3132, 2147483648
        %v3137 = vmul.f32 %v3136, 1.442695
        %v3138 = vpow.pop %v3137
        %v3139 = vadd.f32 %v3138, 1.0
        %v3140 = vrcp.pop %v3139
        %v3141 = vmul.f32 1.0, %v3140
        %v3142 = vxor.u32 %v3133, 2147483648
        %v3143 = vmul.f32 %v3142, 1.442695
        %v3144 = vpow.pop %v3143
        %v3145 = vadd.f32 %v3144, 1.0
        %v3146 = vrcp.pop %v3145
        %v3147 = vmul.f32 1.0, %v3146
        %v3148 = vtanh.pop %v3134
        %v3149 = vxor.u32 %v3135, 2147483648
        %v3150 = vmul.f32 %v3149, 1.442695
        %v3151 = vpow.pop %v3150
        %v3152 = vadd.f32 %v3151, 1.0
        %v3153 = vrcp.pop %v3152
        %v3154 = vmul.f32 1.0, %v3153
        %v3155 = vmul.f32 %v3147, %v2821
        %v3156 = vmul.f32 %v3141, %v3148
        %v3157 = vadd.f32 %v3155, %v3156
        %v3158 = vtanh.pop %v3157
        %v3159 = vmul.f32 %v3154, %v3158
        %v3160 = vpack.c.bf16 %v3159, %v3159
        %s3161 = scalar_lea.vmem %s396, 24 [#allocation17]
        %3162 = vst [vmem:[%s3161] sm:$0xf] %v3160
        %s3163 = scalar_lea.vmem [#allocation4], 224
        %v3164 = vld [vmem:[%s3163] sm:$0xff]
        %v3165 = vld [vmem:[%s3163 + $0x8] sm:$0xff]
        %v3166 = vld [vmem:[%s3163 + $0x10] sm:$0xff]
        %v3167 = vld [vmem:[%s3163 + $0x18] sm:$0xff]
        %v3168 = vld [vmem:[#allocation10] sm:$0xff]
        %v3169 = vld [vmem:[#allocation10 + $0x8] sm:$0xff]
        %v3170 = vld [vmem:[#allocation10 + $0x10] sm:$0xff]
        %v3171 = vld [vmem:[#allocation10 + $0x18] sm:$0xff]
        %v3172 = vld [vmem:[#allocation10 + $0x20] sm:$0xff]
        %v3173 = vld [vmem:[#allocation10 + $0x28] sm:$0xff]
        %v3174 = vld [vmem:[#allocation10 + $0x30] sm:$0xff]
        %v3175 = vld [vmem:[#allocation10 + $0x38] sm:$0xff]
        %v3176 = vld [vmem:[#allocation10 + $0x40] sm:$0xff]
        %v3177 = vld [vmem:[#allocation10 + $0x48] sm:$0xff]
        %v3178 = vld [vmem:[#allocation10 + $0x50] sm:$0xff]
        %v3179 = vld [vmem:[#allocation10 + $0x58] sm:$0xff]
        %v3180 = vld [vmem:[#allocation10 + $0x60] sm:$0xff]
        %v3181 = vld [vmem:[#allocation10 + $0x68] sm:$0xff]
        %v3182 = vld [vmem:[#allocation10 + $0x70] sm:$0xff]
        %v3183 = vld [vmem:[#allocation10 + $0x78] sm:$0xff]
        %v3184 = vld [vmem:[#allocation10 + $0x80] sm:$0xff]
        %v3185 = vld [vmem:[#allocation10 + $0x88] sm:$0xff]
        %v3186 = vld [vmem:[#allocation10 + $0x90] sm:$0xff]
        %v3187 = vld [vmem:[#allocation10 + $0x98] sm:$0xff]
        %v3188 = vld [vmem:[#allocation10 + $0xa0] sm:$0xff]
        %v3189 = vld [vmem:[#allocation10 + $0xa8] sm:$0xff]
        %v3190 = vld [vmem:[#allocation10 + $0xb0] sm:$0xff]
        %v3191 = vld [vmem:[#allocation10 + $0xb8] sm:$0xff]
        %v3192 = vld [vmem:[#allocation10 + $0xc0] sm:$0xff]
        %v3193 = vld [vmem:[#allocation10 + $0xc8] sm:$0xff]
        %v3194 = vld [vmem:[#allocation10 + $0xd0] sm:$0xff]
        %v3195 = vld [vmem:[#allocation10 + $0xd8] sm:$0xff]
        %v3196 = vld [vmem:[#allocation10 + $0xe0] sm:$0xff]
        %v3197 = vld [vmem:[#allocation10 + $0xe8] sm:$0xff]
        %v3198 = vld [vmem:[#allocation10 + $0xf0] sm:$0xff]
        %v3199 = vld [vmem:[#allocation10 + $0xf8] sm:$0xff]
        %v3232 = vunpack.c.l.b16 %v3168
        %v3233 = vunpack.c.h.b16 %v3168
        %v3234 = vunpack.c.l.b16 %v3169
        %v3235 = vunpack.c.h.b16 %v3169
        %v3236 = vunpack.c.l.b16 %v3170
        %v3237 = vunpack.c.h.b16 %v3170
        %v3238 = vunpack.c.l.b16 %v3171
        %v3239 = vunpack.c.h.b16 %v3171
        %v3240 = vunpack.c.l.b16 %v3172
        %v3241 = vunpack.c.h.b16 %v3172
        %v3242 = vunpack.c.l.b16 %v3173
        %v3243 = vunpack.c.h.b16 %v3173
        %v3244 = vunpack.c.l.b16 %v3174
        %v3245 = vunpack.c.h.b16 %v3174
        %v3246 = vunpack.c.l.b16 %v3175
        %v3247 = vunpack.c.h.b16 %v3175
        %v3248 = vunpack.c.l.b16 %v3176
        %v3249 = vunpack.c.h.b16 %v3176
        %v3250 = vunpack.c.l.b16 %v3177
        %v3251 = vunpack.c.h.b16 %v3177
        %v3252 = vunpack.c.l.b16 %v3178
        %v3253 = vunpack.c.h.b16 %v3178
        %v3254 = vunpack.c.l.b16 %v3179
        %v3255 = vunpack.c.h.b16 %v3179
        %v3256 = vunpack.c.l.b16 %v3180
        %v3257 = vunpack.c.h.b16 %v3180
        %v3258 = vunpack.c.l.b16 %v3181
        %v3259 = vunpack.c.h.b16 %v3181
        %v3260 = vunpack.c.l.b16 %v3182
        %v3261 = vunpack.c.h.b16 %v3182
        %v3262 = vunpack.c.l.b16 %v3183
        %v3263 = vunpack.c.h.b16 %v3183
        %v3264 = vunpack.c.l.b16 %v3184
        %v3265 = vunpack.c.h.b16 %v3184
        %v3266 = vunpack.c.l.b16 %v3185
        %v3267 = vunpack.c.h.b16 %v3185
        %v3268 = vunpack.c.l.b16 %v3186
        %v3269 = vunpack.c.h.b16 %v3186
        %v3270 = vunpack.c.l.b16 %v3187
        %v3271 = vunpack.c.h.b16 %v3187
        %v3272 = vunpack.c.l.b16 %v3188
        %v3273 = vunpack.c.h.b16 %v3188
        %v3274 = vunpack.c.l.b16 %v3189
        %v3275 = vunpack.c.h.b16 %v3189
        %v3276 = vunpack.c.l.b16 %v3190
        %v3277 = vunpack.c.h.b16 %v3190
        %v3278 = vunpack.c.l.b16 %v3191
        %v3279 = vunpack.c.h.b16 %v3191
        %v3280 = vunpack.c.l.b16 %v3192
        %v3281 = vunpack.c.h.b16 %v3192
        %v3282 = vunpack.c.l.b16 %v3193
        %v3283 = vunpack.c.h.b16 %v3193
        %v3284 = vunpack.c.l.b16 %v3194
        %v3285 = vunpack.c.h.b16 %v3194
        %v3286 = vunpack.c.l.b16 %v3195
        %v3287 = vunpack.c.h.b16 %v3195
        %v3288 = vunpack.c.l.b16 %v3196
        %v3289 = vunpack.c.h.b16 %v3196
        %v3290 = vunpack.c.l.b16 %v3197
        %v3291 = vunpack.c.h.b16 %v3197
        %v3292 = vunpack.c.l.b16 %v3198
        %v3293 = vunpack.c.h.b16 %v3198
        %v3294 = vunpack.c.l.b16 %v3199
        %v3295 = vunpack.c.h.b16 %v3199
        %v3296 = vpack.c.b16 %v3236, %v3232
        %v3297 = vpack.c.b16 %v3237, %v3233
        %v3298 = vpack.c.b16 %v3238, %v3234
        %v3299 = vpack.c.b16 %v3239, %v3235
        %v3300 = vpack.c.b16 %v3244, %v3240
        %v3301 = vpack.c.b16 %v3245, %v3241
        %v3302 = vpack.c.b16 %v3246, %v3242
        %v3303 = vpack.c.b16 %v3247, %v3243
        %v3304 = vpack.c.b16 %v3252, %v3248
        %v3305 = vpack.c.b16 %v3253, %v3249
        %v3306 = vpack.c.b16 %v3254, %v3250
        %v3307 = vpack.c.b16 %v3255, %v3251
        %v3308 = vpack.c.b16 %v3260, %v3256
        %v3309 = vpack.c.b16 %v3261, %v3257
        %v3310 = vpack.c.b16 %v3262, %v3258
        %v3311 = vpack.c.b16 %v3263, %v3259
        %v3312 = vpack.c.b16 %v3268, %v3264
        %v3313 = vpack.c.b16 %v3269, %v3265
        %v3314 = vpack.c.b16 %v3270, %v3266
        %v3315 = vpack.c.b16 %v3271, %v3267
        %v3316 = vpack.c.b16 %v3276, %v3272
        %v3317 = vpack.c.b16 %v3277, %v3273
        %v3318 = vpack.c.b16 %v3278, %v3274
        %v3319 = vpack.c.b16 %v3279, %v3275
        %v3320 = vpack.c.b16 %v3284, %v3280
        %v3321 = vpack.c.b16 %v3285, %v3281
        %v3322 = vpack.c.b16 %v3286, %v3282
        %v3323 = vpack.c.b16 %v3287, %v3283
        %v3324 = vpack.c.b16 %v3292, %v3288
        %v3325 = vpack.c.b16 %v3293, %v3289
        %v3326 = vpack.c.b16 %v3294, %v3290
        %v3327 = vpack.c.b16 %v3295, %v3291
        %3360 = vmatprep.subr.bf16.mxu0 %v3297
        %3361 = vmatpush1.bf16.msra.mxu0 %v3296
        %3362 = vmatprep.subr.bf16.mxu0 %v3301
        %3363 = vmatpush1.bf16.msra.mxu0 %v3300
        %3364 = vmatprep.subr.bf16.mxu0 %v3305
        %3365 = vmatpush1.bf16.msra.mxu0 %v3304
        %3366 = vmatprep.subr.bf16.mxu0 %v3309
        %3367 = vmatpush1.bf16.msra.mxu0 %v3308
        %3368 = vmatprep.subr.bf16.mxu0 %v3313
        %3369 = vmatpush1.bf16.msra.mxu0 %v3312
        %3370 = vmatprep.subr.bf16.mxu0 %v3317
        %3371 = vmatpush1.bf16.msra.mxu0 %v3316
        %3372 = vmatprep.subr.bf16.mxu0 %v3321
        %3373 = vmatpush1.bf16.msra.mxu0 %v3320
        %3374 = vmatprep.subr.bf16.mxu0 %v3325
        %3375 = vmatpush1.bf16.msra.mxu0 %v3324
        %3376 = vmatprep.subr.bf16.mxu0 0
        %3377 = vmatpush1.bf16.msra.mxu0 0
        %3378 = vmatprep.subr.bf16.mxu0 0
        %3379 = vmatpush1.bf16.msra.mxu0 0
        %3380 = vmatprep.subr.bf16.mxu0 0
        %3381 = vmatpush1.bf16.msra.mxu0 0
        %3382 = vmatprep.subr.bf16.mxu0 0
        %3383 = vmatpush1.bf16.msra.mxu0 0
        %3384 = vmatprep.subr.bf16.mxu0 0
        %3385 = vmatpush1.bf16.msra.mxu0 0
        %3386 = vmatprep.subr.bf16.mxu0 0
        %3387 = vmatpush1.bf16.msra.mxu0 0
        %3388 = vmatprep.subr.bf16.mxu0 0
        %3389 = vmatpush1.bf16.msra.mxu0 0
        %3390 = vmatprep.subr.bf16.mxu0 0
        %3391 = vmatpush1.bf16.msra.mxu0 0
        %3392 = vmatprep.mubr.bf16.mxu0 0
        %3393 = vmatmul.mubr.bf16.gmra.mrb[0].mxu0 %v3160
        %v3394 = vpop.f32.mrb[0].mxu0
        %v3395 = vadd.f32 0.0, %v3394
        %v3396 = vpop.f32.mrb[0].mxu0
        %v3397 = vadd.f32 0.0, %v3396
        %v3398 = vpop.f32.mrb[0].mxu0
        %v3399 = vpop.f32.mrb[0].mxu0
        %3400 = vdwg.mxu0
        %3401 = vmatprep.subr.bf16.mxu0 %v3299
        %3402 = vmatpush1.bf16.msra.mxu0 %v3298
        %3403 = vmatprep.subr.bf16.mxu0 %v3303
        %3404 = vmatpush1.bf16.msra.mxu0 %v3302
        %3405 = vmatprep.subr.bf16.mxu0 %v3307
        %3406 = vmatpush1.bf16.msra.mxu0 %v3306
        %3407 = vmatprep.subr.bf16.mxu0 %v3311
        %3408 = vmatpush1.bf16.msra.mxu0 %v3310
        %3409 = vmatprep.subr.bf16.mxu0 %v3315
        %3410 = vmatpush1.bf16.msra.mxu0 %v3314
        %3411 = vmatprep.subr.bf16.mxu0 %v3319
        %3412 = vmatpush1.bf16.msra.mxu0 %v3318
        %3413 = vmatprep.subr.bf16.mxu0 %v3323
        %3414 = vmatpush1.bf16.msra.mxu0 %v3322
        %3415 = vmatprep.subr.bf16.mxu0 %v3327
        %3416 = vmatpush1.bf16.msra.mxu0 %v3326
        %3417 = vmatprep.subr.bf16.mxu0 0
        %3418 = vmatpush1.bf16.msra.mxu0 0
        %3419 = vmatprep.subr.bf16.mxu0 0
        %3420 = vmatpush1.bf16.msra.mxu0 0
        %3421 = vmatprep.subr.bf16.mxu0 0
        %3422 = vmatpush1.bf16.msra.mxu0 0
        %3423 = vmatprep.subr.bf16.mxu0 0
        %3424 = vmatpush1.bf16.msra.mxu0 0
        %3425 = vmatprep.subr.bf16.mxu0 0
        %3426 = vmatpush1.bf16.msra.mxu0 0
        %3427 = vmatprep.subr.bf16.mxu0 0
        %3428 = vmatpush1.bf16.msra.mxu0 0
        %3429 = vmatprep.subr.bf16.mxu0 0
        %3430 = vmatpush1.bf16.msra.mxu0 0
        %3431 = vmatprep.subr.bf16.mxu0 0
        %3432 = vmatpush1.bf16.msra.mxu0 0
        %3433 = vmatprep.mubr.bf16.mxu0 0
        %3434 = vmatmul.mubr.bf16.gmra.mrb[0].mxu0 %v3160
        %v3435 = vpop.f32.mrb[0].mxu0
        %v3436 = vadd.f32 0.0, %v3435
        %v3437 = vpop.f32.mrb[0].mxu0
        %v3438 = vadd.f32 0.0, %v3437
        %v3439 = vpop.f32.mrb[0].mxu0
        %v3440 = vpop.f32.mrb[0].mxu0
        %3441 = vdwg.mxu0
        %v3442 = vadd.f32 %v3164, %v3395
        %v3443 = vadd.f32 %v3165, %v3397
        %v3444 = vadd.f32 %v3166, %v3436
        %v3445 = vadd.f32 %v3167, %v3438
        %v3446 = vld [vmem:[#allocation11] sm:$0xf]
        %v3448 = vlaneseq
        %v3449 = vshrl.u32 %v3448, 7
        %v3450 = vsub.s32 0, %v3449
        %v3451 = vrot.slane %v3446, %v3450
        %v3452 = vlaneseq
        %v3453 = vshrl.u32 %v3452, 7
        %v3454 = vsub.s32 1, %v3453
        %v3455 = vrot.slane %v3446, %v3454
        %v3456 = vlaneseq
        %v3457 = vshrl.u32 %v3456, 7
        %v3458 = vsub.s32 2, %v3457
        %v3459 = vrot.slane %v3446, %v3458
        %v3460 = vlaneseq
        %v3461 = vshrl.u32 %v3460, 7
        %v3462 = vsub.s32 3, %v3461
        %v3463 = vrot.slane %v3446, %v3462
        %v3468 = vadd.f32 %v3442, %v3451
        %v3469 = vadd.f32 %v3443, %v3455
        %v3470 = vadd.f32 %v3444, %v3459
        %v3471 = vadd.f32 %v3445, %v3463
        %v3472 = vxor.u32 %v3468, 2147483648
        %v3473 = vmul.f32 %v3472, 1.442695
        %v3474 = vpow.pop %v3473
        %v3475 = vadd.f32 %v3474, 1.0
        %v3476 = vrcp.pop %v3475
        %v3477 = vmul.f32 1.0, %v3476
        %v3478 = vxor.u32 %v3469, 2147483648
        %v3479 = vmul.f32 %v3478, 1.442695
        %v3480 = vpow.pop %v3479
        %v3481 = vadd.f32 %v3480, 1.0
        %v3482 = vrcp.pop %v3481
        %v3483 = vmul.f32 1.0, %v3482
        %v3484 = vtanh.pop %v3470
        %v3485 = vxor.u32 %v3471, 2147483648
        %v3486 = vmul.f32 %v3485, 1.442695
        %v3487 = vpow.pop %v3486
        %v3488 = vadd.f32 %v3487, 1.0
        %v3489 = vrcp.pop %v3488
        %v3490 = vmul.f32 1.0, %v3489
        %v3491 = vmul.f32 %v3483, %v3157
        %v3492 = vmul.f32 %v3477, %v3484
        %v3493 = vadd.f32 %v3491, %v3492
        %v3494 = vtanh.pop %v3493
        %v3495 = vmul.f32 %v3490, %v3494
        %v3496 = vpack.c.bf16 %v3495, %v3495
        %s3497 = scalar_lea.vmem %s396, 28 [#allocation17]
        %3498 = vst [vmem:[%s3497] sm:$0xf] %v3496
        %3499 = vst [vmem:[#allocation2] sm:$0xff] %v3495
        %3500 = vst [vmem:[#allocation3] sm:$0xff] %v3493
        %v3501 = vld [vmem:[%s396] sm:$0xf]
        %v3502 = vld [vmem:[%s396 + $0x4] sm:$0xf]
        %v3503 = vld [vmem:[%s396 + $0x8] sm:$0xf]
        %v3504 = vld [vmem:[%s396 + $0xc] sm:$0xf]
        %v3505 = vld [vmem:[%s396 + $0x10] sm:$0xf]
        %v3506 = vld [vmem:[%s396 + $0x14] sm:$0xf]
        %v3507 = vld [vmem:[%s396 + $0x18] sm:$0xf]
        %v3508 = vld [vmem:[%s396 + $0x1c] sm:$0xf]
        %v3509 = vld [vmem:[#allocation13] sm:$0xff]
        %v3510 = vld [vmem:[#allocation13 + $0x8] sm:$0xff]
        %v3511 = vld [vmem:[#allocation13 + $0x10] sm:$0xff]
        %v3512 = vld [vmem:[#allocation13 + $0x18] sm:$0xff]
        %v3513 = vld [vmem:[#allocation13 + $0x20] sm:$0xff]
        %v3514 = vld [vmem:[#allocation13 + $0x28] sm:$0xff]
        %v3515 = vld [vmem:[#allocation13 + $0x30] sm:$0xff]
        %v3516 = vld [vmem:[#allocation13 + $0x38] sm:$0xff]
        %v3517 = vld [vmem:[#allocation13 + $0x40] sm:$0xff]
        %v3518 = vld [vmem:[#allocation13 + $0x48] sm:$0xff]
        %v3519 = vld [vmem:[#allocation13 + $0x50] sm:$0xff]
        %v3520 = vld [vmem:[#allocation13 + $0x58] sm:$0xff]
        %v3521 = vld [vmem:[#allocation13 + $0x60] sm:$0xff]
        %v3522 = vld [vmem:[#allocation13 + $0x68] sm:$0xff]
        %v3523 = vld [vmem:[#allocation13 + $0x70] sm:$0xff]
        %v3524 = vld [vmem:[#allocation13 + $0x78] sm:$0xff]
        %v3525 = vld [vmem:[#allocation13 + $0x80] sm:$0xff]
        %v3526 = vld [vmem:[#allocation13 + $0x88] sm:$0xff]
        %v3527 = vld [vmem:[#allocation13 + $0x90] sm:$0xff]
        %v3528 = vld [vmem:[#allocation13 + $0x98] sm:$0xff]
        %v3529 = vld [vmem:[#allocation13 + $0xa0] sm:$0xff]
        %v3530 = vld [vmem:[#allocation13 + $0xa8] sm:$0xff]
        %v3531 = vld [vmem:[#allocation13 + $0xb0] sm:$0xff]
        %v3532 = vld [vmem:[#allocation13 + $0xb8] sm:$0xff]
        %v3533 = vld [vmem:[#allocation13 + $0xc0] sm:$0xff]
        %v3534 = vld [vmem:[#allocation13 + $0xc8] sm:$0xff]
        %v3535 = vld [vmem:[#allocation13 + $0xd0] sm:$0xff]
        %v3536 = vld [vmem:[#allocation13 + $0xd8] sm:$0xff]
        %v3537 = vld [vmem:[#allocation13 + $0xe0] sm:$0xff]
        %v3538 = vld [vmem:[#allocation13 + $0xe8] sm:$0xff]
        %v3539 = vld [vmem:[#allocation13 + $0xf0] sm:$0xff]
        %v3540 = vld [vmem:[#allocation13 + $0xf8] sm:$0xff]
        %v3549 = vunpack.c.l.b16 %v3501
        %v3550 = vunpack.c.l.b16 %v3502
        %v3551 = vunpack.c.l.b16 %v3503
        %v3552 = vunpack.c.l.b16 %v3504
        %v3553 = vunpack.c.l.b16 %v3505
        %v3554 = vunpack.c.l.b16 %v3506
        %v3555 = vunpack.c.l.b16 %v3507
        %v3556 = vunpack.c.l.b16 %v3508
        %v3557 = vpack.c.b16 %v3550, %v3549
        %v3558 = vpack.c.b16 %v3552, %v3551
        %v3559 = vpack.c.b16 %v3554, %v3553
        %v3560 = vpack.c.b16 %v3556, %v3555
        %v3597 = vunpack.c.l.b16 %v3509
        %v3598 = vunpack.c.h.b16 %v3509
        %v3599 = vunpack.c.l.b16 %v3510
        %v3600 = vunpack.c.h.b16 %v3510
        %v3601 = vunpack.c.l.b16 %v3511
        %v3602 = vunpack.c.h.b16 %v3511
        %v3603 = vunpack.c.l.b16 %v3512
        %v3604 = vunpack.c.h.b16 %v3512
        %v3605 = vunpack.c.l.b16 %v3513
        %v3606 = vunpack.c.h.b16 %v3513
        %v3607 = vunpack.c.l.b16 %v3514
        %v3608 = vunpack.c.h.b16 %v3514
        %v3609 = vunpack.c.l.b16 %v3515
        %v3610 = vunpack.c.h.b16 %v3515
        %v3611 = vunpack.c.l.b16 %v3516
        %v3612 = vunpack.c.h.b16 %v3516
        %v3613 = vunpack.c.l.b16 %v3517
        %v3614 = vunpack.c.h.b16 %v3517
        %v3615 = vunpack.c.l.b16 %v3518
        %v3616 = vunpack.c.h.b16 %v3518
        %v3617 = vunpack.c.l.b16 %v3519
        %v3618 = vunpack.c.h.b16 %v3519
        %v3619 = vunpack.c.l.b16 %v3520
        %v3620 = vunpack.c.h.b16 %v3520
        %v3621 = vunpack.c.l.b16 %v3521
        %v3622 = vunpack.c.h.b16 %v3521
        %v3623 = vunpack.c.l.b16 %v3522
        %v3624 = vunpack.c.h.b16 %v3522
        %v3625 = vunpack.c.l.b16 %v3523
        %v3626 = vunpack.c.h.b16 %v3523
        %v3627 = vunpack.c.l.b16 %v3524
        %v3628 = vunpack.c.h.b16 %v3524
        %v3629 = vunpack.c.l.b16 %v3525
        %v3630 = vunpack.c.h.b16 %v3525
        %v3631 = vunpack.c.l.b16 %v3526
        %v3632 = vunpack.c.h.b16 %v3526
        %v3633 = vunpack.c.l.b16 %v3527
        %v3634 = vunpack.c.h.b16 %v3527
        %v3635 = vunpack.c.l.b16 %v3528
        %v3636 = vunpack.c.h.b16 %v3528
        %v3637 = vunpack.c.l.b16 %v3529
        %v3638 = vunpack.c.h.b16 %v3529
        %v3639 = vunpack.c.l.b16 %v3530
        %v3640 = vunpack.c.h.b16 %v3530
        %v3641 = vunpack.c.l.b16 %v3531
        %v3642 = vunpack.c.h.b16 %v3531
        %v3643 = vunpack.c.l.b16 %v3532
        %v3644 = vunpack.c.h.b16 %v3532
        %v3645 = vunpack.c.l.b16 %v3533
        %v3646 = vunpack.c.h.b16 %v3533
        %v3647 = vunpack.c.l.b16 %v3534
        %v3648 = vunpack.c.h.b16 %v3534
        %v3649 = vunpack.c.l.b16 %v3535
        %v3650 = vunpack.c.h.b16 %v3535
        %v3651 = vunpack.c.l.b16 %v3536
        %v3652 = vunpack.c.h.b16 %v3536
        %v3653 = vunpack.c.l.b16 %v3537
        %v3654 = vunpack.c.h.b16 %v3537
        %v3655 = vunpack.c.l.b16 %v3538
        %v3656 = vunpack.c.h.b16 %v3538
        %v3657 = vunpack.c.l.b16 %v3539
        %v3658 = vunpack.c.h.b16 %v3539
        %v3659 = vunpack.c.l.b16 %v3540
        %v3660 = vunpack.c.h.b16 %v3540
        %v3661 = vpack.c.b16 %v3601, %v3597
        %v3662 = vpack.c.b16 %v3602, %v3598
        %v3663 = vpack.c.b16 %v3603, %v3599
        %v3664 = vpack.c.b16 %v3604, %v3600
        %v3665 = vpack.c.b16 %v3609, %v3605
        %v3666 = vpack.c.b16 %v3610, %v3606
        %v3667 = vpack.c.b16 %v3611, %v3607
        %v3668 = vpack.c.b16 %v3612, %v3608
        %v3669 = vpack.c.b16 %v3617, %v3613
        %v3670 = vpack.c.b16 %v3618, %v3614
        %v3671 = vpack.c.b16 %v3619, %v3615
        %v3672 = vpack.c.b16 %v3620, %v3616
        %v3673 = vpack.c.b16 %v3625, %v3621
        %v3674 = vpack.c.b16 %v3626, %v3622
        %v3675 = vpack.c.b16 %v3627, %v3623
        %v3676 = vpack.c.b16 %v3628, %v3624
        %v3677 = vpack.c.b16 %v3633, %v3629
        %v3678 = vpack.c.b16 %v3634, %v3630
        %v3679 = vpack.c.b16 %v3635, %v3631
        %v3680 = vpack.c.b16 %v3636, %v3632
        %v3681 = vpack.c.b16 %v3641, %v3637
        %v3682 = vpack.c.b16 %v3642, %v3638
        %v3683 = vpack.c.b16 %v3643, %v3639
        %v3684 = vpack.c.b16 %v3644, %v3640
        %v3685 = vpack.c.b16 %v3649, %v3645
        %v3686 = vpack.c.b16 %v3650, %v3646
        %v3687 = vpack.c.b16 %v3651, %v3647
        %v3688 = vpack.c.b16 %v3652, %v3648
        %v3689 = vpack.c.b16 %v3657, %v3653
        %v3690 = vpack.c.b16 %v3658, %v3654
        %v3691 = vpack.c.b16 %v3659, %v3655
        %v3692 = vpack.c.b16 %v3660, %v3656
        %3725 = vmatprep.subr.bf16.mxu0 %v3662
        %3726 = vmatpush1.bf16.msra.mxu0 %v3661
        %3727 = vmatprep.subr.bf16.mxu0 %v3666
        %3728 = vmatpush1.bf16.msra.mxu0 %v3665
        %3729 = vmatprep.subr.bf16.mxu0 %v3670
        %3730 = vmatpush1.bf16.msra.mxu0 %v3669
        %3731 = vmatprep.subr.bf16.mxu0 %v3674
        %3732 = vmatpush1.bf16.msra.mxu0 %v3673
        %3733 = vmatprep.subr.bf16.mxu0 %v3678
        %3734 = vmatpush1.bf16.msra.mxu0 %v3677
        %3735 = vmatprep.subr.bf16.mxu0 %v3682
        %3736 = vmatpush1.bf16.msra.mxu0 %v3681
        %3737 = vmatprep.subr.bf16.mxu0 %v3686
        %3738 = vmatpush1.bf16.msra.mxu0 %v3685
        %3739 = vmatprep.subr.bf16.mxu0 %v3690
        %3740 = vmatpush1.bf16.msra.mxu0 %v3689
        %3741 = vmatprep.subr.bf16.mxu0 0
        %3742 = vmatpush1.bf16.msra.mxu0 0
        %3743 = vmatprep.subr.bf16.mxu0 0
        %3744 = vmatpush1.bf16.msra.mxu0 0
        %3745 = vmatprep.subr.bf16.mxu0 0
        %3746 = vmatpush1.bf16.msra.mxu0 0
        %3747 = vmatprep.subr.bf16.mxu0 0
        %3748 = vmatpush1.bf16.msra.mxu0 0
        %3749 = vmatprep.subr.bf16.mxu0 0
        %3750 = vmatpush1.bf16.msra.mxu0 0
        %3751 = vmatprep.subr.bf16.mxu0 0
        %3752 = vmatpush1.bf16.msra.mxu0 0
        %3753 = vmatprep.subr.bf16.mxu0 0
        %3754 = vmatpush1.bf16.msra.mxu0 0
        %3755 = vmatprep.subr.bf16.mxu0 0
        %3756 = vmatpush1.bf16.msra.mxu0 0
        %3757 = vmatprep.mubr.bf16.mxu0 0
        %3758 = vmatmul.mubr.bf16.gmra.mrb[0].mxu0 %v3557
        %v3759 = vpop.f32.mrb[0].mxu0
        %v3760 = vadd.f32 0.0, %v3759
        %v3761 = vpop.f32.mrb[0].mxu0
        %v3762 = vadd.f32 0.0, %v3761
        %v3763 = vpop.f32.mrb[0].mxu0
        %v3764 = vadd.f32 0.0, %v3763
        %v3765 = vpop.f32.mrb[0].mxu0
        %v3766 = vadd.f32 0.0, %v3765
        %3767 = vmatprep.mubr.bf16.mxu0 0
        %3768 = vmatmul.mubr.bf16.gmra.mrb[0].mxu0 %v3558
        %v3769 = vpop.f32.mrb[0].mxu0
        %v3770 = vadd.f32 0.0, %v3769
        %v3771 = vpop.f32.mrb[0].mxu0
        %v3772 = vadd.f32 0.0, %v3771
        %v3773 = vpop.f32.mrb[0].mxu0
        %v3774 = vadd.f32 0.0, %v3773
        %v3775 = vpop.f32.mrb[0].mxu0
        %v3776 = vadd.f32 0.0, %v3775
        %3777 = vmatprep.mubr.bf16.mxu0 0
        %3778 = vmatmul.mubr.bf16.gmra.mrb[0].mxu0 %v3559
        %v3779 = vpop.f32.mrb[0].mxu0
        %v3780 = vadd.f32 0.0, %v3779
        %v3781 = vpop.f32.mrb[0].mxu0
        %v3782 = vadd.f32 0.0, %v3781
        %v3783 = vpop.f32.mrb[0].mxu0
        %v3784 = vadd.f32 0.0, %v3783
        %v3785 = vpop.f32.mrb[0].mxu0
        %v3786 = vadd.f32 0.0, %v3785
        %3787 = vmatprep.mubr.bf16.mxu0 0
        %3788 = vmatmul.mubr.bf16.gmra.mrb[0].mxu0 %v3560
        %v3789 = vpop.f32.mrb[0].mxu0
        %v3790 = vadd.f32 0.0, %v3789
        %v3791 = vpop.f32.mrb[0].mxu0
        %v3792 = vadd.f32 0.0, %v3791
        %v3793 = vpop.f32.mrb[0].mxu0
        %v3794 = vadd.f32 0.0, %v3793
        %v3795 = vpop.f32.mrb[0].mxu0
        %v3796 = vadd.f32 0.0, %v3795
        %3797 = vdwg.mxu0
        %3798 = vmatprep.subr.bf16.mxu0 %v3664
        %3799 = vmatpush1.bf16.msra.mxu0 %v3663
        %3800 = vmatprep.subr.bf16.mxu0 %v3668
        %3801 = vmatpush1.bf16.msra.mxu0 %v3667
        %3802 = vmatprep.subr.bf16.mxu0 %v3672
        %3803 = vmatpush1.bf16.msra.mxu0 %v3671
        %3804 = vmatprep.subr.bf16.mxu0 %v3676
        %3805 = vmatpush1.bf16.msra.mxu0 %v3675
        %3806 = vmatprep.subr.bf16.mxu0 %v3680
        %3807 = vmatpush1.bf16.msra.mxu0 %v3679
        %3808 = vmatprep.subr.bf16.mxu0 %v3684
        %3809 = vmatpush1.bf16.msra.mxu0 %v3683
        %3810 = vmatprep.subr.bf16.mxu0 %v3688
        %3811 = vmatpush1.bf16.msra.mxu0 %v3687
        %3812 = vmatprep.subr.bf16.mxu0 %v3692
        %3813 = vmatpush1.bf16.msra.mxu0 %v3691
        %3814 = vmatprep.subr.bf16.mxu0 0
        %3815 = vmatpush1.bf16.msra.mxu0 0
        %3816 = vmatprep.subr.bf16.mxu0 0
        %3817 = vmatpush1.bf16.msra.mxu0 0
        %3818 = vmatprep.subr.bf16.mxu0 0
        %3819 = vmatpush1.bf16.msra.mxu0 0
        %3820 = vmatprep.subr.bf16.mxu0 0
        %3821 = vmatpush1.bf16.msra.mxu0 0
        %3822 = vmatprep.subr.bf16.mxu0 0
        %3823 = vmatpush1.bf16.msra.mxu0 0
        %3824 = vmatprep.subr.bf16.mxu0 0
        %3825 = vmatpush1.bf16.msra.mxu0 0
        %3826 = vmatprep.subr.bf16.mxu0 0
        %3827 = vmatpush1.bf16.msra.mxu0 0
        %3828 = vmatprep.subr.bf16.mxu0 0
        %3829 = vmatpush1.bf16.msra.mxu0 0
        %3830 = vmatprep.mubr.bf16.mxu0 0
        %3831 = vmatmul.mubr.bf16.gmra.mrb[0].mxu0 %v3557
        %v3832 = vpop.f32.mrb[0].mxu0
        %v3833 = vadd.f32 0.0, %v3832
        %v3834 = vpop.f32.mrb[0].mxu0
        %v3835 = vadd.f32 0.0, %v3834
        %v3836 = vpop.f32.mrb[0].mxu0
        %v3837 = vadd.f32 0.0, %v3836
        %v3838 = vpop.f32.mrb[0].mxu0
        %v3839 = vadd.f32 0.0, %v3838
        %3840 = vmatprep.mubr.bf16.mxu0 0
        %3841 = vmatmul.mubr.bf16.gmra.mrb[0].mxu0 %v3558
        %v3842 = vpop.f32.mrb[0].mxu0
        %v3843 = vadd.f32 0.0, %v3842
        %v3844 = vpop.f32.mrb[0].mxu0
        %v3845 = vadd.f32 0.0, %v3844
        %v3846 = vpop.f32.mrb[0].mxu0
        %v3847 = vadd.f32 0.0, %v3846
        %v3848 = vpop.f32.mrb[0].mxu0
        %v3849 = vadd.f32 0.0, %v3848
        %3850 = vmatprep.mubr.bf16.mxu0 0
        %3851 = vmatmul.mubr.bf16.gmra.mrb[0].mxu0 %v3559
        %v3852 = vpop.f32.mrb[0].mxu0
        %v3853 = vadd.f32 0.0, %v3852
        %v3854 = vpop.f32.mrb[0].mxu0
        %v3855 = vadd.f32 0.0, %v3854
        %v3856 = vpop.f32.mrb[0].mxu0
        %v3857 = vadd.f32 0.0, %v3856
        %v3858 = vpop.f32.mrb[0].mxu0
        %v3859 = vadd.f32 0.0, %v3858
        %3860 = vmatprep.mubr.bf16.mxu0 0
        %3861 = vmatmul.mubr.bf16.gmra.mrb[0].mxu0 %v3560
        %v3862 = vpop.f32.mrb[0].mxu0
        %v3863 = vadd.f32 0.0, %v3862
        %v3864 = vpop.f32.mrb[0].mxu0
        %v3865 = vadd.f32 0.0, %v3864
        %v3866 = vpop.f32.mrb[0].mxu0
        %v3867 = vadd.f32 0.0, %v3866
        %v3868 = vpop.f32.mrb[0].mxu0
        %v3869 = vadd.f32 0.0, %v3868
        %3870 = vdwg.mxu0
        %3871 = vst [vmem:[#allocation4] sm:$0xff] %v3760
        %3872 = vst [vmem:[#allocation4 + $0x8] sm:$0xff] %v3762
        %3873 = vst [vmem:[#allocation4 + $0x10] sm:$0xff] %v3833
        %3874 = vst [vmem:[#allocation4 + $0x18] sm:$0xff] %v3835
        %3875 = vst [vmem:[#allocation4 + $0x20] sm:$0xff] %v3764
        %3876 = vst [vmem:[#allocation4 + $0x28] sm:$0xff] %v3766
        %3877 = vst [vmem:[#allocation4 + $0x30] sm:$0xff] %v3837
        %3878 = vst [vmem:[#allocation4 + $0x38] sm:$0xff] %v3839
        %3879 = vst [vmem:[#allocation4 + $0x40] sm:$0xff] %v3770
        %3880 = vst [vmem:[#allocation4 + $0x48] sm:$0xff] %v3772
        %3881 = vst [vmem:[#allocation4 + $0x50] sm:$0xff] %v3843
        %3882 = vst [vmem:[#allocation4 + $0x58] sm:$0xff] %v3845
        %3883 = vst [vmem:[#allocation4 + $0x60] sm:$0xff] %v3774
        %3884 = vst [vmem:[#allocation4 + $0x68] sm:$0xff] %v3776
        %3885 = vst [vmem:[#allocation4 + $0x70] sm:$0xff] %v3847
        %3886 = vst [vmem:[#allocation4 + $0x78] sm:$0xff] %v3849
        %3887 = vst [vmem:[#allocation4 + $0x80] sm:$0xff] %v3780
        %3888 = vst [vmem:[#allocation4 + $0x88] sm:$0xff] %v3782
        %3889 = vst [vmem:[#allocation4 + $0x90] sm:$0xff] %v3853
        %3890 = vst [vmem:[#allocation4 + $0x98] sm:$0xff] %v3855
        %3891 = vst [vmem:[#allocation4 + $0xa0] sm:$0xff] %v3784
        %3892 = vst [vmem:[#allocation4 + $0xa8] sm:$0xff] %v3786
        %3893 = vst [vmem:[#allocation4 + $0xb0] sm:$0xff] %v3857
        %3894 = vst [vmem:[#allocation4 + $0xb8] sm:$0xff] %v3859
        %3895 = vst [vmem:[#allocation4 + $0xc0] sm:$0xff] %v3790
        %3896 = vst [vmem:[#allocation4 + $0xc8] sm:$0xff] %v3792
        %3897 = vst [vmem:[#allocation4 + $0xd0] sm:$0xff] %v3863
        %3898 = vst [vmem:[#allocation4 + $0xd8] sm:$0xff] %v3865
        %3899 = vst [vmem:[#allocation4 + $0xe0] sm:$0xff] %v3794
        %3900 = vst [vmem:[#allocation4 + $0xe8] sm:$0xff] %v3796
        %3901 = vst [vmem:[#allocation4 + $0xf0] sm:$0xff] %v3867
        %3902 = vst [vmem:[#allocation4 + $0xf8] sm:$0xff] %v3869
        %s3903 = scalar_lea.vmem [#allocation2], 8
        %v3904 = vld [vmem:[%s3903] sm:$0xff]
        %s3905 = scalar_lea.vmem [#allocation3], 8
        %v3906 = vld [vmem:[%s3905] sm:$0xff]
        %v3907 = vld [vmem:[#allocation4] sm:$0xff]
        %v3908 = vld [vmem:[#allocation4 + $0x8] sm:$0xff]
        %v3909 = vld [vmem:[#allocation4 + $0x10] sm:$0xff]
        %v3910 = vld [vmem:[#allocation4 + $0x18] sm:$0xff]
        %v3911 = vpack.c.bf16 %v3904, %v3904
        %v3912 = vld [vmem:[#allocation14] sm:$0xff]
        %v3913 = vld [vmem:[#allocation14 + $0x8] sm:$0xff]
        %v3914 = vld [vmem:[#allocation14 + $0x10] sm:$0xff]
        %v3915 = vld [vmem:[#allocation14 + $0x18] sm:$0xff]
        %v3916 = vld [vmem:[#allocation14 + $0x20] sm:$0xff]
        %v3917 = vld [vmem:[#allocation14 + $0x28] sm:$0xff]
        %v3918 = vld [vmem:[#allocation14 + $0x30] sm:$0xff]
        %v3919 = vld [vmem:[#allocation14 + $0x38] sm:$0xff]
        %v3920 = vld [vmem:[#allocation14 + $0x40] sm:$0xff]
        %v3921 = vld [vmem:[#allocation14 + $0x48] sm:$0xff]
        %v3922 = vld [vmem:[#allocation14 + $0x50] sm:$0xff]
        %v3923 = vld [vmem:[#allocation14 + $0x58] sm:$0xff]
        %v3924 = vld [vmem:[#allocation14 + $0x60] sm:$0xff]
        %v3925 = vld [vmem:[#allocation14 + $0x68] sm:$0xff]
        %v3926 = vld [vmem:[#allocation14 + $0x70] sm:$0xff]
        %v3927 = vld [vmem:[#allocation14 + $0x78] sm:$0xff]
        %v3928 = vld [vmem:[#allocation14 + $0x80] sm:$0xff]
        %v3929 = vld [vmem:[#allocation14 + $0x88] sm:$0xff]
        %v3930 = vld [vmem:[#allocation14 + $0x90] sm:$0xff]
        %v3931 = vld [vmem:[#allocation14 + $0x98] sm:$0xff]
        %v3932 = vld [vmem:[#allocation14 + $0xa0] sm:$0xff]
        %v3933 = vld [vmem:[#allocation14 + $0xa8] sm:$0xff]
        %v3934 = vld [vmem:[#allocation14 + $0xb0] sm:$0xff]
        %v3935 = vld [vmem:[#allocation14 + $0xb8] sm:$0xff]
        %v3936 = vld [vmem:[#allocation14 + $0xc0] sm:$0xff]
        %v3937 = vld [vmem:[#allocation14 + $0xc8] sm:$0xff]
        %v3938 = vld [vmem:[#allocation14 + $0xd0] sm:$0xff]
        %v3939 = vld [vmem:[#allocation14 + $0xd8] sm:$0xff]
        %v3940 = vld [vmem:[#allocation14 + $0xe0] sm:$0xff]
        %v3941 = vld [vmem:[#allocation14 + $0xe8] sm:$0xff]
        %v3942 = vld [vmem:[#allocation14 + $0xf0] sm:$0xff]
        %v3943 = vld [vmem:[#allocation14 + $0xf8] sm:$0xff]
        %v3976 = vunpack.c.l.b16 %v3912
        %v3977 = vunpack.c.h.b16 %v3912
        %v3978 = vunpack.c.l.b16 %v3913
        %v3979 = vunpack.c.h.b16 %v3913
        %v3980 = vunpack.c.l.b16 %v3914
        %v3981 = vunpack.c.h.b16 %v3914
        %v3982 = vunpack.c.l.b16 %v3915
        %v3983 = vunpack.c.h.b16 %v3915
        %v3984 = vunpack.c.l.b16 %v3916
        %v3985 = vunpack.c.h.b16 %v3916
        %v3986 = vunpack.c.l.b16 %v3917
        %v3987 = vunpack.c.h.b16 %v3917
        %v3988 = vunpack.c.l.b16 %v3918
        %v3989 = vunpack.c.h.b16 %v3918
        %v3990 = vunpack.c.l.b16 %v3919
        %v3991 = vunpack.c.h.b16 %v3919
        %v3992 = vunpack.c.l.b16 %v3920
        %v3993 = vunpack.c.h.b16 %v3920
        %v3994 = vunpack.c.l.b16 %v3921
        %v3995 = vunpack.c.h.b16 %v3921
        %v3996 = vunpack.c.l.b16 %v3922
        %v3997 = vunpack.c.h.b16 %v3922
        %v3998 = vunpack.c.l.b16 %v3923
        %v3999 = vunpack.c.h.b16 %v3923
        %v4000 = vunpack.c.l.b16 %v3924
        %v4001 = vunpack.c.h.b16 %v3924
        %v4002 = vunpack.c.l.b16 %v3925
        %v4003 = vunpack.c.h.b16 %v3925
        %v4004 = vunpack.c.l.b16 %v3926
        %v4005 = vunpack.c.h.b16 %v3926
        %v4006 = vunpack.c.l.b16 %v3927
        %v4007 = vunpack.c.h.b16 %v3927
        %v4008 = vunpack.c.l.b16 %v3928
        %v4009 = vunpack.c.h.b16 %v3928
        %v4010 = vunpack.c.l.b16 %v3929
        %v4011 = vunpack.c.h.b16 %v3929
        %v4012 = vunpack.c.l.b16 %v3930
        %v4013 = vunpack.c.h.b16 %v3930
        %v4014 = vunpack.c.l.b16 %v3931
        %v4015 = vunpack.c.h.b16 %v3931
        %v4016 = vunpack.c.l.b16 %v3932
        %v4017 = vunpack.c.h.b16 %v3932
        %v4018 = vunpack.c.l.b16 %v3933
        %v4019 = vunpack.c.h.b16 %v3933
        %v4020 = vunpack.c.l.b16 %v3934
        %v4021 = vunpack.c.h.b16 %v3934
        %v4022 = vunpack.c.l.b16 %v3935
        %v4023 = vunpack.c.h.b16 %v3935
        %v4024 = vunpack.c.l.b16 %v3936
        %v4025 = vunpack.c.h.b16 %v3936
        %v4026 = vunpack.c.l.b16 %v3937
        %v4027 = vunpack.c.h.b16 %v3937
        %v4028 = vunpack.c.l.b16 %v3938
        %v4029 = vunpack.c.h.b16 %v3938
        %v4030 = vunpack.c.l.b16 %v3939
        %v4031 = vunpack.c.h.b16 %v3939
        %v4032 = vunpack.c.l.b16 %v3940
        %v4033 = vunpack.c.h.b16 %v3940
        %v4034 = vunpack.c.l.b16 %v3941
        %v4035 = vunpack.c.h.b16 %v3941
        %v4036 = vunpack.c.l.b16 %v3942
        %v4037 = vunpack.c.h.b16 %v3942
        %v4038 = vunpack.c.l.b16 %v3943
        %v4039 = vunpack.c.h.b16 %v3943
        %v4040 = vpack.c.b16 %v3980, %v3976
        %v4041 = vpack.c.b16 %v3981, %v3977
        %v4042 = vpack.c.b16 %v3982, %v3978
        %v4043 = vpack.c.b16 %v3983, %v3979
        %v4044 = vpack.c.b16 %v3988, %v3984
        %v4045 = vpack.c.b16 %v3989, %v3985
        %v4046 = vpack.c.b16 %v3990, %v3986
        %v4047 = vpack.c.b16 %v3991, %v3987
        %v4048 = vpack.c.b16 %v3996, %v3992
        %v4049 = vpack.c.b16 %v3997, %v3993
        %v4050 = vpack.c.b16 %v3998, %v3994
        %v4051 = vpack.c.b16 %v3999, %v3995
        %v4052 = vpack.c.b16 %v4004, %v4000
        %v4053 = vpack.c.b16 %v4005, %v4001
        %v4054 = vpack.c.b16 %v4006, %v4002
        %v4055 = vpack.c.b16 %v4007, %v4003
        %v4056 = vpack.c.b16 %v4012, %v4008
        %v4057 = vpack.c.b16 %v4013, %v4009
        %v4058 = vpack.c.b16 %v4014, %v4010
        %v4059 = vpack.c.b16 %v4015, %v4011
        %v4060 = vpack.c.b16 %v4020, %v4016
        %v4061 = vpack.c.b16 %v4021, %v4017
        %v4062 = vpack.c.b16 %v4022, %v4018
        %v4063 = vpack.c.b16 %v4023, %v4019
        %v4064 = vpack.c.b16 %v4028, %v4024
        %v4065 = vpack.c.b16 %v4029, %v4025
        %v4066 = vpack.c.b16 %v4030, %v4026
        %v4067 = vpack.c.b16 %v4031, %v4027
        %v4068 = vpack.c.b16 %v4036, %v4032
        %v4069 = vpack.c.b16 %v4037, %v4033
        %v4070 = vpack.c.b16 %v4038, %v4034
        %v4071 = vpack.c.b16 %v4039, %v4035
        %4104 = vmatprep.subr.bf16.mxu0 %v4041
        %4105 = vmatpush1.bf16.msra.mxu0 %v4040
        %4106 = vmatprep.subr.bf16.mxu0 %v4045
        %4107 = vmatpush1.bf16.msra.mxu0 %v4044
        %4108 = vmatprep.subr.bf16.mxu0 %v4049
        %4109 = vmatpush1.bf16.msra.mxu0 %v4048
        %4110 = vmatprep.subr.bf16.mxu0 %v4053
        %4111 = vmatpush1.bf16.msra.mxu0 %v4052
        %4112 = vmatprep.subr.bf16.mxu0 %v4057
        %4113 = vmatpush1.bf16.msra.mxu0 %v4056
        %4114 = vmatprep.subr.bf16.mxu0 %v4061
        %4115 = vmatpush1.bf16.msra.mxu0 %v4060
        %4116 = vmatprep.subr.bf16.mxu0 %v4065
        %4117 = vmatpush1.bf16.msra.mxu0 %v4064
        %4118 = vmatprep.subr.bf16.mxu0 %v4069
        %4119 = vmatpush1.bf16.msra.mxu0 %v4068
        %4120 = vmatprep.subr.bf16.mxu0 0
        %4121 = vmatpush1.bf16.msra.mxu0 0
        %4122 = vmatprep.subr.bf16.mxu0 0
        %4123 = vmatpush1.bf16.msra.mxu0 0
        %4124 = vmatprep.subr.bf16.mxu0 0
        %4125 = vmatpush1.bf16.msra.mxu0 0
        %4126 = vmatprep.subr.bf16.mxu0 0
        %4127 = vmatpush1.bf16.msra.mxu0 0
        %4128 = vmatprep.subr.bf16.mxu0 0
        %4129 = vmatpush1.bf16.msra.mxu0 0
        %4130 = vmatprep.subr.bf16.mxu0 0
        %4131 = vmatpush1.bf16.msra.mxu0 0
        %4132 = vmatprep.subr.bf16.mxu0 0
        %4133 = vmatpush1.bf16.msra.mxu0 0
        %4134 = vmatprep.subr.bf16.mxu0 0
        %4135 = vmatpush1.bf16.msra.mxu0 0
        %4136 = vmatprep.mubr.bf16.mxu0 0
        %4137 = vmatmul.mubr.bf16.gmra.mrb[0].mxu0 %v3911
        %v4138 = vpop.f32.mrb[0].mxu0
        %v4139 = vadd.f32 0.0, %v4138
        %v4140 = vpop.f32.mrb[0].mxu0
        %v4141 = vadd.f32 0.0, %v4140
        %v4142 = vpop.f32.mrb[0].mxu0
        %v4143 = vpop.f32.mrb[0].mxu0
        %4144 = vdwg.mxu0
        %4145 = vmatprep.subr.bf16.mxu0 %v4043
        %4146 = vmatpush1.bf16.msra.mxu0 %v4042
        %4147 = vmatprep.subr.bf16.mxu0 %v4047
        %4148 = vmatpush1.bf16.msra.mxu0 %v4046
        %4149 = vmatprep.subr.bf16.mxu0 %v4051
        %4150 = vmatpush1.bf16.msra.mxu0 %v4050
        %4151 = vmatprep.subr.bf16.mxu0 %v4055
        %4152 = vmatpush1.bf16.msra.mxu0 %v4054
        %4153 = vmatprep.subr.bf16.mxu0 %v4059
        %4154 = vmatpush1.bf16.msra.mxu0 %v4058
        %4155 = vmatprep.subr.bf16.mxu0 %v4063
        %4156 = vmatpush1.bf16.msra.mxu0 %v4062
        %4157 = vmatprep.subr.bf16.mxu0 %v4067
        %4158 = vmatpush1.bf16.msra.mxu0 %v4066
        %4159 = vmatprep.subr.bf16.mxu0 %v4071
        %4160 = vmatpush1.bf16.msra.mxu0 %v4070
        %4161 = vmatprep.subr.bf16.mxu0 0
        %4162 = vmatpush1.bf16.msra.mxu0 0
        %4163 = vmatprep.subr.bf16.mxu0 0
        %4164 = vmatpush1.bf16.msra.mxu0 0
        %4165 = vmatprep.subr.bf16.mxu0 0
        %4166 = vmatpush1.bf16.msra.mxu0 0
        %4167 = vmatprep.subr.bf16.mxu0 0
        %4168 = vmatpush1.bf16.msra.mxu0 0
        %4169 = vmatprep.subr.bf16.mxu0 0
        %4170 = vmatpush1.bf16.msra.mxu0 0
        %4171 = vmatprep.subr.bf16.mxu0 0
        %4172 = vmatpush1.bf16.msra.mxu0 0
        %4173 = vmatprep.subr.bf16.mxu0 0
        %4174 = vmatpush1.bf16.msra.mxu0 0
        %4175 = vmatprep.subr.bf16.mxu0 0
        %4176 = vmatpush1.bf16.msra.mxu0 0
        %4177 = vmatprep.mubr.bf16.mxu0 0
        %4178 = vmatmul.mubr.bf16.gmra.mrb[0].mxu0 %v3911
        %v4179 = vpop.f32.mrb[0].mxu0
        %v4180 = vadd.f32 0.0, %v4179
        %v4181 = vpop.f32.mrb[0].mxu0
        %v4182 = vadd.f32 0.0, %v4181
        %v4183 = vpop.f32.mrb[0].mxu0
        %v4184 = vpop.f32.mrb[0].mxu0
        %4185 = vdwg.mxu0
        %v4186 = vadd.f32 %v3907, %v4139
        %v4187 = vadd.f32 %v3908, %v4141
        %v4188 = vadd.f32 %v3909, %v4180
        %v4189 = vadd.f32 %v3910, %v4182
        %v4190 = vld [vmem:[#allocation16] sm:$0xf]
        %v4192 = vlaneseq
        %v4193 = vshrl.u32 %v4192, 7
        %v4194 = vsub.s32 0, %v4193
        %v4195 = vrot.slane %v4190, %v4194
        %v4196 = vlaneseq
        %v4197 = vshrl.u32 %v4196, 7
        %v4198 = vsub.s32 1, %v4197
        %v4199 = vrot.slane %v4190, %v4198
        %v4200 = vlaneseq
        %v4201 = vshrl.u32 %v4200, 7
        %v4202 = vsub.s32 2, %v4201
        %v4203 = vrot.slane %v4190, %v4202
        %v4204 = vlaneseq
        %v4205 = vshrl.u32 %v4204, 7
        %v4206 = vsub.s32 3, %v4205
        %v4207 = vrot.slane %v4190, %v4206
        %v4212 = vadd.f32 %v4186, %v4195
        %v4213 = vadd.f32 %v4187, %v4199
        %v4214 = vadd.f32 %v4188, %v4203
        %v4215 = vadd.f32 %v4189, %v4207
        %v4216 = vxor.u32 %v4212, 2147483648
        %v4217 = vmul.f32 %v4216, 1.442695
        %v4218 = vpow.pop %v4217
        %v4219 = vadd.f32 %v4218, 1.0
        %v4220 = vrcp.pop %v4219
        %v4221 = vmul.f32 1.0, %v4220
        %v4222 = vxor.u32 %v4213, 2147483648
        %v4223 = vmul.f32 %v4222, 1.442695
        %v4224 = vpow.pop %v4223
        %v4225 = vadd.f32 %v4224, 1.0
        %v4226 = vrcp.pop %v4225
        %v4227 = vmul.f32 1.0, %v4226
        %v4228 = vtanh.pop %v4214
        %v4229 = vxor.u32 %v4215, 2147483648
        %v4230 = vmul.f32 %v4229, 1.442695
        %v4231 = vpow.pop %v4230
        %v4232 = vadd.f32 %v4231, 1.0
        %v4233 = vrcp.pop %v4232
        %v4234 = vmul.f32 1.0, %v4233
        %v4235 = vmul.f32 %v4227, %v3906
        %v4236 = vmul.f32 %v4221, %v4228
        %v4237 = vadd.f32 %v4235, %v4236
        %v4238 = vtanh.pop %v4237
        %v4239 = vmul.f32 %v4234, %v4238
        %v4240 = vpack.c.bf16 %v4239, %v4239
        %4241 = vst [vmem:[%s396] sm:$0xf] %v4240
        %v4242 = vld [vmem:[%s1147] sm:$0xff]
        %v4243 = vld [vmem:[%s1147 + $0x8] sm:$0xff]
        %v4244 = vld [vmem:[%s1147 + $0x10] sm:$0xff]
        %v4245 = vld [vmem:[%s1147 + $0x18] sm:$0xff]
        %v4246 = vld [vmem:[#allocation14] sm:$0xff]
        %v4247 = vld [vmem:[#allocation14 + $0x8] sm:$0xff]
        %v4248 = vld [vmem:[#allocation14 + $0x10] sm:$0xff]
        %v4249 = vld [vmem:[#allocation14 + $0x18] sm:$0xff]
        %v4250 = vld [vmem:[#allocation14 + $0x20] sm:$0xff]
        %v4251 = vld [vmem:[#allocation14 + $0x28] sm:$0xff]
        %v4252 = vld [vmem:[#allocation14 + $0x30] sm:$0xff]
        %v4253 = vld [vmem:[#allocation14 + $0x38] sm:$0xff]
        %v4254 = vld [vmem:[#allocation14 + $0x40] sm:$0xff]
        %v4255 = vld [vmem:[#allocation14 + $0x48] sm:$0xff]
        %v4256 = vld [vmem:[#allocation14 + $0x50] sm:$0xff]
        %v4257 = vld [vmem:[#allocation14 + $0x58] sm:$0xff]
        %v4258 = vld [vmem:[#allocation14 + $0x60] sm:$0xff]
        %v4259 = vld [vmem:[#allocation14 + $0x68] sm:$0xff]
        %v4260 = vld [vmem:[#allocation14 + $0x70] sm:$0xff]
        %v4261 = vld [vmem:[#allocation14 + $0x78] sm:$0xff]
        %v4262 = vld [vmem:[#allocation14 + $0x80] sm:$0xff]
        %v4263 = vld [vmem:[#allocation14 + $0x88] sm:$0xff]
        %v4264 = vld [vmem:[#allocation14 + $0x90] sm:$0xff]
        %v4265 = vld [vmem:[#allocation14 + $0x98] sm:$0xff]
        %v4266 = vld [vmem:[#allocation14 + $0xa0] sm:$0xff]
        %v4267 = vld [vmem:[#allocation14 + $0xa8] sm:$0xff]
        %v4268 = vld [vmem:[#allocation14 + $0xb0] sm:$0xff]
        %v4269 = vld [vmem:[#allocation14 + $0xb8] sm:$0xff]
        %v4270 = vld [vmem:[#allocation14 + $0xc0] sm:$0xff]
        %v4271 = vld [vmem:[#allocation14 + $0xc8] sm:$0xff]
        %v4272 = vld [vmem:[#allocation14 + $0xd0] sm:$0xff]
        %v4273 = vld [vmem:[#allocation14 + $0xd8] sm:$0xff]
        %v4274 = vld [vmem:[#allocation14 + $0xe0] sm:$0xff]
        %v4275 = vld [vmem:[#allocation14 + $0xe8] sm:$0xff]
        %v4276 = vld [vmem:[#allocation14 + $0xf0] sm:$0xff]
        %v4277 = vld [vmem:[#allocation14 + $0xf8] sm:$0xff]
        %v4310 = vunpack.c.l.b16 %v4246
        %v4311 = vunpack.c.h.b16 %v4246
        %v4312 = vunpack.c.l.b16 %v4247
        %v4313 = vunpack.c.h.b16 %v4247
        %v4314 = vunpack.c.l.b16 %v4248
        %v4315 = vunpack.c.h.b16 %v4248
        %v4316 = vunpack.c.l.b16 %v4249
        %v4317 = vunpack.c.h.b16 %v4249
        %v4318 = vunpack.c.l.b16 %v4250
        %v4319 = vunpack.c.h.b16 %v4250
        %v4320 = vunpack.c.l.b16 %v4251
        %v4321 = vunpack.c.h.b16 %v4251
        %v4322 = vunpack.c.l.b16 %v4252
        %v4323 = vunpack.c.h.b16 %v4252
        %v4324 = vunpack.c.l.b16 %v4253
        %v4325 = vunpack.c.h.b16 %v4253
        %v4326 = vunpack.c.l.b16 %v4254
        %v4327 = vunpack.c.h.b16 %v4254
        %v4328 = vunpack.c.l.b16 %v4255
        %v4329 = vunpack.c.h.b16 %v4255
        %v4330 = vunpack.c.l.b16 %v4256
        %v4331 = vunpack.c.h.b16 %v4256
        %v4332 = vunpack.c.l.b16 %v4257
        %v4333 = vunpack.c.h.b16 %v4257
        %v4334 = vunpack.c.l.b16 %v4258
        %v4335 = vunpack.c.h.b16 %v4258
        %v4336 = vunpack.c.l.b16 %v4259
        %v4337 = vunpack.c.h.b16 %v4259
        %v4338 = vunpack.c.l.b16 %v4260
        %v4339 = vunpack.c.h.b16 %v4260
        %v4340 = vunpack.c.l.b16 %v4261
        %v4341 = vunpack.c.h.b16 %v4261
        %v4342 = vunpack.c.l.b16 %v4262
        %v4343 = vunpack.c.h.b16 %v4262
        %v4344 = vunpack.c.l.b16 %v4263
        %v4345 = vunpack.c.h.b16 %v4263
        %v4346 = vunpack.c.l.b16 %v4264
        %v4347 = vunpack.c.h.b16 %v4264
        %v4348 = vunpack.c.l.b16 %v4265
        %v4349 = vunpack.c.h.b16 %v4265
        %v4350 = vunpack.c.l.b16 %v4266
        %v4351 = vunpack.c.h.b16 %v4266
        %v4352 = vunpack.c.l.b16 %v4267
        %v4353 = vunpack.c.h.b16 %v4267
        %v4354 = vunpack.c.l.b16 %v4268
        %v4355 = vunpack.c.h.b16 %v4268
        %v4356 = vunpack.c.l.b16 %v4269
        %v4357 = vunpack.c.h.b16 %v4269
        %v4358 = vunpack.c.l.b16 %v4270
        %v4359 = vunpack.c.h.b16 %v4270
        %v4360 = vunpack.c.l.b16 %v4271
        %v4361 = vunpack.c.h.b16 %v4271
        %v4362 = vunpack.c.l.b16 %v4272
        %v4363 = vunpack.c.h.b16 %v4272
        %v4364 = vunpack.c.l.b16 %v4273
        %v4365 = vunpack.c.h.b16 %v4273
        %v4366 = vunpack.c.l.b16 %v4274
        %v4367 = vunpack.c.h.b16 %v4274
        %v4368 = vunpack.c.l.b16 %v4275
        %v4369 = vunpack.c.h.b16 %v4275
        %v4370 = vunpack.c.l.b16 %v4276
        %v4371 = vunpack.c.h.b16 %v4276
        %v4372 = vunpack.c.l.b16 %v4277
        %v4373 = vunpack.c.h.b16 %v4277
        %v4374 = vpack.c.b16 %v4314, %v4310
        %v4375 = vpack.c.b16 %v4315, %v4311
        %v4376 = vpack.c.b16 %v4316, %v4312
        %v4377 = vpack.c.b16 %v4317, %v4313
        %v4378 = vpack.c.b16 %v4322, %v4318
        %v4379 = vpack.c.b16 %v4323, %v4319
        %v4380 = vpack.c.b16 %v4324, %v4320
        %v4381 = vpack.c.b16 %v4325, %v4321
        %v4382 = vpack.c.b16 %v4330, %v4326
        %v4383 = vpack.c.b16 %v4331, %v4327
        %v4384 = vpack.c.b16 %v4332, %v4328
        %v4385 = vpack.c.b16 %v4333, %v4329
        %v4386 = vpack.c.b16 %v4338, %v4334
        %v4387 = vpack.c.b16 %v4339, %v4335
        %v4388 = vpack.c.b16 %v4340, %v4336
        %v4389 = vpack.c.b16 %v4341, %v4337
        %v4390 = vpack.c.b16 %v4346, %v4342
        %v4391 = vpack.c.b16 %v4347, %v4343
        %v4392 = vpack.c.b16 %v4348, %v4344
        %v4393 = vpack.c.b16 %v4349, %v4345
        %v4394 = vpack.c.b16 %v4354, %v4350
        %v4395 = vpack.c.b16 %v4355, %v4351
        %v4396 = vpack.c.b16 %v4356, %v4352
        %v4397 = vpack.c.b16 %v4357, %v4353
        %v4398 = vpack.c.b16 %v4362, %v4358
        %v4399 = vpack.c.b16 %v4363, %v4359
        %v4400 = vpack.c.b16 %v4364, %v4360
        %v4401 = vpack.c.b16 %v4365, %v4361
        %v4402 = vpack.c.b16 %v4370, %v4366
        %v4403 = vpack.c.b16 %v4371, %v4367
        %v4404 = vpack.c.b16 %v4372, %v4368
        %v4405 = vpack.c.b16 %v4373, %v4369
        %4438 = vmatprep.subr.bf16.mxu0 %v4375
        %4439 = vmatpush1.bf16.msra.mxu0 %v4374
        %4440 = vmatprep.subr.bf16.mxu0 %v4379
        %4441 = vmatpush1.bf16.msra.mxu0 %v4378
        %4442 = vmatprep.subr.bf16.mxu0 %v4383
        %4443 = vmatpush1.bf16.msra.mxu0 %v4382
        %4444 = vmatprep.subr.bf16.mxu0 %v4387
        %4445 = vmatpush1.bf16.msra.mxu0 %v4386
        %4446 = vmatprep.subr.bf16.mxu0 %v4391
        %4447 = vmatpush1.bf16.msra.mxu0 %v4390
        %4448 = vmatprep.subr.bf16.mxu0 %v4395
        %4449 = vmatpush1.bf16.msra.mxu0 %v4394
        %4450 = vmatprep.subr.bf16.mxu0 %v4399
        %4451 = vmatpush1.bf16.msra.mxu0 %v4398
        %4452 = vmatprep.subr.bf16.mxu0 %v4403
        %4453 = vmatpush1.bf16.msra.mxu0 %v4402
        %4454 = vmatprep.subr.bf16.mxu0 0
        %4455 = vmatpush1.bf16.msra.mxu0 0
        %4456 = vmatprep.subr.bf16.mxu0 0
        %4457 = vmatpush1.bf16.msra.mxu0 0
        %4458 = vmatprep.subr.bf16.mxu0 0
        %4459 = vmatpush1.bf16.msra.mxu0 0
        %4460 = vmatprep.subr.bf16.mxu0 0
        %4461 = vmatpush1.bf16.msra.mxu0 0
        %4462 = vmatprep.subr.bf16.mxu0 0
        %4463 = vmatpush1.bf16.msra.mxu0 0
        %4464 = vmatprep.subr.bf16.mxu0 0
        %4465 = vmatpush1.bf16.msra.mxu0 0
        %4466 = vmatprep.subr.bf16.mxu0 0
        %4467 = vmatpush1.bf16.msra.mxu0 0
        %4468 = vmatprep.subr.bf16.mxu0 0
        %4469 = vmatpush1.bf16.msra.mxu0 0
        %4470 = vmatprep.mubr.bf16.mxu0 0
        %4471 = vmatmul.mubr.bf16.gmra.mrb[0].mxu0 %v4240
        %v4472 = vpop.f32.mrb[0].mxu0
        %v4473 = vadd.f32 0.0, %v4472
        %v4474 = vpop.f32.mrb[0].mxu0
        %v4475 = vadd.f32 0.0, %v4474
        %v4476 = vpop.f32.mrb[0].mxu0
        %v4477 = vpop.f32.mrb[0].mxu0
        %4478 = vdwg.mxu0
        %4479 = vmatprep.subr.bf16.mxu0 %v4377
        %4480 = vmatpush1.bf16.msra.mxu0 %v4376
        %4481 = vmatprep.subr.bf16.mxu0 %v4381
        %4482 = vmatpush1.bf16.msra.mxu0 %v4380
        %4483 = vmatprep.subr.bf16.mxu0 %v4385
        %4484 = vmatpush1.bf16.msra.mxu0 %v4384
        %4485 = vmatprep.subr.bf16.mxu0 %v4389
        %4486 = vmatpush1.bf16.msra.mxu0 %v4388
        %4487 = vmatprep.subr.bf16.mxu0 %v4393
        %4488 = vmatpush1.bf16.msra.mxu0 %v4392
        %4489 = vmatprep.subr.bf16.mxu0 %v4397
        %4490 = vmatpush1.bf16.msra.mxu0 %v4396
        %4491 = vmatprep.subr.bf16.mxu0 %v4401
        %4492 = vmatpush1.bf16.msra.mxu0 %v4400
        %4493 = vmatprep.subr.bf16.mxu0 %v4405
        %4494 = vmatpush1.bf16.msra.mxu0 %v4404
        %4495 = vmatprep.subr.bf16.mxu0 0
        %4496 = vmatpush1.bf16.msra.mxu0 0
        %4497 = vmatprep.subr.bf16.mxu0 0
        %4498 = vmatpush1.bf16.msra.mxu0 0
        %4499 = vmatprep.subr.bf16.mxu0 0
        %4500 = vmatpush1.bf16.msra.mxu0 0
        %4501 = vmatprep.subr.bf16.mxu0 0
        %4502 = vmatpush1.bf16.msra.mxu0 0
        %4503 = vmatprep.subr.bf16.mxu0 0
        %4504 = vmatpush1.bf16.msra.mxu0 0
        %4505 = vmatprep.subr.bf16.mxu0 0
        %4506 = vmatpush1.bf16.msra.mxu0 0
        %4507 = vmatprep.subr.bf16.mxu0 0
        %4508 = vmatpush1.bf16.msra.mxu0 0
        %4509 = vmatprep.subr.bf16.mxu0 0
        %4510 = vmatpush1.bf16.msra.mxu0 0
        %4511 = vmatprep.mubr.bf16.mxu0 0
        %4512 = vmatmul.mubr.bf16.gmra.mrb[0].mxu0 %v4240
        %v4513 = vpop.f32.mrb[0].mxu0
        %v4514 = vadd.f32 0.0, %v4513
        %v4515 = vpop.f32.mrb[0].mxu0
        %v4516 = vadd.f32 0.0, %v4515
        %v4517 = vpop.f32.mrb[0].mxu0
        %v4518 = vpop.f32.mrb[0].mxu0
        %4519 = vdwg.mxu0
        %v4520 = vadd.f32 %v4242, %v4473
        %v4521 = vadd.f32 %v4243, %v4475
        %v4522 = vadd.f32 %v4244, %v4514
        %v4523 = vadd.f32 %v4245, %v4516
        %v4524 = vld [vmem:[#allocation16] sm:$0xf]
        %v4526 = vlaneseq
        %v4527 = vshrl.u32 %v4526, 7
        %v4528 = vsub.s32 0, %v4527
        %v4529 = vrot.slane %v4524, %v4528
        %v4530 = vlaneseq
        %v4531 = vshrl.u32 %v4530, 7
        %v4532 = vsub.s32 1, %v4531
        %v4533 = vrot.slane %v4524, %v4532
        %v4534 = vlaneseq
        %v4535 = vshrl.u32 %v4534, 7
        %v4536 = vsub.s32 2, %v4535
        %v4537 = vrot.slane %v4524, %v4536
        %v4538 = vlaneseq
        %v4539 = vshrl.u32 %v4538, 7
        %v4540 = vsub.s32 3, %v4539
        %v4541 = vrot.slane %v4524, %v4540
        %v4546 = vadd.f32 %v4520, %v4529
        %v4547 = vadd.f32 %v4521, %v4533
        %v4548 = vadd.f32 %v4522, %v4537
        %v4549 = vadd.f32 %v4523, %v4541
        %v4550 = vxor.u32 %v4546, 2147483648
        %v4551 = vmul.f32 %v4550, 1.442695
        %v4552 = vpow.pop %v4551
        %v4553 = vadd.f32 %v4552, 1.0
        %v4554 = vrcp.pop %v4553
        %v4555 = vmul.f32 1.0, %v4554
        %v4556 = vxor.u32 %v4547, 2147483648
        %v4557 = vmul.f32 %v4556, 1.442695
        %v4558 = vpow.pop %v4557
        %v4559 = vadd.f32 %v4558, 1.0
        %v4560 = vrcp.pop %v4559
        %v4561 = vmul.f32 1.0, %v4560
        %v4562 = vtanh.pop %v4548
        %v4563 = vxor.u32 %v4549, 2147483648
        %v4564 = vmul.f32 %v4563, 1.442695
        %v4565 = vpow.pop %v4564
        %v4566 = vadd.f32 %v4565, 1.0
        %v4567 = vrcp.pop %v4566
        %v4568 = vmul.f32 1.0, %v4567
        %v4569 = vmul.f32 %v4561, %v4237
        %v4570 = vmul.f32 %v4555, %v4562
        %v4571 = vadd.f32 %v4569, %v4570
        %v4572 = vtanh.pop %v4571
        %v4573 = vmul.f32 %v4568, %v4572
        %v4574 = vpack.c.bf16 %v4573, %v4573
        %4575 = vst [vmem:[%s1481] sm:$0xf] %v4574
        %v4576 = vld [vmem:[%s1483] sm:$0xff]
        %v4577 = vld [vmem:[%s1483 + $0x8] sm:$0xff]
        %v4578 = vld [vmem:[%s1483 + $0x10] sm:$0xff]
        %v4579 = vld [vmem:[%s1483 + $0x18] sm:$0xff]
        %v4580 = vld [vmem:[#allocation14] sm:$0xff]
        %v4581 = vld [vmem:[#allocation14 + $0x8] sm:$0xff]
        %v4582 = vld [vmem:[#allocation14 + $0x10] sm:$0xff]
        %v4583 = vld [vmem:[#allocation14 + $0x18] sm:$0xff]
        %v4584 = vld [vmem:[#allocation14 + $0x20] sm:$0xff]
        %v4585 = vld [vmem:[#allocation14 + $0x28] sm:$0xff]
        %v4586 = vld [vmem:[#allocation14 + $0x30] sm:$0xff]
        %v4587 = vld [vmem:[#allocation14 + $0x38] sm:$0xff]
        %v4588 = vld [vmem:[#allocation14 + $0x40] sm:$0xff]
        %v4589 = vld [vmem:[#allocation14 + $0x48] sm:$0xff]
        %v4590 = vld [vmem:[#allocation14 + $0x50] sm:$0xff]
        %v4591 = vld [vmem:[#allocation14 + $0x58] sm:$0xff]
        %v4592 = vld [vmem:[#allocation14 + $0x60] sm:$0xff]
        %v4593 = vld [vmem:[#allocation14 + $0x68] sm:$0xff]
        %v4594 = vld [vmem:[#allocation14 + $0x70] sm:$0xff]
        %v4595 = vld [vmem:[#allocation14 + $0x78] sm:$0xff]
        %v4596 = vld [vmem:[#allocation14 + $0x80] sm:$0xff]
        %v4597 = vld [vmem:[#allocation14 + $0x88] sm:$0xff]
        %v4598 = vld [vmem:[#allocation14 + $0x90] sm:$0xff]
        %v4599 = vld [vmem:[#allocation14 + $0x98] sm:$0xff]
        %v4600 = vld [vmem:[#allocation14 + $0xa0] sm:$0xff]
        %v4601 = vld [vmem:[#allocation14 + $0xa8] sm:$0xff]
        %v4602 = vld [vmem:[#allocation14 + $0xb0] sm:$0xff]
        %v4603 = vld [vmem:[#allocation14 + $0xb8] sm:$0xff]
        %v4604 = vld [vmem:[#allocation14 + $0xc0] sm:$0xff]
        %v4605 = vld [vmem:[#allocation14 + $0xc8] sm:$0xff]
        %v4606 = vld [vmem:[#allocation14 + $0xd0] sm:$0xff]
        %v4607 = vld [vmem:[#allocation14 + $0xd8] sm:$0xff]
        %v4608 = vld [vmem:[#allocation14 + $0xe0] sm:$0xff]
        %v4609 = vld [vmem:[#allocation14 + $0xe8] sm:$0xff]
        %v4610 = vld [vmem:[#allocation14 + $0xf0] sm:$0xff]
        %v4611 = vld [vmem:[#allocation14 + $0xf8] sm:$0xff]
        %v4644 = vunpack.c.l.b16 %v4580
        %v4645 = vunpack.c.h.b16 %v4580
        %v4646 = vunpack.c.l.b16 %v4581
        %v4647 = vunpack.c.h.b16 %v4581
        %v4648 = vunpack.c.l.b16 %v4582
        %v4649 = vunpack.c.h.b16 %v4582
        %v4650 = vunpack.c.l.b16 %v4583
        %v4651 = vunpack.c.h.b16 %v4583
        %v4652 = vunpack.c.l.b16 %v4584
        %v4653 = vunpack.c.h.b16 %v4584
        %v4654 = vunpack.c.l.b16 %v4585
        %v4655 = vunpack.c.h.b16 %v4585
        %v4656 = vunpack.c.l.b16 %v4586
        %v4657 = vunpack.c.h.b16 %v4586
        %v4658 = vunpack.c.l.b16 %v4587
        %v4659 = vunpack.c.h.b16 %v4587
        %v4660 = vunpack.c.l.b16 %v4588
        %v4661 = vunpack.c.h.b16 %v4588
        %v4662 = vunpack.c.l.b16 %v4589
        %v4663 = vunpack.c.h.b16 %v4589
        %v4664 = vunpack.c.l.b16 %v4590
        %v4665 = vunpack.c.h.b16 %v4590
        %v4666 = vunpack.c.l.b16 %v4591
        %v4667 = vunpack.c.h.b16 %v4591
        %v4668 = vunpack.c.l.b16 %v4592
        %v4669 = vunpack.c.h.b16 %v4592
        %v4670 = vunpack.c.l.b16 %v4593
        %v4671 = vunpack.c.h.b16 %v4593
        %v4672 = vunpack.c.l.b16 %v4594
        %v4673 = vunpack.c.h.b16 %v4594
        %v4674 = vunpack.c.l.b16 %v4595
        %v4675 = vunpack.c.h.b16 %v4595
        %v4676 = vunpack.c.l.b16 %v4596
        %v4677 = vunpack.c.h.b16 %v4596
        %v4678 = vunpack.c.l.b16 %v4597
        %v4679 = vunpack.c.h.b16 %v4597
        %v4680 = vunpack.c.l.b16 %v4598
        %v4681 = vunpack.c.h.b16 %v4598
        %v4682 = vunpack.c.l.b16 %v4599
        %v4683 = vunpack.c.h.b16 %v4599
        %v4684 = vunpack.c.l.b16 %v4600
        %v4685 = vunpack.c.h.b16 %v4600
        %v4686 = vunpack.c.l.b16 %v4601
        %v4687 = vunpack.c.h.b16 %v4601
        %v4688 = vunpack.c.l.b16 %v4602
        %v4689 = vunpack.c.h.b16 %v4602
        %v4690 = vunpack.c.l.b16 %v4603
        %v4691 = vunpack.c.h.b16 %v4603
        %v4692 = vunpack.c.l.b16 %v4604
        %v4693 = vunpack.c.h.b16 %v4604
        %v4694 = vunpack.c.l.b16 %v4605
        %v4695 = vunpack.c.h.b16 %v4605
        %v4696 = vunpack.c.l.b16 %v4606
        %v4697 = vunpack.c.h.b16 %v4606
        %v4698 = vunpack.c.l.b16 %v4607
        %v4699 = vunpack.c.h.b16 %v4607
        %v4700 = vunpack.c.l.b16 %v4608
        %v4701 = vunpack.c.h.b16 %v4608
        %v4702 = vunpack.c.l.b16 %v4609
        %v4703 = vunpack.c.h.b16 %v4609
        %v4704 = vunpack.c.l.b16 %v4610
        %v4705 = vunpack.c.h.b16 %v4610
        %v4706 = vunpack.c.l.b16 %v4611
        %v4707 = vunpack.c.h.b16 %v4611
        %v4708 = vpack.c.b16 %v4648, %v4644
        %v4709 = vpack.c.b16 %v4649, %v4645
        %v4710 = vpack.c.b16 %v4650, %v4646
        %v4711 = vpack.c.b16 %v4651, %v4647
        %v4712 = vpack.c.b16 %v4656, %v4652
        %v4713 = vpack.c.b16 %v4657, %v4653
        %v4714 = vpack.c.b16 %v4658, %v4654
        %v4715 = vpack.c.b16 %v4659, %v4655
        %v4716 = vpack.c.b16 %v4664, %v4660
        %v4717 = vpack.c.b16 %v4665, %v4661
        %v4718 = vpack.c.b16 %v4666, %v4662
        %v4719 = vpack.c.b16 %v4667, %v4663
        %v4720 = vpack.c.b16 %v4672, %v4668
        %v4721 = vpack.c.b16 %v4673, %v4669
        %v4722 = vpack.c.b16 %v4674, %v4670
        %v4723 = vpack.c.b16 %v4675, %v4671
        %v4724 = vpack.c.b16 %v4680, %v4676
        %v4725 = vpack.c.b16 %v4681, %v4677
        %v4726 = vpack.c.b16 %v4682, %v4678
        %v4727 = vpack.c.b16 %v4683, %v4679
        %v4728 = vpack.c.b16 %v4688, %v4684
        %v4729 = vpack.c.b16 %v4689, %v4685
        %v4730 = vpack.c.b16 %v4690, %v4686
        %v4731 = vpack.c.b16 %v4691, %v4687
        %v4732 = vpack.c.b16 %v4696, %v4692
        %v4733 = vpack.c.b16 %v4697, %v4693
        %v4734 = vpack.c.b16 %v4698, %v4694
        %v4735 = vpack.c.b16 %v4699, %v4695
        %v4736 = vpack.c.b16 %v4704, %v4700
        %v4737 = vpack.c.b16 %v4705, %v4701
        %v4738 = vpack.c.b16 %v4706, %v4702
        %v4739 = vpack.c.b16 %v4707, %v4703
        %4772 = vmatprep.subr.bf16.mxu0 %v4709
        %4773 = vmatpush1.bf16.msra.mxu0 %v4708
        %4774 = vmatprep.subr.bf16.mxu0 %v4713
        %4775 = vmatpush1.bf16.msra.mxu0 %v4712
        %4776 = vmatprep.subr.bf16.mxu0 %v4717
        %4777 = vmatpush1.bf16.msra.mxu0 %v4716
        %4778 = vmatprep.subr.bf16.mxu0 %v4721
        %4779 = vmatpush1.bf16.msra.mxu0 %v4720
        %4780 = vmatprep.subr.bf16.mxu0 %v4725
        %4781 = vmatpush1.bf16.msra.mxu0 %v4724
        %4782 = vmatprep.subr.bf16.mxu0 %v4729
        %4783 = vmatpush1.bf16.msra.mxu0 %v4728
        %4784 = vmatprep.subr.bf16.mxu0 %v4733
        %4785 = vmatpush1.bf16.msra.mxu0 %v4732
        %4786 = vmatprep.subr.bf16.mxu0 %v4737
        %4787 = vmatpush1.bf16.msra.mxu0 %v4736
        %4788 = vmatprep.subr.bf16.mxu0 0
        %4789 = vmatpush1.bf16.msra.mxu0 0
        %4790 = vmatprep.subr.bf16.mxu0 0
        %4791 = vmatpush1.bf16.msra.mxu0 0
        %4792 = vmatprep.subr.bf16.mxu0 0
        %4793 = vmatpush1.bf16.msra.mxu0 0
        %4794 = vmatprep.subr.bf16.mxu0 0
        %4795 = vmatpush1.bf16.msra.mxu0 0
        %4796 = vmatprep.subr.bf16.mxu0 0
        %4797 = vmatpush1.bf16.msra.mxu0 0
        %4798 = vmatprep.subr.bf16.mxu0 0
        %4799 = vmatpush1.bf16.msra.mxu0 0
        %4800 = vmatprep.subr.bf16.mxu0 0
        %4801 = vmatpush1.bf16.msra.mxu0 0
        %4802 = vmatprep.subr.bf16.mxu0 0
        %4803 = vmatpush1.bf16.msra.mxu0 0
        %4804 = vmatprep.mubr.bf16.mxu0 0
        %4805 = vmatmul.mubr.bf16.gmra.mrb[0].mxu0 %v4574
        %v4806 = vpop.f32.mrb[0].mxu0
        %v4807 = vadd.f32 0.0, %v4806
        %v4808 = vpop.f32.mrb[0].mxu0
        %v4809 = vadd.f32 0.0, %v4808
        %v4810 = vpop.f32.mrb[0].mxu0
        %v4811 = vpop.f32.mrb[0].mxu0
        %4812 = vdwg.mxu0
        %4813 = vmatprep.subr.bf16.mxu0 %v4711
        %4814 = vmatpush1.bf16.msra.mxu0 %v4710
        %4815 = vmatprep.subr.bf16.mxu0 %v4715
        %4816 = vmatpush1.bf16.msra.mxu0 %v4714
        %4817 = vmatprep.subr.bf16.mxu0 %v4719
        %4818 = vmatpush1.bf16.msra.mxu0 %v4718
        %4819 = vmatprep.subr.bf16.mxu0 %v4723
        %4820 = vmatpush1.bf16.msra.mxu0 %v4722
        %4821 = vmatprep.subr.bf16.mxu0 %v4727
        %4822 = vmatpush1.bf16.msra.mxu0 %v4726
        %4823 = vmatprep.subr.bf16.mxu0 %v4731
        %4824 = vmatpush1.bf16.msra.mxu0 %v4730
        %4825 = vmatprep.subr.bf16.mxu0 %v4735
        %4826 = vmatpush1.bf16.msra.mxu0 %v4734
        %4827 = vmatprep.subr.bf16.mxu0 %v4739
        %4828 = vmatpush1.bf16.msra.mxu0 %v4738
        %4829 = vmatprep.subr.bf16.mxu0 0
        %4830 = vmatpush1.bf16.msra.mxu0 0
        %4831 = vmatprep.subr.bf16.mxu0 0
        %4832 = vmatpush1.bf16.msra.mxu0 0
        %4833 = vmatprep.subr.bf16.mxu0 0
        %4834 = vmatpush1.bf16.msra.mxu0 0
        %4835 = vmatprep.subr.bf16.mxu0 0
        %4836 = vmatpush1.bf16.msra.mxu0 0
        %4837 = vmatprep.subr.bf16.mxu0 0
        %4838 = vmatpush1.bf16.msra.mxu0 0
        %4839 = vmatprep.subr.bf16.mxu0 0
        %4840 = vmatpush1.bf16.msra.mxu0 0
        %4841 = vmatprep.subr.bf16.mxu0 0
        %4842 = vmatpush1.bf16.msra.mxu0 0
        %4843 = vmatprep.subr.bf16.mxu0 0
        %4844 = vmatpush1.bf16.msra.mxu0 0
        %4845 = vmatprep.mubr.bf16.mxu0 0
        %4846 = vmatmul.mubr.bf16.gmra.mrb[0].mxu0 %v4574
        %v4847 = vpop.f32.mrb[0].mxu0
        %v4848 = vadd.f32 0.0, %v4847
        %v4849 = vpop.f32.mrb[0].mxu0
        %v4850 = vadd.f32 0.0, %v4849
        %v4851 = vpop.f32.mrb[0].mxu0
        %v4852 = vpop.f32.mrb[0].mxu0
        %4853 = vdwg.mxu0
        %v4854 = vadd.f32 %v4576, %v4807
        %v4855 = vadd.f32 %v4577, %v4809
        %v4856 = vadd.f32 %v4578, %v4848
        %v4857 = vadd.f32 %v4579, %v4850
        %v4858 = vld [vmem:[#allocation16] sm:$0xf]
        %v4860 = vlaneseq
        %v4861 = vshrl.u32 %v4860, 7
        %v4862 = vsub.s32 0, %v4861
        %v4863 = vrot.slane %v4858, %v4862
        %v4864 = vlaneseq
        %v4865 = vshrl.u32 %v4864, 7
        %v4866 = vsub.s32 1, %v4865
        %v4867 = vrot.slane %v4858, %v4866
        %v4868 = vlaneseq
        %v4869 = vshrl.u32 %v4868, 7
        %v4870 = vsub.s32 2, %v4869
        %v4871 = vrot.slane %v4858, %v4870
        %v4872 = vlaneseq
        %v4873 = vshrl.u32 %v4872, 7
        %v4874 = vsub.s32 3, %v4873
        %v4875 = vrot.slane %v4858, %v4874
        %v4880 = vadd.f32 %v4854, %v4863
        %v4881 = vadd.f32 %v4855, %v4867
        %v4882 = vadd.f32 %v4856, %v4871
        %v4883 = vadd.f32 %v4857, %v4875
        %v4884 = vxor.u32 %v4880, 2147483648
        %v4885 = vmul.f32 %v4884, 1.442695
        %v4886 = vpow.pop %v4885
        %v4887 = vadd.f32 %v4886, 1.0
        %v4888 = vrcp.pop %v4887
        %v4889 = vmul.f32 1.0, %v4888
        %v4890 = vxor.u32 %v4881, 2147483648
        %v4891 = vmul.f32 %v4890, 1.442695
        %v4892 = vpow.pop %v4891
        %v4893 = vadd.f32 %v4892, 1.0
        %v4894 = vrcp.pop %v4893
        %v4895 = vmul.f32 1.0, %v4894
        %v4896 = vtanh.pop %v4882
        %v4897 = vxor.u32 %v4883, 2147483648
        %v4898 = vmul.f32 %v4897, 1.442695
        %v4899 = vpow.pop %v4898
        %v4900 = vadd.f32 %v4899, 1.0
        %v4901 = vrcp.pop %v4900
        %v4902 = vmul.f32 1.0, %v4901
        %v4903 = vmul.f32 %v4895, %v4571
        %v4904 = vmul.f32 %v4889, %v4896
        %v4905 = vadd.f32 %v4903, %v4904
        %v4906 = vtanh.pop %v4905
        %v4907 = vmul.f32 %v4902, %v4906
        %v4908 = vpack.c.bf16 %v4907, %v4907
        %4909 = vst [vmem:[%s1817] sm:$0xf] %v4908
        %v4910 = vld [vmem:[%s1819] sm:$0xff]
        %v4911 = vld [vmem:[%s1819 + $0x8] sm:$0xff]
        %v4912 = vld [vmem:[%s1819 + $0x10] sm:$0xff]
        %v4913 = vld [vmem:[%s1819 + $0x18] sm:$0xff]
        %v4914 = vld [vmem:[#allocation14] sm:$0xff]
        %v4915 = vld [vmem:[#allocation14 + $0x8] sm:$0xff]
        %v4916 = vld [vmem:[#allocation14 + $0x10] sm:$0xff]
        %v4917 = vld [vmem:[#allocation14 + $0x18] sm:$0xff]
        %v4918 = vld [vmem:[#allocation14 + $0x20] sm:$0xff]
        %v4919 = vld [vmem:[#allocation14 + $0x28] sm:$0xff]
        %v4920 = vld [vmem:[#allocation14 + $0x30] sm:$0xff]
        %v4921 = vld [vmem:[#allocation14 + $0x38] sm:$0xff]
        %v4922 = vld [vmem:[#allocation14 + $0x40] sm:$0xff]
        %v4923 = vld [vmem:[#allocation14 + $0x48] sm:$0xff]
        %v4924 = vld [vmem:[#allocation14 + $0x50] sm:$0xff]
        %v4925 = vld [vmem:[#allocation14 + $0x58] sm:$0xff]
        %v4926 = vld [vmem:[#allocation14 + $0x60] sm:$0xff]
        %v4927 = vld [vmem:[#allocation14 + $0x68] sm:$0xff]
        %v4928 = vld [vmem:[#allocation14 + $0x70] sm:$0xff]
        %v4929 = vld [vmem:[#allocation14 + $0x78] sm:$0xff]
        %v4930 = vld [vmem:[#allocation14 + $0x80] sm:$0xff]
        %v4931 = vld [vmem:[#allocation14 + $0x88] sm:$0xff]
        %v4932 = vld [vmem:[#allocation14 + $0x90] sm:$0xff]
        %v4933 = vld [vmem:[#allocation14 + $0x98] sm:$0xff]
        %v4934 = vld [vmem:[#allocation14 + $0xa0] sm:$0xff]
        %v4935 = vld [vmem:[#allocation14 + $0xa8] sm:$0xff]
        %v4936 = vld [vmem:[#allocation14 + $0xb0] sm:$0xff]
        %v4937 = vld [vmem:[#allocation14 + $0xb8] sm:$0xff]
        %v4938 = vld [vmem:[#allocation14 + $0xc0] sm:$0xff]
        %v4939 = vld [vmem:[#allocation14 + $0xc8] sm:$0xff]
        %v4940 = vld [vmem:[#allocation14 + $0xd0] sm:$0xff]
        %v4941 = vld [vmem:[#allocation14 + $0xd8] sm:$0xff]
        %v4942 = vld [vmem:[#allocation14 + $0xe0] sm:$0xff]
        %v4943 = vld [vmem:[#allocation14 + $0xe8] sm:$0xff]
        %v4944 = vld [vmem:[#allocation14 + $0xf0] sm:$0xff]
        %v4945 = vld [vmem:[#allocation14 + $0xf8] sm:$0xff]
        %v4978 = vunpack.c.l.b16 %v4914
        %v4979 = vunpack.c.h.b16 %v4914
        %v4980 = vunpack.c.l.b16 %v4915
        %v4981 = vunpack.c.h.b16 %v4915
        %v4982 = vunpack.c.l.b16 %v4916
        %v4983 = vunpack.c.h.b16 %v4916
        %v4984 = vunpack.c.l.b16 %v4917
        %v4985 = vunpack.c.h.b16 %v4917
        %v4986 = vunpack.c.l.b16 %v4918
        %v4987 = vunpack.c.h.b16 %v4918
        %v4988 = vunpack.c.l.b16 %v4919
        %v4989 = vunpack.c.h.b16 %v4919
        %v4990 = vunpack.c.l.b16 %v4920
        %v4991 = vunpack.c.h.b16 %v4920
        %v4992 = vunpack.c.l.b16 %v4921
        %v4993 = vunpack.c.h.b16 %v4921
        %v4994 = vunpack.c.l.b16 %v4922
        %v4995 = vunpack.c.h.b16 %v4922
        %v4996 = vunpack.c.l.b16 %v4923
        %v4997 = vunpack.c.h.b16 %v4923
        %v4998 = vunpack.c.l.b16 %v4924
        %v4999 = vunpack.c.h.b16 %v4924
        %v5000 = vunpack.c.l.b16 %v4925
        %v5001 = vunpack.c.h.b16 %v4925
        %v5002 = vunpack.c.l.b16 %v4926
        %v5003 = vunpack.c.h.b16 %v4926
        %v5004 = vunpack.c.l.b16 %v4927
        %v5005 = vunpack.c.h.b16 %v4927
        %v5006 = vunpack.c.l.b16 %v4928
        %v5007 = vunpack.c.h.b16 %v4928
        %v5008 = vunpack.c.l.b16 %v4929
        %v5009 = vunpack.c.h.b16 %v4929
        %v5010 = vunpack.c.l.b16 %v4930
        %v5011 = vunpack.c.h.b16 %v4930
        %v5012 = vunpack.c.l.b16 %v4931
        %v5013 = vunpack.c.h.b16 %v4931
        %v5014 = vunpack.c.l.b16 %v4932
        %v5015 = vunpack.c.h.b16 %v4932
        %v5016 = vunpack.c.l.b16 %v4933
        %v5017 = vunpack.c.h.b16 %v4933
        %v5018 = vunpack.c.l.b16 %v4934
        %v5019 = vunpack.c.h.b16 %v4934
        %v5020 = vunpack.c.l.b16 %v4935
        %v5021 = vunpack.c.h.b16 %v4935
        %v5022 = vunpack.c.l.b16 %v4936
        %v5023 = vunpack.c.h.b16 %v4936
        %v5024 = vunpack.c.l.b16 %v4937
        %v5025 = vunpack.c.h.b16 %v4937
        %v5026 = vunpack.c.l.b16 %v4938
        %v5027 = vunpack.c.h.b16 %v4938
        %v5028 = vunpack.c.l.b16 %v4939
        %v5029 = vunpack.c.h.b16 %v4939
        %v5030 = vunpack.c.l.b16 %v4940
        %v5031 = vunpack.c.h.b16 %v4940
        %v5032 = vunpack.c.l.b16 %v4941
        %v5033 = vunpack.c.h.b16 %v4941
        %v5034 = vunpack.c.l.b16 %v4942
        %v5035 = vunpack.c.h.b16 %v4942
        %v5036 = vunpack.c.l.b16 %v4943
        %v5037 = vunpack.c.h.b16 %v4943
        %v5038 = vunpack.c.l.b16 %v4944
        %v5039 = vunpack.c.h.b16 %v4944
        %v5040 = vunpack.c.l.b16 %v4945
        %v5041 = vunpack.c.h.b16 %v4945
        %v5042 = vpack.c.b16 %v4982, %v4978
        %v5043 = vpack.c.b16 %v4983, %v4979
        %v5044 = vpack.c.b16 %v4984, %v4980
        %v5045 = vpack.c.b16 %v4985, %v4981
        %v5046 = vpack.c.b16 %v4990, %v4986
        %v5047 = vpack.c.b16 %v4991, %v4987
        %v5048 = vpack.c.b16 %v4992, %v4988
        %v5049 = vpack.c.b16 %v4993, %v4989
        %v5050 = vpack.c.b16 %v4998, %v4994
        %v5051 = vpack.c.b16 %v4999, %v4995
        %v5052 = vpack.c.b16 %v5000, %v4996
        %v5053 = vpack.c.b16 %v5001, %v4997
        %v5054 = vpack.c.b16 %v5006, %v5002
        %v5055 = vpack.c.b16 %v5007, %v5003
        %v5056 = vpack.c.b16 %v5008, %v5004
        %v5057 = vpack.c.b16 %v5009, %v5005
        %v5058 = vpack.c.b16 %v5014, %v5010
        %v5059 = vpack.c.b16 %v5015, %v5011
        %v5060 = vpack.c.b16 %v5016, %v5012
        %v5061 = vpack.c.b16 %v5017, %v5013
        %v5062 = vpack.c.b16 %v5022, %v5018
        %v5063 = vpack.c.b16 %v5023, %v5019
        %v5064 = vpack.c.b16 %v5024, %v5020
        %v5065 = vpack.c.b16 %v5025, %v5021
        %v5066 = vpack.c.b16 %v5030, %v5026
        %v5067 = vpack.c.b16 %v5031, %v5027
        %v5068 = vpack.c.b16 %v5032, %v5028
        %v5069 = vpack.c.b16 %v5033, %v5029
        %v5070 = vpack.c.b16 %v5038, %v5034
        %v5071 = vpack.c.b16 %v5039, %v5035
        %v5072 = vpack.c.b16 %v5040, %v5036
        %v5073 = vpack.c.b16 %v5041, %v5037
        %5106 = vmatprep.subr.bf16.mxu0 %v5043
        %5107 = vmatpush1.bf16.msra.mxu0 %v5042
        %5108 = vmatprep.subr.bf16.mxu0 %v5047
        %5109 = vmatpush1.bf16.msra.mxu0 %v5046
        %5110 = vmatprep.subr.bf16.mxu0 %v5051
        %5111 = vmatpush1.bf16.msra.mxu0 %v5050
        %5112 = vmatprep.subr.bf16.mxu0 %v5055
        %5113 = vmatpush1.bf16.msra.mxu0 %v5054
        %5114 = vmatprep.subr.bf16.mxu0 %v5059
        %5115 = vmatpush1.bf16.msra.mxu0 %v5058
        %5116 = vmatprep.subr.bf16.mxu0 %v5063
        %5117 = vmatpush1.bf16.msra.mxu0 %v5062
        %5118 = vmatprep.subr.bf16.mxu0 %v5067
        %5119 = vmatpush1.bf16.msra.mxu0 %v5066
        %5120 = vmatprep.subr.bf16.mxu0 %v5071
        %5121 = vmatpush1.bf16.msra.mxu0 %v5070
        %5122 = vmatprep.subr.bf16.mxu0 0
        %5123 = vmatpush1.bf16.msra.mxu0 0
        %5124 = vmatprep.subr.bf16.mxu0 0
        %5125 = vmatpush1.bf16.msra.mxu0 0
        %5126 = vmatprep.subr.bf16.mxu0 0
        %5127 = vmatpush1.bf16.msra.mxu0 0
        %5128 = vmatprep.subr.bf16.mxu0 0
        %5129 = vmatpush1.bf16.msra.mxu0 0
        %5130 = vmatprep.subr.bf16.mxu0 0
        %5131 = vmatpush1.bf16.msra.mxu0 0
        %5132 = vmatprep.subr.bf16.mxu0 0
        %5133 = vmatpush1.bf16.msra.mxu0 0
        %5134 = vmatprep.subr.bf16.mxu0 0
        %5135 = vmatpush1.bf16.msra.mxu0 0
        %5136 = vmatprep.subr.bf16.mxu0 0
        %5137 = vmatpush1.bf16.msra.mxu0 0
        %5138 = vmatprep.mubr.bf16.mxu0 0
        %5139 = vmatmul.mubr.bf16.gmra.mrb[0].mxu0 %v4908
        %v5140 = vpop.f32.mrb[0].mxu0
        %v5141 = vadd.f32 0.0, %v5140
        %v5142 = vpop.f32.mrb[0].mxu0
        %v5143 = vadd.f32 0.0, %v5142
        %v5144 = vpop.f32.mrb[0].mxu0
        %v5145 = vpop.f32.mrb[0].mxu0
        %5146 = vdwg.mxu0
        %5147 = vmatprep.subr.bf16.mxu0 %v5045
        %5148 = vmatpush1.bf16.msra.mxu0 %v5044
        %5149 = vmatprep.subr.bf16.mxu0 %v5049
        %5150 = vmatpush1.bf16.msra.mxu0 %v5048
        %5151 = vmatprep.subr.bf16.mxu0 %v5053
        %5152 = vmatpush1.bf16.msra.mxu0 %v5052
        %5153 = vmatprep.subr.bf16.mxu0 %v5057
        %5154 = vmatpush1.bf16.msra.mxu0 %v5056
        %5155 = vmatprep.subr.bf16.mxu0 %v5061
        %5156 = vmatpush1.bf16.msra.mxu0 %v5060
        %5157 = vmatprep.subr.bf16.mxu0 %v5065
        %5158 = vmatpush1.bf16.msra.mxu0 %v5064
        %5159 = vmatprep.subr.bf16.mxu0 %v5069
        %5160 = vmatpush1.bf16.msra.mxu0 %v5068
        %5161 = vmatprep.subr.bf16.mxu0 %v5073
        %5162 = vmatpush1.bf16.msra.mxu0 %v5072
        %5163 = vmatprep.subr.bf16.mxu0 0
        %5164 = vmatpush1.bf16.msra.mxu0 0
        %5165 = vmatprep.subr.bf16.mxu0 0
        %5166 = vmatpush1.bf16.msra.mxu0 0
        %5167 = vmatprep.subr.bf16.mxu0 0
        %5168 = vmatpush1.bf16.msra.mxu0 0
        %5169 = vmatprep.subr.bf16.mxu0 0
        %5170 = vmatpush1.bf16.msra.mxu0 0
        %5171 = vmatprep.subr.bf16.mxu0 0
        %5172 = vmatpush1.bf16.msra.mxu0 0
        %5173 = vmatprep.subr.bf16.mxu0 0
        %5174 = vmatpush1.bf16.msra.mxu0 0
        %5175 = vmatprep.subr.bf16.mxu0 0
        %5176 = vmatpush1.bf16.msra.mxu0 0
        %5177 = vmatprep.subr.bf16.mxu0 0
        %5178 = vmatpush1.bf16.msra.mxu0 0
        %5179 = vmatprep.mubr.bf16.mxu0 0
        %5180 = vmatmul.mubr.bf16.gmra.mrb[0].mxu0 %v4908
        %v5181 = vpop.f32.mrb[0].mxu0
        %v5182 = vadd.f32 0.0, %v5181
        %v5183 = vpop.f32.mrb[0].mxu0
        %v5184 = vadd.f32 0.0, %v5183
        %v5185 = vpop.f32.mrb[0].mxu0
        %v5186 = vpop.f32.mrb[0].mxu0
        %5187 = vdwg.mxu0
        %v5188 = vadd.f32 %v4910, %v5141
        %v5189 = vadd.f32 %v4911, %v5143
        %v5190 = vadd.f32 %v4912, %v5182
        %v5191 = vadd.f32 %v4913, %v5184
        %v5192 = vld [vmem:[#allocation16] sm:$0xf]
        %v5194 = vlaneseq
        %v5195 = vshrl.u32 %v5194, 7
        %v5196 = vsub.s32 0, %v5195
        %v5197 = vrot.slane %v5192, %v5196
        %v5198 = vlaneseq
        %v5199 = vshrl.u32 %v5198, 7
        %v5200 = vsub.s32 1, %v5199
        %v5201 = vrot.slane %v5192, %v5200
        %v5202 = vlaneseq
        %v5203 = vshrl.u32 %v5202, 7
        %v5204 = vsub.s32 2, %v5203
        %v5205 = vrot.slane %v5192, %v5204
        %v5206 = vlaneseq
        %v5207 = vshrl.u32 %v5206, 7
        %v5208 = vsub.s32 3, %v5207
        %v5209 = vrot.slane %v5192, %v5208
        %v5214 = vadd.f32 %v5188, %v5197
        %v5215 = vadd.f32 %v5189, %v5201
        %v5216 = vadd.f32 %v5190, %v5205
        %v5217 = vadd.f32 %v5191, %v5209
        %v5218 = vxor.u32 %v5214, 2147483648
        %v5219 = vmul.f32 %v5218, 1.442695
        %v5220 = vpow.pop %v5219
        %v5221 = vadd.f32 %v5220, 1.0
        %v5222 = vrcp.pop %v5221
        %v5223 = vmul.f32 1.0, %v5222
        %v5224 = vxor.u32 %v5215, 2147483648
        %v5225 = vmul.f32 %v5224, 1.442695
        %v5226 = vpow.pop %v5225
        %v5227 = vadd.f32 %v5226, 1.0
        %v5228 = vrcp.pop %v5227
        %v5229 = vmul.f32 1.0, %v5228
        %v5230 = vtanh.pop %v5216
        %v5231 = vxor.u32 %v5217, 2147483648
        %v5232 = vmul.f32 %v5231, 1.442695
        %v5233 = vpow.pop %v5232
        %v5234 = vadd.f32 %v5233, 1.0
        %v5235 = vrcp.pop %v5234
        %v5236 = vmul.f32 1.0, %v5235
        %v5237 = vmul.f32 %v5229, %v4905
        %v5238 = vmul.f32 %v5223, %v5230
        %v5239 = vadd.f32 %v5237, %v5238
        %v5240 = vtanh.pop %v5239
        %v5241 = vmul.f32 %v5236, %v5240
        %v5242 = vpack.c.bf16 %v5241, %v5241
        %5243 = vst [vmem:[%s2153] sm:$0xf] %v5242
        %v5244 = vld [vmem:[%s2155] sm:$0xff]
        %v5245 = vld [vmem:[%s2155 + $0x8] sm:$0xff]
        %v5246 = vld [vmem:[%s2155 + $0x10] sm:$0xff]
        %v5247 = vld [vmem:[%s2155 + $0x18] sm:$0xff]
        %v5248 = vld [vmem:[#allocation14] sm:$0xff]
        %v5249 = vld [vmem:[#allocation14 + $0x8] sm:$0xff]
        %v5250 = vld [vmem:[#allocation14 + $0x10] sm:$0xff]
        %v5251 = vld [vmem:[#allocation14 + $0x18] sm:$0xff]
        %v5252 = vld [vmem:[#allocation14 + $0x20] sm:$0xff]
        %v5253 = vld [vmem:[#allocation14 + $0x28] sm:$0xff]
        %v5254 = vld [vmem:[#allocation14 + $0x30] sm:$0xff]
        %v5255 = vld [vmem:[#allocation14 + $0x38] sm:$0xff]
        %v5256 = vld [vmem:[#allocation14 + $0x40] sm:$0xff]
        %v5257 = vld [vmem:[#allocation14 + $0x48] sm:$0xff]
        %v5258 = vld [vmem:[#allocation14 + $0x50] sm:$0xff]
        %v5259 = vld [vmem:[#allocation14 + $0x58] sm:$0xff]
        %v5260 = vld [vmem:[#allocation14 + $0x60] sm:$0xff]
        %v5261 = vld [vmem:[#allocation14 + $0x68] sm:$0xff]
        %v5262 = vld [vmem:[#allocation14 + $0x70] sm:$0xff]
        %v5263 = vld [vmem:[#allocation14 + $0x78] sm:$0xff]
        %v5264 = vld [vmem:[#allocation14 + $0x80] sm:$0xff]
        %v5265 = vld [vmem:[#allocation14 + $0x88] sm:$0xff]
        %v5266 = vld [vmem:[#allocation14 + $0x90] sm:$0xff]
        %v5267 = vld [vmem:[#allocation14 + $0x98] sm:$0xff]
        %v5268 = vld [vmem:[#allocation14 + $0xa0] sm:$0xff]
        %v5269 = vld [vmem:[#allocation14 + $0xa8] sm:$0xff]
        %v5270 = vld [vmem:[#allocation14 + $0xb0] sm:$0xff]
        %v5271 = vld [vmem:[#allocation14 + $0xb8] sm:$0xff]
        %v5272 = vld [vmem:[#allocation14 + $0xc0] sm:$0xff]
        %v5273 = vld [vmem:[#allocation14 + $0xc8] sm:$0xff]
        %v5274 = vld [vmem:[#allocation14 + $0xd0] sm:$0xff]
        %v5275 = vld [vmem:[#allocation14 + $0xd8] sm:$0xff]
        %v5276 = vld [vmem:[#allocation14 + $0xe0] sm:$0xff]
        %v5277 = vld [vmem:[#allocation14 + $0xe8] sm:$0xff]
        %v5278 = vld [vmem:[#allocation14 + $0xf0] sm:$0xff]
        %v5279 = vld [vmem:[#allocation14 + $0xf8] sm:$0xff]
        %v5312 = vunpack.c.l.b16 %v5248
        %v5313 = vunpack.c.h.b16 %v5248
        %v5314 = vunpack.c.l.b16 %v5249
        %v5315 = vunpack.c.h.b16 %v5249
        %v5316 = vunpack.c.l.b16 %v5250
        %v5317 = vunpack.c.h.b16 %v5250
        %v5318 = vunpack.c.l.b16 %v5251
        %v5319 = vunpack.c.h.b16 %v5251
        %v5320 = vunpack.c.l.b16 %v5252
        %v5321 = vunpack.c.h.b16 %v5252
        %v5322 = vunpack.c.l.b16 %v5253
        %v5323 = vunpack.c.h.b16 %v5253
        %v5324 = vunpack.c.l.b16 %v5254
        %v5325 = vunpack.c.h.b16 %v5254
        %v5326 = vunpack.c.l.b16 %v5255
        %v5327 = vunpack.c.h.b16 %v5255
        %v5328 = vunpack.c.l.b16 %v5256
        %v5329 = vunpack.c.h.b16 %v5256
        %v5330 = vunpack.c.l.b16 %v5257
        %v5331 = vunpack.c.h.b16 %v5257
        %v5332 = vunpack.c.l.b16 %v5258
        %v5333 = vunpack.c.h.b16 %v5258
        %v5334 = vunpack.c.l.b16 %v5259
        %v5335 = vunpack.c.h.b16 %v5259
        %v5336 = vunpack.c.l.b16 %v5260
        %v5337 = vunpack.c.h.b16 %v5260
        %v5338 = vunpack.c.l.b16 %v5261
        %v5339 = vunpack.c.h.b16 %v5261
        %v5340 = vunpack.c.l.b16 %v5262
        %v5341 = vunpack.c.h.b16 %v5262
        %v5342 = vunpack.c.l.b16 %v5263
        %v5343 = vunpack.c.h.b16 %v5263
        %v5344 = vunpack.c.l.b16 %v5264
        %v5345 = vunpack.c.h.b16 %v5264
        %v5346 = vunpack.c.l.b16 %v5265
        %v5347 = vunpack.c.h.b16 %v5265
        %v5348 = vunpack.c.l.b16 %v5266
        %v5349 = vunpack.c.h.b16 %v5266
        %v5350 = vunpack.c.l.b16 %v5267
        %v5351 = vunpack.c.h.b16 %v5267
        %v5352 = vunpack.c.l.b16 %v5268
        %v5353 = vunpack.c.h.b16 %v5268
        %v5354 = vunpack.c.l.b16 %v5269
        %v5355 = vunpack.c.h.b16 %v5269
        %v5356 = vunpack.c.l.b16 %v5270
        %v5357 = vunpack.c.h.b16 %v5270
        %v5358 = vunpack.c.l.b16 %v5271
        %v5359 = vunpack.c.h.b16 %v5271
        %v5360 = vunpack.c.l.b16 %v5272
        %v5361 = vunpack.c.h.b16 %v5272
        %v5362 = vunpack.c.l.b16 %v5273
        %v5363 = vunpack.c.h.b16 %v5273
        %v5364 = vunpack.c.l.b16 %v5274
        %v5365 = vunpack.c.h.b16 %v5274
        %v5366 = vunpack.c.l.b16 %v5275
        %v5367 = vunpack.c.h.b16 %v5275
        %v5368 = vunpack.c.l.b16 %v5276
        %v5369 = vunpack.c.h.b16 %v5276
        %v5370 = vunpack.c.l.b16 %v5277
        %v5371 = vunpack.c.h.b16 %v5277
        %v5372 = vunpack.c.l.b16 %v5278
        %v5373 = vunpack.c.h.b16 %v5278
        %v5374 = vunpack.c.l.b16 %v5279
        %v5375 = vunpack.c.h.b16 %v5279
        %v5376 = vpack.c.b16 %v5316, %v5312
        %v5377 = vpack.c.b16 %v5317, %v5313
        %v5378 = vpack.c.b16 %v5318, %v5314
        %v5379 = vpack.c.b16 %v5319, %v5315
        %v5380 = vpack.c.b16 %v5324, %v5320
        %v5381 = vpack.c.b16 %v5325, %v5321
        %v5382 = vpack.c.b16 %v5326, %v5322
        %v5383 = vpack.c.b16 %v5327, %v5323
        %v5384 = vpack.c.b16 %v5332, %v5328
        %v5385 = vpack.c.b16 %v5333, %v5329
        %v5386 = vpack.c.b16 %v5334, %v5330
        %v5387 = vpack.c.b16 %v5335, %v5331
        %v5388 = vpack.c.b16 %v5340, %v5336
        %v5389 = vpack.c.b16 %v5341, %v5337
        %v5390 = vpack.c.b16 %v5342, %v5338
        %v5391 = vpack.c.b16 %v5343, %v5339
        %v5392 = vpack.c.b16 %v5348, %v5344
        %v5393 = vpack.c.b16 %v5349, %v5345
        %v5394 = vpack.c.b16 %v5350, %v5346
        %v5395 = vpack.c.b16 %v5351, %v5347
        %v5396 = vpack.c.b16 %v5356, %v5352
        %v5397 = vpack.c.b16 %v5357, %v5353
        %v5398 = vpack.c.b16 %v5358, %v5354
        %v5399 = vpack.c.b16 %v5359, %v5355
        %v5400 = vpack.c.b16 %v5364, %v5360
        %v5401 = vpack.c.b16 %v5365, %v5361
        %v5402 = vpack.c.b16 %v5366, %v5362
        %v5403 = vpack.c.b16 %v5367, %v5363
        %v5404 = vpack.c.b16 %v5372, %v5368
        %v5405 = vpack.c.b16 %v5373, %v5369
        %v5406 = vpack.c.b16 %v5374, %v5370
        %v5407 = vpack.c.b16 %v5375, %v5371
        %5440 = vmatprep.subr.bf16.mxu0 %v5377
        %5441 = vmatpush1.bf16.msra.mxu0 %v5376
        %5442 = vmatprep.subr.bf16.mxu0 %v5381
        %5443 = vmatpush1.bf16.msra.mxu0 %v5380
        %5444 = vmatprep.subr.bf16.mxu0 %v5385
        %5445 = vmatpush1.bf16.msra.mxu0 %v5384
        %5446 = vmatprep.subr.bf16.mxu0 %v5389
        %5447 = vmatpush1.bf16.msra.mxu0 %v5388
        %5448 = vmatprep.subr.bf16.mxu0 %v5393
        %5449 = vmatpush1.bf16.msra.mxu0 %v5392
        %5450 = vmatprep.subr.bf16.mxu0 %v5397
        %5451 = vmatpush1.bf16.msra.mxu0 %v5396
        %5452 = vmatprep.subr.bf16.mxu0 %v5401
        %5453 = vmatpush1.bf16.msra.mxu0 %v5400
        %5454 = vmatprep.subr.bf16.mxu0 %v5405
        %5455 = vmatpush1.bf16.msra.mxu0 %v5404
        %5456 = vmatprep.subr.bf16.mxu0 0
        %5457 = vmatpush1.bf16.msra.mxu0 0
        %5458 = vmatprep.subr.bf16.mxu0 0
        %5459 = vmatpush1.bf16.msra.mxu0 0
        %5460 = vmatprep.subr.bf16.mxu0 0
        %5461 = vmatpush1.bf16.msra.mxu0 0
        %5462 = vmatprep.subr.bf16.mxu0 0
        %5463 = vmatpush1.bf16.msra.mxu0 0
        %5464 = vmatprep.subr.bf16.mxu0 0
        %5465 = vmatpush1.bf16.msra.mxu0 0
        %5466 = vmatprep.subr.bf16.mxu0 0
        %5467 = vmatpush1.bf16.msra.mxu0 0
        %5468 = vmatprep.subr.bf16.mxu0 0
        %5469 = vmatpush1.bf16.msra.mxu0 0
        %5470 = vmatprep.subr.bf16.mxu0 0
        %5471 = vmatpush1.bf16.msra.mxu0 0
        %5472 = vmatprep.mubr.bf16.mxu0 0
        %5473 = vmatmul.mubr.bf16.gmra.mrb[0].mxu0 %v5242
        %v5474 = vpop.f32.mrb[0].mxu0
        %v5475 = vadd.f32 0.0, %v5474
        %v5476 = vpop.f32.mrb[0].mxu0
        %v5477 = vadd.f32 0.0, %v5476
        %v5478 = vpop.f32.mrb[0].mxu0
        %v5479 = vpop.f32.mrb[0].mxu0
        %5480 = vdwg.mxu0
        %5481 = vmatprep.subr.bf16.mxu0 %v5379
        %5482 = vmatpush1.bf16.msra.mxu0 %v5378
        %5483 = vmatprep.subr.bf16.mxu0 %v5383
        %5484 = vmatpush1.bf16.msra.mxu0 %v5382
        %5485 = vmatprep.subr.bf16.mxu0 %v5387
        %5486 = vmatpush1.bf16.msra.mxu0 %v5386
        %5487 = vmatprep.subr.bf16.mxu0 %v5391
        %5488 = vmatpush1.bf16.msra.mxu0 %v5390
        %5489 = vmatprep.subr.bf16.mxu0 %v5395
        %5490 = vmatpush1.bf16.msra.mxu0 %v5394
        %5491 = vmatprep.subr.bf16.mxu0 %v5399
        %5492 = vmatpush1.bf16.msra.mxu0 %v5398
        %5493 = vmatprep.subr.bf16.mxu0 %v5403
        %5494 = vmatpush1.bf16.msra.mxu0 %v5402
        %5495 = vmatprep.subr.bf16.mxu0 %v5407
        %5496 = vmatpush1.bf16.msra.mxu0 %v5406
        %5497 = vmatprep.subr.bf16.mxu0 0
        %5498 = vmatpush1.bf16.msra.mxu0 0
        %5499 = vmatprep.subr.bf16.mxu0 0
        %5500 = vmatpush1.bf16.msra.mxu0 0
        %5501 = vmatprep.subr.bf16.mxu0 0
        %5502 = vmatpush1.bf16.msra.mxu0 0
        %5503 = vmatprep.subr.bf16.mxu0 0
        %5504 = vmatpush1.bf16.msra.mxu0 0
        %5505 = vmatprep.subr.bf16.mxu0 0
        %5506 = vmatpush1.bf16.msra.mxu0 0
        %5507 = vmatprep.subr.bf16.mxu0 0
        %5508 = vmatpush1.bf16.msra.mxu0 0
        %5509 = vmatprep.subr.bf16.mxu0 0
        %5510 = vmatpush1.bf16.msra.mxu0 0
        %5511 = vmatprep.subr.bf16.mxu0 0
        %5512 = vmatpush1.bf16.msra.mxu0 0
        %5513 = vmatprep.mubr.bf16.mxu0 0
        %5514 = vmatmul.mubr.bf16.gmra.mrb[0].mxu0 %v5242
        %v5515 = vpop.f32.mrb[0].mxu0
        %v5516 = vadd.f32 0.0, %v5515
        %v5517 = vpop.f32.mrb[0].mxu0
        %v5518 = vadd.f32 0.0, %v5517
        %v5519 = vpop.f32.mrb[0].mxu0
        %v5520 = vpop.f32.mrb[0].mxu0
        %5521 = vdwg.mxu0
        %v5522 = vadd.f32 %v5244, %v5475
        %v5523 = vadd.f32 %v5245, %v5477
        %v5524 = vadd.f32 %v5246, %v5516
        %v5525 = vadd.f32 %v5247, %v5518
        %v5526 = vld [vmem:[#allocation16] sm:$0xf]
        %v5528 = vlaneseq
        %v5529 = vshrl.u32 %v5528, 7
        %v5530 = vsub.s32 0, %v5529
        %v5531 = vrot.slane %v5526, %v5530
        %v5532 = vlaneseq
        %v5533 = vshrl.u32 %v5532, 7
        %v5534 = vsub.s32 1, %v5533
        %v5535 = vrot.slane %v5526, %v5534
        %v5536 = vlaneseq
        %v5537 = vshrl.u32 %v5536, 7
        %v5538 = vsub.s32 2, %v5537
        %v5539 = vrot.slane %v5526, %v5538
        %v5540 = vlaneseq
        %v5541 = vshrl.u32 %v5540, 7
        %v5542 = vsub.s32 3, %v5541
        %v5543 = vrot.slane %v5526, %v5542
        %v5548 = vadd.f32 %v5522, %v5531
        %v5549 = vadd.f32 %v5523, %v5535
        %v5550 = vadd.f32 %v5524, %v5539
        %v5551 = vadd.f32 %v5525, %v5543
        %v5552 = vxor.u32 %v5548, 2147483648
        %v5553 = vmul.f32 %v5552, 1.442695
        %v5554 = vpow.pop %v5553
        %v5555 = vadd.f32 %v5554, 1.0
        %v5556 = vrcp.pop %v5555
        %v5557 = vmul.f32 1.0, %v5556
        %v5558 = vxor.u32 %v5549, 2147483648
        %v5559 = vmul.f32 %v5558, 1.442695
        %v5560 = vpow.pop %v5559
        %v5561 = vadd.f32 %v5560, 1.0
        %v5562 = vrcp.pop %v5561
        %v5563 = vmul.f32 1.0, %v5562
        %v5564 = vtanh.pop %v5550
        %v5565 = vxor.u32 %v5551, 2147483648
        %v5566 = vmul.f32 %v5565, 1.442695
        %v5567 = vpow.pop %v5566
        %v5568 = vadd.f32 %v5567, 1.0
        %v5569 = vrcp.pop %v5568
        %v5570 = vmul.f32 1.0, %v5569
        %v5571 = vmul.f32 %v5563, %v5239
        %v5572 = vmul.f32 %v5557, %v5564
        %v5573 = vadd.f32 %v5571, %v5572
        %v5574 = vtanh.pop %v5573
        %v5575 = vmul.f32 %v5570, %v5574
        %v5576 = vpack.c.bf16 %v5575, %v5575
        %5577 = vst [vmem:[%s2489] sm:$0xf] %v5576
        %v5578 = vld [vmem:[%s2491] sm:$0xff]
        %v5579 = vld [vmem:[%s2491 + $0x8] sm:$0xff]
        %v5580 = vld [vmem:[%s2491 + $0x10] sm:$0xff]
        %v5581 = vld [vmem:[%s2491 + $0x18] sm:$0xff]
        %v5582 = vld [vmem:[#allocation14] sm:$0xff]
        %v5583 = vld [vmem:[#allocation14 + $0x8] sm:$0xff]
        %v5584 = vld [vmem:[#allocation14 + $0x10] sm:$0xff]
        %v5585 = vld [vmem:[#allocation14 + $0x18] sm:$0xff]
        %v5586 = vld [vmem:[#allocation14 + $0x20] sm:$0xff]
        %v5587 = vld [vmem:[#allocation14 + $0x28] sm:$0xff]
        %v5588 = vld [vmem:[#allocation14 + $0x30] sm:$0xff]
        %v5589 = vld [vmem:[#allocation14 + $0x38] sm:$0xff]
        %v5590 = vld [vmem:[#allocation14 + $0x40] sm:$0xff]
        %v5591 = vld [vmem:[#allocation14 + $0x48] sm:$0xff]
        %v5592 = vld [vmem:[#allocation14 + $0x50] sm:$0xff]
        %v5593 = vld [vmem:[#allocation14 + $0x58] sm:$0xff]
        %v5594 = vld [vmem:[#allocation14 + $0x60] sm:$0xff]
        %v5595 = vld [vmem:[#allocation14 + $0x68] sm:$0xff]
        %v5596 = vld [vmem:[#allocation14 + $0x70] sm:$0xff]
        %v5597 = vld [vmem:[#allocation14 + $0x78] sm:$0xff]
        %v5598 = vld [vmem:[#allocation14 + $0x80] sm:$0xff]
        %v5599 = vld [vmem:[#allocation14 + $0x88] sm:$0xff]
        %v5600 = vld [vmem:[#allocation14 + $0x90] sm:$0xff]
        %v5601 = vld [vmem:[#allocation14 + $0x98] sm:$0xff]
        %v5602 = vld [vmem:[#allocation14 + $0xa0] sm:$0xff]
        %v5603 = vld [vmem:[#allocation14 + $0xa8] sm:$0xff]
        %v5604 = vld [vmem:[#allocation14 + $0xb0] sm:$0xff]
        %v5605 = vld [vmem:[#allocation14 + $0xb8] sm:$0xff]
        %v5606 = vld [vmem:[#allocation14 + $0xc0] sm:$0xff]
        %v5607 = vld [vmem:[#allocation14 + $0xc8] sm:$0xff]
        %v5608 = vld [vmem:[#allocation14 + $0xd0] sm:$0xff]
        %v5609 = vld [vmem:[#allocation14 + $0xd8] sm:$0xff]
        %v5610 = vld [vmem:[#allocation14 + $0xe0] sm:$0xff]
        %v5611 = vld [vmem:[#allocation14 + $0xe8] sm:$0xff]
        %v5612 = vld [vmem:[#allocation14 + $0xf0] sm:$0xff]
        %v5613 = vld [vmem:[#allocation14 + $0xf8] sm:$0xff]
        %v5646 = vunpack.c.l.b16 %v5582
        %v5647 = vunpack.c.h.b16 %v5582
        %v5648 = vunpack.c.l.b16 %v5583
        %v5649 = vunpack.c.h.b16 %v5583
        %v5650 = vunpack.c.l.b16 %v5584
        %v5651 = vunpack.c.h.b16 %v5584
        %v5652 = vunpack.c.l.b16 %v5585
        %v5653 = vunpack.c.h.b16 %v5585
        %v5654 = vunpack.c.l.b16 %v5586
        %v5655 = vunpack.c.h.b16 %v5586
        %v5656 = vunpack.c.l.b16 %v5587
        %v5657 = vunpack.c.h.b16 %v5587
        %v5658 = vunpack.c.l.b16 %v5588
        %v5659 = vunpack.c.h.b16 %v5588
        %v5660 = vunpack.c.l.b16 %v5589
        %v5661 = vunpack.c.h.b16 %v5589
        %v5662 = vunpack.c.l.b16 %v5590
        %v5663 = vunpack.c.h.b16 %v5590
        %v5664 = vunpack.c.l.b16 %v5591
        %v5665 = vunpack.c.h.b16 %v5591
        %v5666 = vunpack.c.l.b16 %v5592
        %v5667 = vunpack.c.h.b16 %v5592
        %v5668 = vunpack.c.l.b16 %v5593
        %v5669 = vunpack.c.h.b16 %v5593
        %v5670 = vunpack.c.l.b16 %v5594
        %v5671 = vunpack.c.h.b16 %v5594
        %v5672 = vunpack.c.l.b16 %v5595
        %v5673 = vunpack.c.h.b16 %v5595
        %v5674 = vunpack.c.l.b16 %v5596
        %v5675 = vunpack.c.h.b16 %v5596
        %v5676 = vunpack.c.l.b16 %v5597
        %v5677 = vunpack.c.h.b16 %v5597
        %v5678 = vunpack.c.l.b16 %v5598
        %v5679 = vunpack.c.h.b16 %v5598
        %v5680 = vunpack.c.l.b16 %v5599
        %v5681 = vunpack.c.h.b16 %v5599
        %v5682 = vunpack.c.l.b16 %v5600
        %v5683 = vunpack.c.h.b16 %v5600
        %v5684 = vunpack.c.l.b16 %v5601
        %v5685 = vunpack.c.h.b16 %v5601
        %v5686 = vunpack.c.l.b16 %v5602
        %v5687 = vunpack.c.h.b16 %v5602
        %v5688 = vunpack.c.l.b16 %v5603
        %v5689 = vunpack.c.h.b16 %v5603
        %v5690 = vunpack.c.l.b16 %v5604
        %v5691 = vunpack.c.h.b16 %v5604
        %v5692 = vunpack.c.l.b16 %v5605
        %v5693 = vunpack.c.h.b16 %v5605
        %v5694 = vunpack.c.l.b16 %v5606
        %v5695 = vunpack.c.h.b16 %v5606
        %v5696 = vunpack.c.l.b16 %v5607
        %v5697 = vunpack.c.h.b16 %v5607
        %v5698 = vunpack.c.l.b16 %v5608
        %v5699 = vunpack.c.h.b16 %v5608
        %v5700 = vunpack.c.l.b16 %v5609
        %v5701 = vunpack.c.h.b16 %v5609
        %v5702 = vunpack.c.l.b16 %v5610
        %v5703 = vunpack.c.h.b16 %v5610
        %v5704 = vunpack.c.l.b16 %v5611
        %v5705 = vunpack.c.h.b16 %v5611
        %v5706 = vunpack.c.l.b16 %v5612
        %v5707 = vunpack.c.h.b16 %v5612
        %v5708 = vunpack.c.l.b16 %v5613
        %v5709 = vunpack.c.h.b16 %v5613
        %v5710 = vpack.c.b16 %v5650, %v5646
        %v5711 = vpack.c.b16 %v5651, %v5647
        %v5712 = vpack.c.b16 %v5652, %v5648
        %v5713 = vpack.c.b16 %v5653, %v5649
        %v5714 = vpack.c.b16 %v5658, %v5654
        %v5715 = vpack.c.b16 %v5659, %v5655
        %v5716 = vpack.c.b16 %v5660, %v5656
        %v5717 = vpack.c.b16 %v5661, %v5657
        %v5718 = vpack.c.b16 %v5666, %v5662
        %v5719 = vpack.c.b16 %v5667, %v5663
        %v5720 = vpack.c.b16 %v5668, %v5664
        %v5721 = vpack.c.b16 %v5669, %v5665
        %v5722 = vpack.c.b16 %v5674, %v5670
        %v5723 = vpack.c.b16 %v5675, %v5671
        %v5724 = vpack.c.b16 %v5676, %v5672
        %v5725 = vpack.c.b16 %v5677, %v5673
        %v5726 = vpack.c.b16 %v5682, %v5678
        %v5727 = vpack.c.b16 %v5683, %v5679
        %v5728 = vpack.c.b16 %v5684, %v5680
        %v5729 = vpack.c.b16 %v5685, %v5681
        %v5730 = vpack.c.b16 %v5690, %v5686
        %v5731 = vpack.c.b16 %v5691, %v5687
        %v5732 = vpack.c.b16 %v5692, %v5688
        %v5733 = vpack.c.b16 %v5693, %v5689
        %v5734 = vpack.c.b16 %v5698, %v5694
        %v5735 = vpack.c.b16 %v5699, %v5695
        %v5736 = vpack.c.b16 %v5700, %v5696
        %v5737 = vpack.c.b16 %v5701, %v5697
        %v5738 = vpack.c.b16 %v5706, %v5702
        %v5739 = vpack.c.b16 %v5707, %v5703
        %v5740 = vpack.c.b16 %v5708, %v5704
        %v5741 = vpack.c.b16 %v5709, %v5705
        %5774 = vmatprep.subr.bf16.mxu0 %v5711
        %5775 = vmatpush1.bf16.msra.mxu0 %v5710
        %5776 = vmatprep.subr.bf16.mxu0 %v5715
        %5777 = vmatpush1.bf16.msra.mxu0 %v5714
        %5778 = vmatprep.subr.bf16.mxu0 %v5719
        %5779 = vmatpush1.bf16.msra.mxu0 %v5718
        %5780 = vmatprep.subr.bf16.mxu0 %v5723
        %5781 = vmatpush1.bf16.msra.mxu0 %v5722
        %5782 = vmatprep.subr.bf16.mxu0 %v5727
        %5783 = vmatpush1.bf16.msra.mxu0 %v5726
        %5784 = vmatprep.subr.bf16.mxu0 %v5731
        %5785 = vmatpush1.bf16.msra.mxu0 %v5730
        %5786 = vmatprep.subr.bf16.mxu0 %v5735
        %5787 = vmatpush1.bf16.msra.mxu0 %v5734
        %5788 = vmatprep.subr.bf16.mxu0 %v5739
        %5789 = vmatpush1.bf16.msra.mxu0 %v5738
        %5790 = vmatprep.subr.bf16.mxu0 0
        %5791 = vmatpush1.bf16.msra.mxu0 0
        %5792 = vmatprep.subr.bf16.mxu0 0
        %5793 = vmatpush1.bf16.msra.mxu0 0
        %5794 = vmatprep.subr.bf16.mxu0 0
        %5795 = vmatpush1.bf16.msra.mxu0 0
        %5796 = vmatprep.subr.bf16.mxu0 0
        %5797 = vmatpush1.bf16.msra.mxu0 0
        %5798 = vmatprep.subr.bf16.mxu0 0
        %5799 = vmatpush1.bf16.msra.mxu0 0
        %5800 = vmatprep.subr.bf16.mxu0 0
        %5801 = vmatpush1.bf16.msra.mxu0 0
        %5802 = vmatprep.subr.bf16.mxu0 0
        %5803 = vmatpush1.bf16.msra.mxu0 0
        %5804 = vmatprep.subr.bf16.mxu0 0
        %5805 = vmatpush1.bf16.msra.mxu0 0
        %5806 = vmatprep.mubr.bf16.mxu0 0
        %5807 = vmatmul.mubr.bf16.gmra.mrb[0].mxu0 %v5576
        %v5808 = vpop.f32.mrb[0].mxu0
        %v5809 = vadd.f32 0.0, %v5808
        %v5810 = vpop.f32.mrb[0].mxu0
        %v5811 = vadd.f32 0.0, %v5810
        %v5812 = vpop.f32.mrb[0].mxu0
        %v5813 = vpop.f32.mrb[0].mxu0
        %5814 = vdwg.mxu0
        %5815 = vmatprep.subr.bf16.mxu0 %v5713
        %5816 = vmatpush1.bf16.msra.mxu0 %v5712
        %5817 = vmatprep.subr.bf16.mxu0 %v5717
        %5818 = vmatpush1.bf16.msra.mxu0 %v5716
        %5819 = vmatprep.subr.bf16.mxu0 %v5721
        %5820 = vmatpush1.bf16.msra.mxu0 %v5720
        %5821 = vmatprep.subr.bf16.mxu0 %v5725
        %5822 = vmatpush1.bf16.msra.mxu0 %v5724
        %5823 = vmatprep.subr.bf16.mxu0 %v5729
        %5824 = vmatpush1.bf16.msra.mxu0 %v5728
        %5825 = vmatprep.subr.bf16.mxu0 %v5733
        %5826 = vmatpush1.bf16.msra.mxu0 %v5732
        %5827 = vmatprep.subr.bf16.mxu0 %v5737
        %5828 = vmatpush1.bf16.msra.mxu0 %v5736
        %5829 = vmatprep.subr.bf16.mxu0 %v5741
        %5830 = vmatpush1.bf16.msra.mxu0 %v5740
        %5831 = vmatprep.subr.bf16.mxu0 0
        %5832 = vmatpush1.bf16.msra.mxu0 0
        %5833 = vmatprep.subr.bf16.mxu0 0
        %5834 = vmatpush1.bf16.msra.mxu0 0
        %5835 = vmatprep.subr.bf16.mxu0 0
        %5836 = vmatpush1.bf16.msra.mxu0 0
        %5837 = vmatprep.subr.bf16.mxu0 0
        %5838 = vmatpush1.bf16.msra.mxu0 0
        %5839 = vmatprep.subr.bf16.mxu0 0
        %5840 = vmatpush1.bf16.msra.mxu0 0
        %5841 = vmatprep.subr.bf16.mxu0 0
        %5842 = vmatpush1.bf16.msra.mxu0 0
        %5843 = vmatprep.subr.bf16.mxu0 0
        %5844 = vmatpush1.bf16.msra.mxu0 0
        %5845 = vmatprep.subr.bf16.mxu0 0
        %5846 = vmatpush1.bf16.msra.mxu0 0
        %5847 = vmatprep.mubr.bf16.mxu0 0
        %5848 = vmatmul.mubr.bf16.gmra.mrb[0].mxu0 %v5576
        %v5849 = vpop.f32.mrb[0].mxu0
        %v5850 = vadd.f32 0.0, %v5849
        %v5851 = vpop.f32.mrb[0].mxu0
        %v5852 = vadd.f32 0.0, %v5851
        %v5853 = vpop.f32.mrb[0].mxu0
        %v5854 = vpop.f32.mrb[0].mxu0
        %5855 = vdwg.mxu0
        %v5856 = vadd.f32 %v5578, %v5809
        %v5857 = vadd.f32 %v5579, %v5811
        %v5858 = vadd.f32 %v5580, %v5850
        %v5859 = vadd.f32 %v5581, %v5852
        %v5860 = vld [vmem:[#allocation16] sm:$0xf]
        %v5862 = vlaneseq
        %v5863 = vshrl.u32 %v5862, 7
        %v5864 = vsub.s32 0, %v5863
        %v5865 = vrot.slane %v5860, %v5864
        %v5866 = vlaneseq
        %v5867 = vshrl.u32 %v5866, 7
        %v5868 = vsub.s32 1, %v5867
        %v5869 = vrot.slane %v5860, %v5868
        %v5870 = vlaneseq
        %v5871 = vshrl.u32 %v5870, 7
        %v5872 = vsub.s32 2, %v5871
        %v5873 = vrot.slane %v5860, %v5872
        %v5874 = vlaneseq
        %v5875 = vshrl.u32 %v5874, 7
        %v5876 = vsub.s32 3, %v5875
        %v5877 = vrot.slane %v5860, %v5876
        %v5882 = vadd.f32 %v5856, %v5865
        %v5883 = vadd.f32 %v5857, %v5869
        %v5884 = vadd.f32 %v5858, %v5873
        %v5885 = vadd.f32 %v5859, %v5877
        %v5886 = vxor.u32 %v5882, 2147483648
        %v5887 = vmul.f32 %v5886, 1.442695
        %v5888 = vpow.pop %v5887
        %v5889 = vadd.f32 %v5888, 1.0
        %v5890 = vrcp.pop %v5889
        %v5891 = vmul.f32 1.0, %v5890
        %v5892 = vxor.u32 %v5883, 2147483648
        %v5893 = vmul.f32 %v5892, 1.442695
        %v5894 = vpow.pop %v5893
        %v5895 = vadd.f32 %v5894, 1.0
        %v5896 = vrcp.pop %v5895
        %v5897 = vmul.f32 1.0, %v5896
        %v5898 = vtanh.pop %v5884
        %v5899 = vxor.u32 %v5885, 2147483648
        %v5900 = vmul.f32 %v5899, 1.442695
        %v5901 = vpow.pop %v5900
        %v5902 = vadd.f32 %v5901, 1.0
        %v5903 = vrcp.pop %v5902
        %v5904 = vmul.f32 1.0, %v5903
        %v5905 = vmul.f32 %v5897, %v5573
        %v5906 = vmul.f32 %v5891, %v5898
        %v5907 = vadd.f32 %v5905, %v5906
        %v5908 = vtanh.pop %v5907
        %v5909 = vmul.f32 %v5904, %v5908
        %v5910 = vpack.c.bf16 %v5909, %v5909
        %5911 = vst [vmem:[%s2825] sm:$0xf] %v5910
        %v5912 = vld [vmem:[%s2827] sm:$0xff]
        %v5913 = vld [vmem:[%s2827 + $0x8] sm:$0xff]
        %v5914 = vld [vmem:[%s2827 + $0x10] sm:$0xff]
        %v5915 = vld [vmem:[%s2827 + $0x18] sm:$0xff]
        %v5916 = vld [vmem:[#allocation14] sm:$0xff]
        %v5917 = vld [vmem:[#allocation14 + $0x8] sm:$0xff]
        %v5918 = vld [vmem:[#allocation14 + $0x10] sm:$0xff]
        %v5919 = vld [vmem:[#allocation14 + $0x18] sm:$0xff]
        %v5920 = vld [vmem:[#allocation14 + $0x20] sm:$0xff]
        %v5921 = vld [vmem:[#allocation14 + $0x28] sm:$0xff]
        %v5922 = vld [vmem:[#allocation14 + $0x30] sm:$0xff]
        %v5923 = vld [vmem:[#allocation14 + $0x38] sm:$0xff]
        %v5924 = vld [vmem:[#allocation14 + $0x40] sm:$0xff]
        %v5925 = vld [vmem:[#allocation14 + $0x48] sm:$0xff]
        %v5926 = vld [vmem:[#allocation14 + $0x50] sm:$0xff]
        %v5927 = vld [vmem:[#allocation14 + $0x58] sm:$0xff]
        %v5928 = vld [vmem:[#allocation14 + $0x60] sm:$0xff]
        %v5929 = vld [vmem:[#allocation14 + $0x68] sm:$0xff]
        %v5930 = vld [vmem:[#allocation14 + $0x70] sm:$0xff]
        %v5931 = vld [vmem:[#allocation14 + $0x78] sm:$0xff]
        %v5932 = vld [vmem:[#allocation14 + $0x80] sm:$0xff]
        %v5933 = vld [vmem:[#allocation14 + $0x88] sm:$0xff]
        %v5934 = vld [vmem:[#allocation14 + $0x90] sm:$0xff]
        %v5935 = vld [vmem:[#allocation14 + $0x98] sm:$0xff]
        %v5936 = vld [vmem:[#allocation14 + $0xa0] sm:$0xff]
        %v5937 = vld [vmem:[#allocation14 + $0xa8] sm:$0xff]
        %v5938 = vld [vmem:[#allocation14 + $0xb0] sm:$0xff]
        %v5939 = vld [vmem:[#allocation14 + $0xb8] sm:$0xff]
        %v5940 = vld [vmem:[#allocation14 + $0xc0] sm:$0xff]
        %v5941 = vld [vmem:[#allocation14 + $0xc8] sm:$0xff]
        %v5942 = vld [vmem:[#allocation14 + $0xd0] sm:$0xff]
        %v5943 = vld [vmem:[#allocation14 + $0xd8] sm:$0xff]
        %v5944 = vld [vmem:[#allocation14 + $0xe0] sm:$0xff]
        %v5945 = vld [vmem:[#allocation14 + $0xe8] sm:$0xff]
        %v5946 = vld [vmem:[#allocation14 + $0xf0] sm:$0xff]
        %v5947 = vld [vmem:[#allocation14 + $0xf8] sm:$0xff]
        %v5980 = vunpack.c.l.b16 %v5916
        %v5981 = vunpack.c.h.b16 %v5916
        %v5982 = vunpack.c.l.b16 %v5917
        %v5983 = vunpack.c.h.b16 %v5917
        %v5984 = vunpack.c.l.b16 %v5918
        %v5985 = vunpack.c.h.b16 %v5918
        %v5986 = vunpack.c.l.b16 %v5919
        %v5987 = vunpack.c.h.b16 %v5919
        %v5988 = vunpack.c.l.b16 %v5920
        %v5989 = vunpack.c.h.b16 %v5920
        %v5990 = vunpack.c.l.b16 %v5921
        %v5991 = vunpack.c.h.b16 %v5921
        %v5992 = vunpack.c.l.b16 %v5922
        %v5993 = vunpack.c.h.b16 %v5922
        %v5994 = vunpack.c.l.b16 %v5923
        %v5995 = vunpack.c.h.b16 %v5923
        %v5996 = vunpack.c.l.b16 %v5924
        %v5997 = vunpack.c.h.b16 %v5924
        %v5998 = vunpack.c.l.b16 %v5925
        %v5999 = vunpack.c.h.b16 %v5925
        %v6000 = vunpack.c.l.b16 %v5926
        %v6001 = vunpack.c.h.b16 %v5926
        %v6002 = vunpack.c.l.b16 %v5927
        %v6003 = vunpack.c.h.b16 %v5927
        %v6004 = vunpack.c.l.b16 %v5928
        %v6005 = vunpack.c.h.b16 %v5928
        %v6006 = vunpack.c.l.b16 %v5929
        %v6007 = vunpack.c.h.b16 %v5929
        %v6008 = vunpack.c.l.b16 %v5930
        %v6009 = vunpack.c.h.b16 %v5930
        %v6010 = vunpack.c.l.b16 %v5931
        %v6011 = vunpack.c.h.b16 %v5931
        %v6012 = vunpack.c.l.b16 %v5932
        %v6013 = vunpack.c.h.b16 %v5932
        %v6014 = vunpack.c.l.b16 %v5933
        %v6015 = vunpack.c.h.b16 %v5933
        %v6016 = vunpack.c.l.b16 %v5934
        %v6017 = vunpack.c.h.b16 %v5934
        %v6018 = vunpack.c.l.b16 %v5935
        %v6019 = vunpack.c.h.b16 %v5935
        %v6020 = vunpack.c.l.b16 %v5936
        %v6021 = vunpack.c.h.b16 %v5936
        %v6022 = vunpack.c.l.b16 %v5937
        %v6023 = vunpack.c.h.b16 %v5937
        %v6024 = vunpack.c.l.b16 %v5938
        %v6025 = vunpack.c.h.b16 %v5938
        %v6026 = vunpack.c.l.b16 %v5939
        %v6027 = vunpack.c.h.b16 %v5939
        %v6028 = vunpack.c.l.b16 %v5940
        %v6029 = vunpack.c.h.b16 %v5940
        %v6030 = vunpack.c.l.b16 %v5941
        %v6031 = vunpack.c.h.b16 %v5941
        %v6032 = vunpack.c.l.b16 %v5942
        %v6033 = vunpack.c.h.b16 %v5942
        %v6034 = vunpack.c.l.b16 %v5943
        %v6035 = vunpack.c.h.b16 %v5943
        %v6036 = vunpack.c.l.b16 %v5944
        %v6037 = vunpack.c.h.b16 %v5944
        %v6038 = vunpack.c.l.b16 %v5945
        %v6039 = vunpack.c.h.b16 %v5945
        %v6040 = vunpack.c.l.b16 %v5946
        %v6041 = vunpack.c.h.b16 %v5946
        %v6042 = vunpack.c.l.b16 %v5947
        %v6043 = vunpack.c.h.b16 %v5947
        %v6044 = vpack.c.b16 %v5984, %v5980
        %v6045 = vpack.c.b16 %v5985, %v5981
        %v6046 = vpack.c.b16 %v5986, %v5982
        %v6047 = vpack.c.b16 %v5987, %v5983
        %v6048 = vpack.c.b16 %v5992, %v5988
        %v6049 = vpack.c.b16 %v5993, %v5989
        %v6050 = vpack.c.b16 %v5994, %v5990
        %v6051 = vpack.c.b16 %v5995, %v5991
        %v6052 = vpack.c.b16 %v6000, %v5996
        %v6053 = vpack.c.b16 %v6001, %v5997
        %v6054 = vpack.c.b16 %v6002, %v5998
        %v6055 = vpack.c.b16 %v6003, %v5999
        %v6056 = vpack.c.b16 %v6008, %v6004
        %v6057 = vpack.c.b16 %v6009, %v6005
        %v6058 = vpack.c.b16 %v6010, %v6006
        %v6059 = vpack.c.b16 %v6011, %v6007
        %v6060 = vpack.c.b16 %v6016, %v6012
        %v6061 = vpack.c.b16 %v6017, %v6013
        %v6062 = vpack.c.b16 %v6018, %v6014
        %v6063 = vpack.c.b16 %v6019, %v6015
        %v6064 = vpack.c.b16 %v6024, %v6020
        %v6065 = vpack.c.b16 %v6025, %v6021
        %v6066 = vpack.c.b16 %v6026, %v6022
        %v6067 = vpack.c.b16 %v6027, %v6023
        %v6068 = vpack.c.b16 %v6032, %v6028
        %v6069 = vpack.c.b16 %v6033, %v6029
        %v6070 = vpack.c.b16 %v6034, %v6030
        %v6071 = vpack.c.b16 %v6035, %v6031
        %v6072 = vpack.c.b16 %v6040, %v6036
        %v6073 = vpack.c.b16 %v6041, %v6037
        %v6074 = vpack.c.b16 %v6042, %v6038
        %v6075 = vpack.c.b16 %v6043, %v6039
        %6108 = vmatprep.subr.bf16.mxu0 %v6045
        %6109 = vmatpush1.bf16.msra.mxu0 %v6044
        %6110 = vmatprep.subr.bf16.mxu0 %v6049
        %6111 = vmatpush1.bf16.msra.mxu0 %v6048
        %6112 = vmatprep.subr.bf16.mxu0 %v6053
        %6113 = vmatpush1.bf16.msra.mxu0 %v6052
        %6114 = vmatprep.subr.bf16.mxu0 %v6057
        %6115 = vmatpush1.bf16.msra.mxu0 %v6056
        %6116 = vmatprep.subr.bf16.mxu0 %v6061
        %6117 = vmatpush1.bf16.msra.mxu0 %v6060
        %6118 = vmatprep.subr.bf16.mxu0 %v6065
        %6119 = vmatpush1.bf16.msra.mxu0 %v6064
        %6120 = vmatprep.subr.bf16.mxu0 %v6069
        %6121 = vmatpush1.bf16.msra.mxu0 %v6068
        %6122 = vmatprep.subr.bf16.mxu0 %v6073
        %6123 = vmatpush1.bf16.msra.mxu0 %v6072
        %6124 = vmatprep.subr.bf16.mxu0 0
        %6125 = vmatpush1.bf16.msra.mxu0 0
        %6126 = vmatprep.subr.bf16.mxu0 0
        %6127 = vmatpush1.bf16.msra.mxu0 0
        %6128 = vmatprep.subr.bf16.mxu0 0
        %6129 = vmatpush1.bf16.msra.mxu0 0
        %6130 = vmatprep.subr.bf16.mxu0 0
        %6131 = vmatpush1.bf16.msra.mxu0 0
        %6132 = vmatprep.subr.bf16.mxu0 0
        %6133 = vmatpush1.bf16.msra.mxu0 0
        %6134 = vmatprep.subr.bf16.mxu0 0
        %6135 = vmatpush1.bf16.msra.mxu0 0
        %6136 = vmatprep.subr.bf16.mxu0 0
        %6137 = vmatpush1.bf16.msra.mxu0 0
        %6138 = vmatprep.subr.bf16.mxu0 0
        %6139 = vmatpush1.bf16.msra.mxu0 0
        %6140 = vmatprep.mubr.bf16.mxu0 0
        %6141 = vmatmul.mubr.bf16.gmra.mrb[0].mxu0 %v5910
        %v6142 = vpop.f32.mrb[0].mxu0
        %v6143 = vadd.f32 0.0, %v6142
        %v6144 = vpop.f32.mrb[0].mxu0
        %v6145 = vadd.f32 0.0, %v6144
        %v6146 = vpop.f32.mrb[0].mxu0
        %v6147 = vpop.f32.mrb[0].mxu0
        %6148 = vdwg.mxu0
        %6149 = vmatprep.subr.bf16.mxu0 %v6047
        %6150 = vmatpush1.bf16.msra.mxu0 %v6046
        %6151 = vmatprep.subr.bf16.mxu0 %v6051
        %6152 = vmatpush1.bf16.msra.mxu0 %v6050
        %6153 = vmatprep.subr.bf16.mxu0 %v6055
        %6154 = vmatpush1.bf16.msra.mxu0 %v6054
        %6155 = vmatprep.subr.bf16.mxu0 %v6059
        %6156 = vmatpush1.bf16.msra.mxu0 %v6058
        %6157 = vmatprep.subr.bf16.mxu0 %v6063
        %6158 = vmatpush1.bf16.msra.mxu0 %v6062
        %6159 = vmatprep.subr.bf16.mxu0 %v6067
        %6160 = vmatpush1.bf16.msra.mxu0 %v6066
        %6161 = vmatprep.subr.bf16.mxu0 %v6071
        %6162 = vmatpush1.bf16.msra.mxu0 %v6070
        %6163 = vmatprep.subr.bf16.mxu0 %v6075
        %6164 = vmatpush1.bf16.msra.mxu0 %v6074
        %6165 = vmatprep.subr.bf16.mxu0 0
        %6166 = vmatpush1.bf16.msra.mxu0 0
        %6167 = vmatprep.subr.bf16.mxu0 0
        %6168 = vmatpush1.bf16.msra.mxu0 0
        %6169 = vmatprep.subr.bf16.mxu0 0
        %6170 = vmatpush1.bf16.msra.mxu0 0
        %6171 = vmatprep.subr.bf16.mxu0 0
        %6172 = vmatpush1.bf16.msra.mxu0 0
        %6173 = vmatprep.subr.bf16.mxu0 0
        %6174 = vmatpush1.bf16.msra.mxu0 0
        %6175 = vmatprep.subr.bf16.mxu0 0
        %6176 = vmatpush1.bf16.msra.mxu0 0
        %6177 = vmatprep.subr.bf16.mxu0 0
        %6178 = vmatpush1.bf16.msra.mxu0 0
        %6179 = vmatprep.subr.bf16.mxu0 0
        %6180 = vmatpush1.bf16.msra.mxu0 0
        %6181 = vmatprep.mubr.bf16.mxu0 0
        %6182 = vmatmul.mubr.bf16.gmra.mrb[0].mxu0 %v5910
        %v6183 = vpop.f32.mrb[0].mxu0
        %v6184 = vadd.f32 0.0, %v6183
        %v6185 = vpop.f32.mrb[0].mxu0
        %v6186 = vadd.f32 0.0, %v6185
        %v6187 = vpop.f32.mrb[0].mxu0
        %v6188 = vpop.f32.mrb[0].mxu0
        %6189 = vdwg.mxu0
        %v6190 = vadd.f32 %v5912, %v6143
        %v6191 = vadd.f32 %v5913, %v6145
        %v6192 = vadd.f32 %v5914, %v6184
        %v6193 = vadd.f32 %v5915, %v6186
        %v6194 = vld [vmem:[#allocation16] sm:$0xf]
        %v6196 = vlaneseq
        %v6197 = vshrl.u32 %v6196, 7
        %v6198 = vsub.s32 0, %v6197
        %v6199 = vrot.slane %v6194, %v6198
        %v6200 = vlaneseq
        %v6201 = vshrl.u32 %v6200, 7
        %v6202 = vsub.s32 1, %v6201
        %v6203 = vrot.slane %v6194, %v6202
        %v6204 = vlaneseq
        %v6205 = vshrl.u32 %v6204, 7
        %v6206 = vsub.s32 2, %v6205
        %v6207 = vrot.slane %v6194, %v6206
        %v6208 = vlaneseq
        %v6209 = vshrl.u32 %v6208, 7
        %v6210 = vsub.s32 3, %v6209
        %v6211 = vrot.slane %v6194, %v6210
        %v6216 = vadd.f32 %v6190, %v6199
        %v6217 = vadd.f32 %v6191, %v6203
        %v6218 = vadd.f32 %v6192, %v6207
        %v6219 = vadd.f32 %v6193, %v6211
        %v6220 = vxor.u32 %v6216, 2147483648
        %v6221 = vmul.f32 %v6220, 1.442695
        %v6222 = vpow.pop %v6221
        %v6223 = vadd.f32 %v6222, 1.0
        %v6224 = vrcp.pop %v6223
        %v6225 = vmul.f32 1.0, %v6224
        %v6226 = vxor.u32 %v6217, 2147483648
        %v6227 = vmul.f32 %v6226, 1.442695
        %v6228 = vpow.pop %v6227
        %v6229 = vadd.f32 %v6228, 1.0
        %v6230 = vrcp.pop %v6229
        %v6231 = vmul.f32 1.0, %v6230
        %v6232 = vtanh.pop %v6218
        %v6233 = vxor.u32 %v6219, 2147483648
        %v6234 = vmul.f32 %v6233, 1.442695
        %v6235 = vpow.pop %v6234
        %v6236 = vadd.f32 %v6235, 1.0
        %v6237 = vrcp.pop %v6236
        %v6238 = vmul.f32 1.0, %v6237
        %v6239 = vmul.f32 %v6231, %v5907
        %v6240 = vmul.f32 %v6225, %v6232
        %v6241 = vadd.f32 %v6239, %v6240
        %v6242 = vtanh.pop %v6241
        %v6243 = vmul.f32 %v6238, %v6242
        %v6244 = vpack.c.bf16 %v6243, %v6243
        %6245 = vst [vmem:[%s3161] sm:$0xf] %v6244
        %v6246 = vld [vmem:[%s3163] sm:$0xff]
        %v6247 = vld [vmem:[%s3163 + $0x8] sm:$0xff]
        %v6248 = vld [vmem:[%s3163 + $0x10] sm:$0xff]
        %v6249 = vld [vmem:[%s3163 + $0x18] sm:$0xff]
        %v6250 = vld [vmem:[#allocation14] sm:$0xff]
        %v6251 = vld [vmem:[#allocation14 + $0x8] sm:$0xff]
        %v6252 = vld [vmem:[#allocation14 + $0x10] sm:$0xff]
        %v6253 = vld [vmem:[#allocation14 + $0x18] sm:$0xff]
        %v6254 = vld [vmem:[#allocation14 + $0x20] sm:$0xff]
        %v6255 = vld [vmem:[#allocation14 + $0x28] sm:$0xff]
        %v6256 = vld [vmem:[#allocation14 + $0x30] sm:$0xff]
        %v6257 = vld [vmem:[#allocation14 + $0x38] sm:$0xff]
        %v6258 = vld [vmem:[#allocation14 + $0x40] sm:$0xff]
        %v6259 = vld [vmem:[#allocation14 + $0x48] sm:$0xff]
        %v6260 = vld [vmem:[#allocation14 + $0x50] sm:$0xff]
        %v6261 = vld [vmem:[#allocation14 + $0x58] sm:$0xff]
        %v6262 = vld [vmem:[#allocation14 + $0x60] sm:$0xff]
        %v6263 = vld [vmem:[#allocation14 + $0x68] sm:$0xff]
        %v6264 = vld [vmem:[#allocation14 + $0x70] sm:$0xff]
        %v6265 = vld [vmem:[#allocation14 + $0x78] sm:$0xff]
        %v6266 = vld [vmem:[#allocation14 + $0x80] sm:$0xff]
        %v6267 = vld [vmem:[#allocation14 + $0x88] sm:$0xff]
        %v6268 = vld [vmem:[#allocation14 + $0x90] sm:$0xff]
        %v6269 = vld [vmem:[#allocation14 + $0x98] sm:$0xff]
        %v6270 = vld [vmem:[#allocation14 + $0xa0] sm:$0xff]
        %v6271 = vld [vmem:[#allocation14 + $0xa8] sm:$0xff]
        %v6272 = vld [vmem:[#allocation14 + $0xb0] sm:$0xff]
        %v6273 = vld [vmem:[#allocation14 + $0xb8] sm:$0xff]
        %v6274 = vld [vmem:[#allocation14 + $0xc0] sm:$0xff]
        %v6275 = vld [vmem:[#allocation14 + $0xc8] sm:$0xff]
        %v6276 = vld [vmem:[#allocation14 + $0xd0] sm:$0xff]
        %v6277 = vld [vmem:[#allocation14 + $0xd8] sm:$0xff]
        %v6278 = vld [vmem:[#allocation14 + $0xe0] sm:$0xff]
        %v6279 = vld [vmem:[#allocation14 + $0xe8] sm:$0xff]
        %v6280 = vld [vmem:[#allocation14 + $0xf0] sm:$0xff]
        %v6281 = vld [vmem:[#allocation14 + $0xf8] sm:$0xff]
        %v6314 = vunpack.c.l.b16 %v6250
        %v6315 = vunpack.c.h.b16 %v6250
        %v6316 = vunpack.c.l.b16 %v6251
        %v6317 = vunpack.c.h.b16 %v6251
        %v6318 = vunpack.c.l.b16 %v6252
        %v6319 = vunpack.c.h.b16 %v6252
        %v6320 = vunpack.c.l.b16 %v6253
        %v6321 = vunpack.c.h.b16 %v6253
        %v6322 = vunpack.c.l.b16 %v6254
        %v6323 = vunpack.c.h.b16 %v6254
        %v6324 = vunpack.c.l.b16 %v6255
        %v6325 = vunpack.c.h.b16 %v6255
        %v6326 = vunpack.c.l.b16 %v6256
        %v6327 = vunpack.c.h.b16 %v6256
        %v6328 = vunpack.c.l.b16 %v6257
        %v6329 = vunpack.c.h.b16 %v6257
        %v6330 = vunpack.c.l.b16 %v6258
        %v6331 = vunpack.c.h.b16 %v6258
        %v6332 = vunpack.c.l.b16 %v6259
        %v6333 = vunpack.c.h.b16 %v6259
        %v6334 = vunpack.c.l.b16 %v6260
        %v6335 = vunpack.c.h.b16 %v6260
        %v6336 = vunpack.c.l.b16 %v6261
        %v6337 = vunpack.c.h.b16 %v6261
        %v6338 = vunpack.c.l.b16 %v6262
        %v6339 = vunpack.c.h.b16 %v6262
        %v6340 = vunpack.c.l.b16 %v6263
        %v6341 = vunpack.c.h.b16 %v6263
        %v6342 = vunpack.c.l.b16 %v6264
        %v6343 = vunpack.c.h.b16 %v6264
        %v6344 = vunpack.c.l.b16 %v6265
        %v6345 = vunpack.c.h.b16 %v6265
        %v6346 = vunpack.c.l.b16 %v6266
        %v6347 = vunpack.c.h.b16 %v6266
        %v6348 = vunpack.c.l.b16 %v6267
        %v6349 = vunpack.c.h.b16 %v6267
        %v6350 = vunpack.c.l.b16 %v6268
        %v6351 = vunpack.c.h.b16 %v6268
        %v6352 = vunpack.c.l.b16 %v6269
        %v6353 = vunpack.c.h.b16 %v6269
        %v6354 = vunpack.c.l.b16 %v6270
        %v6355 = vunpack.c.h.b16 %v6270
        %v6356 = vunpack.c.l.b16 %v6271
        %v6357 = vunpack.c.h.b16 %v6271
        %v6358 = vunpack.c.l.b16 %v6272
        %v6359 = vunpack.c.h.b16 %v6272
        %v6360 = vunpack.c.l.b16 %v6273
        %v6361 = vunpack.c.h.b16 %v6273
        %v6362 = vunpack.c.l.b16 %v6274
        %v6363 = vunpack.c.h.b16 %v6274
        %v6364 = vunpack.c.l.b16 %v6275
        %v6365 = vunpack.c.h.b16 %v6275
        %v6366 = vunpack.c.l.b16 %v6276
        %v6367 = vunpack.c.h.b16 %v6276
        %v6368 = vunpack.c.l.b16 %v6277
        %v6369 = vunpack.c.h.b16 %v6277
        %v6370 = vunpack.c.l.b16 %v6278
        %v6371 = vunpack.c.h.b16 %v6278
        %v6372 = vunpack.c.l.b16 %v6279
        %v6373 = vunpack.c.h.b16 %v6279
        %v6374 = vunpack.c.l.b16 %v6280
        %v6375 = vunpack.c.h.b16 %v6280
        %v6376 = vunpack.c.l.b16 %v6281
        %v6377 = vunpack.c.h.b16 %v6281
        %v6378 = vpack.c.b16 %v6318, %v6314
        %v6379 = vpack.c.b16 %v6319, %v6315
        %v6380 = vpack.c.b16 %v6320, %v6316
        %v6381 = vpack.c.b16 %v6321, %v6317
        %v6382 = vpack.c.b16 %v6326, %v6322
        %v6383 = vpack.c.b16 %v6327, %v6323
        %v6384 = vpack.c.b16 %v6328, %v6324
        %v6385 = vpack.c.b16 %v6329, %v6325
        %v6386 = vpack.c.b16 %v6334, %v6330
        %v6387 = vpack.c.b16 %v6335, %v6331
        %v6388 = vpack.c.b16 %v6336, %v6332
        %v6389 = vpack.c.b16 %v6337, %v6333
        %v6390 = vpack.c.b16 %v6342, %v6338
        %v6391 = vpack.c.b16 %v6343, %v6339
        %v6392 = vpack.c.b16 %v6344, %v6340
        %v6393 = vpack.c.b16 %v6345, %v6341
        %v6394 = vpack.c.b16 %v6350, %v6346
        %v6395 = vpack.c.b16 %v6351, %v6347
        %v6396 = vpack.c.b16 %v6352, %v6348
        %v6397 = vpack.c.b16 %v6353, %v6349
        %v6398 = vpack.c.b16 %v6358, %v6354
        %v6399 = vpack.c.b16 %v6359, %v6355
        %v6400 = vpack.c.b16 %v6360, %v6356
        %v6401 = vpack.c.b16 %v6361, %v6357
        %v6402 = vpack.c.b16 %v6366, %v6362
        %v6403 = vpack.c.b16 %v6367, %v6363
        %v6404 = vpack.c.b16 %v6368, %v6364
        %v6405 = vpack.c.b16 %v6369, %v6365
        %v6406 = vpack.c.b16 %v6374, %v6370
        %v6407 = vpack.c.b16 %v6375, %v6371
        %v6408 = vpack.c.b16 %v6376, %v6372
        %v6409 = vpack.c.b16 %v6377, %v6373
        %6442 = vmatprep.subr.bf16.mxu0 %v6379
        %6443 = vmatpush1.bf16.msra.mxu0 %v6378
        %6444 = vmatprep.subr.bf16.mxu0 %v6383
        %6445 = vmatpush1.bf16.msra.mxu0 %v6382
        %6446 = vmatprep.subr.bf16.mxu0 %v6387
        %6447 = vmatpush1.bf16.msra.mxu0 %v6386
        %6448 = vmatprep.subr.bf16.mxu0 %v6391
        %6449 = vmatpush1.bf16.msra.mxu0 %v6390
        %6450 = vmatprep.subr.bf16.mxu0 %v6395
        %6451 = vmatpush1.bf16.msra.mxu0 %v6394
        %6452 = vmatprep.subr.bf16.mxu0 %v6399
        %6453 = vmatpush1.bf16.msra.mxu0 %v6398
        %6454 = vmatprep.subr.bf16.mxu0 %v6403
        %6455 = vmatpush1.bf16.msra.mxu0 %v6402
        %6456 = vmatprep.subr.bf16.mxu0 %v6407
        %6457 = vmatpush1.bf16.msra.mxu0 %v6406
        %6458 = vmatprep.subr.bf16.mxu0 0
        %6459 = vmatpush1.bf16.msra.mxu0 0
        %6460 = vmatprep.subr.bf16.mxu0 0
        %6461 = vmatpush1.bf16.msra.mxu0 0
        %6462 = vmatprep.subr.bf16.mxu0 0
        %6463 = vmatpush1.bf16.msra.mxu0 0
        %6464 = vmatprep.subr.bf16.mxu0 0
        %6465 = vmatpush1.bf16.msra.mxu0 0
        %6466 = vmatprep.subr.bf16.mxu0 0
        %6467 = vmatpush1.bf16.msra.mxu0 0
        %6468 = vmatprep.subr.bf16.mxu0 0
        %6469 = vmatpush1.bf16.msra.mxu0 0
        %6470 = vmatprep.subr.bf16.mxu0 0
        %6471 = vmatpush1.bf16.msra.mxu0 0
        %6472 = vmatprep.subr.bf16.mxu0 0
        %6473 = vmatpush1.bf16.msra.mxu0 0
        %6474 = vmatprep.mubr.bf16.mxu0 0
        %6475 = vmatmul.mubr.bf16.gmra.mrb[0].mxu0 %v6244
        %v6476 = vpop.f32.mrb[0].mxu0
        %v6477 = vadd.f32 0.0, %v6476
        %v6478 = vpop.f32.mrb[0].mxu0
        %v6479 = vadd.f32 0.0, %v6478
        %v6480 = vpop.f32.mrb[0].mxu0
        %v6481 = vpop.f32.mrb[0].mxu0
        %6482 = vdwg.mxu0
        %6483 = vmatprep.subr.bf16.mxu0 %v6381
        %6484 = vmatpush1.bf16.msra.mxu0 %v6380
        %6485 = vmatprep.subr.bf16.mxu0 %v6385
        %6486 = vmatpush1.bf16.msra.mxu0 %v6384
        %6487 = vmatprep.subr.bf16.mxu0 %v6389
        %6488 = vmatpush1.bf16.msra.mxu0 %v6388
        %6489 = vmatprep.subr.bf16.mxu0 %v6393
        %6490 = vmatpush1.bf16.msra.mxu0 %v6392
        %6491 = vmatprep.subr.bf16.mxu0 %v6397
        %6492 = vmatpush1.bf16.msra.mxu0 %v6396
        %6493 = vmatprep.subr.bf16.mxu0 %v6401
        %6494 = vmatpush1.bf16.msra.mxu0 %v6400
        %6495 = vmatprep.subr.bf16.mxu0 %v6405
        %6496 = vmatpush1.bf16.msra.mxu0 %v6404
        %6497 = vmatprep.subr.bf16.mxu0 %v6409
        %6498 = vmatpush1.bf16.msra.mxu0 %v6408
        %6499 = vmatprep.subr.bf16.mxu0 0
        %6500 = vmatpush1.bf16.msra.mxu0 0
        %6501 = vmatprep.subr.bf16.mxu0 0
        %6502 = vmatpush1.bf16.msra.mxu0 0
        %6503 = vmatprep.subr.bf16.mxu0 0
        %6504 = vmatpush1.bf16.msra.mxu0 0
        %6505 = vmatprep.subr.bf16.mxu0 0
        %6506 = vmatpush1.bf16.msra.mxu0 0
        %6507 = vmatprep.subr.bf16.mxu0 0
        %6508 = vmatpush1.bf16.msra.mxu0 0
        %6509 = vmatprep.subr.bf16.mxu0 0
        %6510 = vmatpush1.bf16.msra.mxu0 0
        %6511 = vmatprep.subr.bf16.mxu0 0
        %6512 = vmatpush1.bf16.msra.mxu0 0
        %6513 = vmatprep.subr.bf16.mxu0 0
        %6514 = vmatpush1.bf16.msra.mxu0 0
        %6515 = vmatprep.mubr.bf16.mxu0 0
        %6516 = vmatmul.mubr.bf16.gmra.mrb[0].mxu0 %v6244
        %v6517 = vpop.f32.mrb[0].mxu0
        %v6518 = vadd.f32 0.0, %v6517
        %v6519 = vpop.f32.mrb[0].mxu0
        %v6520 = vadd.f32 0.0, %v6519
        %v6521 = vpop.f32.mrb[0].mxu0
        %v6522 = vpop.f32.mrb[0].mxu0
        %6523 = vdwg.mxu0
        %v6524 = vadd.f32 %v6246, %v6477
        %v6525 = vadd.f32 %v6247, %v6479
        %v6526 = vadd.f32 %v6248, %v6518
        %v6527 = vadd.f32 %v6249, %v6520
        %v6528 = vld [vmem:[#allocation16] sm:$0xf]
        %v6530 = vlaneseq
        %v6531 = vshrl.u32 %v6530, 7
        %v6532 = vsub.s32 0, %v6531
        %v6533 = vrot.slane %v6528, %v6532
        %v6534 = vlaneseq
        %v6535 = vshrl.u32 %v6534, 7
        %v6536 = vsub.s32 1, %v6535
        %v6537 = vrot.slane %v6528, %v6536
        %v6538 = vlaneseq
        %v6539 = vshrl.u32 %v6538, 7
        %v6540 = vsub.s32 2, %v6539
        %v6541 = vrot.slane %v6528, %v6540
        %v6542 = vlaneseq
        %v6543 = vshrl.u32 %v6542, 7
        %v6544 = vsub.s32 3, %v6543
        %v6545 = vrot.slane %v6528, %v6544
        %v6550 = vadd.f32 %v6524, %v6533
        %v6551 = vadd.f32 %v6525, %v6537
        %v6552 = vadd.f32 %v6526, %v6541
        %v6553 = vadd.f32 %v6527, %v6545
        %v6554 = vxor.u32 %v6550, 2147483648
        %v6555 = vmul.f32 %v6554, 1.442695
        %v6556 = vpow.pop %v6555
        %v6557 = vadd.f32 %v6556, 1.0
        %v6558 = vrcp.pop %v6557
        %v6559 = vmul.f32 1.0, %v6558
        %v6560 = vxor.u32 %v6551, 2147483648
        %v6561 = vmul.f32 %v6560, 1.442695
        %v6562 = vpow.pop %v6561
        %v6563 = vadd.f32 %v6562, 1.0
        %v6564 = vrcp.pop %v6563
        %v6565 = vmul.f32 1.0, %v6564
        %v6566 = vtanh.pop %v6552
        %v6567 = vxor.u32 %v6553, 2147483648
        %v6568 = vmul.f32 %v6567, 1.442695
        %v6569 = vpow.pop %v6568
        %v6570 = vadd.f32 %v6569, 1.0
        %v6571 = vrcp.pop %v6570
        %v6572 = vmul.f32 1.0, %v6571
        %v6573 = vmul.f32 %v6565, %v6241
        %v6574 = vmul.f32 %v6559, %v6566
        %v6575 = vadd.f32 %v6573, %v6574
        %v6576 = vtanh.pop %v6575
        %v6577 = vmul.f32 %v6572, %v6576
        %v6578 = vpack.c.bf16 %v6577, %v6577
        %6579 = vst [vmem:[%s3497] sm:$0xf] %v6578
        %6580 = vst [vmem:[%s3903] sm:$0xff] %v6577
        %6581 = vst [vmem:[%s3905] sm:$0xff] %v6575
        %s6582 = sand.u32 %s203, 1
        %s6583 = scalar_lea.sflag [#allocation7], %s6582
        %s6584 = sand.u32 %s203, 1
        %s6585 = smul.addr %s6584, 32
        %s6586 = scalar_lea.vmem [#allocation17], %s6585
        // Predicated region
        $region81: #{cnn_to_rnn_forward.4} parent=47 // pred_check
          %p6587 = pneg %p213
        $region82: #{cnn_to_rnn_forward.4} parent=47 // pred_check_branch
          %6589 = sbr.rel (%p6587) target = $region84
        $region83: #{cnn_to_rnn_forward.4} parent=47 // pred_region
          %s6590 = smul.u32 8, %s32
          %s6592 = ssub.s32 512, 512
          %6593 = vsyncadd %s6583, %s6592
          %s6594 = sadd.s32 %s31, %s6590
          %s6595 = smul.addr %s6594, 64
          %s6596 = scalar_lea.hbm %s7, %s6595
          %s6597 = sshll.u32 %s6586, 4
          %s6598 = int_to_ptr.vmem [resolvable:$true] %s6597
          %6603 = dma.vmem_to_hbm [thread:$0]  %s6598, 512, %s6596, %s6583, 64, 64, 4
        $region84: #{cnn_to_rnn_forward.4} parent=47 // pred_fallthru
          _
      $region48: #{cnn_to_rnn_forward.4} parent=5 // pred_fallthru
        _
      %p6604 = scmp.le.s32.totalorder 2, %s22
      // Predicated region
      $region85: #{cnn_to_rnn_forward.4} parent=5 // pred_check
        %p6605 = pneg %p6604
      $region86: #{cnn_to_rnn_forward.4} parent=5 // pred_check_branch
        %6607 = sbr.rel (%p6605) target = $region88
      $region87: #{cnn_to_rnn_forward.4} parent=5 // pred_region
        %s6608 = ssub.s32 %s22, 2
        // Predicated region
        $region89: #{cnn_to_rnn_forward.4} parent=87 // pred_check
          %p6609 = pneg %p219
        $region90: #{cnn_to_rnn_forward.4} parent=87 // pred_check_branch
          %6611 = sbr.rel (%p6609) target = $region92
        $region91: #{cnn_to_rnn_forward.4} parent=87 // pred_region
          %s6612 = sand.u32 %s204, 1
          %s6613 = scalar_lea.sflag [#allocation7], %s6612
          %s6614 = sand.u32 %s204, 1
          %s6615 = smul.addr %s6614, 32
          %s6616 = scalar_lea.vmem [#allocation17], %s6615
          %6617 = dma.done %s6613, 512
        $region92: #{cnn_to_rnn_forward.4} parent=87 // pred_fallthru
          _
      $region88: #{cnn_to_rnn_forward.4} parent=5 // pred_fallthru
        _
    $region6: #{cnn_to_rnn_forward.4} parent=1 // loop_footer
      %s26 = sadd.s32 1, %s22
    $region7: #{cnn_to_rnn_forward.4} parent=1 // loop_footer_branch
      %21 = sbr.rel target = $region3
    $region8: #{cnn_to_rnn_forward.4} parent=1 // loop_exit
      _
    %6618 = vsyncpa [#allocation6], 1
    %s6619 = scalar_lea.sflag [#allocation6], 1
    %6620 = vsyncpa %s6619, 1
    %6621 = vsyncpa [#allocation9], 1
    %6622 = vsyncpa [#allocation12], 1
    %6623 = vsyncpa [#allocation15], 1
    %6624 = vsyncpa [#allocation7], 1
    %s6625 = scalar_lea.sflag [#allocation7], 1
    %6626 = vsyncpa %s6625, 1

</llo_original>
